<compile_context>
chip_gen: v7x
topology: tpu7x:2x2x1
jax: 0.10.0
libtpu: 0.0.40
codegen_flags: <defaults>
</compile_context>

<pallas_src>
import jax
import jax.numpy as jnp
from jax.experimental import pallas as pl
from jax.experimental.pallas import tpu as pltpu


# ---------------------------------------------------------------------------
# Fused kernel: per grid step, handle block_b batch rows x all M candidates.
#   lang  = h_out( RNN_tanh(embs)[-1] )                          (bb, EP)
#   feat  = proj( avg_pool( relu( patches @ conv_w ) ) )         (M*bb, EP)
#   out[b, m] = <lang[b], feat[m*bb + b]>                        (bb, M)
# ---------------------------------------------------------------------------
def fused_receiver_kernel(emb_ref, w_ih_ref, w_hh_ref, b_rnn_ref, w_out_ref, b_out_ref,
                          patch_ref, wc_ref, bc_ref, wp_ref, bp_ref, out_ref):
    bb, _ = out_ref.shape
    s = emb_ref.shape[0]
    hlp = w_ih_ref.shape[0]
    m, rows_blk, ckk = patch_ref.shape          # (M, bb*HW, CKK)
    hw = rows_blk // bb
    fp = wc_ref.shape[1]

    # ---- language receiver: Elman RNN (tanh), input projection hoisted off the chain ----
    # TODO(synk): only rnn_type='RNN' (tanh) with num_layers=1 is implemented
    # (no GRU/LSTM/SRU cells, no stacked layers).
    emb2d = emb_ref[...].reshape(s * bb, hlp)                               # bf16
    xz = (jnp.dot(emb2d, w_ih_ref[...], preferred_element_type=jnp.float32)
          + b_rnn_ref[...])                                                 # (s*bb, HLP) f32
    h = jnp.zeros((bb, hlp), jnp.float32)
    for t in range(s):                          # S is small & static; only h@W_hh + tanh
        z = xz[t * bb:(t + 1) * bb, :] + jnp.dot(
            h.astype(w_hh_ref.dtype), w_hh_ref[...],
            preferred_element_type=jnp.float32)
        h = jnp.tanh(z)
    lang = (jnp.dot(h.astype(w_out_ref.dtype), w_out_ref[...],
                    preferred_element_type=jnp.float32)
            + b_out_ref[...])                                               # (bb, EP) f32

    # ---- CNN encoder for this block's M*bb images (conv-as-matmul on the MXU) -----------
    patches = patch_ref[...].reshape(m * rows_blk, ckk)                     # (M*bb*HW, CKK)
    conv = (jnp.dot(patches, wc_ref[...], preferred_element_type=jnp.float32)
            + bc_ref[...])                                                  # (M*bb*HW, FP) f32
    act = jnp.maximum(conv, 0.0)
    # global average pool: sublane reduction (1/HW folded into the proj weight in the glue)
    pooled = act.reshape(m * bb, hw, fp).sum(axis=1)                        # (M*bb, FP) f32
    feat = (jnp.dot(pooled.astype(wp_ref.dtype), wp_ref[...],
                    preferred_element_type=jnp.float32)
            + bp_ref[...])                                                  # (M*bb, EP) f32

    # ---- scoring: candidate-major feat -> aligned static slices, single (bb, M) store ---
    cols = []
    for mm in range(m):
        f_m = feat[mm * bb:(mm + 1) * bb, :]                                # (bb, EP)
        cols.append(jnp.sum(lang * f_m, axis=-1, keepdims=True))            # (bb, 1)
    out_ref[...] = jnp.concatenate(cols, axis=-1)                           # (bb, M)


# ---------------------------------------------------------------------------
# JAX glue
# ---------------------------------------------------------------------------
def _round_up(x, m):
    return (x + m - 1) // m * m


def _vmem_capacity_bytes():
    try:
        info = pltpu.get_tpu_info()
        cap = getattr(info, "vmem_capacity_bytes", None)
        if cap:
            return int(cap)
    except Exception:
        pass
    return 64 * 1024 * 1024            # conservative (v7x-sized) fallback


def _step_vmem_bytes(block_b, M, HW, S, HLP, FP, EP, itemsize):
    """Estimate resident VMEM per grid step (inputs double-buffered + f32 intermediates)."""
    n = block_b * M * HW
    patch_buf = n * 128 * itemsize                 # CKK=36 rows occupy full 128-lane tiles
    emb_buf = S * block_b * HLP * itemsize
    out_buf = block_b * 128 * 4
    act_f32 = n * FP * 4                           # conv / relu activation (f32)
    weights = (2 * HLP * HLP + HLP * EP + 2 * FP * EP) * itemsize + 64 * 1024
    return 2 * (patch_buf + emb_buf + out_buf) + 2 * act_f32 + 2 * weights


def _pick_block_b(B_pad, M, HW, S, HLP, FP, EP, itemsize, vmem_cap):
    """Largest multiple-of-8 divisor of B_pad whose per-step footprint fits the budget.
    On small-VMEM (v7x) chips keep >= 2 'parallel' grid steps so both TensorCores work."""
    small_vmem = vmem_cap <= 72 * 1024 * 1024
    budget = int(vmem_cap * (0.55 if small_vmem else 0.65))
    max_bb = B_pad
    if small_vmem and B_pad >= 16:
        max_bb = max(8, (B_pad // 2) // 8 * 8)
    best = 8
    for bb in range(8, B_pad + 1, 8):
        if B_pad % bb != 0 or bb > max_bb:
            continue
        if _step_vmem_bytes(bb, M, HW, S, HLP, FP, EP, itemsize) <= budget:
            best = bb
    return best


def im2col(x, k, pad):
    # x: (N, C, H, W) -> patches (N, H*W, C*k*k), patch index order (c, dy, dx)
    N, C, H, W = x.shape
    xp = jnp.pad(x, ((0, 0), (0, 0), (pad, pad), (pad, pad)))
    cols = []
    for dy in range(k):
        for dx in range(k):
            cols.append(xp[:, :, dy:dy + H, dx:dx + W])
    p = jnp.stack(cols, axis=0)                 # (k*k, N, C, H, W)
    p = p.transpose(1, 3, 4, 2, 0)              # (N, H, W, C, k*k)
    return p.reshape(N, H * W, C * k * k)


def receiver_forward(utts, images, params, *, compute_dtype=jnp.bfloat16, block_b=None):
    """utts: (S, B) int32 (seq-major, as in the PyTorch module); images: (M, B, C, H, W).
    Returns dp: (B, M) float32."""
    S, B = utts.shape
    M, B2, C, H, W = images.shape
    assert B == B2
    HL = params["emb"].shape[1]
    F, _, K, _ = params["conv_w"].shape
    E = params["w_out"].shape[1]
    HW, CKK = H * W, C * K * K
    HLP = _round_up(HL, 128)          # lane-pad hidden/embedding dim
    FP = _round_up(F, 128)            # lane-pad conv filters
    EP = _round_up(E, 128)            # lane-pad shared scoring dim
    itemsize = jnp.dtype(compute_dtype).itemsize

    B_pad = _round_up(B, 8)
    vmem_cap = _vmem_capacity_bytes()
    if block_b is None:
        block_b = _pick_block_b(B_pad, M, HW, S, HLP, FP, EP, itemsize, vmem_cap)
    assert B_pad % block_b == 0 and block_b % 8 == 0
    grid = (B_pad // block_b,)
    vmem_limit = max(32 * 1024 * 1024,
                     min(vmem_cap - 16 * 1024 * 1024, 100 * 1024 * 1024))

    # ---- glue: embedding gather (no Pallas gather), pad/pack weights, im2col ------------
    # NOTE: weights are stored (in, out) so the kernel computes x @ W; real PyTorch
    # nn.RNN/nn.Linear checkpoints are (out, in) and would need a transpose when loading.
    embs = params["emb"][utts]                                              # (S, B, HL) f32
    embs = jnp.pad(embs, ((0, 0), (0, B_pad - B), (0, HLP - HL))).astype(compute_dtype)
    w_ih = jnp.zeros((HLP, HLP), jnp.float32).at[:HL, :HL].set(
        params["w_ih"]).astype(compute_dtype)
    w_hh = jnp.zeros((HLP, HLP), jnp.float32).at[:HL, :HL].set(
        params["w_hh"]).astype(compute_dtype)
    b_rnn = jnp.zeros((1, HLP), jnp.float32).at[0, :HL].set(
        params["b_ih"] + params["b_hh"])
    w_out = jnp.zeros((HLP, EP), jnp.float32).at[:HL, :E].set(
        params["w_out"]).astype(compute_dtype)
    b_out = jnp.zeros((1, EP), jnp.float32).at[0, :E].set(params["b_out"])

    imgs = jnp.pad(images, ((0, 0), (0, B_pad - B), (0, 0), (0, 0), (0, 0)))
    # TODO(synk): in-kernel shifted-slice im2col would avoid this 9x HBM expansion (v5e win).
    patches = im2col(imgs.reshape(M * B_pad, C, H, W), K, K // 2)           # (M*B_pad, HW, CKK)
    patches = patches.reshape(M, B_pad * HW, CKK).astype(compute_dtype)     # candidate-major

    wc = jnp.zeros((CKK, FP), jnp.float32).at[:, :F].set(
        params["conv_w"].reshape(F, CKK).T).astype(compute_dtype)
    bc = jnp.zeros((1, FP), jnp.float32).at[0, :F].set(params["conv_b"])
    wp = jnp.zeros((FP, EP), jnp.float32).at[:F, :E].set(
        params["proj_w"] / HW).astype(compute_dtype)                        # 1/HW folded in
    bp = jnp.zeros((1, EP), jnp.float32).at[0, :E].set(params["proj_b"])

    def run(single_buffer_consts):
        def const_spec(shape):
            zeros = (0,) * len(shape)
            if single_buffer_consts:
                return pl.BlockSpec(shape, lambda i, _z=zeros: _z,
                                    pipeline_mode=pl.Buffered(1))
            return pl.BlockSpec(shape, lambda i, _z=zeros: _z)

        return pl.pallas_call(
            fused_receiver_kernel,
            out_shape=jax.ShapeDtypeStruct((B_pad, M), jnp.float32),
            grid=grid,
            in_specs=[
                pl.BlockSpec((S, block_b, HLP), lambda i: (0, i, 0)),       # embeddings
                const_spec((HLP, HLP)),                                     # RNN W_ih
                const_spec((HLP, HLP)),                                     # RNN W_hh
                const_spec((1, HLP)),                                       # b_ih + b_hh
                const_spec((HLP, EP)),                                      # h_out weight
                const_spec((1, EP)),                                        # h_out bias
                pl.BlockSpec((M, block_b * HW, CKK), lambda i: (0, i, 0)),  # im2col patches
                const_spec((CKK, FP)),                                      # conv weight
                const_spec((1, FP)),                                        # conv bias
                const_spec((FP, EP)),                                       # proj weight (/HW)
                const_spec((1, EP)),                                        # proj bias
            ],
            out_specs=pl.BlockSpec((block_b, M), lambda i: (i, 0)),
            compiler_params=pltpu.CompilerParams(
                dimension_semantics=("parallel",),
                vmem_limit_bytes=int(vmem_limit)),
        )(embs, w_ih, w_hh, b_rnn, w_out, b_out, patches, wc, bc, wp, bp)

    try:
        dp = run(single_buffer_consts=True)
    except Exception:
        # Fallback for jax versions where pipeline_mode / Buffered(1) is unsupported.
        dp = run(single_buffer_consts=False)
    return dp[:B]


# ---------------------------------------------------------------------------
# Pure-JAX reference (same math, f32) for the sanity check
# ---------------------------------------------------------------------------
def reference_forward(utts, images, params):
    S, B = utts.shape
    M, _, C, H, W = images.shape
    HL = params["emb"].shape[1]

    embs = params["emb"][utts]                                              # (S, B, HL)

    def step(h, x_t):
        h = jnp.tanh(x_t @ params["w_ih"] + h @ params["w_hh"]
                     + params["b_ih"] + params["b_hh"])
        return h, None

    h_last, _ = jax.lax.scan(step, jnp.zeros((B, HL), jnp.float32), embs)
    lang = h_last @ params["w_out"] + params["b_out"]                       # (B, E)

    x = images.reshape(M * B, C, H, W)
    F, _, K, _ = params["conv_w"].shape
    patches = im2col(x, K, K // 2)                                          # (N, HW, CKK)
    wc = params["conv_w"].reshape(F, -1).T
    conv = jnp.maximum(patches @ wc + params["conv_b"], 0.0)
    pooled = conv.mean(axis=1)                                              # (N, F)
    feat = (pooled @ params["proj_w"] + params["proj_b"]).reshape(M, B, -1)
    return jnp.einsum("be,mbe->bm", lang, feat)                             # (B, M)


if __name__ == "__main__":
    # Small deterministic example shapes
    M, B = 3, 16          # candidate images per item, batch
    C, H, W = 4, 8, 8     # image channels / spatial
    S, V = 8, 16          # utterance length (seq-major), vocab size
    HL = 32               # embedding_size == hidden_size (the module ties them)
    F = 16                # conv filters
    E = 32                # output_size == shared scoring dim

    key = jax.random.PRNGKey(0)
    ks = jax.random.split(key, 13)
    params = {
        "emb":    0.1 * jax.random.normal(ks[0], (V, HL), jnp.float32),
        "w_ih":   0.1 * jax.random.normal(ks[1], (HL, HL), jnp.float32),
        "w_hh":   0.1 * jax.random.normal(ks[2], (HL, HL), jnp.float32),
        "b_ih":   0.1 * jax.random.normal(ks[3], (HL,), jnp.float32),
        "b_hh":   0.1 * jax.random.normal(ks[4], (HL,), jnp.float32),
        "w_out":  0.1 * jax.random.normal(ks[5], (HL, E), jnp.float32),
        "b_out":  0.1 * jax.random.normal(ks[6], (E,), jnp.float32),
        "conv_w": 0.1 * jax.random.normal(ks[7], (F, C, 3, 3), jnp.float32),
        "conv_b": 0.1 * jax.random.normal(ks[8], (F,), jnp.float32),
        "proj_w": 0.1 * jax.random.normal(ks[9], (F, E), jnp.float32),
        "proj_b": 0.1 * jax.random.normal(ks[10], (E,), jnp.float32),
    }
    utts = jax.random.randint(ks[11], (S, B), 0, V, jnp.int32)
    images = jax.random.normal(ks[12], (M, B, C, H, W), jnp.float32)

    ref = reference_forward(utts, images, params)

    dp = jax.block_until_ready(
        receiver_forward(utts, images, params, compute_dtype=jnp.bfloat16))
    assert dp.shape == (B, M), dp.shape
    assert jnp.allclose(dp, ref, rtol=5e-2, atol=1e-2), (dp, ref)

    print("KERNEL_OK")
</pallas_src>

<mosaic_0001>
module attributes {stable_mosaic.version = 11 : i64} {
  func.func @fused_receiver_kernel(%arg0: i32, %arg1: memref<8x8x128xbf16, #tpu.memory_space<vmem>>, %arg2: memref<128x128xbf16, #tpu.memory_space<vmem>>, %arg3: memref<128x128xbf16, #tpu.memory_space<vmem>>, %arg4: memref<1x128xf32, #tpu.memory_space<vmem>>, %arg5: memref<128x128xbf16, #tpu.memory_space<vmem>>, %arg6: memref<1x128xf32, #tpu.memory_space<vmem>>, %arg7: memref<3x512x36xbf16, #tpu.memory_space<vmem>>, %arg8: memref<36x128xbf16, #tpu.memory_space<vmem>>, %arg9: memref<1x128xf32, #tpu.memory_space<vmem>>, %arg10: memref<128x128xbf16, #tpu.memory_space<vmem>>, %arg11: memref<1x128xf32, #tpu.memory_space<vmem>>, %arg12: memref<8x3xf32, #tpu.memory_space<vmem>>) attributes {dimension_semantics = [#tpu.dimension_semantics<parallel>], iteration_bounds = array<i64: 2>, scalar_prefetch = 0 : i64, scratch_operands = 0 : i64, tpu.core_type = #tpu.core_type<tc>, window_params = [{transform_indices = @transform_0, window_bounds = array<i64: 8, 8, 128>}, {pipeline_mode = #tpu.pipeline_mode<synchronous>, transform_indices = @transform_1, window_bounds = array<i64: 128, 128>}, {pipeline_mode = #tpu.pipeline_mode<synchronous>, transform_indices = @transform_2, window_bounds = array<i64: 128, 128>}, {pipeline_mode = #tpu.pipeline_mode<synchronous>, transform_indices = @transform_3, window_bounds = array<i64: 1, 128>}, {pipeline_mode = #tpu.pipeline_mode<synchronous>, transform_indices = @transform_4, window_bounds = array<i64: 128, 128>}, {pipeline_mode = #tpu.pipeline_mode<synchronous>, transform_indices = @transform_5, window_bounds = array<i64: 1, 128>}, {transform_indices = @transform_6, window_bounds = array<i64: 3, 512, 36>}, {pipeline_mode = #tpu.pipeline_mode<synchronous>, transform_indices = @transform_7, window_bounds = array<i64: 36, 128>}, {pipeline_mode = #tpu.pipeline_mode<synchronous>, transform_indices = @transform_8, window_bounds = array<i64: 1, 128>}, {pipeline_mode = #tpu.pipeline_mode<synchronous>, transform_indices = @transform_9, window_bounds = array<i64: 128, 128>}, {pipeline_mode = #tpu.pipeline_mode<synchronous>, transform_indices = @transform_10, window_bounds = array<i64: 1, 128>}, {transform_indices = @transform_11, window_bounds = array<i64: 8, 3>}]} {
    %c0 = arith.constant 0 : index
    %c0_0 = arith.constant 0 : index
    %c0_1 = arith.constant 0 : index
    %0 = vector.load %arg1[%c0, %c0_0, %c0_1] : memref<8x8x128xbf16, #tpu.memory_space<vmem>>, vector<8x8x128xbf16>
    %1 = vector.shape_cast %0 : vector<8x8x128xbf16> to vector<64x128xbf16>
    %c0_2 = arith.constant 0 : index
    %c0_3 = arith.constant 0 : index
    %2 = vector.load %arg2[%c0_2, %c0_3] : memref<128x128xbf16, #tpu.memory_space<vmem>>, vector<128x128xbf16>
    %cst = arith.constant dense<0.000000e+00> : vector<64x128xf32>
    %3 = tpu.matmul %1, %2, %cst {dimension_numbers = #tpu.dot_dimension_numbers<[1], [0], [0], [1], [0, 0, 1, 1], [], []>} : vector<64x128xbf16>, vector<128x128xbf16>, vector<64x128xf32> -> vector<64x128xf32>
    %c0_4 = arith.constant 0 : index
    %c0_5 = arith.constant 0 : index
    %4 = vector.load %arg4[%c0_4, %c0_5] : memref<1x128xf32, #tpu.memory_space<vmem>>, vector<1x128xf32>
    %5 = vector.broadcast %4 : vector<1x128xf32> to vector<64x128xf32>
    %6 = arith.addf %3, %5 : vector<64x128xf32>
    %cst_6 = arith.constant 0.000000e+00 : f32
    %7 = vector.broadcast %cst_6 : f32 to vector<8x128xf32>
    %8 = vector.extract_strided_slice %6 {offsets = [0, 0], sizes = [8, 128], strides = [1, 1]} : vector<64x128xf32> to vector<8x128xf32>
    %9 = arith.truncf %7 : vector<8x128xf32> to vector<8x128xbf16>
    %c0_7 = arith.constant 0 : index
    %c0_8 = arith.constant 0 : index
    %10 = vector.load %arg3[%c0_7, %c0_8] : memref<128x128xbf16, #tpu.memory_space<vmem>>, vector<128x128xbf16>
    %cst_9 = arith.constant dense<0.000000e+00> : vector<8x128xf32>
    %11 = tpu.matmul %9, %10, %cst_9 {dimension_numbers = #tpu.dot_dimension_numbers<[1], [0], [0], [1], [0, 0, 1, 1], [], []>} : vector<8x128xbf16>, vector<128x128xbf16>, vector<8x128xf32> -> vector<8x128xf32>
    %12 = arith.addf %8, %11 : vector<8x128xf32>
    %13 = math.tanh %12 : vector<8x128xf32>
    %14 = vector.extract_strided_slice %6 {offsets = [8, 0], sizes = [8, 128], strides = [1, 1]} : vector<64x128xf32> to vector<8x128xf32>
    %15 = arith.truncf %13 : vector<8x128xf32> to vector<8x128xbf16>
    %c0_10 = arith.constant 0 : index
    %c0_11 = arith.constant 0 : index
    %16 = vector.load %arg3[%c0_10, %c0_11] : memref<128x128xbf16, #tpu.memory_space<vmem>>, vector<128x128xbf16>
    %cst_12 = arith.constant dense<0.000000e+00> : vector<8x128xf32>
    %17 = tpu.matmul %15, %16, %cst_12 {dimension_numbers = #tpu.dot_dimension_numbers<[1], [0], [0], [1], [0, 0, 1, 1], [], []>} : vector<8x128xbf16>, vector<128x128xbf16>, vector<8x128xf32> -> vector<8x128xf32>
    %18 = arith.addf %14, %17 : vector<8x128xf32>
    %19 = math.tanh %18 : vector<8x128xf32>
    %20 = vector.extract_strided_slice %6 {offsets = [16, 0], sizes = [8, 128], strides = [1, 1]} : vector<64x128xf32> to vector<8x128xf32>
    %21 = arith.truncf %19 : vector<8x128xf32> to vector<8x128xbf16>
    %c0_13 = arith.constant 0 : index
    %c0_14 = arith.constant 0 : index
    %22 = vector.load %arg3[%c0_13, %c0_14] : memref<128x128xbf16, #tpu.memory_space<vmem>>, vector<128x128xbf16>
    %cst_15 = arith.constant dense<0.000000e+00> : vector<8x128xf32>
    %23 = tpu.matmul %21, %22, %cst_15 {dimension_numbers = #tpu.dot_dimension_numbers<[1], [0], [0], [1], [0, 0, 1, 1], [], []>} : vector<8x128xbf16>, vector<128x128xbf16>, vector<8x128xf32> -> vector<8x128xf32>
    %24 = arith.addf %20, %23 : vector<8x128xf32>
    %25 = math.tanh %24 : vector<8x128xf32>
    %26 = vector.extract_strided_slice %6 {offsets = [24, 0], sizes = [8, 128], strides = [1, 1]} : vector<64x128xf32> to vector<8x128xf32>
    %27 = arith.truncf %25 : vector<8x128xf32> to vector<8x128xbf16>
    %c0_16 = arith.constant 0 : index
    %c0_17 = arith.constant 0 : index
    %28 = vector.load %arg3[%c0_16, %c0_17] : memref<128x128xbf16, #tpu.memory_space<vmem>>, vector<128x128xbf16>
    %cst_18 = arith.constant dense<0.000000e+00> : vector<8x128xf32>
    %29 = tpu.matmul %27, %28, %cst_18 {dimension_numbers = #tpu.dot_dimension_numbers<[1], [0], [0], [1], [0, 0, 1, 1], [], []>} : vector<8x128xbf16>, vector<128x128xbf16>, vector<8x128xf32> -> vector<8x128xf32>
    %30 = arith.addf %26, %29 : vector<8x128xf32>
    %31 = math.tanh %30 : vector<8x128xf32>
    %32 = vector.extract_strided_slice %6 {offsets = [32, 0], sizes = [8, 128], strides = [1, 1]} : vector<64x128xf32> to vector<8x128xf32>
    %33 = arith.truncf %31 : vector<8x128xf32> to vector<8x128xbf16>
    %c0_19 = arith.constant 0 : index
    %c0_20 = arith.constant 0 : index
    %34 = vector.load %arg3[%c0_19, %c0_20] : memref<128x128xbf16, #tpu.memory_space<vmem>>, vector<128x128xbf16>
    %cst_21 = arith.constant dense<0.000000e+00> : vector<8x128xf32>
    %35 = tpu.matmul %33, %34, %cst_21 {dimension_numbers = #tpu.dot_dimension_numbers<[1], [0], [0], [1], [0, 0, 1, 1], [], []>} : vector<8x128xbf16>, vector<128x128xbf16>, vector<8x128xf32> -> vector<8x128xf32>
    %36 = arith.addf %32, %35 : vector<8x128xf32>
    %37 = math.tanh %36 : vector<8x128xf32>
    %38 = vector.extract_strided_slice %6 {offsets = [40, 0], sizes = [8, 128], strides = [1, 1]} : vector<64x128xf32> to vector<8x128xf32>
    %39 = arith.truncf %37 : vector<8x128xf32> to vector<8x128xbf16>
    %c0_22 = arith.constant 0 : index
    %c0_23 = arith.constant 0 : index
    %40 = vector.load %arg3[%c0_22, %c0_23] : memref<128x128xbf16, #tpu.memory_space<vmem>>, vector<128x128xbf16>
    %cst_24 = arith.constant dense<0.000000e+00> : vector<8x128xf32>
    %41 = tpu.matmul %39, %40, %cst_24 {dimension_numbers = #tpu.dot_dimension_numbers<[1], [0], [0], [1], [0, 0, 1, 1], [], []>} : vector<8x128xbf16>, vector<128x128xbf16>, vector<8x128xf32> -> vector<8x128xf32>
    %42 = arith.addf %38, %41 : vector<8x128xf32>
    %43 = math.tanh %42 : vector<8x128xf32>
    %44 = vector.extract_strided_slice %6 {offsets = [48, 0], sizes = [8, 128], strides = [1, 1]} : vector<64x128xf32> to vector<8x128xf32>
    %45 = arith.truncf %43 : vector<8x128xf32> to vector<8x128xbf16>
    %c0_25 = arith.constant 0 : index
    %c0_26 = arith.constant 0 : index
    %46 = vector.load %arg3[%c0_25, %c0_26] : memref<128x128xbf16, #tpu.memory_space<vmem>>, vector<128x128xbf16>
    %cst_27 = arith.constant dense<0.000000e+00> : vector<8x128xf32>
    %47 = tpu.matmul %45, %46, %cst_27 {dimension_numbers = #tpu.dot_dimension_numbers<[1], [0], [0], [1], [0, 0, 1, 1], [], []>} : vector<8x128xbf16>, vector<128x128xbf16>, vector<8x128xf32> -> vector<8x128xf32>
    %48 = arith.addf %44, %47 : vector<8x128xf32>
    %49 = math.tanh %48 : vector<8x128xf32>
    %50 = vector.extract_strided_slice %6 {offsets = [56, 0], sizes = [8, 128], strides = [1, 1]} : vector<64x128xf32> to vector<8x128xf32>
    %51 = arith.truncf %49 : vector<8x128xf32> to vector<8x128xbf16>
    %c0_28 = arith.constant 0 : index
    %c0_29 = arith.constant 0 : index
    %52 = vector.load %arg3[%c0_28, %c0_29] : memref<128x128xbf16, #tpu.memory_space<vmem>>, vector<128x128xbf16>
    %cst_30 = arith.constant dense<0.000000e+00> : vector<8x128xf32>
    %53 = tpu.matmul %51, %52, %cst_30 {dimension_numbers = #tpu.dot_dimension_numbers<[1], [0], [0], [1], [0, 0, 1, 1], [], []>} : vector<8x128xbf16>, vector<128x128xbf16>, vector<8x128xf32> -> vector<8x128xf32>
    %54 = arith.addf %50, %53 : vector<8x128xf32>
    %55 = math.tanh %54 : vector<8x128xf32>
    %56 = arith.truncf %55 : vector<8x128xf32> to vector<8x128xbf16>
    %c0_31 = arith.constant 0 : index
    %c0_32 = arith.constant 0 : index
    %57 = vector.load %arg5[%c0_31, %c0_32] : memref<128x128xbf16, #tpu.memory_space<vmem>>, vector<128x128xbf16>
    %cst_33 = arith.constant dense<0.000000e+00> : vector<8x128xf32>
    %58 = tpu.matmul %56, %57, %cst_33 {dimension_numbers = #tpu.dot_dimension_numbers<[1], [0], [0], [1], [0, 0, 1, 1], [], []>} : vector<8x128xbf16>, vector<128x128xbf16>, vector<8x128xf32> -> vector<8x128xf32>
    %c0_34 = arith.constant 0 : index
    %c0_35 = arith.constant 0 : index
    %59 = vector.load %arg6[%c0_34, %c0_35] : memref<1x128xf32, #tpu.memory_space<vmem>>, vector<1x128xf32>
    %60 = vector.broadcast %59 : vector<1x128xf32> to vector<8x128xf32>
    %61 = arith.addf %58, %60 : vector<8x128xf32>
    %c0_36 = arith.constant 0 : index
    %c0_37 = arith.constant 0 : index
    %c0_38 = arith.constant 0 : index
    %62 = vector.load %arg7[%c0_36, %c0_37, %c0_38] : memref<3x512x36xbf16, #tpu.memory_space<vmem>>, vector<3x512x36xbf16>
    %63 = vector.shape_cast %62 : vector<3x512x36xbf16> to vector<1536x36xbf16>
    %c0_39 = arith.constant 0 : index
    %c0_40 = arith.constant 0 : index
    %64 = vector.load %arg8[%c0_39, %c0_40] : memref<36x128xbf16, #tpu.memory_space<vmem>>, vector<36x128xbf16>
    %cst_41 = arith.constant dense<0.000000e+00> : vector<1536x128xf32>
    %65 = tpu.matmul %63, %64, %cst_41 {dimension_numbers = #tpu.dot_dimension_numbers<[1], [0], [0], [1], [0, 0, 1, 1], [], []>} : vector<1536x36xbf16>, vector<36x128xbf16>, vector<1536x128xf32> -> vector<1536x128xf32>
    %c0_42 = arith.constant 0 : index
    %c0_43 = arith.constant 0 : index
    %66 = vector.load %arg9[%c0_42, %c0_43] : memref<1x128xf32, #tpu.memory_space<vmem>>, vector<1x128xf32>
    %67 = vector.broadcast %66 : vector<1x128xf32> to vector<1536x128xf32>
    %68 = arith.addf %65, %67 : vector<1536x128xf32>
    %cst_44 = arith.constant 0.000000e+00 : f32
    %69 = vector.broadcast %cst_44 : f32 to vector<1536x128xf32>
    %70 = arith.maximumf %68, %69 : vector<1536x128xf32>
    %71 = vector.shape_cast %70 : vector<1536x128xf32> to vector<24x64x128xf32>
    %cst_45 = arith.constant dense<0.000000e+00> : vector<24x128xf32>
    %72 = vector.multi_reduction <add>, %71, %cst_45 [1] : vector<24x64x128xf32> to vector<24x128xf32>
    %73 = arith.truncf %72 : vector<24x128xf32> to vector<24x128xbf16>
    %c0_46 = arith.constant 0 : index
    %c0_47 = arith.constant 0 : index
    %74 = vector.load %arg10[%c0_46, %c0_47] : memref<128x128xbf16, #tpu.memory_space<vmem>>, vector<128x128xbf16>
    %cst_48 = arith.constant dense<0.000000e+00> : vector<24x128xf32>
    %75 = tpu.matmul %73, %74, %cst_48 {dimension_numbers = #tpu.dot_dimension_numbers<[1], [0], [0], [1], [0, 0, 1, 1], [], []>} : vector<24x128xbf16>, vector<128x128xbf16>, vector<24x128xf32> -> vector<24x128xf32>
    %c0_49 = arith.constant 0 : index
    %c0_50 = arith.constant 0 : index
    %76 = vector.load %arg11[%c0_49, %c0_50] : memref<1x128xf32, #tpu.memory_space<vmem>>, vector<1x128xf32>
    %77 = vector.broadcast %76 : vector<1x128xf32> to vector<24x128xf32>
    %78 = arith.addf %75, %77 : vector<24x128xf32>
    %79 = vector.extract_strided_slice %78 {offsets = [0, 0], sizes = [8, 128], strides = [1, 1]} : vector<24x128xf32> to vector<8x128xf32>
    %80 = arith.mulf %61, %79 : vector<8x128xf32>
    %cst_51 = arith.constant dense<0.000000e+00> : vector<8xf32>
    %81 = vector.multi_reduction <add>, %80, %cst_51 [1] : vector<8x128xf32> to vector<8xf32>
    %82 = vector.shape_cast %81 : vector<8xf32> to vector<8x1xf32>
    %83 = vector.extract_strided_slice %78 {offsets = [8, 0], sizes = [8, 128], strides = [1, 1]} : vector<24x128xf32> to vector<8x128xf32>
    %84 = arith.mulf %61, %83 : vector<8x128xf32>
    %cst_52 = arith.constant dense<0.000000e+00> : vector<8xf32>
    %85 = vector.multi_reduction <add>, %84, %cst_52 [1] : vector<8x128xf32> to vector<8xf32>
    %86 = vector.shape_cast %85 : vector<8xf32> to vector<8x1xf32>
    %87 = vector.extract_strided_slice %78 {offsets = [16, 0], sizes = [8, 128], strides = [1, 1]} : vector<24x128xf32> to vector<8x128xf32>
    %88 = arith.mulf %61, %87 : vector<8x128xf32>
    %cst_53 = arith.constant dense<0.000000e+00> : vector<8xf32>
    %89 = vector.multi_reduction <add>, %88, %cst_53 [1] : vector<8x128xf32> to vector<8xf32>
    %90 = vector.shape_cast %89 : vector<8xf32> to vector<8x1xf32>
    %91 = tpu.concatenate %82, %86, %90 in 1 : vector<8x1xf32>, vector<8x1xf32>, vector<8x1xf32> -> vector<8x3xf32>
    %c0_54 = arith.constant 0 : index
    %c0_55 = arith.constant 0 : index
    %92 = vector.load %arg12[%c0_54, %c0_55] : memref<8x3xf32, #tpu.memory_space<vmem>>, vector<8x3xf32>
    tpu.vector_store %arg12[%c0_54, %c0_55], %91 {strides = array<i32>} : memref<8x3xf32, #tpu.memory_space<vmem>>, vector<8x3xf32>,
    return
  }
  func.func @transform_0(%arg0: i32) -> (i32, i32, i32) {
    %c0_i32 = arith.constant 0 : i32
    %c0_i32_0 = arith.constant 0 : i32
    %c0_i32_1 = arith.constant 0 : i32
    return %c0_i32, %arg0, %c0_i32_0 : i32, i32, i32
  }
  func.func @transform_1(%arg0: i32) -> (i32, i32) {
    %c0_i32 = arith.constant 0 : i32
    %c0_i32_0 = arith.constant 0 : i32
    %c0_i32_1 = arith.constant 0 : i32
    return %c0_i32, %c0_i32_0 : i32, i32
  }
  func.func @transform_2(%arg0: i32) -> (i32, i32) {
    %c0_i32 = arith.constant 0 : i32
    %c0_i32_0 = arith.constant 0 : i32
    %c0_i32_1 = arith.constant 0 : i32
    return %c0_i32, %c0_i32_0 : i32, i32
  }
  func.func @transform_3(%arg0: i32) -> (i32, i32) {
    %c0_i32 = arith.constant 0 : i32
    %c0_i32_0 = arith.constant 0 : i32
    %c0_i32_1 = arith.constant 0 : i32
    return %c0_i32, %c0_i32_0 : i32, i32
  }
  func.func @transform_4(%arg0: i32) -> (i32, i32) {
    %c0_i32 = arith.constant 0 : i32
    %c0_i32_0 = arith.constant 0 : i32
    %c0_i32_1 = arith.constant 0 : i32
    return %c0_i32, %c0_i32_0 : i32, i32
  }
  func.func @transform_5(%arg0: i32) -> (i32, i32) {
    %c0_i32 = arith.constant 0 : i32
    %c0_i32_0 = arith.constant 0 : i32
    %c0_i32_1 = arith.constant 0 : i32
    return %c0_i32, %c0_i32_0 : i32, i32
  }
  func.func @transform_6(%arg0: i32) -> (i32, i32, i32) {
    %c0_i32 = arith.constant 0 : i32
    %c0_i32_0 = arith.constant 0 : i32
    %c0_i32_1 = arith.constant 0 : i32
    return %c0_i32, %arg0, %c0_i32_0 : i32, i32, i32
  }
  func.func @transform_7(%arg0: i32) -> (i32, i32) {
    %c0_i32 = arith.constant 0 : i32
    %c0_i32_0 = arith.constant 0 : i32
    %c0_i32_1 = arith.constant 0 : i32
    return %c0_i32, %c0_i32_0 : i32, i32
  }
  func.func @transform_8(%arg0: i32) -> (i32, i32) {
    %c0_i32 = arith.constant 0 : i32
    %c0_i32_0 = arith.constant 0 : i32
    %c0_i32_1 = arith.constant 0 : i32
    return %c0_i32, %c0_i32_0 : i32, i32
  }
  func.func @transform_9(%arg0: i32) -> (i32, i32) {
    %c0_i32 = arith.constant 0 : i32
    %c0_i32_0 = arith.constant 0 : i32
    %c0_i32_1 = arith.constant 0 : i32
    return %c0_i32, %c0_i32_0 : i32, i32
  }
  func.func @transform_10(%arg0: i32) -> (i32, i32) {
    %c0_i32 = arith.constant 0 : i32
    %c0_i32_0 = arith.constant 0 : i32
    %c0_i32_1 = arith.constant 0 : i32
    return %c0_i32, %c0_i32_0 : i32, i32
  }
  func.func @transform_11(%arg0: i32) -> (i32, i32) {
    %c0_i32 = arith.constant 0 : i32
    %c0_i32_0 = arith.constant 0 : i32
    return %arg0, %c0_i32 : i32, i32
  }
}

module attributes {stable_mosaic.version = 11 : i64} {
  func.func @fused_receiver_kernel(%arg0: i32, %arg1: memref<8x8x128xbf16, #tpu.memory_space<vmem>>, %arg2: memref<128x128xbf16, #tpu.memory_space<vmem>>, %arg3: memref<128x128xbf16, #tpu.memory_space<vmem>>, %arg4: memref<1x128xf32, #tpu.memory_space<vmem>>, %arg5: memref<128x128xbf16, #tpu.memory_space<vmem>>, %arg6: memref<1x128xf32, #tpu.memory_space<vmem>>, %arg7: memref<3x512x36xbf16, #tpu.memory_space<vmem>>, %arg8: memref<36x128xbf16, #tpu.memory_space<vmem>>, %arg9: memref<1x128xf32, #tpu.memory_space<vmem>>, %arg10: memref<128x128xbf16, #tpu.memory_space<vmem>>, %arg11: memref<1x128xf32, #tpu.memory_space<vmem>>, %arg12: memref<8x3xf32, #tpu.memory_space<vmem>>) attributes {dimension_semantics = [#tpu.dimension_semantics<parallel>], iteration_bounds = array<i64: 2>, scalar_prefetch = 0 : i64, scratch_operands = 0 : i64, tpu.core_type = #tpu.core_type<tc>, window_params = [{transform_indices = @transform_0, window_bounds = array<i64: 8, 8, 128>}, {pipeline_mode = #tpu.pipeline_mode<synchronous>, transform_indices = @transform_1, window_bounds = array<i64: 128, 128>}, {pipeline_mode = #tpu.pipeline_mode<synchronous>, transform_indices = @transform_2, window_bounds = array<i64: 128, 128>}, {pipeline_mode = #tpu.pipeline_mode<synchronous>, transform_indices = @transform_3, window_bounds = array<i64: 1, 128>}, {pipeline_mode = #tpu.pipeline_mode<synchronous>, transform_indices = @transform_4, window_bounds = array<i64: 128, 128>}, {pipeline_mode = #tpu.pipeline_mode<synchronous>, transform_indices = @transform_5, window_bounds = array<i64: 1, 128>}, {transform_indices = @transform_6, window_bounds = array<i64: 3, 512, 36>}, {pipeline_mode = #tpu.pipeline_mode<synchronous>, transform_indices = @transform_7, window_bounds = array<i64: 36, 128>}, {pipeline_mode = #tpu.pipeline_mode<synchronous>, transform_indices = @transform_8, window_bounds = array<i64: 1, 128>}, {pipeline_mode = #tpu.pipeline_mode<synchronous>, transform_indices = @transform_9, window_bounds = array<i64: 128, 128>}, {pipeline_mode = #tpu.pipeline_mode<synchronous>, transform_indices = @transform_10, window_bounds = array<i64: 1, 128>}, {transform_indices = @transform_11, window_bounds = array<i64: 8, 3>}]} {
    %c0 = arith.constant 0 : index
    %c0_0 = arith.constant 0 : index
    %c0_1 = arith.constant 0 : index
    %0 = vector.load %arg1[%c0, %c0_0, %c0_1] : memref<8x8x128xbf16, #tpu.memory_space<vmem>>, vector<8x8x128xbf16>
    %1 = vector.shape_cast %0 : vector<8x8x128xbf16> to vector<64x128xbf16>
    %c0_2 = arith.constant 0 : index
    %c0_3 = arith.constant 0 : index
    %2 = vector.load %arg2[%c0_2, %c0_3] : memref<128x128xbf16, #tpu.memory_space<vmem>>, vector<128x128xbf16>
    %cst = arith.constant dense<0.000000e+00> : vector<64x128xf32>
    %3 = tpu.matmul %1, %2, %cst {dimension_numbers = #tpu.dot_dimension_numbers<[1], [0], [0], [1], [0, 0, 1, 1], [], []>} : vector<64x128xbf16>, vector<128x128xbf16>, vector<64x128xf32> -> vector<64x128xf32>
    %c0_4 = arith.constant 0 : index
    %c0_5 = arith.constant 0 : index
    %4 = vector.load %arg4[%c0_4, %c0_5] : memref<1x128xf32, #tpu.memory_space<vmem>>, vector<1x128xf32>
    %5 = vector.broadcast %4 : vector<1x128xf32> to vector<64x128xf32>
    %6 = arith.addf %3, %5 : vector<64x128xf32>
    %cst_6 = arith.constant 0.000000e+00 : f32
    %7 = vector.broadcast %cst_6 : f32 to vector<8x128xf32>
    %8 = vector.extract_strided_slice %6 {offsets = [0, 0], sizes = [8, 128], strides = [1, 1]} : vector<64x128xf32> to vector<8x128xf32>
    %9 = arith.truncf %7 : vector<8x128xf32> to vector<8x128xbf16>
    %c0_7 = arith.constant 0 : index
    %c0_8 = arith.constant 0 : index
    %10 = vector.load %arg3[%c0_7, %c0_8] : memref<128x128xbf16, #tpu.memory_space<vmem>>, vector<128x128xbf16>
    %cst_9 = arith.constant dense<0.000000e+00> : vector<8x128xf32>
    %11 = tpu.matmul %9, %10, %cst_9 {dimension_numbers = #tpu.dot_dimension_numbers<[1], [0], [0], [1], [0, 0, 1, 1], [], []>} : vector<8x128xbf16>, vector<128x128xbf16>, vector<8x128xf32> -> vector<8x128xf32>
    %12 = arith.addf %8, %11 : vector<8x128xf32>
    %13 = math.tanh %12 : vector<8x128xf32>
    %14 = vector.extract_strided_slice %6 {offsets = [8, 0], sizes = [8, 128], strides = [1, 1]} : vector<64x128xf32> to vector<8x128xf32>
    %15 = arith.truncf %13 : vector<8x128xf32> to vector<8x128xbf16>
    %c0_10 = arith.constant 0 : index
    %c0_11 = arith.constant 0 : index
    %16 = vector.load %arg3[%c0_10, %c0_11] : memref<128x128xbf16, #tpu.memory_space<vmem>>, vector<128x128xbf16>
    %cst_12 = arith.constant dense<0.000000e+00> : vector<8x128xf32>
    %17 = tpu.matmul %15, %16, %cst_12 {dimension_numbers = #tpu.dot_dimension_numbers<[1], [0], [0], [1], [0, 0, 1, 1], [], []>} : vector<8x128xbf16>, vector<128x128xbf16>, vector<8x128xf32> -> vector<8x128xf32>
    %18 = arith.addf %14, %17 : vector<8x128xf32>
    %19 = math.tanh %18 : vector<8x128xf32>
    %20 = vector.extract_strided_slice %6 {offsets = [16, 0], sizes = [8, 128], strides = [1, 1]} : vector<64x128xf32> to vector<8x128xf32>
    %21 = arith.truncf %19 : vector<8x128xf32> to vector<8x128xbf16>
    %c0_13 = arith.constant 0 : index
    %c0_14 = arith.constant 0 : index
    %22 = vector.load %arg3[%c0_13, %c0_14] : memref<128x128xbf16, #tpu.memory_space<vmem>>, vector<128x128xbf16>
    %cst_15 = arith.constant dense<0.000000e+00> : vector<8x128xf32>
    %23 = tpu.matmul %21, %22, %cst_15 {dimension_numbers = #tpu.dot_dimension_numbers<[1], [0], [0], [1], [0, 0, 1, 1], [], []>} : vector<8x128xbf16>, vector<128x128xbf16>, vector<8x128xf32> -> vector<8x128xf32>
    %24 = arith.addf %20, %23 : vector<8x128xf32>
    %25 = math.tanh %24 : vector<8x128xf32>
    %26 = vector.extract_strided_slice %6 {offsets = [24, 0], sizes = [8, 128], strides = [1, 1]} : vector<64x128xf32> to vector<8x128xf32>
    %27 = arith.truncf %25 : vector<8x128xf32> to vector<8x128xbf16>
    %c0_16 = arith.constant 0 : index
    %c0_17 = arith.constant 0 : index
    %28 = vector.load %arg3[%c0_16, %c0_17] : memref<128x128xbf16, #tpu.memory_space<vmem>>, vector<128x128xbf16>
    %cst_18 = arith.constant dense<0.000000e+00> : vector<8x128xf32>
    %29 = tpu.matmul %27, %28, %cst_18 {dimension_numbers = #tpu.dot_dimension_numbers<[1], [0], [0], [1], [0, 0, 1, 1], [], []>} : vector<8x128xbf16>, vector<128x128xbf16>, vector<8x128xf32> -> vector<8x128xf32>
    %30 = arith.addf %26, %29 : vector<8x128xf32>
    %31 = math.tanh %30 : vector<8x128xf32>
    %32 = vector.extract_strided_slice %6 {offsets = [32, 0], sizes = [8, 128], strides = [1, 1]} : vector<64x128xf32> to vector<8x128xf32>
    %33 = arith.truncf %31 : vector<8x128xf32> to vector<8x128xbf16>
    %c0_19 = arith.constant 0 : index
    %c0_20 = arith.constant 0 : index
    %34 = vector.load %arg3[%c0_19, %c0_20] : memref<128x128xbf16, #tpu.memory_space<vmem>>, vector<128x128xbf16>
    %cst_21 = arith.constant dense<0.000000e+00> : vector<8x128xf32>
    %35 = tpu.matmul %33, %34, %cst_21 {dimension_numbers = #tpu.dot_dimension_numbers<[1], [0], [0], [1], [0, 0, 1, 1], [], []>} : vector<8x128xbf16>, vector<128x128xbf16>, vector<8x128xf32> -> vector<8x128xf32>
    %36 = arith.addf %32, %35 : vector<8x128xf32>
    %37 = math.tanh %36 : vector<8x128xf32>
    %38 = vector.extract_strided_slice %6 {offsets = [40, 0], sizes = [8, 128], strides = [1, 1]} : vector<64x128xf32> to vector<8x128xf32>
    %39 = arith.truncf %37 : vector<8x128xf32> to vector<8x128xbf16>
    %c0_22 = arith.constant 0 : index
    %c0_23 = arith.constant 0 : index
    %40 = vector.load %arg3[%c0_22, %c0_23] : memref<128x128xbf16, #tpu.memory_space<vmem>>, vector<128x128xbf16>
    %cst_24 = arith.constant dense<0.000000e+00> : vector<8x128xf32>
    %41 = tpu.matmul %39, %40, %cst_24 {dimension_numbers = #tpu.dot_dimension_numbers<[1], [0], [0], [1], [0, 0, 1, 1], [], []>} : vector<8x128xbf16>, vector<128x128xbf16>, vector<8x128xf32> -> vector<8x128xf32>
    %42 = arith.addf %38, %41 : vector<8x128xf32>
    %43 = math.tanh %42 : vector<8x128xf32>
    %44 = vector.extract_strided_slice %6 {offsets = [48, 0], sizes = [8, 128], strides = [1, 1]} : vector<64x128xf32> to vector<8x128xf32>
    %45 = arith.truncf %43 : vector<8x128xf32> to vector<8x128xbf16>
    %c0_25 = arith.constant 0 : index
    %c0_26 = arith.constant 0 : index
    %46 = vector.load %arg3[%c0_25, %c0_26] : memref<128x128xbf16, #tpu.memory_space<vmem>>, vector<128x128xbf16>
    %cst_27 = arith.constant dense<0.000000e+00> : vector<8x128xf32>
    %47 = tpu.matmul %45, %46, %cst_27 {dimension_numbers = #tpu.dot_dimension_numbers<[1], [0], [0], [1], [0, 0, 1, 1], [], []>} : vector<8x128xbf16>, vector<128x128xbf16>, vector<8x128xf32> -> vector<8x128xf32>
    %48 = arith.addf %44, %47 : vector<8x128xf32>
    %49 = math.tanh %48 : vector<8x128xf32>
    %50 = vector.extract_strided_slice %6 {offsets = [56, 0], sizes = [8, 128], strides = [1, 1]} : vector<64x128xf32> to vector<8x128xf32>
    %51 = arith.truncf %49 : vector<8x128xf32> to vector<8x128xbf16>
    %c0_28 = arith.constant 0 : index
    %c0_29 = arith.constant 0 : index
    %52 = vector.load %arg3[%c0_28, %c0_29] : memref<128x128xbf16, #tpu.memory_space<vmem>>, vector<128x128xbf16>
    %cst_30 = arith.constant dense<0.000000e+00> : vector<8x128xf32>
    %53 = tpu.matmul %51, %52, %cst_30 {dimension_numbers = #tpu.dot_dimension_numbers<[1], [0], [0], [1], [0, 0, 1, 1], [], []>} : vector<8x128xbf16>, vector<128x128xbf16>, vector<8x128xf32> -> vector<8x128xf32>
    %54 = arith.addf %50, %53 : vector<8x128xf32>
    %55 = math.tanh %54 : vector<8x128xf32>
    %56 = arith.truncf %55 : vector<8x128xf32> to vector<8x128xbf16>
    %c0_31 = arith.constant 0 : index
    %c0_32 = arith.constant 0 : index
    %57 = vector.load %arg5[%c0_31, %c0_32] : memref<128x128xbf16, #tpu.memory_space<vmem>>, vector<128x128xbf16>
    %cst_33 = arith.constant dense<0.000000e+00> : vector<8x128xf32>
    %58 = tpu.matmul %56, %57, %cst_33 {dimension_numbers = #tpu.dot_dimension_numbers<[1], [0], [0], [1], [0, 0, 1, 1], [], []>} : vector<8x128xbf16>, vector<128x128xbf16>, vector<8x128xf32> -> vector<8x128xf32>
    %c0_34 = arith.constant 0 : index
    %c0_35 = arith.constant 0 : index
    %59 = vector.load %arg6[%c0_34, %c0_35] : memref<1x128xf32, #tpu.memory_space<vmem>>, vector<1x128xf32>
    %60 = vector.broadcast %59 : vector<1x128xf32> to vector<8x128xf32>
    %61 = arith.addf %58, %60 : vector<8x128xf32>
    %c0_36 = arith.constant 0 : index
    %c0_37 = arith.constant 0 : index
    %c0_38 = arith.constant 0 : index
    %62 = vector.load %arg7[%c0_36, %c0_37, %c0_38] : memref<3x512x36xbf16, #tpu.memory_space<vmem>>, vector<3x512x36xbf16>
    %63 = vector.shape_cast %62 : vector<3x512x36xbf16> to vector<1536x36xbf16>
    %c0_39 = arith.constant 0 : index
    %c0_40 = arith.constant 0 : index
    %64 = vector.load %arg8[%c0_39, %c0_40] : memref<36x128xbf16, #tpu.memory_space<vmem>>, vector<36x128xbf16>
    %cst_41 = arith.constant dense<0.000000e+00> : vector<1536x128xf32>
    %65 = tpu.matmul %63, %64, %cst_41 {dimension_numbers = #tpu.dot_dimension_numbers<[1], [0], [0], [1], [0, 0, 1, 1], [], []>} : vector<1536x36xbf16>, vector<36x128xbf16>, vector<1536x128xf32> -> vector<1536x128xf32>
    %c0_42 = arith.constant 0 : index
    %c0_43 = arith.constant 0 : index
    %66 = vector.load %arg9[%c0_42, %c0_43] : memref<1x128xf32, #tpu.memory_space<vmem>>, vector<1x128xf32>
    %67 = vector.broadcast %66 : vector<1x128xf32> to vector<1536x128xf32>
    %68 = arith.addf %65, %67 : vector<1536x128xf32>
    %cst_44 = arith.constant 0.000000e+00 : f32
    %69 = vector.broadcast %cst_44 : f32 to vector<1536x128xf32>
    %70 = arith.maximumf %68, %69 : vector<1536x128xf32>
    %71 = vector.shape_cast %70 : vector<1536x128xf32> to vector<24x64x128xf32>
    %cst_45 = arith.constant dense<0.000000e+00> : vector<24x128xf32>
    %72 = vector.multi_reduction <add>, %71, %cst_45 [1] : vector<24x64x128xf32> to vector<24x128xf32>
    %73 = arith.truncf %72 : vector<24x128xf32> to vector<24x128xbf16>
    %c0_46 = arith.constant 0 : index
    %c0_47 = arith.constant 0 : index
    %74 = vector.load %arg10[%c0_46, %c0_47] : memref<128x128xbf16, #tpu.memory_space<vmem>>, vector<128x128xbf16>
    %cst_48 = arith.constant dense<0.000000e+00> : vector<24x128xf32>
    %75 = tpu.matmul %73, %74, %cst_48 {dimension_numbers = #tpu.dot_dimension_numbers<[1], [0], [0], [1], [0, 0, 1, 1], [], []>} : vector<24x128xbf16>, vector<128x128xbf16>, vector<24x128xf32> -> vector<24x128xf32>
    %c0_49 = arith.constant 0 : index
    %c0_50 = arith.constant 0 : index
    %76 = vector.load %arg11[%c0_49, %c0_50] : memref<1x128xf32, #tpu.memory_space<vmem>>, vector<1x128xf32>
    %77 = vector.broadcast %76 : vector<1x128xf32> to vector<24x128xf32>
    %78 = arith.addf %75, %77 : vector<24x128xf32>
    %79 = vector.extract_strided_slice %78 {offsets = [0, 0], sizes = [8, 128], strides = [1, 1]} : vector<24x128xf32> to vector<8x128xf32>
    %80 = arith.mulf %61, %79 : vector<8x128xf32>
    %cst_51 = arith.constant dense<0.000000e+00> : vector<8xf32>
    %81 = vector.multi_reduction <add>, %80, %cst_51 [1] : vector<8x128xf32> to vector<8xf32>
    %82 = vector.shape_cast %81 : vector<8xf32> to vector<8x1xf32>
    %83 = vector.extract_strided_slice %78 {offsets = [8, 0], sizes = [8, 128], strides = [1, 1]} : vector<24x128xf32> to vector<8x128xf32>
    %84 = arith.mulf %61, %83 : vector<8x128xf32>
    %cst_52 = arith.constant dense<0.000000e+00> : vector<8xf32>
    %85 = vector.multi_reduction <add>, %84, %cst_52 [1] : vector<8x128xf32> to vector<8xf32>
    %86 = vector.shape_cast %85 : vector<8xf32> to vector<8x1xf32>
    %87 = vector.extract_strided_slice %78 {offsets = [16, 0], sizes = [8, 128], strides = [1, 1]} : vector<24x128xf32> to vector<8x128xf32>
    %88 = arith.mulf %61, %87 : vector<8x128xf32>
    %cst_53 = arith.constant dense<0.000000e+00> : vector<8xf32>
    %89 = vector.multi_reduction <add>, %88, %cst_53 [1] : vector<8x128xf32> to vector<8xf32>
    %90 = vector.shape_cast %89 : vector<8xf32> to vector<8x1xf32>
    %91 = tpu.concatenate %82, %86, %90 in 1 : vector<8x1xf32>, vector<8x1xf32>, vector<8x1xf32> -> vector<8x3xf32>
    %c0_54 = arith.constant 0 : index
    %c0_55 = arith.constant 0 : index
    %92 = vector.load %arg12[%c0_54, %c0_55] : memref<8x3xf32, #tpu.memory_space<vmem>>, vector<8x3xf32>
    tpu.vector_store %arg12[%c0_54, %c0_55], %91 {strides = array<i32>} : memref<8x3xf32, #tpu.memory_space<vmem>>, vector<8x3xf32>,
    return
  }
  func.func @transform_0(%arg0: i32) -> (i32, i32, i32) {
    %c0_i32 = arith.constant 0 : i32
    %c0_i32_0 = arith.constant 0 : i32
    %c0_i32_1 = arith.constant 0 : i32
    return %c0_i32, %arg0, %c0_i32_0 : i32, i32, i32
  }
  func.func @transform_1(%arg0: i32) -> (i32, i32) {
    %c0_i32 = arith.constant 0 : i32
    %c0_i32_0 = arith.constant 0 : i32
    %c0_i32_1 = arith.constant 0 : i32
    return %c0_i32, %c0_i32_0 : i32, i32
  }
  func.func @transform_2(%arg0: i32) -> (i32, i32) {
    %c0_i32 = arith.constant 0 : i32
    %c0_i32_0 = arith.constant 0 : i32
    %c0_i32_1 = arith.constant 0 : i32
    return %c0_i32, %c0_i32_0 : i32, i32
  }
  func.func @transform_3(%arg0: i32) -> (i32, i32) {
    %c0_i32 = arith.constant 0 : i32
    %c0_i32_0 = arith.constant 0 : i32
    %c0_i32_1 = arith.constant 0 : i32
    return %c0_i32, %c0_i32_0 : i32, i32
  }
  func.func @transform_4(%arg0: i32) -> (i32, i32) {
    %c0_i32 = arith.constant 0 : i32
    %c0_i32_0 = arith.constant 0 : i32
    %c0_i32_1 = arith.constant 0 : i32
    return %c0_i32, %c0_i32_0 : i32, i32
  }
  func.func @transform_5(%arg0: i32) -> (i32, i32) {
    %c0_i32 = arith.constant 0 : i32
    %c0_i32_0 = arith.constant 0 : i32
    %c0_i32_1 = arith.constant 0 : i32
    return %c0_i32, %c0_i32_0 : i32, i32
  }
  func.func @transform_6(%arg0: i32) -> (i32, i32, i32) {
    %c0_i32 = arith.constant 0 : i32
    %c0_i32_0 = arith.constant 0 : i32
    %c0_i32_1 = arith.constant 0 : i32
    return %c0_i32, %arg0, %c0_i32_0 : i32, i32, i32
  }
  func.func @transform_7(%arg0: i32) -> (i32, i32) {
    %c0_i32 = arith.constant 0 : i32
    %c0_i32_0 = arith.constant 0 : i32
    %c0_i32_1 = arith.constant 0 : i32
    return %c0_i32, %c0_i32_0 : i32, i32
  }
  func.func @transform_8(%arg0: i32) -> (i32, i32) {
    %c0_i32 = arith.constant 0 : i32
    %c0_i32_0 = arith.constant 0 : i32
    %c0_i32_1 = arith.constant 0 : i32
    return %c0_i32, %c0_i32_0 : i32, i32
  }
  func.func @transform_9(%arg0: i32) -> (i32, i32) {
    %c0_i32 = arith.constant 0 : i32
    %c0_i32_0 = arith.constant 0 : i32
    %c0_i32_1 = arith.constant 0 : i32
    return %c0_i32, %c0_i32_0 : i32, i32
  }
  func.func @transform_10(%arg0: i32) -> (i32, i32) {
    %c0_i32 = arith.constant 0 : i32
    %c0_i32_0 = arith.constant 0 : i32
    %c0_i32_1 = arith.constant 0 : i32
    return %c0_i32, %c0_i32_0 : i32, i32
  }
  func.func @transform_11(%arg0: i32) -> (i32, i32) {
    %c0_i32 = arith.constant 0 : i32
    %c0_i32_0 = arith.constant 0 : i32
    return %arg0, %c0_i32 : i32, i32
  }
}

</mosaic_0001>

<llo_original>
// kernel: tpu_custom_call.1
$region0: #{tpu_custom_call.1}
  #allocation0 [shape = 'u32[]', space=smem, size = 0x4, offset = 0x4, fixed_abs, tag = 'smem constant byte address 0x4 - core index']
  #allocation1 [shape = 'u32[144,128]{1,0:T(1,128)}', space=vmem, size = 0x12000, scoped, tag = 'internal scratch']
  %s0 = inlined_call_operand.vmem [shape: bf16[8,16,128], index: 0, kind: input, shape index: {}]
  %s1 = inlined_call_operand.vmem [shape: bf16[128,128], index: 1, kind: input, shape index: {}]
  %s2 = inlined_call_operand.vmem [shape: bf16[128,128], index: 2, kind: input, shape index: {}]
  %s3 = inlined_call_operand.vmem [shape: f32[1,128], index: 3, kind: input, shape index: {}]
  %s4 = inlined_call_operand.vmem [shape: bf16[128,128], index: 4, kind: input, shape index: {}]
  %s5 = inlined_call_operand.vmem [shape: f32[1,128], index: 5, kind: input, shape index: {}]
  %s6 = inlined_call_operand.vmem [shape: bf16[3,1024,36], index: 6, kind: input, shape index: {}]
  %s7 = inlined_call_operand.vmem [shape: bf16[36,128], index: 7, kind: input, shape index: {}]
  %s8 = inlined_call_operand.vmem [shape: f32[1,128], index: 8, kind: input, shape index: {}]
  %s9 = inlined_call_operand.vmem [shape: bf16[128,128], index: 9, kind: input, shape index: {}]
  %s10 = inlined_call_operand.vmem [shape: f32[1,128], index: 10, kind: input, shape index: {}]
  %s11 = inlined_call_operand.vmem [shape: f32[16,3], index: 11, kind: output, shape index: {}]
  %s12 = sld [smem:[#allocation0]]
  $region159: #{tpu_custom_call.1} parent=0
    _
  %s14 = ssub.s32 1, %s12
  %s15 = scalar_select 0, %s14, %s12
  $region1: #{tpu_custom_call.1} parent=0
    #allocation2 [shape = 'u8[32768]{0}', space=vmem, size = 0x8000, scoped, tag = 'input window, operand 0']
    #allocation3 [shape = 'u8[786432]{0}', space=vmem, size = 0xc0000, scoped, tag = 'input window, operand 6']
    loop: start=0, step=1, limit=4
    $region2: #{tpu_custom_call.1} parent=1 // loop_pre_header
      _
    $region3: #{tpu_custom_call.1} parent=1 // loop_header
      %s17 = sphi 0, %s21
      %p18 = scmp.ge.s32.totalorder %s17, 4
      %s27 = sphi 0, %s29
      %s30 = sphi 0, %s27
      %s31 = sphi 0, %s30
      %s47 = sphi 0, %s31
      %s51 = sphi 0, %s51
      %s53 = sphi 0, %s51
      %s54 = sphi 0, %s53
      %s68 = sphi 0, %s54
      %s72 = sphi 0, %s72
      %s74 = sphi 0, %s72
      %s75 = sphi 0, %s74
      %s89 = sphi 0, %s75
      %s93 = sphi 0, %s93
      %s95 = sphi 0, %s93
      %s96 = sphi 0, %s95
      %s110 = sphi 0, %s96
      %s114 = sphi 0, %s114
      %s116 = sphi 0, %s114
      %s117 = sphi 0, %s116
      %s131 = sphi 0, %s117
      %s135 = sphi 0, %s135
      %s137 = sphi 0, %s135
      %s138 = sphi 0, %s137
      %s152 = sphi 0, %s138
      %s158 = sphi 0, %s160
      %s161 = sphi 0, %s158
      %s162 = sphi 0, %s161
      %s178 = sphi 0, %s162
      %s182 = sphi 0, %s182
      %s184 = sphi 0, %s182
      %s185 = sphi 0, %s184
      %s199 = sphi 0, %s185
      %s203 = sphi 0, %s203
      %s205 = sphi 0, %s203
      %s206 = sphi 0, %s205
      %s220 = sphi 0, %s206
      %s224 = sphi 0, %s224
      %s226 = sphi 0, %s224
      %s227 = sphi 0, %s226
      %s241 = sphi 0, %s227
      %s245 = sphi 0, %s245
      %s247 = sphi 0, %s245
      %s248 = sphi 0, %s247
      %s262 = sphi 0, %s248
      %s268 = sphi 0, %s270
      %s271 = sphi 0, %s268
      %s272 = sphi 0, %s271
      %s288 = sphi 0, %s272
    $region4: #{tpu_custom_call.1} parent=1 // loop_header_branch
      %20 = sbr.rel (%p18) target = $region8
    $region5: #{tpu_custom_call.1} parent=1 // loop_body
      %s22 = ssub.s32 %s17, 1
      %s23 = ssub.s32 %s17, 2
      %s24 = sadd.s32 %s17, 1
      %s25 = ssub.s32 %s17, %s24
      %p26 = scmp.eq.s32.totalorder %s25, 0
      %s28 = sadd.s32 %s27, 1
      %s29 = scalar_select %p26, %s27, %s28
      %p32 = pneg %p26
      %p33 = scmp.eq.s32.totalorder %s17, 1
      %p34 = por %p32, %p33
      %p35 = scmp.ne.s32.totalorder %s27, %s30
      %p36 = scmp.eq.s32.totalorder %s17, 0
      %p37 = por %p35, %p36
      %p38 = scmp.ne.s32.totalorder %s27, %s30
      %p39 = scmp.eq.s32.totalorder %s22, 1
      %p40 = por %p38, %p39
      %p41 = scmp.ne.s32.totalorder %s30, %s31
      %p42 = scmp.eq.s32.totalorder %s22, 0
      %p43 = por %p41, %p42
      %p44 = scmp.ne.s32.totalorder %s30, %s31
      %p45 = scmp.eq.s32.totalorder %s23, 1
      %p46 = por %p44, %p45
      %p48 = scmp.ne.s32.totalorder %s31, %s47
      %p49 = scmp.eq.s32.totalorder %s23, 0
      %p50 = por %p48, %p49
      %s52 = sadd.s32 %s51, 1
      %p55 = scmp.eq.s32.totalorder %s17, 1
      %p56 = scmp.ne.s32.totalorder %s51, %s53
      %p57 = scmp.eq.s32.totalorder %s17, 0
      %p58 = por %p56, %p57
      %p59 = scmp.ne.s32.totalorder %s51, %s53
      %p60 = scmp.eq.s32.totalorder %s22, 1
      %p61 = por %p59, %p60
      %p62 = scmp.ne.s32.totalorder %s53, %s54
      %p63 = scmp.eq.s32.totalorder %s22, 0
      %p64 = por %p62, %p63
      %p65 = scmp.ne.s32.totalorder %s53, %s54
      %p66 = scmp.eq.s32.totalorder %s23, 1
      %p67 = por %p65, %p66
      %p69 = scmp.ne.s32.totalorder %s54, %s68
      %p70 = scmp.eq.s32.totalorder %s23, 0
      %p71 = por %p69, %p70
      %s73 = sadd.s32 %s72, 1
      %p76 = scmp.eq.s32.totalorder %s17, 1
      %p77 = scmp.ne.s32.totalorder %s72, %s74
      %p78 = scmp.eq.s32.totalorder %s17, 0
      %p79 = por %p77, %p78
      %p80 = scmp.ne.s32.totalorder %s72, %s74
      %p81 = scmp.eq.s32.totalorder %s22, 1
      %p82 = por %p80, %p81
      %p83 = scmp.ne.s32.totalorder %s74, %s75
      %p84 = scmp.eq.s32.totalorder %s22, 0
      %p85 = por %p83, %p84
      %p86 = scmp.ne.s32.totalorder %s74, %s75
      %p87 = scmp.eq.s32.totalorder %s23, 1
      %p88 = por %p86, %p87
      %p90 = scmp.ne.s32.totalorder %s75, %s89
      %p91 = scmp.eq.s32.totalorder %s23, 0
      %p92 = por %p90, %p91
      %s94 = sadd.s32 %s93, 1
      %p97 = scmp.eq.s32.totalorder %s17, 1
      %p98 = scmp.ne.s32.totalorder %s93, %s95
      %p99 = scmp.eq.s32.totalorder %s17, 0
      %p100 = por %p98, %p99
      %p101 = scmp.ne.s32.totalorder %s93, %s95
      %p102 = scmp.eq.s32.totalorder %s22, 1
      %p103 = por %p101, %p102
      %p104 = scmp.ne.s32.totalorder %s95, %s96
      %p105 = scmp.eq.s32.totalorder %s22, 0
      %p106 = por %p104, %p105
      %p107 = scmp.ne.s32.totalorder %s95, %s96
      %p108 = scmp.eq.s32.totalorder %s23, 1
      %p109 = por %p107, %p108
      %p111 = scmp.ne.s32.totalorder %s96, %s110
      %p112 = scmp.eq.s32.totalorder %s23, 0
      %p113 = por %p111, %p112
      %s115 = sadd.s32 %s114, 1
      %p118 = scmp.eq.s32.totalorder %s17, 1
      %p119 = scmp.ne.s32.totalorder %s114, %s116
      %p120 = scmp.eq.s32.totalorder %s17, 0
      %p121 = por %p119, %p120
      %p122 = scmp.ne.s32.totalorder %s114, %s116
      %p123 = scmp.eq.s32.totalorder %s22, 1
      %p124 = por %p122, %p123
      %p125 = scmp.ne.s32.totalorder %s116, %s117
      %p126 = scmp.eq.s32.totalorder %s22, 0
      %p127 = por %p125, %p126
      %p128 = scmp.ne.s32.totalorder %s116, %s117
      %p129 = scmp.eq.s32.totalorder %s23, 1
      %p130 = por %p128, %p129
      %p132 = scmp.ne.s32.totalorder %s117, %s131
      %p133 = scmp.eq.s32.totalorder %s23, 0
      %p134 = por %p132, %p133
      %s136 = sadd.s32 %s135, 1
      %p139 = scmp.eq.s32.totalorder %s17, 1
      %p140 = scmp.ne.s32.totalorder %s135, %s137
      %p141 = scmp.eq.s32.totalorder %s17, 0
      %p142 = por %p140, %p141
      %p143 = scmp.ne.s32.totalorder %s135, %s137
      %p144 = scmp.eq.s32.totalorder %s22, 1
      %p145 = por %p143, %p144
      %p146 = scmp.ne.s32.totalorder %s137, %s138
      %p147 = scmp.eq.s32.totalorder %s22, 0
      %p148 = por %p146, %p147
      %p149 = scmp.ne.s32.totalorder %s137, %s138
      %p150 = scmp.eq.s32.totalorder %s23, 1
      %p151 = por %p149, %p150
      %p153 = scmp.ne.s32.totalorder %s138, %s152
      %p154 = scmp.eq.s32.totalorder %s23, 0
      %p155 = por %p153, %p154
      %s156 = ssub.s32 %s17, %s24
      %p157 = scmp.eq.s32.totalorder %s156, 0
      %s159 = sadd.s32 %s158, 1
      %s160 = scalar_select %p157, %s158, %s159
      %p163 = pneg %p157
      %p164 = scmp.eq.s32.totalorder %s17, 1
      %p165 = por %p163, %p164
      %p166 = scmp.ne.s32.totalorder %s158, %s161
      %p167 = scmp.eq.s32.totalorder %s17, 0
      %p168 = por %p166, %p167
      %p169 = scmp.ne.s32.totalorder %s158, %s161
      %p170 = scmp.eq.s32.totalorder %s22, 1
      %p171 = por %p169, %p170
      %p172 = scmp.ne.s32.totalorder %s161, %s162
      %p173 = scmp.eq.s32.totalorder %s22, 0
      %p174 = por %p172, %p173
      %p175 = scmp.ne.s32.totalorder %s161, %s162
      %p176 = scmp.eq.s32.totalorder %s23, 1
      %p177 = por %p175, %p176
      %p179 = scmp.ne.s32.totalorder %s162, %s178
      %p180 = scmp.eq.s32.totalorder %s23, 0
      %p181 = por %p179, %p180
      %s183 = sadd.s32 %s182, 1
      %p186 = scmp.eq.s32.totalorder %s17, 1
      %p187 = scmp.ne.s32.totalorder %s182, %s184
      %p188 = scmp.eq.s32.totalorder %s17, 0
      %p189 = por %p187, %p188
      %p190 = scmp.ne.s32.totalorder %s182, %s184
      %p191 = scmp.eq.s32.totalorder %s22, 1
      %p192 = por %p190, %p191
      %p193 = scmp.ne.s32.totalorder %s184, %s185
      %p194 = scmp.eq.s32.totalorder %s22, 0
      %p195 = por %p193, %p194
      %p196 = scmp.ne.s32.totalorder %s184, %s185
      %p197 = scmp.eq.s32.totalorder %s23, 1
      %p198 = por %p196, %p197
      %p200 = scmp.ne.s32.totalorder %s185, %s199
      %p201 = scmp.eq.s32.totalorder %s23, 0
      %p202 = por %p200, %p201
      %s204 = sadd.s32 %s203, 1
      %p207 = scmp.eq.s32.totalorder %s17, 1
      %p208 = scmp.ne.s32.totalorder %s203, %s205
      %p209 = scmp.eq.s32.totalorder %s17, 0
      %p210 = por %p208, %p209
      %p211 = scmp.ne.s32.totalorder %s203, %s205
      %p212 = scmp.eq.s32.totalorder %s22, 1
      %p213 = por %p211, %p212
      %p214 = scmp.ne.s32.totalorder %s205, %s206
      %p215 = scmp.eq.s32.totalorder %s22, 0
      %p216 = por %p214, %p215
      %p217 = scmp.ne.s32.totalorder %s205, %s206
      %p218 = scmp.eq.s32.totalorder %s23, 1
      %p219 = por %p217, %p218
      %p221 = scmp.ne.s32.totalorder %s206, %s220
      %p222 = scmp.eq.s32.totalorder %s23, 0
      %p223 = por %p221, %p222
      %s225 = sadd.s32 %s224, 1
      %p228 = scmp.eq.s32.totalorder %s17, 1
      %p229 = scmp.ne.s32.totalorder %s224, %s226
      %p230 = scmp.eq.s32.totalorder %s17, 0
      %p231 = por %p229, %p230
      %p232 = scmp.ne.s32.totalorder %s224, %s226
      %p233 = scmp.eq.s32.totalorder %s22, 1
      %p234 = por %p232, %p233
      %p235 = scmp.ne.s32.totalorder %s226, %s227
      %p236 = scmp.eq.s32.totalorder %s22, 0
      %p237 = por %p235, %p236
      %p238 = scmp.ne.s32.totalorder %s226, %s227
      %p239 = scmp.eq.s32.totalorder %s23, 1
      %p240 = por %p238, %p239
      %p242 = scmp.ne.s32.totalorder %s227, %s241
      %p243 = scmp.eq.s32.totalorder %s23, 0
      %p244 = por %p242, %p243
      %s246 = sadd.s32 %s245, 1
      %p249 = scmp.eq.s32.totalorder %s17, 1
      %p250 = scmp.ne.s32.totalorder %s245, %s247
      %p251 = scmp.eq.s32.totalorder %s17, 0
      %p252 = por %p250, %p251
      %p253 = scmp.ne.s32.totalorder %s245, %s247
      %p254 = scmp.eq.s32.totalorder %s22, 1
      %p255 = por %p253, %p254
      %p256 = scmp.ne.s32.totalorder %s247, %s248
      %p257 = scmp.eq.s32.totalorder %s22, 0
      %p258 = por %p256, %p257
      %p259 = scmp.ne.s32.totalorder %s247, %s248
      %p260 = scmp.eq.s32.totalorder %s23, 1
      %p261 = por %p259, %p260
      %p263 = scmp.ne.s32.totalorder %s248, %s262
      %p264 = scmp.eq.s32.totalorder %s23, 0
      %p265 = por %p263, %p264
      %s266 = ssub.s32 %s17, %s24
      %p267 = scmp.eq.s32.totalorder %s266, 0
      %s269 = sadd.s32 %s268, 1
      %s270 = scalar_select %p267, %s268, %s269
      %p273 = pneg %p267
      %p274 = scmp.eq.s32.totalorder %s17, 1
      %p275 = por %p273, %p274
      %p276 = scmp.ne.s32.totalorder %s268, %s271
      %p277 = scmp.eq.s32.totalorder %s17, 0
      %p278 = por %p276, %p277
      %p279 = scmp.ne.s32.totalorder %s268, %s271
      %p280 = scmp.eq.s32.totalorder %s22, 1
      %p281 = por %p279, %p280
      %p282 = scmp.ne.s32.totalorder %s271, %s272
      %p283 = scmp.eq.s32.totalorder %s22, 0
      %p284 = por %p282, %p283
      %p285 = scmp.ne.s32.totalorder %s271, %s272
      %p286 = scmp.eq.s32.totalorder %s23, 1
      %p287 = por %p285, %p286
      %p289 = scmp.ne.s32.totalorder %s272, %s288
      %p290 = scmp.eq.s32.totalorder %s23, 0
      %p291 = por %p289, %p290
      %p292 = scmp.le.s32.totalorder 1, %s17
      %p293 = scmp.lt.s32.totalorder %s17, 3
      %p294 = pnand %p292, %p293
      %p295 = pneg %p294
      // Predicated region
      $region9: #{tpu_custom_call.1} parent=5 // pred_check
        _
      $region10: #{tpu_custom_call.1} parent=5 // pred_check_branch
        %297 = sbr.rel (%p294) target = $region12
      $region11: #{tpu_custom_call.1} parent=5 // pred_region
        %s298 = ssub.s32 %s17, 1
        // Predicated region
        $region13: #{tpu_custom_call.1} parent=11 // pred_check
          %p299 = pneg %p64
        $region14: #{tpu_custom_call.1} parent=11 // pred_check_branch
          %301 = sbr.rel (%p299) target = $region16
        $region15: #{tpu_custom_call.1} parent=11 // pred_region
          _
        $region16: #{tpu_custom_call.1} parent=11 // pred_fallthru
          _
        // Predicated region
        $region17: #{tpu_custom_call.1} parent=11 // pred_check
          %p302 = pneg %p85
        $region18: #{tpu_custom_call.1} parent=11 // pred_check_branch
          %304 = sbr.rel (%p302) target = $region20
        $region19: #{tpu_custom_call.1} parent=11 // pred_region
          _
        $region20: #{tpu_custom_call.1} parent=11 // pred_fallthru
          _
        // Predicated region
        $region21: #{tpu_custom_call.1} parent=11 // pred_check
          %p305 = pneg %p106
        $region22: #{tpu_custom_call.1} parent=11 // pred_check_branch
          %307 = sbr.rel (%p305) target = $region24
        $region23: #{tpu_custom_call.1} parent=11 // pred_region
          _
        $region24: #{tpu_custom_call.1} parent=11 // pred_fallthru
          _
        // Predicated region
        $region25: #{tpu_custom_call.1} parent=11 // pred_check
          %p308 = pneg %p127
        $region26: #{tpu_custom_call.1} parent=11 // pred_check_branch
          %310 = sbr.rel (%p308) target = $region28
        $region27: #{tpu_custom_call.1} parent=11 // pred_region
          _
        $region28: #{tpu_custom_call.1} parent=11 // pred_fallthru
          _
        // Predicated region
        $region29: #{tpu_custom_call.1} parent=11 // pred_check
          %p311 = pneg %p148
        $region30: #{tpu_custom_call.1} parent=11 // pred_check_branch
          %313 = sbr.rel (%p311) target = $region32
        $region31: #{tpu_custom_call.1} parent=11 // pred_region
          _
        $region32: #{tpu_custom_call.1} parent=11 // pred_fallthru
          _
        // Predicated region
        $region33: #{tpu_custom_call.1} parent=11 // pred_check
          %p314 = pneg %p195
        $region34: #{tpu_custom_call.1} parent=11 // pred_check_branch
          %316 = sbr.rel (%p314) target = $region36
        $region35: #{tpu_custom_call.1} parent=11 // pred_region
          _
        $region36: #{tpu_custom_call.1} parent=11 // pred_fallthru
          _
        // Predicated region
        $region37: #{tpu_custom_call.1} parent=11 // pred_check
          %p317 = pneg %p216
        $region38: #{tpu_custom_call.1} parent=11 // pred_check_branch
          %319 = sbr.rel (%p317) target = $region40
        $region39: #{tpu_custom_call.1} parent=11 // pred_region
          _
        $region40: #{tpu_custom_call.1} parent=11 // pred_fallthru
          _
        // Predicated region
        $region41: #{tpu_custom_call.1} parent=11 // pred_check
          %p320 = pneg %p237
        $region42: #{tpu_custom_call.1} parent=11 // pred_check_branch
          %322 = sbr.rel (%p320) target = $region44
        $region43: #{tpu_custom_call.1} parent=11 // pred_region
          _
        $region44: #{tpu_custom_call.1} parent=11 // pred_fallthru
          _
        // Predicated region
        $region45: #{tpu_custom_call.1} parent=11 // pred_check
          %p323 = pneg %p258
        $region46: #{tpu_custom_call.1} parent=11 // pred_check_branch
          %325 = sbr.rel (%p323) target = $region48
        $region47: #{tpu_custom_call.1} parent=11 // pred_region
          _
        $region48: #{tpu_custom_call.1} parent=11 // pred_fallthru
          _
      $region12: #{tpu_custom_call.1} parent=5 // pred_fallthru
        _
      %p326 = scmp.lt.s32.totalorder %s17, 2
      // Predicated region
      $region49: #{tpu_custom_call.1} parent=5 // pred_check
        %p327 = pneg %p326
      $region50: #{tpu_custom_call.1} parent=5 // pred_check_branch
        %329 = sbr.rel (%p327) target = $region52
      $region51: #{tpu_custom_call.1} parent=5 // pred_region
        // Predicated region
        $region53: #{tpu_custom_call.1} parent=51 // pred_check
          %p330 = pneg %p37
        $region54: #{tpu_custom_call.1} parent=51 // pred_check_branch
          %332 = sbr.rel (%p330) target = $region56
        $region55: #{tpu_custom_call.1} parent=51 // pred_region
          %s333 = sand.u32 %s27, 1
          %s334 = sand.u32 %s27, 1
          %s335 = smul.addr %s334, 32
          %s336 = scalar_lea.vmem [#allocation2], %s335
          %s337 = smul.addr %s17, 4
          %s338 = scalar_lea.vmem %s0, %s337
          // Predicated region
          $region57: #{tpu_custom_call.1} parent=55 // pred_check
            _
          $region58: #{tpu_custom_call.1} parent=55 // pred_check_branch
            %340 = sbr.rel (0) target = $region60
          $region59: #{tpu_custom_call.1} parent=55 // pred_region
            // Predicated region
            $region61: #{tpu_custom_call.1} parent=59 // pred_check
              _
            $region62: #{tpu_custom_call.1} parent=59 // pred_check_branch
              %342 = sbr.rel target = $region64
            $region63: #{tpu_custom_call.1} parent=59 // pred_region
              // Predicated region
              $region76: #{tpu_custom_call.1} parent=63 // pred_check
                _
              $region77: #{tpu_custom_call.1} parent=63 // pred_check_branch
                %371 = sbr.rel (0) target = $region79
              $region78: #{tpu_custom_call.1} parent=63 // pred_region
                loop: start=0, step=1, limit=1
                $region80: #{tpu_custom_call.1} parent=78 // loop_pre_header
                  _
                $region81: #{tpu_custom_call.1} parent=78 // loop_header
                  %s373 = sphi 0, %s377
                  %p374 = scmp.ge.s32.totalorder %s373, 1
                  %s378 = sphi %s338, %s338
                  %s379 = sphi %s336, %s336
                $region82: #{tpu_custom_call.1} parent=78 // loop_header_branch
                  %376 = sbr.rel (%p374) target = $region86
                $region83: #{tpu_custom_call.1} parent=78 // loop_body
                  _
                $region84: #{tpu_custom_call.1} parent=78 // loop_footer
                  %s377 = sadd.s32 1, %s373
                $region85: #{tpu_custom_call.1} parent=78 // loop_footer_branch
                  %372 = sbr.rel target = $region81
                $region86: #{tpu_custom_call.1} parent=78 // loop_exit
                  _
                loop: start=0, step=1, limit=1
                $region87: #{tpu_custom_call.1} parent=78 // loop_pre_header
                  _
                $region88: #{tpu_custom_call.1} parent=78 // loop_header
                  %s382 = sphi 0, %s386
                  %p383 = scmp.ge.s32.totalorder %s382, 1
                  %s387 = sphi %s338, %s338
                  %s388 = sphi %s336, %s336
                $region89: #{tpu_custom_call.1} parent=78 // loop_header_branch
                  %385 = sbr.rel (%p383) target = $region93
                $region90: #{tpu_custom_call.1} parent=78 // loop_body
                  %v389 = vld [vmem:[%s387] sm:$0xf]
                  %390 = vst [vmem:[%s388] sm:$0xf] %v389
                  %v391 = vld [vmem:[%s387 + $0x8] sm:$0xf]
                  %392 = vst [vmem:[%s388 + $0x4] sm:$0xf] %v391
                  %v393 = vld [vmem:[%s387 + $0x10] sm:$0xf]
                  %394 = vst [vmem:[%s388 + $0x8] sm:$0xf] %v393
                  %v395 = vld [vmem:[%s387 + $0x18] sm:$0xf]
                  %396 = vst [vmem:[%s388 + $0xc] sm:$0xf] %v395
                  %v397 = vld [vmem:[%s387 + $0x20] sm:$0xf]
                  %398 = vst [vmem:[%s388 + $0x10] sm:$0xf] %v397
                  %v399 = vld [vmem:[%s387 + $0x28] sm:$0xf]
                  %400 = vst [vmem:[%s388 + $0x14] sm:$0xf] %v399
                  %v401 = vld [vmem:[%s387 + $0x30] sm:$0xf]
                  %402 = vst [vmem:[%s388 + $0x18] sm:$0xf] %v401
                  %v403 = vld [vmem:[%s387 + $0x38] sm:$0xf]
                  %404 = vst [vmem:[%s388 + $0x1c] sm:$0xf] %v403
                $region91: #{tpu_custom_call.1} parent=78 // loop_footer
                  %s386 = sadd.s32 1, %s382
                $region92: #{tpu_custom_call.1} parent=78 // loop_footer_branch
                  %381 = sbr.rel target = $region88
                $region93: #{tpu_custom_call.1} parent=78 // loop_exit
                  _
              $region79: #{tpu_custom_call.1} parent=63 // pred_fallthru
                _
            $region64: #{tpu_custom_call.1} parent=59 // pred_fallthru
              _
            // Predicated region
            $region65: #{tpu_custom_call.1} parent=59 // pred_check
              _
            $region66: #{tpu_custom_call.1} parent=59 // pred_check_branch
              %344 = sbr.rel (0) target = $region68
            $region67: #{tpu_custom_call.1} parent=59 // pred_region
              loop: start=0, step=1, limit=1
              $region69: #{tpu_custom_call.1} parent=67 // loop_pre_header
                _
              $region70: #{tpu_custom_call.1} parent=67 // loop_header
                %s347 = sphi 0, %s351
                %p348 = scmp.ge.s32.totalorder %s347, 1
                %s352 = sphi %s338, %s338
                %s353 = sphi %s336, %s336
              $region71: #{tpu_custom_call.1} parent=67 // loop_header_branch
                %350 = sbr.rel (%p348) target = $region75
              $region72: #{tpu_custom_call.1} parent=67 // loop_body
                %v354 = vld [vmem:[%s352] sm:$0xf]
                %355 = vst [vmem:[%s353] sm:$0xf] %v354
                %v356 = vld [vmem:[%s352 + $0x8] sm:$0xf]
                %357 = vst [vmem:[%s353 + $0x4] sm:$0xf] %v356
                %v358 = vld [vmem:[%s352 + $0x10] sm:$0xf]
                %359 = vst [vmem:[%s353 + $0x8] sm:$0xf] %v358
                %v360 = vld [vmem:[%s352 + $0x18] sm:$0xf]
                %361 = vst [vmem:[%s353 + $0xc] sm:$0xf] %v360
                %v362 = vld [vmem:[%s352 + $0x20] sm:$0xf]
                %363 = vst [vmem:[%s353 + $0x10] sm:$0xf] %v362
                %v364 = vld [vmem:[%s352 + $0x28] sm:$0xf]
                %365 = vst [vmem:[%s353 + $0x14] sm:$0xf] %v364
                %v366 = vld [vmem:[%s352 + $0x30] sm:$0xf]
                %367 = vst [vmem:[%s353 + $0x18] sm:$0xf] %v366
                %v368 = vld [vmem:[%s352 + $0x38] sm:$0xf]
                %369 = vst [vmem:[%s353 + $0x1c] sm:$0xf] %v368
              $region73: #{tpu_custom_call.1} parent=67 // loop_footer
                %s351 = sadd.s32 1, %s347
              $region74: #{tpu_custom_call.1} parent=67 // loop_footer_branch
                %346 = sbr.rel target = $region70
              $region75: #{tpu_custom_call.1} parent=67 // loop_exit
                _
            $region68: #{tpu_custom_call.1} parent=59 // pred_fallthru
              _
          $region60: #{tpu_custom_call.1} parent=55 // pred_fallthru
            _
          %405 = vnop
        $region56: #{tpu_custom_call.1} parent=51 // pred_fallthru
          _
        // Predicated region
        $region94: #{tpu_custom_call.1} parent=51 // pred_check
          %p406 = pneg %p168
        $region95: #{tpu_custom_call.1} parent=51 // pred_check_branch
          %408 = sbr.rel (%p406) target = $region97
        $region96: #{tpu_custom_call.1} parent=51 // pred_region
          %s409 = sand.u32 %s158, 1
          %s410 = sand.u32 %s158, 1
          %s411 = smul.addr %s410, 768
          %s412 = scalar_lea.vmem [#allocation3], %s411
          %s413 = smul.u32 64, %s17
          %s414 = smul.addr %s413, 4
          %s415 = scalar_lea.vmem %s6, %s414
          // Predicated region
          $region98: #{tpu_custom_call.1} parent=96 // pred_check
            _
          $region99: #{tpu_custom_call.1} parent=96 // pred_check_branch
            %417 = sbr.rel (0) target = $region101
          $region100: #{tpu_custom_call.1} parent=96 // pred_region
            // Predicated region
            $region102: #{tpu_custom_call.1} parent=100 // pred_check
              _
            $region103: #{tpu_custom_call.1} parent=100 // pred_check_branch
              %419 = sbr.rel target = $region105
            $region104: #{tpu_custom_call.1} parent=100 // pred_region
              // Predicated region
              $region117: #{tpu_custom_call.1} parent=104 // pred_check
                _
              $region118: #{tpu_custom_call.1} parent=104 // pred_check_branch
                %816 = sbr.rel (0) target = $region120
              $region119: #{tpu_custom_call.1} parent=104 // pred_region
                loop: start=0, step=1, limit=1
                $region121: #{tpu_custom_call.1} parent=119 // loop_pre_header
                  _
                $region122: #{tpu_custom_call.1} parent=119 // loop_header
                  %s818 = sphi 0, %s822
                  %p819 = scmp.ge.s32.totalorder %s818, 1
                  %s823 = sphi %s415, %s415
                  %s824 = sphi %s412, %s412
                $region123: #{tpu_custom_call.1} parent=119 // loop_header_branch
                  %821 = sbr.rel (%p819) target = $region127
                $region124: #{tpu_custom_call.1} parent=119 // loop_body
                  _
                $region125: #{tpu_custom_call.1} parent=119 // loop_footer
                  %s822 = sadd.s32 1, %s818
                $region126: #{tpu_custom_call.1} parent=119 // loop_footer_branch
                  %817 = sbr.rel target = $region122
                $region127: #{tpu_custom_call.1} parent=119 // loop_exit
                  _
                loop: start=0, step=1, limit=1
                $region128: #{tpu_custom_call.1} parent=119 // loop_pre_header
                  _
                $region129: #{tpu_custom_call.1} parent=119 // loop_header
                  %s827 = sphi 0, %s831
                  %p828 = scmp.ge.s32.totalorder %s827, 1
                  %s832 = sphi %s415, %s415
                  %s833 = sphi %s412, %s412
                $region130: #{tpu_custom_call.1} parent=119 // loop_header_branch
                  %830 = sbr.rel (%p828) target = $region134
                $region131: #{tpu_custom_call.1} parent=119 // loop_body
                  %v834 = vld [vmem:[%s832] sm:$0xf]
                  %835 = vst [vmem:[%s833] sm:$0xf] %v834
                  %v836 = vld [vmem:[%s832 + $0x4] sm:$0xf]
                  %837 = vst [vmem:[%s833 + $0x4] sm:$0xf] %v836
                  %v838 = vld [vmem:[%s832 + $0x8] sm:$0xf]
                  %839 = vst [vmem:[%s833 + $0x8] sm:$0xf] %v838
                  %v840 = vld [vmem:[%s832 + $0xc] sm:$0xf]
                  %841 = vst [vmem:[%s833 + $0xc] sm:$0xf] %v840
                  %v842 = vld [vmem:[%s832 + $0x10] sm:$0xf]
                  %843 = vst [vmem:[%s833 + $0x10] sm:$0xf] %v842
                  %v844 = vld [vmem:[%s832 + $0x14] sm:$0xf]
                  %845 = vst [vmem:[%s833 + $0x14] sm:$0xf] %v844
                  %v846 = vld [vmem:[%s832 + $0x18] sm:$0xf]
                  %847 = vst [vmem:[%s833 + $0x18] sm:$0xf] %v846
                  %v848 = vld [vmem:[%s832 + $0x1c] sm:$0xf]
                  %849 = vst [vmem:[%s833 + $0x1c] sm:$0xf] %v848
                  %v850 = vld [vmem:[%s832 + $0x20] sm:$0xf]
                  %851 = vst [vmem:[%s833 + $0x20] sm:$0xf] %v850
                  %v852 = vld [vmem:[%s832 + $0x24] sm:$0xf]
                  %853 = vst [vmem:[%s833 + $0x24] sm:$0xf] %v852
                  %v854 = vld [vmem:[%s832 + $0x28] sm:$0xf]
                  %855 = vst [vmem:[%s833 + $0x28] sm:$0xf] %v854
                  %v856 = vld [vmem:[%s832 + $0x2c] sm:$0xf]
                  %857 = vst [vmem:[%s833 + $0x2c] sm:$0xf] %v856
                  %v858 = vld [vmem:[%s832 + $0x30] sm:$0xf]
                  %859 = vst [vmem:[%s833 + $0x30] sm:$0xf] %v858
                  %v860 = vld [vmem:[%s832 + $0x34] sm:$0xf]
                  %861 = vst [vmem:[%s833 + $0x34] sm:$0xf] %v860
                  %v862 = vld [vmem:[%s832 + $0x38] sm:$0xf]
                  %863 = vst [vmem:[%s833 + $0x38] sm:$0xf] %v862
                  %v864 = vld [vmem:[%s832 + $0x3c] sm:$0xf]
                  %865 = vst [vmem:[%s833 + $0x3c] sm:$0xf] %v864
                  %v866 = vld [vmem:[%s832 + $0x40] sm:$0xf]
                  %867 = vst [vmem:[%s833 + $0x40] sm:$0xf] %v866
                  %v868 = vld [vmem:[%s832 + $0x44] sm:$0xf]
                  %869 = vst [vmem:[%s833 + $0x44] sm:$0xf] %v868
                  %v870 = vld [vmem:[%s832 + $0x48] sm:$0xf]
                  %871 = vst [vmem:[%s833 + $0x48] sm:$0xf] %v870
                  %v872 = vld [vmem:[%s832 + $0x4c] sm:$0xf]
                  %873 = vst [vmem:[%s833 + $0x4c] sm:$0xf] %v872
                  %v874 = vld [vmem:[%s832 + $0x50] sm:$0xf]
                  %875 = vst [vmem:[%s833 + $0x50] sm:$0xf] %v874
                  %v876 = vld [vmem:[%s832 + $0x54] sm:$0xf]
                  %877 = vst [vmem:[%s833 + $0x54] sm:$0xf] %v876
                  %v878 = vld [vmem:[%s832 + $0x58] sm:$0xf]
                  %879 = vst [vmem:[%s833 + $0x58] sm:$0xf] %v878
                  %v880 = vld [vmem:[%s832 + $0x5c] sm:$0xf]
                  %881 = vst [vmem:[%s833 + $0x5c] sm:$0xf] %v880
                  %v882 = vld [vmem:[%s832 + $0x60] sm:$0xf]
                  %883 = vst [vmem:[%s833 + $0x60] sm:$0xf] %v882
                  %v884 = vld [vmem:[%s832 + $0x64] sm:$0xf]
                  %885 = vst [vmem:[%s833 + $0x64] sm:$0xf] %v884
                  %v886 = vld [vmem:[%s832 + $0x68] sm:$0xf]
                  %887 = vst [vmem:[%s833 + $0x68] sm:$0xf] %v886
                  %v888 = vld [vmem:[%s832 + $0x6c] sm:$0xf]
                  %889 = vst [vmem:[%s833 + $0x6c] sm:$0xf] %v888
                  %v890 = vld [vmem:[%s832 + $0x70] sm:$0xf]
                  %891 = vst [vmem:[%s833 + $0x70] sm:$0xf] %v890
                  %v892 = vld [vmem:[%s832 + $0x74] sm:$0xf]
                  %893 = vst [vmem:[%s833 + $0x74] sm:$0xf] %v892
                  %v894 = vld [vmem:[%s832 + $0x78] sm:$0xf]
                  %895 = vst [vmem:[%s833 + $0x78] sm:$0xf] %v894
                  %v896 = vld [vmem:[%s832 + $0x7c] sm:$0xf]
                  %897 = vst [vmem:[%s833 + $0x7c] sm:$0xf] %v896
                  %v898 = vld [vmem:[%s832 + $0x80] sm:$0xf]
                  %899 = vst [vmem:[%s833 + $0x80] sm:$0xf] %v898
                  %v900 = vld [vmem:[%s832 + $0x84] sm:$0xf]
                  %901 = vst [vmem:[%s833 + $0x84] sm:$0xf] %v900
                  %v902 = vld [vmem:[%s832 + $0x88] sm:$0xf]
                  %903 = vst [vmem:[%s833 + $0x88] sm:$0xf] %v902
                  %v904 = vld [vmem:[%s832 + $0x8c] sm:$0xf]
                  %905 = vst [vmem:[%s833 + $0x8c] sm:$0xf] %v904
                  %v906 = vld [vmem:[%s832 + $0x90] sm:$0xf]
                  %907 = vst [vmem:[%s833 + $0x90] sm:$0xf] %v906
                  %v908 = vld [vmem:[%s832 + $0x94] sm:$0xf]
                  %909 = vst [vmem:[%s833 + $0x94] sm:$0xf] %v908
                  %v910 = vld [vmem:[%s832 + $0x98] sm:$0xf]
                  %911 = vst [vmem:[%s833 + $0x98] sm:$0xf] %v910
                  %v912 = vld [vmem:[%s832 + $0x9c] sm:$0xf]
                  %913 = vst [vmem:[%s833 + $0x9c] sm:$0xf] %v912
                  %v914 = vld [vmem:[%s832 + $0xa0] sm:$0xf]
                  %915 = vst [vmem:[%s833 + $0xa0] sm:$0xf] %v914
                  %v916 = vld [vmem:[%s832 + $0xa4] sm:$0xf]
                  %917 = vst [vmem:[%s833 + $0xa4] sm:$0xf] %v916
                  %v918 = vld [vmem:[%s832 + $0xa8] sm:$0xf]
                  %919 = vst [vmem:[%s833 + $0xa8] sm:$0xf] %v918
                  %v920 = vld [vmem:[%s832 + $0xac] sm:$0xf]
                  %921 = vst [vmem:[%s833 + $0xac] sm:$0xf] %v920
                  %v922 = vld [vmem:[%s832 + $0xb0] sm:$0xf]
                  %923 = vst [vmem:[%s833 + $0xb0] sm:$0xf] %v922
                  %v924 = vld [vmem:[%s832 + $0xb4] sm:$0xf]
                  %925 = vst [vmem:[%s833 + $0xb4] sm:$0xf] %v924
                  %v926 = vld [vmem:[%s832 + $0xb8] sm:$0xf]
                  %927 = vst [vmem:[%s833 + $0xb8] sm:$0xf] %v926
                  %v928 = vld [vmem:[%s832 + $0xbc] sm:$0xf]
                  %929 = vst [vmem:[%s833 + $0xbc] sm:$0xf] %v928
                  %v930 = vld [vmem:[%s832 + $0xc0] sm:$0xf]
                  %931 = vst [vmem:[%s833 + $0xc0] sm:$0xf] %v930
                  %v932 = vld [vmem:[%s832 + $0xc4] sm:$0xf]
                  %933 = vst [vmem:[%s833 + $0xc4] sm:$0xf] %v932
                  %v934 = vld [vmem:[%s832 + $0xc8] sm:$0xf]
                  %935 = vst [vmem:[%s833 + $0xc8] sm:$0xf] %v934
                  %v936 = vld [vmem:[%s832 + $0xcc] sm:$0xf]
                  %937 = vst [vmem:[%s833 + $0xcc] sm:$0xf] %v936
                  %v938 = vld [vmem:[%s832 + $0xd0] sm:$0xf]
                  %939 = vst [vmem:[%s833 + $0xd0] sm:$0xf] %v938
                  %v940 = vld [vmem:[%s832 + $0xd4] sm:$0xf]
                  %941 = vst [vmem:[%s833 + $0xd4] sm:$0xf] %v940
                  %v942 = vld [vmem:[%s832 + $0xd8] sm:$0xf]
                  %943 = vst [vmem:[%s833 + $0xd8] sm:$0xf] %v942
                  %v944 = vld [vmem:[%s832 + $0xdc] sm:$0xf]
                  %945 = vst [vmem:[%s833 + $0xdc] sm:$0xf] %v944
                  %v946 = vld [vmem:[%s832 + $0xe0] sm:$0xf]
                  %947 = vst [vmem:[%s833 + $0xe0] sm:$0xf] %v946
                  %v948 = vld [vmem:[%s832 + $0xe4] sm:$0xf]
                  %949 = vst [vmem:[%s833 + $0xe4] sm:$0xf] %v948
                  %v950 = vld [vmem:[%s832 + $0xe8] sm:$0xf]
                  %951 = vst [vmem:[%s833 + $0xe8] sm:$0xf] %v950
                  %v952 = vld [vmem:[%s832 + $0xec] sm:$0xf]
                  %953 = vst [vmem:[%s833 + $0xec] sm:$0xf] %v952
                  %v954 = vld [vmem:[%s832 + $0xf0] sm:$0xf]
                  %955 = vst [vmem:[%s833 + $0xf0] sm:$0xf] %v954
                  %v956 = vld [vmem:[%s832 + $0xf4] sm:$0xf]
                  %957 = vst [vmem:[%s833 + $0xf4] sm:$0xf] %v956
                  %v958 = vld [vmem:[%s832 + $0xf8] sm:$0xf]
                  %959 = vst [vmem:[%s833 + $0xf8] sm:$0xf] %v958
                  %v960 = vld [vmem:[%s832 + $0xfc] sm:$0xf]
                  %961 = vst [vmem:[%s833 + $0xfc] sm:$0xf] %v960
                  %v962 = vld [vmem:[%s832 + $0x200] sm:$0xf]
                  %963 = vst [vmem:[%s833 + $0x100] sm:$0xf] %v962
                  %v964 = vld [vmem:[%s832 + $0x204] sm:$0xf]
                  %965 = vst [vmem:[%s833 + $0x104] sm:$0xf] %v964
                  %v966 = vld [vmem:[%s832 + $0x208] sm:$0xf]
                  %967 = vst [vmem:[%s833 + $0x108] sm:$0xf] %v966
                  %v968 = vld [vmem:[%s832 + $0x20c] sm:$0xf]
                  %969 = vst [vmem:[%s833 + $0x10c] sm:$0xf] %v968
                  %v970 = vld [vmem:[%s832 + $0x210] sm:$0xf]
                  %971 = vst [vmem:[%s833 + $0x110] sm:$0xf] %v970
                  %v972 = vld [vmem:[%s832 + $0x214] sm:$0xf]
                  %973 = vst [vmem:[%s833 + $0x114] sm:$0xf] %v972
                  %v974 = vld [vmem:[%s832 + $0x218] sm:$0xf]
                  %975 = vst [vmem:[%s833 + $0x118] sm:$0xf] %v974
                  %v976 = vld [vmem:[%s832 + $0x21c] sm:$0xf]
                  %977 = vst [vmem:[%s833 + $0x11c] sm:$0xf] %v976
                  %v978 = vld [vmem:[%s832 + $0x220] sm:$0xf]
                  %979 = vst [vmem:[%s833 + $0x120] sm:$0xf] %v978
                  %v980 = vld [vmem:[%s832 + $0x224] sm:$0xf]
                  %981 = vst [vmem:[%s833 + $0x124] sm:$0xf] %v980
                  %v982 = vld [vmem:[%s832 + $0x228] sm:$0xf]
                  %983 = vst [vmem:[%s833 + $0x128] sm:$0xf] %v982
                  %v984 = vld [vmem:[%s832 + $0x22c] sm:$0xf]
                  %985 = vst [vmem:[%s833 + $0x12c] sm:$0xf] %v984
                  %v986 = vld [vmem:[%s832 + $0x230] sm:$0xf]
                  %987 = vst [vmem:[%s833 + $0x130] sm:$0xf] %v986
                  %v988 = vld [vmem:[%s832 + $0x234] sm:$0xf]
                  %989 = vst [vmem:[%s833 + $0x134] sm:$0xf] %v988
                  %v990 = vld [vmem:[%s832 + $0x238] sm:$0xf]
                  %991 = vst [vmem:[%s833 + $0x138] sm:$0xf] %v990
                  %v992 = vld [vmem:[%s832 + $0x23c] sm:$0xf]
                  %993 = vst [vmem:[%s833 + $0x13c] sm:$0xf] %v992
                  %v994 = vld [vmem:[%s832 + $0x240] sm:$0xf]
                  %995 = vst [vmem:[%s833 + $0x140] sm:$0xf] %v994
                  %v996 = vld [vmem:[%s832 + $0x244] sm:$0xf]
                  %997 = vst [vmem:[%s833 + $0x144] sm:$0xf] %v996
                  %v998 = vld [vmem:[%s832 + $0x248] sm:$0xf]
                  %999 = vst [vmem:[%s833 + $0x148] sm:$0xf] %v998
                  %v1000 = vld [vmem:[%s832 + $0x24c] sm:$0xf]
                  %1001 = vst [vmem:[%s833 + $0x14c] sm:$0xf] %v1000
                  %v1002 = vld [vmem:[%s832 + $0x250] sm:$0xf]
                  %1003 = vst [vmem:[%s833 + $0x150] sm:$0xf] %v1002
                  %v1004 = vld [vmem:[%s832 + $0x254] sm:$0xf]
                  %1005 = vst [vmem:[%s833 + $0x154] sm:$0xf] %v1004
                  %v1006 = vld [vmem:[%s832 + $0x258] sm:$0xf]
                  %1007 = vst [vmem:[%s833 + $0x158] sm:$0xf] %v1006
                  %v1008 = vld [vmem:[%s832 + $0x25c] sm:$0xf]
                  %1009 = vst [vmem:[%s833 + $0x15c] sm:$0xf] %v1008
                  %v1010 = vld [vmem:[%s832 + $0x260] sm:$0xf]
                  %1011 = vst [vmem:[%s833 + $0x160] sm:$0xf] %v1010
                  %v1012 = vld [vmem:[%s832 + $0x264] sm:$0xf]
                  %1013 = vst [vmem:[%s833 + $0x164] sm:$0xf] %v1012
                  %v1014 = vld [vmem:[%s832 + $0x268] sm:$0xf]
                  %1015 = vst [vmem:[%s833 + $0x168] sm:$0xf] %v1014
                  %v1016 = vld [vmem:[%s832 + $0x26c] sm:$0xf]
                  %1017 = vst [vmem:[%s833 + $0x16c] sm:$0xf] %v1016
                  %v1018 = vld [vmem:[%s832 + $0x270] sm:$0xf]
                  %1019 = vst [vmem:[%s833 + $0x170] sm:$0xf] %v1018
                  %v1020 = vld [vmem:[%s832 + $0x274] sm:$0xf]
                  %1021 = vst [vmem:[%s833 + $0x174] sm:$0xf] %v1020
                  %v1022 = vld [vmem:[%s832 + $0x278] sm:$0xf]
                  %1023 = vst [vmem:[%s833 + $0x178] sm:$0xf] %v1022
                  %v1024 = vld [vmem:[%s832 + $0x27c] sm:$0xf]
                  %1025 = vst [vmem:[%s833 + $0x17c] sm:$0xf] %v1024
                  %v1026 = vld [vmem:[%s832 + $0x280] sm:$0xf]
                  %1027 = vst [vmem:[%s833 + $0x180] sm:$0xf] %v1026
                  %v1028 = vld [vmem:[%s832 + $0x284] sm:$0xf]
                  %1029 = vst [vmem:[%s833 + $0x184] sm:$0xf] %v1028
                  %v1030 = vld [vmem:[%s832 + $0x288] sm:$0xf]
                  %1031 = vst [vmem:[%s833 + $0x188] sm:$0xf] %v1030
                  %v1032 = vld [vmem:[%s832 + $0x28c] sm:$0xf]
                  %1033 = vst [vmem:[%s833 + $0x18c] sm:$0xf] %v1032
                  %v1034 = vld [vmem:[%s832 + $0x290] sm:$0xf]
                  %1035 = vst [vmem:[%s833 + $0x190] sm:$0xf] %v1034
                  %v1036 = vld [vmem:[%s832 + $0x294] sm:$0xf]
                  %1037 = vst [vmem:[%s833 + $0x194] sm:$0xf] %v1036
                  %v1038 = vld [vmem:[%s832 + $0x298] sm:$0xf]
                  %1039 = vst [vmem:[%s833 + $0x198] sm:$0xf] %v1038
                  %v1040 = vld [vmem:[%s832 + $0x29c] sm:$0xf]
                  %1041 = vst [vmem:[%s833 + $0x19c] sm:$0xf] %v1040
                  %v1042 = vld [vmem:[%s832 + $0x2a0] sm:$0xf]
                  %1043 = vst [vmem:[%s833 + $0x1a0] sm:$0xf] %v1042
                  %v1044 = vld [vmem:[%s832 + $0x2a4] sm:$0xf]
                  %1045 = vst [vmem:[%s833 + $0x1a4] sm:$0xf] %v1044
                  %v1046 = vld [vmem:[%s832 + $0x2a8] sm:$0xf]
                  %1047 = vst [vmem:[%s833 + $0x1a8] sm:$0xf] %v1046
                  %v1048 = vld [vmem:[%s832 + $0x2ac] sm:$0xf]
                  %1049 = vst [vmem:[%s833 + $0x1ac] sm:$0xf] %v1048
                  %v1050 = vld [vmem:[%s832 + $0x2b0] sm:$0xf]
                  %1051 = vst [vmem:[%s833 + $0x1b0] sm:$0xf] %v1050
                  %v1052 = vld [vmem:[%s832 + $0x2b4] sm:$0xf]
                  %1053 = vst [vmem:[%s833 + $0x1b4] sm:$0xf] %v1052
                  %v1054 = vld [vmem:[%s832 + $0x2b8] sm:$0xf]
                  %1055 = vst [vmem:[%s833 + $0x1b8] sm:$0xf] %v1054
                  %v1056 = vld [vmem:[%s832 + $0x2bc] sm:$0xf]
                  %1057 = vst [vmem:[%s833 + $0x1bc] sm:$0xf] %v1056
                  %v1058 = vld [vmem:[%s832 + $0x2c0] sm:$0xf]
                  %1059 = vst [vmem:[%s833 + $0x1c0] sm:$0xf] %v1058
                  %v1060 = vld [vmem:[%s832 + $0x2c4] sm:$0xf]
                  %1061 = vst [vmem:[%s833 + $0x1c4] sm:$0xf] %v1060
                  %v1062 = vld [vmem:[%s832 + $0x2c8] sm:$0xf]
                  %1063 = vst [vmem:[%s833 + $0x1c8] sm:$0xf] %v1062
                  %v1064 = vld [vmem:[%s832 + $0x2cc] sm:$0xf]
                  %1065 = vst [vmem:[%s833 + $0x1cc] sm:$0xf] %v1064
                  %v1066 = vld [vmem:[%s832 + $0x2d0] sm:$0xf]
                  %1067 = vst [vmem:[%s833 + $0x1d0] sm:$0xf] %v1066
                  %v1068 = vld [vmem:[%s832 + $0x2d4] sm:$0xf]
                  %1069 = vst [vmem:[%s833 + $0x1d4] sm:$0xf] %v1068
                  %v1070 = vld [vmem:[%s832 + $0x2d8] sm:$0xf]
                  %1071 = vst [vmem:[%s833 + $0x1d8] sm:$0xf] %v1070
                  %v1072 = vld [vmem:[%s832 + $0x2dc] sm:$0xf]
                  %1073 = vst [vmem:[%s833 + $0x1dc] sm:$0xf] %v1072
                  %v1074 = vld [vmem:[%s832 + $0x2e0] sm:$0xf]
                  %1075 = vst [vmem:[%s833 + $0x1e0] sm:$0xf] %v1074
                  %v1076 = vld [vmem:[%s832 + $0x2e4] sm:$0xf]
                  %1077 = vst [vmem:[%s833 + $0x1e4] sm:$0xf] %v1076
                  %v1078 = vld [vmem:[%s832 + $0x2e8] sm:$0xf]
                  %1079 = vst [vmem:[%s833 + $0x1e8] sm:$0xf] %v1078
                  %v1080 = vld [vmem:[%s832 + $0x2ec] sm:$0xf]
                  %1081 = vst [vmem:[%s833 + $0x1ec] sm:$0xf] %v1080
                  %v1082 = vld [vmem:[%s832 + $0x2f0] sm:$0xf]
                  %1083 = vst [vmem:[%s833 + $0x1f0] sm:$0xf] %v1082
                  %v1084 = vld [vmem:[%s832 + $0x2f4] sm:$0xf]
                  %1085 = vst [vmem:[%s833 + $0x1f4] sm:$0xf] %v1084
                  %v1086 = vld [vmem:[%s832 + $0x2f8] sm:$0xf]
                  %1087 = vst [vmem:[%s833 + $0x1f8] sm:$0xf] %v1086
                  %v1088 = vld [vmem:[%s832 + $0x2fc] sm:$0xf]
                  %1089 = vst [vmem:[%s833 + $0x1fc] sm:$0xf] %v1088
                  %v1090 = vld [vmem:[%s832 + $0x400] sm:$0xf]
                  %1091 = vst [vmem:[%s833 + $0x200] sm:$0xf] %v1090
                  %v1092 = vld [vmem:[%s832 + $0x404] sm:$0xf]
                  %1093 = vst [vmem:[%s833 + $0x204] sm:$0xf] %v1092
                  %v1094 = vld [vmem:[%s832 + $0x408] sm:$0xf]
                  %1095 = vst [vmem:[%s833 + $0x208] sm:$0xf] %v1094
                  %v1096 = vld [vmem:[%s832 + $0x40c] sm:$0xf]
                  %1097 = vst [vmem:[%s833 + $0x20c] sm:$0xf] %v1096
                  %v1098 = vld [vmem:[%s832 + $0x410] sm:$0xf]
                  %1099 = vst [vmem:[%s833 + $0x210] sm:$0xf] %v1098
                  %v1100 = vld [vmem:[%s832 + $0x414] sm:$0xf]
                  %1101 = vst [vmem:[%s833 + $0x214] sm:$0xf] %v1100
                  %v1102 = vld [vmem:[%s832 + $0x418] sm:$0xf]
                  %1103 = vst [vmem:[%s833 + $0x218] sm:$0xf] %v1102
                  %v1104 = vld [vmem:[%s832 + $0x41c] sm:$0xf]
                  %1105 = vst [vmem:[%s833 + $0x21c] sm:$0xf] %v1104
                  %v1106 = vld [vmem:[%s832 + $0x420] sm:$0xf]
                  %1107 = vst [vmem:[%s833 + $0x220] sm:$0xf] %v1106
                  %v1108 = vld [vmem:[%s832 + $0x424] sm:$0xf]
                  %1109 = vst [vmem:[%s833 + $0x224] sm:$0xf] %v1108
                  %v1110 = vld [vmem:[%s832 + $0x428] sm:$0xf]
                  %1111 = vst [vmem:[%s833 + $0x228] sm:$0xf] %v1110
                  %v1112 = vld [vmem:[%s832 + $0x42c] sm:$0xf]
                  %1113 = vst [vmem:[%s833 + $0x22c] sm:$0xf] %v1112
                  %v1114 = vld [vmem:[%s832 + $0x430] sm:$0xf]
                  %1115 = vst [vmem:[%s833 + $0x230] sm:$0xf] %v1114
                  %v1116 = vld [vmem:[%s832 + $0x434] sm:$0xf]
                  %1117 = vst [vmem:[%s833 + $0x234] sm:$0xf] %v1116
                  %v1118 = vld [vmem:[%s832 + $0x438] sm:$0xf]
                  %1119 = vst [vmem:[%s833 + $0x238] sm:$0xf] %v1118
                  %v1120 = vld [vmem:[%s832 + $0x43c] sm:$0xf]
                  %1121 = vst [vmem:[%s833 + $0x23c] sm:$0xf] %v1120
                  %v1122 = vld [vmem:[%s832 + $0x440] sm:$0xf]
                  %1123 = vst [vmem:[%s833 + $0x240] sm:$0xf] %v1122
                  %v1124 = vld [vmem:[%s832 + $0x444] sm:$0xf]
                  %1125 = vst [vmem:[%s833 + $0x244] sm:$0xf] %v1124
                  %v1126 = vld [vmem:[%s832 + $0x448] sm:$0xf]
                  %1127 = vst [vmem:[%s833 + $0x248] sm:$0xf] %v1126
                  %v1128 = vld [vmem:[%s832 + $0x44c] sm:$0xf]
                  %1129 = vst [vmem:[%s833 + $0x24c] sm:$0xf] %v1128
                  %v1130 = vld [vmem:[%s832 + $0x450] sm:$0xf]
                  %1131 = vst [vmem:[%s833 + $0x250] sm:$0xf] %v1130
                  %v1132 = vld [vmem:[%s832 + $0x454] sm:$0xf]
                  %1133 = vst [vmem:[%s833 + $0x254] sm:$0xf] %v1132
                  %v1134 = vld [vmem:[%s832 + $0x458] sm:$0xf]
                  %1135 = vst [vmem:[%s833 + $0x258] sm:$0xf] %v1134
                  %v1136 = vld [vmem:[%s832 + $0x45c] sm:$0xf]
                  %1137 = vst [vmem:[%s833 + $0x25c] sm:$0xf] %v1136
                  %v1138 = vld [vmem:[%s832 + $0x460] sm:$0xf]
                  %1139 = vst [vmem:[%s833 + $0x260] sm:$0xf] %v1138
                  %v1140 = vld [vmem:[%s832 + $0x464] sm:$0xf]
                  %1141 = vst [vmem:[%s833 + $0x264] sm:$0xf] %v1140
                  %v1142 = vld [vmem:[%s832 + $0x468] sm:$0xf]
                  %1143 = vst [vmem:[%s833 + $0x268] sm:$0xf] %v1142
                  %v1144 = vld [vmem:[%s832 + $0x46c] sm:$0xf]
                  %1145 = vst [vmem:[%s833 + $0x26c] sm:$0xf] %v1144
                  %v1146 = vld [vmem:[%s832 + $0x470] sm:$0xf]
                  %1147 = vst [vmem:[%s833 + $0x270] sm:$0xf] %v1146
                  %v1148 = vld [vmem:[%s832 + $0x474] sm:$0xf]
                  %1149 = vst [vmem:[%s833 + $0x274] sm:$0xf] %v1148
                  %v1150 = vld [vmem:[%s832 + $0x478] sm:$0xf]
                  %1151 = vst [vmem:[%s833 + $0x278] sm:$0xf] %v1150
                  %v1152 = vld [vmem:[%s832 + $0x47c] sm:$0xf]
                  %1153 = vst [vmem:[%s833 + $0x27c] sm:$0xf] %v1152
                  %v1154 = vld [vmem:[%s832 + $0x480] sm:$0xf]
                  %1155 = vst [vmem:[%s833 + $0x280] sm:$0xf] %v1154
                  %v1156 = vld [vmem:[%s832 + $0x484] sm:$0xf]
                  %1157 = vst [vmem:[%s833 + $0x284] sm:$0xf] %v1156
                  %v1158 = vld [vmem:[%s832 + $0x488] sm:$0xf]
                  %1159 = vst [vmem:[%s833 + $0x288] sm:$0xf] %v1158
                  %v1160 = vld [vmem:[%s832 + $0x48c] sm:$0xf]
                  %1161 = vst [vmem:[%s833 + $0x28c] sm:$0xf] %v1160
                  %v1162 = vld [vmem:[%s832 + $0x490] sm:$0xf]
                  %1163 = vst [vmem:[%s833 + $0x290] sm:$0xf] %v1162
                  %v1164 = vld [vmem:[%s832 + $0x494] sm:$0xf]
                  %1165 = vst [vmem:[%s833 + $0x294] sm:$0xf] %v1164
                  %v1166 = vld [vmem:[%s832 + $0x498] sm:$0xf]
                  %1167 = vst [vmem:[%s833 + $0x298] sm:$0xf] %v1166
                  %v1168 = vld [vmem:[%s832 + $0x49c] sm:$0xf]
                  %1169 = vst [vmem:[%s833 + $0x29c] sm:$0xf] %v1168
                  %v1170 = vld [vmem:[%s832 + $0x4a0] sm:$0xf]
                  %1171 = vst [vmem:[%s833 + $0x2a0] sm:$0xf] %v1170
                  %v1172 = vld [vmem:[%s832 + $0x4a4] sm:$0xf]
                  %1173 = vst [vmem:[%s833 + $0x2a4] sm:$0xf] %v1172
                  %v1174 = vld [vmem:[%s832 + $0x4a8] sm:$0xf]
                  %1175 = vst [vmem:[%s833 + $0x2a8] sm:$0xf] %v1174
                  %v1176 = vld [vmem:[%s832 + $0x4ac] sm:$0xf]
                  %1177 = vst [vmem:[%s833 + $0x2ac] sm:$0xf] %v1176
                  %v1178 = vld [vmem:[%s832 + $0x4b0] sm:$0xf]
                  %1179 = vst [vmem:[%s833 + $0x2b0] sm:$0xf] %v1178
                  %v1180 = vld [vmem:[%s832 + $0x4b4] sm:$0xf]
                  %1181 = vst [vmem:[%s833 + $0x2b4] sm:$0xf] %v1180
                  %v1182 = vld [vmem:[%s832 + $0x4b8] sm:$0xf]
                  %1183 = vst [vmem:[%s833 + $0x2b8] sm:$0xf] %v1182
                  %v1184 = vld [vmem:[%s832 + $0x4bc] sm:$0xf]
                  %1185 = vst [vmem:[%s833 + $0x2bc] sm:$0xf] %v1184
                  %v1186 = vld [vmem:[%s832 + $0x4c0] sm:$0xf]
                  %1187 = vst [vmem:[%s833 + $0x2c0] sm:$0xf] %v1186
                  %v1188 = vld [vmem:[%s832 + $0x4c4] sm:$0xf]
                  %1189 = vst [vmem:[%s833 + $0x2c4] sm:$0xf] %v1188
                  %v1190 = vld [vmem:[%s832 + $0x4c8] sm:$0xf]
                  %1191 = vst [vmem:[%s833 + $0x2c8] sm:$0xf] %v1190
                  %v1192 = vld [vmem:[%s832 + $0x4cc] sm:$0xf]
                  %1193 = vst [vmem:[%s833 + $0x2cc] sm:$0xf] %v1192
                  %v1194 = vld [vmem:[%s832 + $0x4d0] sm:$0xf]
                  %1195 = vst [vmem:[%s833 + $0x2d0] sm:$0xf] %v1194
                  %v1196 = vld [vmem:[%s832 + $0x4d4] sm:$0xf]
                  %1197 = vst [vmem:[%s833 + $0x2d4] sm:$0xf] %v1196
                  %v1198 = vld [vmem:[%s832 + $0x4d8] sm:$0xf]
                  %1199 = vst [vmem:[%s833 + $0x2d8] sm:$0xf] %v1198
                  %v1200 = vld [vmem:[%s832 + $0x4dc] sm:$0xf]
                  %1201 = vst [vmem:[%s833 + $0x2dc] sm:$0xf] %v1200
                  %v1202 = vld [vmem:[%s832 + $0x4e0] sm:$0xf]
                  %1203 = vst [vmem:[%s833 + $0x2e0] sm:$0xf] %v1202
                  %v1204 = vld [vmem:[%s832 + $0x4e4] sm:$0xf]
                  %1205 = vst [vmem:[%s833 + $0x2e4] sm:$0xf] %v1204
                  %v1206 = vld [vmem:[%s832 + $0x4e8] sm:$0xf]
                  %1207 = vst [vmem:[%s833 + $0x2e8] sm:$0xf] %v1206
                  %v1208 = vld [vmem:[%s832 + $0x4ec] sm:$0xf]
                  %1209 = vst [vmem:[%s833 + $0x2ec] sm:$0xf] %v1208
                  %v1210 = vld [vmem:[%s832 + $0x4f0] sm:$0xf]
                  %1211 = vst [vmem:[%s833 + $0x2f0] sm:$0xf] %v1210
                  %v1212 = vld [vmem:[%s832 + $0x4f4] sm:$0xf]
                  %1213 = vst [vmem:[%s833 + $0x2f4] sm:$0xf] %v1212
                  %v1214 = vld [vmem:[%s832 + $0x4f8] sm:$0xf]
                  %1215 = vst [vmem:[%s833 + $0x2f8] sm:$0xf] %v1214
                  %v1216 = vld [vmem:[%s832 + $0x4fc] sm:$0xf]
                  %1217 = vst [vmem:[%s833 + $0x2fc] sm:$0xf] %v1216
                $region132: #{tpu_custom_call.1} parent=119 // loop_footer
                  %s831 = sadd.s32 1, %s827
                $region133: #{tpu_custom_call.1} parent=119 // loop_footer_branch
                  %826 = sbr.rel target = $region129
                $region134: #{tpu_custom_call.1} parent=119 // loop_exit
                  _
              $region120: #{tpu_custom_call.1} parent=104 // pred_fallthru
                _
            $region105: #{tpu_custom_call.1} parent=100 // pred_fallthru
              _
            // Predicated region
            $region106: #{tpu_custom_call.1} parent=100 // pred_check
              _
            $region107: #{tpu_custom_call.1} parent=100 // pred_check_branch
              %421 = sbr.rel (0) target = $region109
            $region108: #{tpu_custom_call.1} parent=100 // pred_region
              loop: start=0, step=1, limit=1
              $region110: #{tpu_custom_call.1} parent=108 // loop_pre_header
                _
              $region111: #{tpu_custom_call.1} parent=108 // loop_header
                %s424 = sphi 0, %s428
                %p425 = scmp.ge.s32.totalorder %s424, 1
                %s429 = sphi %s415, %s415
                %s430 = sphi %s412, %s412
              $region112: #{tpu_custom_call.1} parent=108 // loop_header_branch
                %427 = sbr.rel (%p425) target = $region116
              $region113: #{tpu_custom_call.1} parent=108 // loop_body
                %v431 = vld [vmem:[%s429] sm:$0xf]
                %432 = vst [vmem:[%s430] sm:$0xf] %v431
                %v433 = vld [vmem:[%s429 + $0x4] sm:$0xf]
                %434 = vst [vmem:[%s430 + $0x4] sm:$0xf] %v433
                %v435 = vld [vmem:[%s429 + $0x8] sm:$0xf]
                %436 = vst [vmem:[%s430 + $0x8] sm:$0xf] %v435
                %v437 = vld [vmem:[%s429 + $0xc] sm:$0xf]
                %438 = vst [vmem:[%s430 + $0xc] sm:$0xf] %v437
                %v439 = vld [vmem:[%s429 + $0x10] sm:$0xf]
                %440 = vst [vmem:[%s430 + $0x10] sm:$0xf] %v439
                %v441 = vld [vmem:[%s429 + $0x14] sm:$0xf]
                %442 = vst [vmem:[%s430 + $0x14] sm:$0xf] %v441
                %v443 = vld [vmem:[%s429 + $0x18] sm:$0xf]
                %444 = vst [vmem:[%s430 + $0x18] sm:$0xf] %v443
                %v445 = vld [vmem:[%s429 + $0x1c] sm:$0xf]
                %446 = vst [vmem:[%s430 + $0x1c] sm:$0xf] %v445
                %v447 = vld [vmem:[%s429 + $0x20] sm:$0xf]
                %448 = vst [vmem:[%s430 + $0x20] sm:$0xf] %v447
                %v449 = vld [vmem:[%s429 + $0x24] sm:$0xf]
                %450 = vst [vmem:[%s430 + $0x24] sm:$0xf] %v449
                %v451 = vld [vmem:[%s429 + $0x28] sm:$0xf]
                %452 = vst [vmem:[%s430 + $0x28] sm:$0xf] %v451
                %v453 = vld [vmem:[%s429 + $0x2c] sm:$0xf]
                %454 = vst [vmem:[%s430 + $0x2c] sm:$0xf] %v453
                %v455 = vld [vmem:[%s429 + $0x30] sm:$0xf]
                %456 = vst [vmem:[%s430 + $0x30] sm:$0xf] %v455
                %v457 = vld [vmem:[%s429 + $0x34] sm:$0xf]
                %458 = vst [vmem:[%s430 + $0x34] sm:$0xf] %v457
                %v459 = vld [vmem:[%s429 + $0x38] sm:$0xf]
                %460 = vst [vmem:[%s430 + $0x38] sm:$0xf] %v459
                %v461 = vld [vmem:[%s429 + $0x3c] sm:$0xf]
                %462 = vst [vmem:[%s430 + $0x3c] sm:$0xf] %v461
                %v463 = vld [vmem:[%s429 + $0x40] sm:$0xf]
                %464 = vst [vmem:[%s430 + $0x40] sm:$0xf] %v463
                %v465 = vld [vmem:[%s429 + $0x44] sm:$0xf]
                %466 = vst [vmem:[%s430 + $0x44] sm:$0xf] %v465
                %v467 = vld [vmem:[%s429 + $0x48] sm:$0xf]
                %468 = vst [vmem:[%s430 + $0x48] sm:$0xf] %v467
                %v469 = vld [vmem:[%s429 + $0x4c] sm:$0xf]
                %470 = vst [vmem:[%s430 + $0x4c] sm:$0xf] %v469
                %v471 = vld [vmem:[%s429 + $0x50] sm:$0xf]
                %472 = vst [vmem:[%s430 + $0x50] sm:$0xf] %v471
                %v473 = vld [vmem:[%s429 + $0x54] sm:$0xf]
                %474 = vst [vmem:[%s430 + $0x54] sm:$0xf] %v473
                %v475 = vld [vmem:[%s429 + $0x58] sm:$0xf]
                %476 = vst [vmem:[%s430 + $0x58] sm:$0xf] %v475
                %v477 = vld [vmem:[%s429 + $0x5c] sm:$0xf]
                %478 = vst [vmem:[%s430 + $0x5c] sm:$0xf] %v477
                %v479 = vld [vmem:[%s429 + $0x60] sm:$0xf]
                %480 = vst [vmem:[%s430 + $0x60] sm:$0xf] %v479
                %v481 = vld [vmem:[%s429 + $0x64] sm:$0xf]
                %482 = vst [vmem:[%s430 + $0x64] sm:$0xf] %v481
                %v483 = vld [vmem:[%s429 + $0x68] sm:$0xf]
                %484 = vst [vmem:[%s430 + $0x68] sm:$0xf] %v483
                %v485 = vld [vmem:[%s429 + $0x6c] sm:$0xf]
                %486 = vst [vmem:[%s430 + $0x6c] sm:$0xf] %v485
                %v487 = vld [vmem:[%s429 + $0x70] sm:$0xf]
                %488 = vst [vmem:[%s430 + $0x70] sm:$0xf] %v487
                %v489 = vld [vmem:[%s429 + $0x74] sm:$0xf]
                %490 = vst [vmem:[%s430 + $0x74] sm:$0xf] %v489
                %v491 = vld [vmem:[%s429 + $0x78] sm:$0xf]
                %492 = vst [vmem:[%s430 + $0x78] sm:$0xf] %v491
                %v493 = vld [vmem:[%s429 + $0x7c] sm:$0xf]
                %494 = vst [vmem:[%s430 + $0x7c] sm:$0xf] %v493
                %v495 = vld [vmem:[%s429 + $0x80] sm:$0xf]
                %496 = vst [vmem:[%s430 + $0x80] sm:$0xf] %v495
                %v497 = vld [vmem:[%s429 + $0x84] sm:$0xf]
                %498 = vst [vmem:[%s430 + $0x84] sm:$0xf] %v497
                %v499 = vld [vmem:[%s429 + $0x88] sm:$0xf]
                %500 = vst [vmem:[%s430 + $0x88] sm:$0xf] %v499
                %v501 = vld [vmem:[%s429 + $0x8c] sm:$0xf]
                %502 = vst [vmem:[%s430 + $0x8c] sm:$0xf] %v501
                %v503 = vld [vmem:[%s429 + $0x90] sm:$0xf]
                %504 = vst [vmem:[%s430 + $0x90] sm:$0xf] %v503
                %v505 = vld [vmem:[%s429 + $0x94] sm:$0xf]
                %506 = vst [vmem:[%s430 + $0x94] sm:$0xf] %v505
                %v507 = vld [vmem:[%s429 + $0x98] sm:$0xf]
                %508 = vst [vmem:[%s430 + $0x98] sm:$0xf] %v507
                %v509 = vld [vmem:[%s429 + $0x9c] sm:$0xf]
                %510 = vst [vmem:[%s430 + $0x9c] sm:$0xf] %v509
                %v511 = vld [vmem:[%s429 + $0xa0] sm:$0xf]
                %512 = vst [vmem:[%s430 + $0xa0] sm:$0xf] %v511
                %v513 = vld [vmem:[%s429 + $0xa4] sm:$0xf]
                %514 = vst [vmem:[%s430 + $0xa4] sm:$0xf] %v513
                %v515 = vld [vmem:[%s429 + $0xa8] sm:$0xf]
                %516 = vst [vmem:[%s430 + $0xa8] sm:$0xf] %v515
                %v517 = vld [vmem:[%s429 + $0xac] sm:$0xf]
                %518 = vst [vmem:[%s430 + $0xac] sm:$0xf] %v517
                %v519 = vld [vmem:[%s429 + $0xb0] sm:$0xf]
                %520 = vst [vmem:[%s430 + $0xb0] sm:$0xf] %v519
                %v521 = vld [vmem:[%s429 + $0xb4] sm:$0xf]
                %522 = vst [vmem:[%s430 + $0xb4] sm:$0xf] %v521
                %v523 = vld [vmem:[%s429 + $0xb8] sm:$0xf]
                %524 = vst [vmem:[%s430 + $0xb8] sm:$0xf] %v523
                %v525 = vld [vmem:[%s429 + $0xbc] sm:$0xf]
                %526 = vst [vmem:[%s430 + $0xbc] sm:$0xf] %v525
                %v527 = vld [vmem:[%s429 + $0xc0] sm:$0xf]
                %528 = vst [vmem:[%s430 + $0xc0] sm:$0xf] %v527
                %v529 = vld [vmem:[%s429 + $0xc4] sm:$0xf]
                %530 = vst [vmem:[%s430 + $0xc4] sm:$0xf] %v529
                %v531 = vld [vmem:[%s429 + $0xc8] sm:$0xf]
                %532 = vst [vmem:[%s430 + $0xc8] sm:$0xf] %v531
                %v533 = vld [vmem:[%s429 + $0xcc] sm:$0xf]
                %534 = vst [vmem:[%s430 + $0xcc] sm:$0xf] %v533
                %v535 = vld [vmem:[%s429 + $0xd0] sm:$0xf]
                %536 = vst [vmem:[%s430 + $0xd0] sm:$0xf] %v535
                %v537 = vld [vmem:[%s429 + $0xd4] sm:$0xf]
                %538 = vst [vmem:[%s430 + $0xd4] sm:$0xf] %v537
                %v539 = vld [vmem:[%s429 + $0xd8] sm:$0xf]
                %540 = vst [vmem:[%s430 + $0xd8] sm:$0xf] %v539
                %v541 = vld [vmem:[%s429 + $0xdc] sm:$0xf]
                %542 = vst [vmem:[%s430 + $0xdc] sm:$0xf] %v541
                %v543 = vld [vmem:[%s429 + $0xe0] sm:$0xf]
                %544 = vst [vmem:[%s430 + $0xe0] sm:$0xf] %v543
                %v545 = vld [vmem:[%s429 + $0xe4] sm:$0xf]
                %546 = vst [vmem:[%s430 + $0xe4] sm:$0xf] %v545
                %v547 = vld [vmem:[%s429 + $0xe8] sm:$0xf]
                %548 = vst [vmem:[%s430 + $0xe8] sm:$0xf] %v547
                %v549 = vld [vmem:[%s429 + $0xec] sm:$0xf]
                %550 = vst [vmem:[%s430 + $0xec] sm:$0xf] %v549
                %v551 = vld [vmem:[%s429 + $0xf0] sm:$0xf]
                %552 = vst [vmem:[%s430 + $0xf0] sm:$0xf] %v551
                %v553 = vld [vmem:[%s429 + $0xf4] sm:$0xf]
                %554 = vst [vmem:[%s430 + $0xf4] sm:$0xf] %v553
                %v555 = vld [vmem:[%s429 + $0xf8] sm:$0xf]
                %556 = vst [vmem:[%s430 + $0xf8] sm:$0xf] %v555
                %v557 = vld [vmem:[%s429 + $0xfc] sm:$0xf]
                %558 = vst [vmem:[%s430 + $0xfc] sm:$0xf] %v557
                %v559 = vld [vmem:[%s429 + $0x200] sm:$0xf]
                %560 = vst [vmem:[%s430 + $0x100] sm:$0xf] %v559
                %v561 = vld [vmem:[%s429 + $0x204] sm:$0xf]
                %562 = vst [vmem:[%s430 + $0x104] sm:$0xf] %v561
                %v563 = vld [vmem:[%s429 + $0x208] sm:$0xf]
                %564 = vst [vmem:[%s430 + $0x108] sm:$0xf] %v563
                %v565 = vld [vmem:[%s429 + $0x20c] sm:$0xf]
                %566 = vst [vmem:[%s430 + $0x10c] sm:$0xf] %v565
                %v567 = vld [vmem:[%s429 + $0x210] sm:$0xf]
                %568 = vst [vmem:[%s430 + $0x110] sm:$0xf] %v567
                %v569 = vld [vmem:[%s429 + $0x214] sm:$0xf]
                %570 = vst [vmem:[%s430 + $0x114] sm:$0xf] %v569
                %v571 = vld [vmem:[%s429 + $0x218] sm:$0xf]
                %572 = vst [vmem:[%s430 + $0x118] sm:$0xf] %v571
                %v573 = vld [vmem:[%s429 + $0x21c] sm:$0xf]
                %574 = vst [vmem:[%s430 + $0x11c] sm:$0xf] %v573
                %v575 = vld [vmem:[%s429 + $0x220] sm:$0xf]
                %576 = vst [vmem:[%s430 + $0x120] sm:$0xf] %v575
                %v577 = vld [vmem:[%s429 + $0x224] sm:$0xf]
                %578 = vst [vmem:[%s430 + $0x124] sm:$0xf] %v577
                %v579 = vld [vmem:[%s429 + $0x228] sm:$0xf]
                %580 = vst [vmem:[%s430 + $0x128] sm:$0xf] %v579
                %v581 = vld [vmem:[%s429 + $0x22c] sm:$0xf]
                %582 = vst [vmem:[%s430 + $0x12c] sm:$0xf] %v581
                %v583 = vld [vmem:[%s429 + $0x230] sm:$0xf]
                %584 = vst [vmem:[%s430 + $0x130] sm:$0xf] %v583
                %v585 = vld [vmem:[%s429 + $0x234] sm:$0xf]
                %586 = vst [vmem:[%s430 + $0x134] sm:$0xf] %v585
                %v587 = vld [vmem:[%s429 + $0x238] sm:$0xf]
                %588 = vst [vmem:[%s430 + $0x138] sm:$0xf] %v587
                %v589 = vld [vmem:[%s429 + $0x23c] sm:$0xf]
                %590 = vst [vmem:[%s430 + $0x13c] sm:$0xf] %v589
                %v591 = vld [vmem:[%s429 + $0x240] sm:$0xf]
                %592 = vst [vmem:[%s430 + $0x140] sm:$0xf] %v591
                %v593 = vld [vmem:[%s429 + $0x244] sm:$0xf]
                %594 = vst [vmem:[%s430 + $0x144] sm:$0xf] %v593
                %v595 = vld [vmem:[%s429 + $0x248] sm:$0xf]
                %596 = vst [vmem:[%s430 + $0x148] sm:$0xf] %v595
                %v597 = vld [vmem:[%s429 + $0x24c] sm:$0xf]
                %598 = vst [vmem:[%s430 + $0x14c] sm:$0xf] %v597
                %v599 = vld [vmem:[%s429 + $0x250] sm:$0xf]
                %600 = vst [vmem:[%s430 + $0x150] sm:$0xf] %v599
                %v601 = vld [vmem:[%s429 + $0x254] sm:$0xf]
                %602 = vst [vmem:[%s430 + $0x154] sm:$0xf] %v601
                %v603 = vld [vmem:[%s429 + $0x258] sm:$0xf]
                %604 = vst [vmem:[%s430 + $0x158] sm:$0xf] %v603
                %v605 = vld [vmem:[%s429 + $0x25c] sm:$0xf]
                %606 = vst [vmem:[%s430 + $0x15c] sm:$0xf] %v605
                %v607 = vld [vmem:[%s429 + $0x260] sm:$0xf]
                %608 = vst [vmem:[%s430 + $0x160] sm:$0xf] %v607
                %v609 = vld [vmem:[%s429 + $0x264] sm:$0xf]
                %610 = vst [vmem:[%s430 + $0x164] sm:$0xf] %v609
                %v611 = vld [vmem:[%s429 + $0x268] sm:$0xf]
                %612 = vst [vmem:[%s430 + $0x168] sm:$0xf] %v611
                %v613 = vld [vmem:[%s429 + $0x26c] sm:$0xf]
                %614 = vst [vmem:[%s430 + $0x16c] sm:$0xf] %v613
                %v615 = vld [vmem:[%s429 + $0x270] sm:$0xf]
                %616 = vst [vmem:[%s430 + $0x170] sm:$0xf] %v615
                %v617 = vld [vmem:[%s429 + $0x274] sm:$0xf]
                %618 = vst [vmem:[%s430 + $0x174] sm:$0xf] %v617
                %v619 = vld [vmem:[%s429 + $0x278] sm:$0xf]
                %620 = vst [vmem:[%s430 + $0x178] sm:$0xf] %v619
                %v621 = vld [vmem:[%s429 + $0x27c] sm:$0xf]
                %622 = vst [vmem:[%s430 + $0x17c] sm:$0xf] %v621
                %v623 = vld [vmem:[%s429 + $0x280] sm:$0xf]
                %624 = vst [vmem:[%s430 + $0x180] sm:$0xf] %v623
                %v625 = vld [vmem:[%s429 + $0x284] sm:$0xf]
                %626 = vst [vmem:[%s430 + $0x184] sm:$0xf] %v625
                %v627 = vld [vmem:[%s429 + $0x288] sm:$0xf]
                %628 = vst [vmem:[%s430 + $0x188] sm:$0xf] %v627
                %v629 = vld [vmem:[%s429 + $0x28c] sm:$0xf]
                %630 = vst [vmem:[%s430 + $0x18c] sm:$0xf] %v629
                %v631 = vld [vmem:[%s429 + $0x290] sm:$0xf]
                %632 = vst [vmem:[%s430 + $0x190] sm:$0xf] %v631
                %v633 = vld [vmem:[%s429 + $0x294] sm:$0xf]
                %634 = vst [vmem:[%s430 + $0x194] sm:$0xf] %v633
                %v635 = vld [vmem:[%s429 + $0x298] sm:$0xf]
                %636 = vst [vmem:[%s430 + $0x198] sm:$0xf] %v635
                %v637 = vld [vmem:[%s429 + $0x29c] sm:$0xf]
                %638 = vst [vmem:[%s430 + $0x19c] sm:$0xf] %v637
                %v639 = vld [vmem:[%s429 + $0x2a0] sm:$0xf]
                %640 = vst [vmem:[%s430 + $0x1a0] sm:$0xf] %v639
                %v641 = vld [vmem:[%s429 + $0x2a4] sm:$0xf]
                %642 = vst [vmem:[%s430 + $0x1a4] sm:$0xf] %v641
                %v643 = vld [vmem:[%s429 + $0x2a8] sm:$0xf]
                %644 = vst [vmem:[%s430 + $0x1a8] sm:$0xf] %v643
                %v645 = vld [vmem:[%s429 + $0x2ac] sm:$0xf]
                %646 = vst [vmem:[%s430 + $0x1ac] sm:$0xf] %v645
                %v647 = vld [vmem:[%s429 + $0x2b0] sm:$0xf]
                %648 = vst [vmem:[%s430 + $0x1b0] sm:$0xf] %v647
                %v649 = vld [vmem:[%s429 + $0x2b4] sm:$0xf]
                %650 = vst [vmem:[%s430 + $0x1b4] sm:$0xf] %v649
                %v651 = vld [vmem:[%s429 + $0x2b8] sm:$0xf]
                %652 = vst [vmem:[%s430 + $0x1b8] sm:$0xf] %v651
                %v653 = vld [vmem:[%s429 + $0x2bc] sm:$0xf]
                %654 = vst [vmem:[%s430 + $0x1bc] sm:$0xf] %v653
                %v655 = vld [vmem:[%s429 + $0x2c0] sm:$0xf]
                %656 = vst [vmem:[%s430 + $0x1c0] sm:$0xf] %v655
                %v657 = vld [vmem:[%s429 + $0x2c4] sm:$0xf]
                %658 = vst [vmem:[%s430 + $0x1c4] sm:$0xf] %v657
                %v659 = vld [vmem:[%s429 + $0x2c8] sm:$0xf]
                %660 = vst [vmem:[%s430 + $0x1c8] sm:$0xf] %v659
                %v661 = vld [vmem:[%s429 + $0x2cc] sm:$0xf]
                %662 = vst [vmem:[%s430 + $0x1cc] sm:$0xf] %v661
                %v663 = vld [vmem:[%s429 + $0x2d0] sm:$0xf]
                %664 = vst [vmem:[%s430 + $0x1d0] sm:$0xf] %v663
                %v665 = vld [vmem:[%s429 + $0x2d4] sm:$0xf]
                %666 = vst [vmem:[%s430 + $0x1d4] sm:$0xf] %v665
                %v667 = vld [vmem:[%s429 + $0x2d8] sm:$0xf]
                %668 = vst [vmem:[%s430 + $0x1d8] sm:$0xf] %v667
                %v669 = vld [vmem:[%s429 + $0x2dc] sm:$0xf]
                %670 = vst [vmem:[%s430 + $0x1dc] sm:$0xf] %v669
                %v671 = vld [vmem:[%s429 + $0x2e0] sm:$0xf]
                %672 = vst [vmem:[%s430 + $0x1e0] sm:$0xf] %v671
                %v673 = vld [vmem:[%s429 + $0x2e4] sm:$0xf]
                %674 = vst [vmem:[%s430 + $0x1e4] sm:$0xf] %v673
                %v675 = vld [vmem:[%s429 + $0x2e8] sm:$0xf]
                %676 = vst [vmem:[%s430 + $0x1e8] sm:$0xf] %v675
                %v677 = vld [vmem:[%s429 + $0x2ec] sm:$0xf]
                %678 = vst [vmem:[%s430 + $0x1ec] sm:$0xf] %v677
                %v679 = vld [vmem:[%s429 + $0x2f0] sm:$0xf]
                %680 = vst [vmem:[%s430 + $0x1f0] sm:$0xf] %v679
                %v681 = vld [vmem:[%s429 + $0x2f4] sm:$0xf]
                %682 = vst [vmem:[%s430 + $0x1f4] sm:$0xf] %v681
                %v683 = vld [vmem:[%s429 + $0x2f8] sm:$0xf]
                %684 = vst [vmem:[%s430 + $0x1f8] sm:$0xf] %v683
                %v685 = vld [vmem:[%s429 + $0x2fc] sm:$0xf]
                %686 = vst [vmem:[%s430 + $0x1fc] sm:$0xf] %v685
                %v687 = vld [vmem:[%s429 + $0x400] sm:$0xf]
                %688 = vst [vmem:[%s430 + $0x200] sm:$0xf] %v687
                %v689 = vld [vmem:[%s429 + $0x404] sm:$0xf]
                %690 = vst [vmem:[%s430 + $0x204] sm:$0xf] %v689
                %v691 = vld [vmem:[%s429 + $0x408] sm:$0xf]
                %692 = vst [vmem:[%s430 + $0x208] sm:$0xf] %v691
                %v693 = vld [vmem:[%s429 + $0x40c] sm:$0xf]
                %694 = vst [vmem:[%s430 + $0x20c] sm:$0xf] %v693
                %v695 = vld [vmem:[%s429 + $0x410] sm:$0xf]
                %696 = vst [vmem:[%s430 + $0x210] sm:$0xf] %v695
                %v697 = vld [vmem:[%s429 + $0x414] sm:$0xf]
                %698 = vst [vmem:[%s430 + $0x214] sm:$0xf] %v697
                %v699 = vld [vmem:[%s429 + $0x418] sm:$0xf]
                %700 = vst [vmem:[%s430 + $0x218] sm:$0xf] %v699
                %v701 = vld [vmem:[%s429 + $0x41c] sm:$0xf]
                %702 = vst [vmem:[%s430 + $0x21c] sm:$0xf] %v701
                %v703 = vld [vmem:[%s429 + $0x420] sm:$0xf]
                %704 = vst [vmem:[%s430 + $0x220] sm:$0xf] %v703
                %v705 = vld [vmem:[%s429 + $0x424] sm:$0xf]
                %706 = vst [vmem:[%s430 + $0x224] sm:$0xf] %v705
                %v707 = vld [vmem:[%s429 + $0x428] sm:$0xf]
                %708 = vst [vmem:[%s430 + $0x228] sm:$0xf] %v707
                %v709 = vld [vmem:[%s429 + $0x42c] sm:$0xf]
                %710 = vst [vmem:[%s430 + $0x22c] sm:$0xf] %v709
                %v711 = vld [vmem:[%s429 + $0x430] sm:$0xf]
                %712 = vst [vmem:[%s430 + $0x230] sm:$0xf] %v711
                %v713 = vld [vmem:[%s429 + $0x434] sm:$0xf]
                %714 = vst [vmem:[%s430 + $0x234] sm:$0xf] %v713
                %v715 = vld [vmem:[%s429 + $0x438] sm:$0xf]
                %716 = vst [vmem:[%s430 + $0x238] sm:$0xf] %v715
                %v717 = vld [vmem:[%s429 + $0x43c] sm:$0xf]
                %718 = vst [vmem:[%s430 + $0x23c] sm:$0xf] %v717
                %v719 = vld [vmem:[%s429 + $0x440] sm:$0xf]
                %720 = vst [vmem:[%s430 + $0x240] sm:$0xf] %v719
                %v721 = vld [vmem:[%s429 + $0x444] sm:$0xf]
                %722 = vst [vmem:[%s430 + $0x244] sm:$0xf] %v721
                %v723 = vld [vmem:[%s429 + $0x448] sm:$0xf]
                %724 = vst [vmem:[%s430 + $0x248] sm:$0xf] %v723
                %v725 = vld [vmem:[%s429 + $0x44c] sm:$0xf]
                %726 = vst [vmem:[%s430 + $0x24c] sm:$0xf] %v725
                %v727 = vld [vmem:[%s429 + $0x450] sm:$0xf]
                %728 = vst [vmem:[%s430 + $0x250] sm:$0xf] %v727
                %v729 = vld [vmem:[%s429 + $0x454] sm:$0xf]
                %730 = vst [vmem:[%s430 + $0x254] sm:$0xf] %v729
                %v731 = vld [vmem:[%s429 + $0x458] sm:$0xf]
                %732 = vst [vmem:[%s430 + $0x258] sm:$0xf] %v731
                %v733 = vld [vmem:[%s429 + $0x45c] sm:$0xf]
                %734 = vst [vmem:[%s430 + $0x25c] sm:$0xf] %v733
                %v735 = vld [vmem:[%s429 + $0x460] sm:$0xf]
                %736 = vst [vmem:[%s430 + $0x260] sm:$0xf] %v735
                %v737 = vld [vmem:[%s429 + $0x464] sm:$0xf]
                %738 = vst [vmem:[%s430 + $0x264] sm:$0xf] %v737
                %v739 = vld [vmem:[%s429 + $0x468] sm:$0xf]
                %740 = vst [vmem:[%s430 + $0x268] sm:$0xf] %v739
                %v741 = vld [vmem:[%s429 + $0x46c] sm:$0xf]
                %742 = vst [vmem:[%s430 + $0x26c] sm:$0xf] %v741
                %v743 = vld [vmem:[%s429 + $0x470] sm:$0xf]
                %744 = vst [vmem:[%s430 + $0x270] sm:$0xf] %v743
                %v745 = vld [vmem:[%s429 + $0x474] sm:$0xf]
                %746 = vst [vmem:[%s430 + $0x274] sm:$0xf] %v745
                %v747 = vld [vmem:[%s429 + $0x478] sm:$0xf]
                %748 = vst [vmem:[%s430 + $0x278] sm:$0xf] %v747
                %v749 = vld [vmem:[%s429 + $0x47c] sm:$0xf]
                %750 = vst [vmem:[%s430 + $0x27c] sm:$0xf] %v749
                %v751 = vld [vmem:[%s429 + $0x480] sm:$0xf]
                %752 = vst [vmem:[%s430 + $0x280] sm:$0xf] %v751
                %v753 = vld [vmem:[%s429 + $0x484] sm:$0xf]
                %754 = vst [vmem:[%s430 + $0x284] sm:$0xf] %v753
                %v755 = vld [vmem:[%s429 + $0x488] sm:$0xf]
                %756 = vst [vmem:[%s430 + $0x288] sm:$0xf] %v755
                %v757 = vld [vmem:[%s429 + $0x48c] sm:$0xf]
                %758 = vst [vmem:[%s430 + $0x28c] sm:$0xf] %v757
                %v759 = vld [vmem:[%s429 + $0x490] sm:$0xf]
                %760 = vst [vmem:[%s430 + $0x290] sm:$0xf] %v759
                %v761 = vld [vmem:[%s429 + $0x494] sm:$0xf]
                %762 = vst [vmem:[%s430 + $0x294] sm:$0xf] %v761
                %v763 = vld [vmem:[%s429 + $0x498] sm:$0xf]
                %764 = vst [vmem:[%s430 + $0x298] sm:$0xf] %v763
                %v765 = vld [vmem:[%s429 + $0x49c] sm:$0xf]
                %766 = vst [vmem:[%s430 + $0x29c] sm:$0xf] %v765
                %v767 = vld [vmem:[%s429 + $0x4a0] sm:$0xf]
                %768 = vst [vmem:[%s430 + $0x2a0] sm:$0xf] %v767
                %v769 = vld [vmem:[%s429 + $0x4a4] sm:$0xf]
                %770 = vst [vmem:[%s430 + $0x2a4] sm:$0xf] %v769
                %v771 = vld [vmem:[%s429 + $0x4a8] sm:$0xf]
                %772 = vst [vmem:[%s430 + $0x2a8] sm:$0xf] %v771
                %v773 = vld [vmem:[%s429 + $0x4ac] sm:$0xf]
                %774 = vst [vmem:[%s430 + $0x2ac] sm:$0xf] %v773
                %v775 = vld [vmem:[%s429 + $0x4b0] sm:$0xf]
                %776 = vst [vmem:[%s430 + $0x2b0] sm:$0xf] %v775
                %v777 = vld [vmem:[%s429 + $0x4b4] sm:$0xf]
                %778 = vst [vmem:[%s430 + $0x2b4] sm:$0xf] %v777
                %v779 = vld [vmem:[%s429 + $0x4b8] sm:$0xf]
                %780 = vst [vmem:[%s430 + $0x2b8] sm:$0xf] %v779
                %v781 = vld [vmem:[%s429 + $0x4bc] sm:$0xf]
                %782 = vst [vmem:[%s430 + $0x2bc] sm:$0xf] %v781
                %v783 = vld [vmem:[%s429 + $0x4c0] sm:$0xf]
                %784 = vst [vmem:[%s430 + $0x2c0] sm:$0xf] %v783
                %v785 = vld [vmem:[%s429 + $0x4c4] sm:$0xf]
                %786 = vst [vmem:[%s430 + $0x2c4] sm:$0xf] %v785
                %v787 = vld [vmem:[%s429 + $0x4c8] sm:$0xf]
                %788 = vst [vmem:[%s430 + $0x2c8] sm:$0xf] %v787
                %v789 = vld [vmem:[%s429 + $0x4cc] sm:$0xf]
                %790 = vst [vmem:[%s430 + $0x2cc] sm:$0xf] %v789
                %v791 = vld [vmem:[%s429 + $0x4d0] sm:$0xf]
                %792 = vst [vmem:[%s430 + $0x2d0] sm:$0xf] %v791
                %v793 = vld [vmem:[%s429 + $0x4d4] sm:$0xf]
                %794 = vst [vmem:[%s430 + $0x2d4] sm:$0xf] %v793
                %v795 = vld [vmem:[%s429 + $0x4d8] sm:$0xf]
                %796 = vst [vmem:[%s430 + $0x2d8] sm:$0xf] %v795
                %v797 = vld [vmem:[%s429 + $0x4dc] sm:$0xf]
                %798 = vst [vmem:[%s430 + $0x2dc] sm:$0xf] %v797
                %v799 = vld [vmem:[%s429 + $0x4e0] sm:$0xf]
                %800 = vst [vmem:[%s430 + $0x2e0] sm:$0xf] %v799
                %v801 = vld [vmem:[%s429 + $0x4e4] sm:$0xf]
                %802 = vst [vmem:[%s430 + $0x2e4] sm:$0xf] %v801
                %v803 = vld [vmem:[%s429 + $0x4e8] sm:$0xf]
                %804 = vst [vmem:[%s430 + $0x2e8] sm:$0xf] %v803
                %v805 = vld [vmem:[%s429 + $0x4ec] sm:$0xf]
                %806 = vst [vmem:[%s430 + $0x2ec] sm:$0xf] %v805
                %v807 = vld [vmem:[%s429 + $0x4f0] sm:$0xf]
                %808 = vst [vmem:[%s430 + $0x2f0] sm:$0xf] %v807
                %v809 = vld [vmem:[%s429 + $0x4f4] sm:$0xf]
                %810 = vst [vmem:[%s430 + $0x2f4] sm:$0xf] %v809
                %v811 = vld [vmem:[%s429 + $0x4f8] sm:$0xf]
                %812 = vst [vmem:[%s430 + $0x2f8] sm:$0xf] %v811
                %v813 = vld [vmem:[%s429 + $0x4fc] sm:$0xf]
                %814 = vst [vmem:[%s430 + $0x2fc] sm:$0xf] %v813
              $region114: #{tpu_custom_call.1} parent=108 // loop_footer
                %s428 = sadd.s32 1, %s424
              $region115: #{tpu_custom_call.1} parent=108 // loop_footer_branch
                %423 = sbr.rel target = $region111
              $region116: #{tpu_custom_call.1} parent=108 // loop_exit
                _
            $region109: #{tpu_custom_call.1} parent=100 // pred_fallthru
              _
          $region101: #{tpu_custom_call.1} parent=96 // pred_fallthru
            _
          %1218 = vnop
        $region97: #{tpu_custom_call.1} parent=51 // pred_fallthru
          _
      $region52: #{tpu_custom_call.1} parent=5 // pred_fallthru
        _
      %p1219 = scmp.le.s32.totalorder 1, %s17
      %p1220 = scmp.lt.s32.totalorder %s17, 3
      %p1221 = pnand %p1219, %p1220
      %p1222 = pneg %p1221
      // Predicated region
      $region135: #{tpu_custom_call.1} parent=5 // pred_check
        _
      $region136: #{tpu_custom_call.1} parent=5 // pred_check_branch
        %1224 = sbr.rel (%p1221) target = $region138
      $region137: #{tpu_custom_call.1} parent=5 // pred_region
        %s1225 = ssub.s32 %s17, 1
        %s1226 = sand.u32 %s30, 1
        %s1227 = sand.u32 %s30, 1
        %s1228 = smul.addr %s1227, 32
        %s1229 = scalar_lea.vmem [#allocation2], %s1228
        // Predicated region
        $region139: #{tpu_custom_call.1} parent=137 // pred_check
          %p1230 = pneg %p43
        $region140: #{tpu_custom_call.1} parent=137 // pred_check_branch
          %1232 = sbr.rel (%p1230) target = $region142
        $region141: #{tpu_custom_call.1} parent=137 // pred_region
          _
        $region142: #{tpu_custom_call.1} parent=137 // pred_fallthru
          _
        %s1233 = sand.u32 %s161, 1
        %s1234 = sand.u32 %s161, 1
        %s1235 = smul.addr %s1234, 768
        %s1236 = scalar_lea.vmem [#allocation3], %s1235
        // Predicated region
        $region143: #{tpu_custom_call.1} parent=137 // pred_check
          %p1237 = pneg %p174
        $region144: #{tpu_custom_call.1} parent=137 // pred_check_branch
          %1239 = sbr.rel (%p1237) target = $region146
        $region145: #{tpu_custom_call.1} parent=137 // pred_region
          _
        $region146: #{tpu_custom_call.1} parent=137 // pred_fallthru
          _
        %s1240 = sand.u32 %s30, 1
        %s1241 = sand.u32 %s30, 1
        %s1242 = smul.addr %s1241, 32
        %s1243 = scalar_lea.vmem [#allocation2], %s1242
        %p1244 = pneg %p43
        %p1245 = pneg %p40
        %p1246 = pneg %p64
        %p1247 = pneg %p61
        %p1248 = pneg %p85
        %p1249 = pneg %p82
        %p1250 = pneg %p106
        %p1251 = pneg %p103
        %p1252 = pneg %p127
        %p1253 = pneg %p124
        %p1254 = pneg %p148
        %p1255 = pneg %p145
        %s1256 = sand.u32 %s161, 1
        %s1257 = sand.u32 %s161, 1
        %s1258 = smul.addr %s1257, 768
        %s1259 = scalar_lea.vmem [#allocation3], %s1258
        %p1260 = pneg %p174
        %p1261 = pneg %p171
        %p1262 = pneg %p195
        %p1263 = pneg %p192
        %p1264 = pneg %p216
        %p1265 = pneg %p213
        %p1266 = pneg %p237
        %p1267 = pneg %p234
        %p1268 = pneg %p258
        %p1269 = pneg %p255
        %p1270 = pneg %p284
        %p1271 = pneg %p281
        %p1272 = scmp.lt.s32.totalorder %s22, 1
        %s1273 = scalar_select %p1272, %s22, 1
        %s1274 = smul.addr %s1273, 8
        %s1275 = scalar_lea.vmem %s11, %s1274
        %s1276 = smul.u32 64, %s22
        %p1277 = scmp.lt.s32.totalorder %s22, 1
        %s1278 = scalar_select %p1277, %s22, 1
        %s1279 = smul.addr %s1278, 8
        %s1280 = scalar_lea.vmem %s11, %s1279
        %v1282 = vld [vmem:[%s1229] sm:$0xf]
        %v1283 = vld [vmem:[%s1229 + $0x4] sm:$0xf]
        %v1284 = vld [vmem:[%s1229 + $0x8] sm:$0xf]
        %v1285 = vld [vmem:[%s1229 + $0xc] sm:$0xf]
        %v1286 = vld [vmem:[%s1229 + $0x10] sm:$0xf]
        %v1287 = vld [vmem:[%s1229 + $0x14] sm:$0xf]
        %v1288 = vld [vmem:[%s1229 + $0x18] sm:$0xf]
        %v1289 = vld [vmem:[%s1229 + $0x1c] sm:$0xf]
        %v1290 = vld [vmem:[%s1] sm:$0xf]
        %v1291 = vld [vmem:[%s1 + $0x4] sm:$0xf]
        %v1292 = vld [vmem:[%s1 + $0x8] sm:$0xf]
        %v1293 = vld [vmem:[%s1 + $0xc] sm:$0xf]
        %v1294 = vld [vmem:[%s1 + $0x10] sm:$0xf]
        %v1295 = vld [vmem:[%s1 + $0x14] sm:$0xf]
        %v1296 = vld [vmem:[%s1 + $0x18] sm:$0xf]
        %v1297 = vld [vmem:[%s1 + $0x1c] sm:$0xf]
        %v1298 = vld [vmem:[%s1 + $0x20] sm:$0xf]
        %v1299 = vld [vmem:[%s1 + $0x24] sm:$0xf]
        %v1300 = vld [vmem:[%s1 + $0x28] sm:$0xf]
        %v1301 = vld [vmem:[%s1 + $0x2c] sm:$0xf]
        %v1302 = vld [vmem:[%s1 + $0x30] sm:$0xf]
        %v1303 = vld [vmem:[%s1 + $0x34] sm:$0xf]
        %v1304 = vld [vmem:[%s1 + $0x38] sm:$0xf]
        %v1305 = vld [vmem:[%s1 + $0x3c] sm:$0xf]
        %v1306 = vld [vmem:[%s3] sm:$0x1]
        %v1308 = vlaneseq
        %v1309 = vshrl.u32 %v1308, 7
        %v1310 = vsub.s32 0, %v1309
        %v1311 = vrot.slane %v1306, %v1310
        %v1321 = vunpack.c.l.b16 %v1282
        %v1322 = vunpack.c.l.b16 %v1283
        %v1323 = vunpack.c.l.b16 %v1284
        %v1324 = vunpack.c.l.b16 %v1285
        %v1325 = vunpack.c.l.b16 %v1286
        %v1326 = vunpack.c.l.b16 %v1287
        %v1327 = vunpack.c.l.b16 %v1288
        %v1328 = vunpack.c.l.b16 %v1289
        %v1329 = vpack.c.b16 %v1322, %v1321
        %v1330 = vpack.c.b16 %v1324, %v1323
        %v1331 = vpack.c.b16 %v1326, %v1325
        %v1332 = vpack.c.b16 %v1328, %v1327
        %v1353 = vunpack.c.l.b16 %v1290
        %v1354 = vunpack.c.l.b16 %v1291
        %v1355 = vunpack.c.l.b16 %v1292
        %v1356 = vunpack.c.l.b16 %v1293
        %v1357 = vunpack.c.l.b16 %v1294
        %v1358 = vunpack.c.l.b16 %v1295
        %v1359 = vunpack.c.l.b16 %v1296
        %v1360 = vunpack.c.l.b16 %v1297
        %v1361 = vunpack.c.l.b16 %v1298
        %v1362 = vunpack.c.l.b16 %v1299
        %v1363 = vunpack.c.l.b16 %v1300
        %v1364 = vunpack.c.l.b16 %v1301
        %v1365 = vunpack.c.l.b16 %v1302
        %v1366 = vunpack.c.l.b16 %v1303
        %v1367 = vunpack.c.l.b16 %v1304
        %v1368 = vunpack.c.l.b16 %v1305
        %v1369 = vpack.c.b16 %v1354, %v1353
        %v1370 = vpack.c.b16 %v1356, %v1355
        %v1371 = vpack.c.b16 %v1358, %v1357
        %v1372 = vpack.c.b16 %v1360, %v1359
        %v1373 = vpack.c.b16 %v1362, %v1361
        %v1374 = vpack.c.b16 %v1364, %v1363
        %v1375 = vpack.c.b16 %v1366, %v1365
        %v1376 = vpack.c.b16 %v1368, %v1367
        %1385 = vmatprep.subr.bf16.mxu0 0
        %1386 = vmatpush1.bf16.msra.mxu0 %v1369
        %1387 = vmatprep.subr.bf16.mxu0 0
        %1388 = vmatpush1.bf16.msra.mxu0 %v1370
        %1389 = vmatprep.subr.bf16.mxu0 0
        %1390 = vmatpush1.bf16.msra.mxu0 %v1371
        %1391 = vmatprep.subr.bf16.mxu0 0
        %1392 = vmatpush1.bf16.msra.mxu0 %v1372
        %1393 = vmatprep.subr.bf16.mxu0 0
        %1394 = vmatpush1.bf16.msra.mxu0 %v1373
        %1395 = vmatprep.subr.bf16.mxu0 0
        %1396 = vmatpush1.bf16.msra.mxu0 %v1374
        %1397 = vmatprep.subr.bf16.mxu0 0
        %1398 = vmatpush1.bf16.msra.mxu0 %v1375
        %1399 = vmatprep.subr.bf16.mxu0 0
        %1400 = vmatpush1.bf16.msra.mxu0 %v1376
        %1401 = vmatprep.subr.bf16.mxu0 0
        %1402 = vmatpush1.bf16.msra.mxu0 0
        %1403 = vmatprep.subr.bf16.mxu0 0
        %1404 = vmatpush1.bf16.msra.mxu0 0
        %1405 = vmatprep.subr.bf16.mxu0 0
        %1406 = vmatpush1.bf16.msra.mxu0 0
        %1407 = vmatprep.subr.bf16.mxu0 0
        %1408 = vmatpush1.bf16.msra.mxu0 0
        %1409 = vmatprep.subr.bf16.mxu0 0
        %1410 = vmatpush1.bf16.msra.mxu0 0
        %1411 = vmatprep.subr.bf16.mxu0 0
        %1412 = vmatpush1.bf16.msra.mxu0 0
        %1413 = vmatprep.subr.bf16.mxu0 0
        %1414 = vmatpush1.bf16.msra.mxu0 0
        %1415 = vmatprep.subr.bf16.mxu0 0
        %1416 = vmatpush1.bf16.msra.mxu0 0
        %1417 = vmatprep.mubr.bf16.mxu0 0
        %1418 = vmatmul.mubr.bf16.gmra.mrb[0].mxu0 %v1329
        %v1419 = vpop.f32.mrb[0].mxu0
        %v1420 = vadd.f32 %v1311, %v1419
        %v1421 = vpop.f32.mrb[0].mxu0
        %v1422 = vpop.f32.mrb[0].mxu0
        %v1423 = vadd.f32 %v1311, %v1422
        %v1424 = vpop.f32.mrb[0].mxu0
        %1425 = vmatprep.mubr.bf16.mxu0 0
        %1426 = vmatmul.mubr.bf16.gmra.mrb[0].mxu0 %v1330
        %v1427 = vpop.f32.mrb[0].mxu0
        %v1428 = vadd.f32 %v1311, %v1427
        %v1429 = vpop.f32.mrb[0].mxu0
        %v1430 = vpop.f32.mrb[0].mxu0
        %v1431 = vadd.f32 %v1311, %v1430
        %v1432 = vpop.f32.mrb[0].mxu0
        %1433 = vmatprep.mubr.bf16.mxu0 0
        %1434 = vmatmul.mubr.bf16.gmra.mrb[0].mxu0 %v1331
        %v1435 = vpop.f32.mrb[0].mxu0
        %v1436 = vadd.f32 %v1311, %v1435
        %v1437 = vpop.f32.mrb[0].mxu0
        %v1438 = vpop.f32.mrb[0].mxu0
        %v1439 = vadd.f32 %v1311, %v1438
        %v1440 = vpop.f32.mrb[0].mxu0
        %1441 = vmatprep.mubr.bf16.mxu0 0
        %1442 = vmatmul.mubr.bf16.gmra.mrb[0].mxu0 %v1332
        %v1443 = vpop.f32.mrb[0].mxu0
        %v1444 = vadd.f32 %v1311, %v1443
        %v1445 = vpop.f32.mrb[0].mxu0
        %v1446 = vpop.f32.mrb[0].mxu0
        %v1447 = vadd.f32 %v1311, %v1446
        %v1448 = vpop.f32.mrb[0].mxu0
        %1449 = vdwg.mxu0
        %v1450 = vld [vmem:[%s2] sm:$0xf]
        %v1451 = vld [vmem:[%s2 + $0x4] sm:$0xf]
        %v1452 = vld [vmem:[%s2 + $0x8] sm:$0xf]
        %v1453 = vld [vmem:[%s2 + $0xc] sm:$0xf]
        %v1454 = vld [vmem:[%s2 + $0x10] sm:$0xf]
        %v1455 = vld [vmem:[%s2 + $0x14] sm:$0xf]
        %v1456 = vld [vmem:[%s2 + $0x18] sm:$0xf]
        %v1457 = vld [vmem:[%s2 + $0x1c] sm:$0xf]
        %v1458 = vld [vmem:[%s2 + $0x20] sm:$0xf]
        %v1459 = vld [vmem:[%s2 + $0x24] sm:$0xf]
        %v1460 = vld [vmem:[%s2 + $0x28] sm:$0xf]
        %v1461 = vld [vmem:[%s2 + $0x2c] sm:$0xf]
        %v1462 = vld [vmem:[%s2 + $0x30] sm:$0xf]
        %v1463 = vld [vmem:[%s2 + $0x34] sm:$0xf]
        %v1464 = vld [vmem:[%s2 + $0x38] sm:$0xf]
        %v1465 = vld [vmem:[%s2 + $0x3c] sm:$0xf]
        %v1482 = vunpack.c.l.b16 %v1450
        %v1483 = vunpack.c.l.b16 %v1451
        %v1484 = vunpack.c.l.b16 %v1452
        %v1485 = vunpack.c.l.b16 %v1453
        %v1486 = vunpack.c.l.b16 %v1454
        %v1487 = vunpack.c.l.b16 %v1455
        %v1488 = vunpack.c.l.b16 %v1456
        %v1489 = vunpack.c.l.b16 %v1457
        %v1490 = vunpack.c.l.b16 %v1458
        %v1491 = vunpack.c.l.b16 %v1459
        %v1492 = vunpack.c.l.b16 %v1460
        %v1493 = vunpack.c.l.b16 %v1461
        %v1494 = vunpack.c.l.b16 %v1462
        %v1495 = vunpack.c.l.b16 %v1463
        %v1496 = vunpack.c.l.b16 %v1464
        %v1497 = vunpack.c.l.b16 %v1465
        %v1498 = vpack.c.b16 %v1483, %v1482
        %v1499 = vpack.c.b16 %v1485, %v1484
        %v1500 = vpack.c.b16 %v1487, %v1486
        %v1501 = vpack.c.b16 %v1489, %v1488
        %v1502 = vpack.c.b16 %v1491, %v1490
        %v1503 = vpack.c.b16 %v1493, %v1492
        %v1504 = vpack.c.b16 %v1495, %v1494
        %v1505 = vpack.c.b16 %v1497, %v1496
        %1514 = vmatprep.subr.bf16.mxu0 0
        %1515 = vmatpush1.bf16.msra.mxu0 %v1498
        %1516 = vmatprep.subr.bf16.mxu0 0
        %1517 = vmatpush1.bf16.msra.mxu0 %v1499
        %1518 = vmatprep.subr.bf16.mxu0 0
        %1519 = vmatpush1.bf16.msra.mxu0 %v1500
        %1520 = vmatprep.subr.bf16.mxu0 0
        %1521 = vmatpush1.bf16.msra.mxu0 %v1501
        %1522 = vmatprep.subr.bf16.mxu0 0
        %1523 = vmatpush1.bf16.msra.mxu0 %v1502
        %1524 = vmatprep.subr.bf16.mxu0 0
        %1525 = vmatpush1.bf16.msra.mxu0 %v1503
        %1526 = vmatprep.subr.bf16.mxu0 0
        %1527 = vmatpush1.bf16.msra.mxu0 %v1504
        %1528 = vmatprep.subr.bf16.mxu0 0
        %1529 = vmatpush1.bf16.msra.mxu0 %v1505
        %1530 = vmatprep.subr.bf16.mxu0 0
        %1531 = vmatpush1.bf16.msra.mxu0 0
        %1532 = vmatprep.subr.bf16.mxu0 0
        %1533 = vmatpush1.bf16.msra.mxu0 0
        %1534 = vmatprep.subr.bf16.mxu0 0
        %1535 = vmatpush1.bf16.msra.mxu0 0
        %1536 = vmatprep.subr.bf16.mxu0 0
        %1537 = vmatpush1.bf16.msra.mxu0 0
        %1538 = vmatprep.subr.bf16.mxu0 0
        %1539 = vmatpush1.bf16.msra.mxu0 0
        %1540 = vmatprep.subr.bf16.mxu0 0
        %1541 = vmatpush1.bf16.msra.mxu0 0
        %1542 = vmatprep.subr.bf16.mxu0 0
        %1543 = vmatpush1.bf16.msra.mxu0 0
        %1544 = vmatprep.subr.bf16.mxu0 0
        %1545 = vmatpush1.bf16.msra.mxu0 0
        %1546 = vmatprep.mubr.bf16.mxu0 0
        %1547 = vmatmul.mubr.bf16.gmra.mrb[0].mxu0 0
        %v1548 = vpop.f32.mrb[0].mxu0
        %v1549 = vadd.f32 0.0, %v1548
        %v1550 = vpop.f32.mrb[0].mxu0
        %v1551 = vpop.f32.mrb[0].mxu0
        %v1552 = vpop.f32.mrb[0].mxu0
        %1553 = vdwg.mxu0
        %v1554 = vadd.f32 %v1420, %v1549
        %v1555 = vtanh.pop %v1554
        %v1556 = vpack.c.bf16 %v1555, %v1555
        %1557 = vmatprep.subr.bf16.mxu0 0
        %1558 = vmatpush1.bf16.msra.mxu0 %v1498
        %1559 = vmatprep.subr.bf16.mxu0 0
        %1560 = vmatpush1.bf16.msra.mxu0 %v1499
        %1561 = vmatprep.subr.bf16.mxu0 0
        %1562 = vmatpush1.bf16.msra.mxu0 %v1500
        %1563 = vmatprep.subr.bf16.mxu0 0
        %1564 = vmatpush1.bf16.msra.mxu0 %v1501
        %1565 = vmatprep.subr.bf16.mxu0 0
        %1566 = vmatpush1.bf16.msra.mxu0 %v1502
        %1567 = vmatprep.subr.bf16.mxu0 0
        %1568 = vmatpush1.bf16.msra.mxu0 %v1503
        %1569 = vmatprep.subr.bf16.mxu0 0
        %1570 = vmatpush1.bf16.msra.mxu0 %v1504
        %1571 = vmatprep.subr.bf16.mxu0 0
        %1572 = vmatpush1.bf16.msra.mxu0 %v1505
        %1573 = vmatprep.subr.bf16.mxu0 0
        %1574 = vmatpush1.bf16.msra.mxu0 0
        %1575 = vmatprep.subr.bf16.mxu0 0
        %1576 = vmatpush1.bf16.msra.mxu0 0
        %1577 = vmatprep.subr.bf16.mxu0 0
        %1578 = vmatpush1.bf16.msra.mxu0 0
        %1579 = vmatprep.subr.bf16.mxu0 0
        %1580 = vmatpush1.bf16.msra.mxu0 0
        %1581 = vmatprep.subr.bf16.mxu0 0
        %1582 = vmatpush1.bf16.msra.mxu0 0
        %1583 = vmatprep.subr.bf16.mxu0 0
        %1584 = vmatpush1.bf16.msra.mxu0 0
        %1585 = vmatprep.subr.bf16.mxu0 0
        %1586 = vmatpush1.bf16.msra.mxu0 0
        %1587 = vmatprep.subr.bf16.mxu0 0
        %1588 = vmatpush1.bf16.msra.mxu0 0
        %1589 = vmatprep.mubr.bf16.mxu0 0
        %1590 = vmatmul.mubr.bf16.gmra.mrb[0].mxu0 %v1556
        %v1591 = vpop.f32.mrb[0].mxu0
        %v1592 = vadd.f32 0.0, %v1591
        %v1593 = vpop.f32.mrb[0].mxu0
        %v1594 = vpop.f32.mrb[0].mxu0
        %v1595 = vpop.f32.mrb[0].mxu0
        %1596 = vdwg.mxu0
        %v1597 = vadd.f32 %v1423, %v1592
        %v1598 = vtanh.pop %v1597
        %v1599 = vpack.c.bf16 %v1598, %v1598
        %1600 = vmatprep.subr.bf16.mxu0 0
        %1601 = vmatpush1.bf16.msra.mxu0 %v1498
        %1602 = vmatprep.subr.bf16.mxu0 0
        %1603 = vmatpush1.bf16.msra.mxu0 %v1499
        %1604 = vmatprep.subr.bf16.mxu0 0
        %1605 = vmatpush1.bf16.msra.mxu0 %v1500
        %1606 = vmatprep.subr.bf16.mxu0 0
        %1607 = vmatpush1.bf16.msra.mxu0 %v1501
        %1608 = vmatprep.subr.bf16.mxu0 0
        %1609 = vmatpush1.bf16.msra.mxu0 %v1502
        %1610 = vmatprep.subr.bf16.mxu0 0
        %1611 = vmatpush1.bf16.msra.mxu0 %v1503
        %1612 = vmatprep.subr.bf16.mxu0 0
        %1613 = vmatpush1.bf16.msra.mxu0 %v1504
        %1614 = vmatprep.subr.bf16.mxu0 0
        %1615 = vmatpush1.bf16.msra.mxu0 %v1505
        %1616 = vmatprep.subr.bf16.mxu0 0
        %1617 = vmatpush1.bf16.msra.mxu0 0
        %1618 = vmatprep.subr.bf16.mxu0 0
        %1619 = vmatpush1.bf16.msra.mxu0 0
        %1620 = vmatprep.subr.bf16.mxu0 0
        %1621 = vmatpush1.bf16.msra.mxu0 0
        %1622 = vmatprep.subr.bf16.mxu0 0
        %1623 = vmatpush1.bf16.msra.mxu0 0
        %1624 = vmatprep.subr.bf16.mxu0 0
        %1625 = vmatpush1.bf16.msra.mxu0 0
        %1626 = vmatprep.subr.bf16.mxu0 0
        %1627 = vmatpush1.bf16.msra.mxu0 0
        %1628 = vmatprep.subr.bf16.mxu0 0
        %1629 = vmatpush1.bf16.msra.mxu0 0
        %1630 = vmatprep.subr.bf16.mxu0 0
        %1631 = vmatpush1.bf16.msra.mxu0 0
        %1632 = vmatprep.mubr.bf16.mxu0 0
        %1633 = vmatmul.mubr.bf16.gmra.mrb[0].mxu0 %v1599
        %v1634 = vpop.f32.mrb[0].mxu0
        %v1635 = vadd.f32 0.0, %v1634
        %v1636 = vpop.f32.mrb[0].mxu0
        %v1637 = vpop.f32.mrb[0].mxu0
        %v1638 = vpop.f32.mrb[0].mxu0
        %1639 = vdwg.mxu0
        %v1640 = vadd.f32 %v1428, %v1635
        %v1641 = vtanh.pop %v1640
        %v1642 = vpack.c.bf16 %v1641, %v1641
        %1643 = vmatprep.subr.bf16.mxu0 0
        %1644 = vmatpush1.bf16.msra.mxu0 %v1498
        %1645 = vmatprep.subr.bf16.mxu0 0
        %1646 = vmatpush1.bf16.msra.mxu0 %v1499
        %1647 = vmatprep.subr.bf16.mxu0 0
        %1648 = vmatpush1.bf16.msra.mxu0 %v1500
        %1649 = vmatprep.subr.bf16.mxu0 0
        %1650 = vmatpush1.bf16.msra.mxu0 %v1501
        %1651 = vmatprep.subr.bf16.mxu0 0
        %1652 = vmatpush1.bf16.msra.mxu0 %v1502
        %1653 = vmatprep.subr.bf16.mxu0 0
        %1654 = vmatpush1.bf16.msra.mxu0 %v1503
        %1655 = vmatprep.subr.bf16.mxu0 0
        %1656 = vmatpush1.bf16.msra.mxu0 %v1504
        %1657 = vmatprep.subr.bf16.mxu0 0
        %1658 = vmatpush1.bf16.msra.mxu0 %v1505
        %1659 = vmatprep.subr.bf16.mxu0 0
        %1660 = vmatpush1.bf16.msra.mxu0 0
        %1661 = vmatprep.subr.bf16.mxu0 0
        %1662 = vmatpush1.bf16.msra.mxu0 0
        %1663 = vmatprep.subr.bf16.mxu0 0
        %1664 = vmatpush1.bf16.msra.mxu0 0
        %1665 = vmatprep.subr.bf16.mxu0 0
        %1666 = vmatpush1.bf16.msra.mxu0 0
        %1667 = vmatprep.subr.bf16.mxu0 0
        %1668 = vmatpush1.bf16.msra.mxu0 0
        %1669 = vmatprep.subr.bf16.mxu0 0
        %1670 = vmatpush1.bf16.msra.mxu0 0
        %1671 = vmatprep.subr.bf16.mxu0 0
        %1672 = vmatpush1.bf16.msra.mxu0 0
        %1673 = vmatprep.subr.bf16.mxu0 0
        %1674 = vmatpush1.bf16.msra.mxu0 0
        %1675 = vmatprep.mubr.bf16.mxu0 0
        %1676 = vmatmul.mubr.bf16.gmra.mrb[0].mxu0 %v1642
        %v1677 = vpop.f32.mrb[0].mxu0
        %v1678 = vadd.f32 0.0, %v1677
        %v1679 = vpop.f32.mrb[0].mxu0
        %v1680 = vpop.f32.mrb[0].mxu0
        %v1681 = vpop.f32.mrb[0].mxu0
        %1682 = vdwg.mxu0
        %v1683 = vadd.f32 %v1431, %v1678
        %v1684 = vtanh.pop %v1683
        %v1685 = vpack.c.bf16 %v1684, %v1684
        %1686 = vmatprep.subr.bf16.mxu0 0
        %1687 = vmatpush1.bf16.msra.mxu0 %v1498
        %1688 = vmatprep.subr.bf16.mxu0 0
        %1689 = vmatpush1.bf16.msra.mxu0 %v1499
        %1690 = vmatprep.subr.bf16.mxu0 0
        %1691 = vmatpush1.bf16.msra.mxu0 %v1500
        %1692 = vmatprep.subr.bf16.mxu0 0
        %1693 = vmatpush1.bf16.msra.mxu0 %v1501
        %1694 = vmatprep.subr.bf16.mxu0 0
        %1695 = vmatpush1.bf16.msra.mxu0 %v1502
        %1696 = vmatprep.subr.bf16.mxu0 0
        %1697 = vmatpush1.bf16.msra.mxu0 %v1503
        %1698 = vmatprep.subr.bf16.mxu0 0
        %1699 = vmatpush1.bf16.msra.mxu0 %v1504
        %1700 = vmatprep.subr.bf16.mxu0 0
        %1701 = vmatpush1.bf16.msra.mxu0 %v1505
        %1702 = vmatprep.subr.bf16.mxu0 0
        %1703 = vmatpush1.bf16.msra.mxu0 0
        %1704 = vmatprep.subr.bf16.mxu0 0
        %1705 = vmatpush1.bf16.msra.mxu0 0
        %1706 = vmatprep.subr.bf16.mxu0 0
        %1707 = vmatpush1.bf16.msra.mxu0 0
        %1708 = vmatprep.subr.bf16.mxu0 0
        %1709 = vmatpush1.bf16.msra.mxu0 0
        %1710 = vmatprep.subr.bf16.mxu0 0
        %1711 = vmatpush1.bf16.msra.mxu0 0
        %1712 = vmatprep.subr.bf16.mxu0 0
        %1713 = vmatpush1.bf16.msra.mxu0 0
        %1714 = vmatprep.subr.bf16.mxu0 0
        %1715 = vmatpush1.bf16.msra.mxu0 0
        %1716 = vmatprep.subr.bf16.mxu0 0
        %1717 = vmatpush1.bf16.msra.mxu0 0
        %1718 = vmatprep.mubr.bf16.mxu0 0
        %1719 = vmatmul.mubr.bf16.gmra.mrb[0].mxu0 %v1685
        %v1720 = vpop.f32.mrb[0].mxu0
        %v1721 = vadd.f32 0.0, %v1720
        %v1722 = vpop.f32.mrb[0].mxu0
        %v1723 = vpop.f32.mrb[0].mxu0
        %v1724 = vpop.f32.mrb[0].mxu0
        %1725 = vdwg.mxu0
        %v1726 = vadd.f32 %v1436, %v1721
        %v1727 = vtanh.pop %v1726
        %v1728 = vpack.c.bf16 %v1727, %v1727
        %1729 = vmatprep.subr.bf16.mxu0 0
        %1730 = vmatpush1.bf16.msra.mxu0 %v1498
        %1731 = vmatprep.subr.bf16.mxu0 0
        %1732 = vmatpush1.bf16.msra.mxu0 %v1499
        %1733 = vmatprep.subr.bf16.mxu0 0
        %1734 = vmatpush1.bf16.msra.mxu0 %v1500
        %1735 = vmatprep.subr.bf16.mxu0 0
        %1736 = vmatpush1.bf16.msra.mxu0 %v1501
        %1737 = vmatprep.subr.bf16.mxu0 0
        %1738 = vmatpush1.bf16.msra.mxu0 %v1502
        %1739 = vmatprep.subr.bf16.mxu0 0
        %1740 = vmatpush1.bf16.msra.mxu0 %v1503
        %1741 = vmatprep.subr.bf16.mxu0 0
        %1742 = vmatpush1.bf16.msra.mxu0 %v1504
        %1743 = vmatprep.subr.bf16.mxu0 0
        %1744 = vmatpush1.bf16.msra.mxu0 %v1505
        %1745 = vmatprep.subr.bf16.mxu0 0
        %1746 = vmatpush1.bf16.msra.mxu0 0
        %1747 = vmatprep.subr.bf16.mxu0 0
        %1748 = vmatpush1.bf16.msra.mxu0 0
        %1749 = vmatprep.subr.bf16.mxu0 0
        %1750 = vmatpush1.bf16.msra.mxu0 0
        %1751 = vmatprep.subr.bf16.mxu0 0
        %1752 = vmatpush1.bf16.msra.mxu0 0
        %1753 = vmatprep.subr.bf16.mxu0 0
        %1754 = vmatpush1.bf16.msra.mxu0 0
        %1755 = vmatprep.subr.bf16.mxu0 0
        %1756 = vmatpush1.bf16.msra.mxu0 0
        %1757 = vmatprep.subr.bf16.mxu0 0
        %1758 = vmatpush1.bf16.msra.mxu0 0
        %1759 = vmatprep.subr.bf16.mxu0 0
        %1760 = vmatpush1.bf16.msra.mxu0 0
        %1761 = vmatprep.mubr.bf16.mxu0 0
        %1762 = vmatmul.mubr.bf16.gmra.mrb[0].mxu0 %v1728
        %v1763 = vpop.f32.mrb[0].mxu0
        %v1764 = vadd.f32 0.0, %v1763
        %v1765 = vpop.f32.mrb[0].mxu0
        %v1766 = vpop.f32.mrb[0].mxu0
        %v1767 = vpop.f32.mrb[0].mxu0
        %1768 = vdwg.mxu0
        %v1769 = vadd.f32 %v1439, %v1764
        %v1770 = vtanh.pop %v1769
        %v1771 = vpack.c.bf16 %v1770, %v1770
        %1772 = vmatprep.subr.bf16.mxu0 0
        %1773 = vmatpush1.bf16.msra.mxu0 %v1498
        %1774 = vmatprep.subr.bf16.mxu0 0
        %1775 = vmatpush1.bf16.msra.mxu0 %v1499
        %1776 = vmatprep.subr.bf16.mxu0 0
        %1777 = vmatpush1.bf16.msra.mxu0 %v1500
        %1778 = vmatprep.subr.bf16.mxu0 0
        %1779 = vmatpush1.bf16.msra.mxu0 %v1501
        %1780 = vmatprep.subr.bf16.mxu0 0
        %1781 = vmatpush1.bf16.msra.mxu0 %v1502
        %1782 = vmatprep.subr.bf16.mxu0 0
        %1783 = vmatpush1.bf16.msra.mxu0 %v1503
        %1784 = vmatprep.subr.bf16.mxu0 0
        %1785 = vmatpush1.bf16.msra.mxu0 %v1504
        %1786 = vmatprep.subr.bf16.mxu0 0
        %1787 = vmatpush1.bf16.msra.mxu0 %v1505
        %1788 = vmatprep.subr.bf16.mxu0 0
        %1789 = vmatpush1.bf16.msra.mxu0 0
        %1790 = vmatprep.subr.bf16.mxu0 0
        %1791 = vmatpush1.bf16.msra.mxu0 0
        %1792 = vmatprep.subr.bf16.mxu0 0
        %1793 = vmatpush1.bf16.msra.mxu0 0
        %1794 = vmatprep.subr.bf16.mxu0 0
        %1795 = vmatpush1.bf16.msra.mxu0 0
        %1796 = vmatprep.subr.bf16.mxu0 0
        %1797 = vmatpush1.bf16.msra.mxu0 0
        %1798 = vmatprep.subr.bf16.mxu0 0
        %1799 = vmatpush1.bf16.msra.mxu0 0
        %1800 = vmatprep.subr.bf16.mxu0 0
        %1801 = vmatpush1.bf16.msra.mxu0 0
        %1802 = vmatprep.subr.bf16.mxu0 0
        %1803 = vmatpush1.bf16.msra.mxu0 0
        %1804 = vmatprep.mubr.bf16.mxu0 0
        %1805 = vmatmul.mubr.bf16.gmra.mrb[0].mxu0 %v1771
        %v1806 = vpop.f32.mrb[0].mxu0
        %v1807 = vadd.f32 0.0, %v1806
        %v1808 = vpop.f32.mrb[0].mxu0
        %v1809 = vpop.f32.mrb[0].mxu0
        %v1810 = vpop.f32.mrb[0].mxu0
        %1811 = vdwg.mxu0
        %v1812 = vadd.f32 %v1444, %v1807
        %v1813 = vtanh.pop %v1812
        %v1814 = vpack.c.bf16 %v1813, %v1813
        %1815 = vmatprep.subr.bf16.mxu0 0
        %1816 = vmatpush1.bf16.msra.mxu0 %v1498
        %1817 = vmatprep.subr.bf16.mxu0 0
        %1818 = vmatpush1.bf16.msra.mxu0 %v1499
        %1819 = vmatprep.subr.bf16.mxu0 0
        %1820 = vmatpush1.bf16.msra.mxu0 %v1500
        %1821 = vmatprep.subr.bf16.mxu0 0
        %1822 = vmatpush1.bf16.msra.mxu0 %v1501
        %1823 = vmatprep.subr.bf16.mxu0 0
        %1824 = vmatpush1.bf16.msra.mxu0 %v1502
        %1825 = vmatprep.subr.bf16.mxu0 0
        %1826 = vmatpush1.bf16.msra.mxu0 %v1503
        %1827 = vmatprep.subr.bf16.mxu0 0
        %1828 = vmatpush1.bf16.msra.mxu0 %v1504
        %1829 = vmatprep.subr.bf16.mxu0 0
        %1830 = vmatpush1.bf16.msra.mxu0 %v1505
        %1831 = vmatprep.subr.bf16.mxu0 0
        %1832 = vmatpush1.bf16.msra.mxu0 0
        %1833 = vmatprep.subr.bf16.mxu0 0
        %1834 = vmatpush1.bf16.msra.mxu0 0
        %1835 = vmatprep.subr.bf16.mxu0 0
        %1836 = vmatpush1.bf16.msra.mxu0 0
        %1837 = vmatprep.subr.bf16.mxu0 0
        %1838 = vmatpush1.bf16.msra.mxu0 0
        %1839 = vmatprep.subr.bf16.mxu0 0
        %1840 = vmatpush1.bf16.msra.mxu0 0
        %1841 = vmatprep.subr.bf16.mxu0 0
        %1842 = vmatpush1.bf16.msra.mxu0 0
        %1843 = vmatprep.subr.bf16.mxu0 0
        %1844 = vmatpush1.bf16.msra.mxu0 0
        %1845 = vmatprep.subr.bf16.mxu0 0
        %1846 = vmatpush1.bf16.msra.mxu0 0
        %1847 = vmatprep.mubr.bf16.mxu0 0
        %1848 = vmatmul.mubr.bf16.gmra.mrb[0].mxu0 %v1814
        %v1849 = vpop.f32.mrb[0].mxu0
        %v1850 = vadd.f32 0.0, %v1849
        %v1851 = vpop.f32.mrb[0].mxu0
        %v1852 = vpop.f32.mrb[0].mxu0
        %v1853 = vpop.f32.mrb[0].mxu0
        %1854 = vdwg.mxu0
        %v1855 = vadd.f32 %v1447, %v1850
        %v1856 = vtanh.pop %v1855
        %v1857 = vpack.c.bf16 %v1856, %v1856
        %v1858 = vld [vmem:[%s4] sm:$0xf]
        %v1859 = vld [vmem:[%s4 + $0x4] sm:$0xf]
        %v1860 = vld [vmem:[%s4 + $0x8] sm:$0xf]
        %v1861 = vld [vmem:[%s4 + $0xc] sm:$0xf]
        %v1862 = vld [vmem:[%s4 + $0x10] sm:$0xf]
        %v1863 = vld [vmem:[%s4 + $0x14] sm:$0xf]
        %v1864 = vld [vmem:[%s4 + $0x18] sm:$0xf]
        %v1865 = vld [vmem:[%s4 + $0x1c] sm:$0xf]
        %v1866 = vld [vmem:[%s4 + $0x20] sm:$0xf]
        %v1867 = vld [vmem:[%s4 + $0x24] sm:$0xf]
        %v1868 = vld [vmem:[%s4 + $0x28] sm:$0xf]
        %v1869 = vld [vmem:[%s4 + $0x2c] sm:$0xf]
        %v1870 = vld [vmem:[%s4 + $0x30] sm:$0xf]
        %v1871 = vld [vmem:[%s4 + $0x34] sm:$0xf]
        %v1872 = vld [vmem:[%s4 + $0x38] sm:$0xf]
        %v1873 = vld [vmem:[%s4 + $0x3c] sm:$0xf]
        %v1874 = vld [vmem:[%s5] sm:$0x1]
        %v1876 = vlaneseq
        %v1877 = vshrl.u32 %v1876, 7
        %v1878 = vsub.s32 0, %v1877
        %v1879 = vrot.slane %v1874, %v1878
        %v1897 = vunpack.c.l.b16 %v1858
        %v1898 = vunpack.c.l.b16 %v1859
        %v1899 = vunpack.c.l.b16 %v1860
        %v1900 = vunpack.c.l.b16 %v1861
        %v1901 = vunpack.c.l.b16 %v1862
        %v1902 = vunpack.c.l.b16 %v1863
        %v1903 = vunpack.c.l.b16 %v1864
        %v1904 = vunpack.c.l.b16 %v1865
        %v1905 = vunpack.c.l.b16 %v1866
        %v1906 = vunpack.c.l.b16 %v1867
        %v1907 = vunpack.c.l.b16 %v1868
        %v1908 = vunpack.c.l.b16 %v1869
        %v1909 = vunpack.c.l.b16 %v1870
        %v1910 = vunpack.c.l.b16 %v1871
        %v1911 = vunpack.c.l.b16 %v1872
        %v1912 = vunpack.c.l.b16 %v1873
        %v1913 = vpack.c.b16 %v1898, %v1897
        %v1914 = vpack.c.b16 %v1900, %v1899
        %v1915 = vpack.c.b16 %v1902, %v1901
        %v1916 = vpack.c.b16 %v1904, %v1903
        %v1917 = vpack.c.b16 %v1906, %v1905
        %v1918 = vpack.c.b16 %v1908, %v1907
        %v1919 = vpack.c.b16 %v1910, %v1909
        %v1920 = vpack.c.b16 %v1912, %v1911
        %1929 = vmatprep.subr.bf16.mxu0 0
        %1930 = vmatpush1.bf16.msra.mxu0 %v1913
        %1931 = vmatprep.subr.bf16.mxu0 0
        %1932 = vmatpush1.bf16.msra.mxu0 %v1914
        %1933 = vmatprep.subr.bf16.mxu0 0
        %1934 = vmatpush1.bf16.msra.mxu0 %v1915
        %1935 = vmatprep.subr.bf16.mxu0 0
        %1936 = vmatpush1.bf16.msra.mxu0 %v1916
        %1937 = vmatprep.subr.bf16.mxu0 0
        %1938 = vmatpush1.bf16.msra.mxu0 %v1917
        %1939 = vmatprep.subr.bf16.mxu0 0
        %1940 = vmatpush1.bf16.msra.mxu0 %v1918
        %1941 = vmatprep.subr.bf16.mxu0 0
        %1942 = vmatpush1.bf16.msra.mxu0 %v1919
        %1943 = vmatprep.subr.bf16.mxu0 0
        %1944 = vmatpush1.bf16.msra.mxu0 %v1920
        %1945 = vmatprep.subr.bf16.mxu0 0
        %1946 = vmatpush1.bf16.msra.mxu0 0
        %1947 = vmatprep.subr.bf16.mxu0 0
        %1948 = vmatpush1.bf16.msra.mxu0 0
        %1949 = vmatprep.subr.bf16.mxu0 0
        %1950 = vmatpush1.bf16.msra.mxu0 0
        %1951 = vmatprep.subr.bf16.mxu0 0
        %1952 = vmatpush1.bf16.msra.mxu0 0
        %1953 = vmatprep.subr.bf16.mxu0 0
        %1954 = vmatpush1.bf16.msra.mxu0 0
        %1955 = vmatprep.subr.bf16.mxu0 0
        %1956 = vmatpush1.bf16.msra.mxu0 0
        %1957 = vmatprep.subr.bf16.mxu0 0
        %1958 = vmatpush1.bf16.msra.mxu0 0
        %1959 = vmatprep.subr.bf16.mxu0 0
        %1960 = vmatpush1.bf16.msra.mxu0 0
        %1961 = vmatprep.mubr.bf16.mxu0 0
        %1962 = vmatmul.mubr.bf16.gmra.mrb[0].mxu0 %v1857
        %v1963 = vpop.f32.mrb[0].mxu0
        %v1964 = vadd.f32 %v1879, %v1963
        %v1965 = vpop.f32.mrb[0].mxu0
        %v1966 = vpop.f32.mrb[0].mxu0
        %v1967 = vpop.f32.mrb[0].mxu0
        %1968 = vdwg.mxu0
        %v1969 = vld [vmem:[%s1236] sm:$0xf]
        %v1970 = vld [vmem:[%s1236 + $0x4] sm:$0xf]
        %v1971 = vld [vmem:[%s1236 + $0x8] sm:$0xf]
        %v1972 = vld [vmem:[%s1236 + $0xc] sm:$0xf]
        %v1973 = vld [vmem:[%s1236 + $0x10] sm:$0xf]
        %v1974 = vld [vmem:[%s1236 + $0x14] sm:$0xf]
        %v1975 = vld [vmem:[%s1236 + $0x18] sm:$0xf]
        %v1976 = vld [vmem:[%s1236 + $0x1c] sm:$0xf]
        %v1977 = vld [vmem:[%s1236 + $0x20] sm:$0xf]
        %v1978 = vld [vmem:[%s1236 + $0x24] sm:$0xf]
        %v1979 = vld [vmem:[%s1236 + $0x28] sm:$0xf]
        %v1980 = vld [vmem:[%s1236 + $0x2c] sm:$0xf]
        %v1981 = vld [vmem:[%s1236 + $0x30] sm:$0xf]
        %v1982 = vld [vmem:[%s1236 + $0x34] sm:$0xf]
        %v1983 = vld [vmem:[%s1236 + $0x38] sm:$0xf]
        %v1984 = vld [vmem:[%s1236 + $0x3c] sm:$0xf]
        %v1985 = vld [vmem:[%s1236 + $0x40] sm:$0xf]
        %v1986 = vld [vmem:[%s1236 + $0x44] sm:$0xf]
        %v1987 = vld [vmem:[%s1236 + $0x48] sm:$0xf]
        %v1988 = vld [vmem:[%s1236 + $0x4c] sm:$0xf]
        %v1989 = vld [vmem:[%s1236 + $0x50] sm:$0xf]
        %v1990 = vld [vmem:[%s1236 + $0x54] sm:$0xf]
        %v1991 = vld [vmem:[%s1236 + $0x58] sm:$0xf]
        %v1992 = vld [vmem:[%s1236 + $0x5c] sm:$0xf]
        %v1993 = vld [vmem:[%s1236 + $0x60] sm:$0xf]
        %v1994 = vld [vmem:[%s1236 + $0x64] sm:$0xf]
        %v1995 = vld [vmem:[%s1236 + $0x68] sm:$0xf]
        %v1996 = vld [vmem:[%s1236 + $0x6c] sm:$0xf]
        %v1997 = vld [vmem:[%s1236 + $0x70] sm:$0xf]
        %v1998 = vld [vmem:[%s1236 + $0x74] sm:$0xf]
        %v1999 = vld [vmem:[%s1236 + $0x78] sm:$0xf]
        %v2000 = vld [vmem:[%s1236 + $0x7c] sm:$0xf]
        %v2001 = vld [vmem:[%s1236 + $0x80] sm:$0xf]
        %v2002 = vld [vmem:[%s1236 + $0x84] sm:$0xf]
        %v2003 = vld [vmem:[%s1236 + $0x88] sm:$0xf]
        %v2004 = vld [vmem:[%s1236 + $0x8c] sm:$0xf]
        %v2005 = vld [vmem:[%s1236 + $0x90] sm:$0xf]
        %v2006 = vld [vmem:[%s1236 + $0x94] sm:$0xf]
        %v2007 = vld [vmem:[%s1236 + $0x98] sm:$0xf]
        %v2008 = vld [vmem:[%s1236 + $0x9c] sm:$0xf]
        %v2009 = vld [vmem:[%s1236 + $0xa0] sm:$0xf]
        %v2010 = vld [vmem:[%s1236 + $0xa4] sm:$0xf]
        %v2011 = vld [vmem:[%s1236 + $0xa8] sm:$0xf]
        %v2012 = vld [vmem:[%s1236 + $0xac] sm:$0xf]
        %v2013 = vld [vmem:[%s1236 + $0xb0] sm:$0xf]
        %v2014 = vld [vmem:[%s1236 + $0xb4] sm:$0xf]
        %v2015 = vld [vmem:[%s1236 + $0xb8] sm:$0xf]
        %v2016 = vld [vmem:[%s1236 + $0xbc] sm:$0xf]
        %v2017 = vld [vmem:[%s1236 + $0xc0] sm:$0xf]
        %v2018 = vld [vmem:[%s1236 + $0xc4] sm:$0xf]
        %v2019 = vld [vmem:[%s1236 + $0xc8] sm:$0xf]
        %v2020 = vld [vmem:[%s1236 + $0xcc] sm:$0xf]
        %v2021 = vld [vmem:[%s1236 + $0xd0] sm:$0xf]
        %v2022 = vld [vmem:[%s1236 + $0xd4] sm:$0xf]
        %v2023 = vld [vmem:[%s1236 + $0xd8] sm:$0xf]
        %v2024 = vld [vmem:[%s1236 + $0xdc] sm:$0xf]
        %v2025 = vld [vmem:[%s1236 + $0xe0] sm:$0xf]
        %v2026 = vld [vmem:[%s1236 + $0xe4] sm:$0xf]
        %v2027 = vld [vmem:[%s1236 + $0xe8] sm:$0xf]
        %v2028 = vld [vmem:[%s1236 + $0xec] sm:$0xf]
        %v2029 = vld [vmem:[%s1236 + $0xf0] sm:$0xf]
        %v2030 = vld [vmem:[%s1236 + $0xf4] sm:$0xf]
        %v2031 = vld [vmem:[%s1236 + $0xf8] sm:$0xf]
        %v2032 = vld [vmem:[%s1236 + $0xfc] sm:$0xf]
        %v2033 = vld [vmem:[%s1236 + $0x100] sm:$0xf]
        %v2034 = vld [vmem:[%s1236 + $0x104] sm:$0xf]
        %v2035 = vld [vmem:[%s1236 + $0x108] sm:$0xf]
        %v2036 = vld [vmem:[%s1236 + $0x10c] sm:$0xf]
        %v2037 = vld [vmem:[%s1236 + $0x110] sm:$0xf]
        %v2038 = vld [vmem:[%s1236 + $0x114] sm:$0xf]
        %v2039 = vld [vmem:[%s1236 + $0x118] sm:$0xf]
        %v2040 = vld [vmem:[%s1236 + $0x11c] sm:$0xf]
        %v2041 = vld [vmem:[%s1236 + $0x120] sm:$0xf]
        %v2042 = vld [vmem:[%s1236 + $0x124] sm:$0xf]
        %v2043 = vld [vmem:[%s1236 + $0x128] sm:$0xf]
        %v2044 = vld [vmem:[%s1236 + $0x12c] sm:$0xf]
        %v2045 = vld [vmem:[%s1236 + $0x130] sm:$0xf]
        %v2046 = vld [vmem:[%s1236 + $0x134] sm:$0xf]
        %v2047 = vld [vmem:[%s1236 + $0x138] sm:$0xf]
        %v2048 = vld [vmem:[%s1236 + $0x13c] sm:$0xf]
        %v2049 = vld [vmem:[%s1236 + $0x140] sm:$0xf]
        %v2050 = vld [vmem:[%s1236 + $0x144] sm:$0xf]
        %v2051 = vld [vmem:[%s1236 + $0x148] sm:$0xf]
        %v2052 = vld [vmem:[%s1236 + $0x14c] sm:$0xf]
        %v2053 = vld [vmem:[%s1236 + $0x150] sm:$0xf]
        %v2054 = vld [vmem:[%s1236 + $0x154] sm:$0xf]
        %v2055 = vld [vmem:[%s1236 + $0x158] sm:$0xf]
        %v2056 = vld [vmem:[%s1236 + $0x15c] sm:$0xf]
        %v2057 = vld [vmem:[%s1236 + $0x160] sm:$0xf]
        %v2058 = vld [vmem:[%s1236 + $0x164] sm:$0xf]
        %v2059 = vld [vmem:[%s1236 + $0x168] sm:$0xf]
        %v2060 = vld [vmem:[%s1236 + $0x16c] sm:$0xf]
        %v2061 = vld [vmem:[%s1236 + $0x170] sm:$0xf]
        %v2062 = vld [vmem:[%s1236 + $0x174] sm:$0xf]
        %v2063 = vld [vmem:[%s1236 + $0x178] sm:$0xf]
        %v2064 = vld [vmem:[%s1236 + $0x17c] sm:$0xf]
        %v2065 = vld [vmem:[%s1236 + $0x180] sm:$0xf]
        %v2066 = vld [vmem:[%s1236 + $0x184] sm:$0xf]
        %v2067 = vld [vmem:[%s1236 + $0x188] sm:$0xf]
        %v2068 = vld [vmem:[%s1236 + $0x18c] sm:$0xf]
        %v2069 = vld [vmem:[%s1236 + $0x190] sm:$0xf]
        %v2070 = vld [vmem:[%s1236 + $0x194] sm:$0xf]
        %v2071 = vld [vmem:[%s1236 + $0x198] sm:$0xf]
        %v2072 = vld [vmem:[%s1236 + $0x19c] sm:$0xf]
        %v2073 = vld [vmem:[%s1236 + $0x1a0] sm:$0xf]
        %v2074 = vld [vmem:[%s1236 + $0x1a4] sm:$0xf]
        %v2075 = vld [vmem:[%s1236 + $0x1a8] sm:$0xf]
        %v2076 = vld [vmem:[%s1236 + $0x1ac] sm:$0xf]
        %v2077 = vld [vmem:[%s1236 + $0x1b0] sm:$0xf]
        %v2078 = vld [vmem:[%s1236 + $0x1b4] sm:$0xf]
        %v2079 = vld [vmem:[%s1236 + $0x1b8] sm:$0xf]
        %v2080 = vld [vmem:[%s1236 + $0x1bc] sm:$0xf]
        %v2081 = vld [vmem:[%s1236 + $0x1c0] sm:$0xf]
        %v2082 = vld [vmem:[%s1236 + $0x1c4] sm:$0xf]
        %v2083 = vld [vmem:[%s1236 + $0x1c8] sm:$0xf]
        %v2084 = vld [vmem:[%s1236 + $0x1cc] sm:$0xf]
        %v2085 = vld [vmem:[%s1236 + $0x1d0] sm:$0xf]
        %v2086 = vld [vmem:[%s1236 + $0x1d4] sm:$0xf]
        %v2087 = vld [vmem:[%s1236 + $0x1d8] sm:$0xf]
        %v2088 = vld [vmem:[%s1236 + $0x1dc] sm:$0xf]
        %v2089 = vld [vmem:[%s1236 + $0x1e0] sm:$0xf]
        %v2090 = vld [vmem:[%s1236 + $0x1e4] sm:$0xf]
        %v2091 = vld [vmem:[%s1236 + $0x1e8] sm:$0xf]
        %v2092 = vld [vmem:[%s1236 + $0x1ec] sm:$0xf]
        %v2093 = vld [vmem:[%s1236 + $0x1f0] sm:$0xf]
        %v2094 = vld [vmem:[%s1236 + $0x1f4] sm:$0xf]
        %v2095 = vld [vmem:[%s1236 + $0x1f8] sm:$0xf]
        %v2096 = vld [vmem:[%s1236 + $0x1fc] sm:$0xf]
        %v2097 = vld [vmem:[%s1236 + $0x200] sm:$0xf]
        %v2098 = vld [vmem:[%s1236 + $0x204] sm:$0xf]
        %v2099 = vld [vmem:[%s1236 + $0x208] sm:$0xf]
        %v2100 = vld [vmem:[%s1236 + $0x20c] sm:$0xf]
        %v2101 = vld [vmem:[%s1236 + $0x210] sm:$0xf]
        %v2102 = vld [vmem:[%s1236 + $0x214] sm:$0xf]
        %v2103 = vld [vmem:[%s1236 + $0x218] sm:$0xf]
        %v2104 = vld [vmem:[%s1236 + $0x21c] sm:$0xf]
        %v2105 = vld [vmem:[%s1236 + $0x220] sm:$0xf]
        %v2106 = vld [vmem:[%s1236 + $0x224] sm:$0xf]
        %v2107 = vld [vmem:[%s1236 + $0x228] sm:$0xf]
        %v2108 = vld [vmem:[%s1236 + $0x22c] sm:$0xf]
        %v2109 = vld [vmem:[%s1236 + $0x230] sm:$0xf]
        %v2110 = vld [vmem:[%s1236 + $0x234] sm:$0xf]
        %v2111 = vld [vmem:[%s1236 + $0x238] sm:$0xf]
        %v2112 = vld [vmem:[%s1236 + $0x23c] sm:$0xf]
        %v2113 = vld [vmem:[%s1236 + $0x240] sm:$0xf]
        %v2114 = vld [vmem:[%s1236 + $0x244] sm:$0xf]
        %v2115 = vld [vmem:[%s1236 + $0x248] sm:$0xf]
        %v2116 = vld [vmem:[%s1236 + $0x24c] sm:$0xf]
        %v2117 = vld [vmem:[%s1236 + $0x250] sm:$0xf]
        %v2118 = vld [vmem:[%s1236 + $0x254] sm:$0xf]
        %v2119 = vld [vmem:[%s1236 + $0x258] sm:$0xf]
        %v2120 = vld [vmem:[%s1236 + $0x25c] sm:$0xf]
        %v2121 = vld [vmem:[%s1236 + $0x260] sm:$0xf]
        %v2122 = vld [vmem:[%s1236 + $0x264] sm:$0xf]
        %v2123 = vld [vmem:[%s1236 + $0x268] sm:$0xf]
        %v2124 = vld [vmem:[%s1236 + $0x26c] sm:$0xf]
        %v2125 = vld [vmem:[%s1236 + $0x270] sm:$0xf]
        %v2126 = vld [vmem:[%s1236 + $0x274] sm:$0xf]
        %v2127 = vld [vmem:[%s1236 + $0x278] sm:$0xf]
        %v2128 = vld [vmem:[%s1236 + $0x27c] sm:$0xf]
        %v2129 = vld [vmem:[%s1236 + $0x280] sm:$0xf]
        %v2130 = vld [vmem:[%s1236 + $0x284] sm:$0xf]
        %v2131 = vld [vmem:[%s1236 + $0x288] sm:$0xf]
        %v2132 = vld [vmem:[%s1236 + $0x28c] sm:$0xf]
        %v2133 = vld [vmem:[%s1236 + $0x290] sm:$0xf]
        %v2134 = vld [vmem:[%s1236 + $0x294] sm:$0xf]
        %v2135 = vld [vmem:[%s1236 + $0x298] sm:$0xf]
        %v2136 = vld [vmem:[%s1236 + $0x29c] sm:$0xf]
        %v2137 = vld [vmem:[%s1236 + $0x2a0] sm:$0xf]
        %v2138 = vld [vmem:[%s1236 + $0x2a4] sm:$0xf]
        %v2139 = vld [vmem:[%s1236 + $0x2a8] sm:$0xf]
        %v2140 = vld [vmem:[%s1236 + $0x2ac] sm:$0xf]
        %v2141 = vld [vmem:[%s1236 + $0x2b0] sm:$0xf]
        %v2142 = vld [vmem:[%s1236 + $0x2b4] sm:$0xf]
        %v2143 = vld [vmem:[%s1236 + $0x2b8] sm:$0xf]
        %v2144 = vld [vmem:[%s1236 + $0x2bc] sm:$0xf]
        %v2145 = vld [vmem:[%s1236 + $0x2c0] sm:$0xf]
        %v2146 = vld [vmem:[%s1236 + $0x2c4] sm:$0xf]
        %v2147 = vld [vmem:[%s1236 + $0x2c8] sm:$0xf]
        %v2148 = vld [vmem:[%s1236 + $0x2cc] sm:$0xf]
        %v2149 = vld [vmem:[%s1236 + $0x2d0] sm:$0xf]
        %v2150 = vld [vmem:[%s1236 + $0x2d4] sm:$0xf]
        %v2151 = vld [vmem:[%s1236 + $0x2d8] sm:$0xf]
        %v2152 = vld [vmem:[%s1236 + $0x2dc] sm:$0xf]
        %v2153 = vld [vmem:[%s1236 + $0x2e0] sm:$0xf]
        %v2154 = vld [vmem:[%s1236 + $0x2e4] sm:$0xf]
        %v2155 = vld [vmem:[%s1236 + $0x2e8] sm:$0xf]
        %v2156 = vld [vmem:[%s1236 + $0x2ec] sm:$0xf]
        %v2157 = vld [vmem:[%s1236 + $0x2f0] sm:$0xf]
        %v2158 = vld [vmem:[%s1236 + $0x2f4] sm:$0xf]
        %v2159 = vld [vmem:[%s1236 + $0x2f8] sm:$0xf]
        %v2160 = vld [vmem:[%s1236 + $0x2fc] sm:$0xf]
        %v2161 = vld [vmem:[%s7] sm:$0xf]
        %v2162 = vld [vmem:[%s7 + $0x4] sm:$0xf]
        %v2163 = vld [vmem:[%s7 + $0x8] sm:$0xf]
        %v2164 = vld [vmem:[%s7 + $0xc] sm:$0xf]
        %v2165 = vld [vmem:[%s7 + $0x10] sm:$0x3]
        %v2166 = vld [vmem:[%s8] sm:$0x1]
        %v2168 = vlaneseq
        %v2169 = vshrl.u32 %v2168, 7
        %v2170 = vsub.s32 0, %v2169
        %v2171 = vrot.slane %v2166, %v2170
        %v2365 = vunpack.c.l.b16 %v1969
        %v2366 = vunpack.c.l.b16 %v1970
        %v2367 = vunpack.c.l.b16 %v1971
        %v2368 = vunpack.c.l.b16 %v1972
        %v2369 = vunpack.c.l.b16 %v1973
        %v2370 = vunpack.c.l.b16 %v1974
        %v2371 = vunpack.c.l.b16 %v1975
        %v2372 = vunpack.c.l.b16 %v1976
        %v2373 = vunpack.c.l.b16 %v1977
        %v2374 = vunpack.c.l.b16 %v1978
        %v2375 = vunpack.c.l.b16 %v1979
        %v2376 = vunpack.c.l.b16 %v1980
        %v2377 = vunpack.c.l.b16 %v1981
        %v2378 = vunpack.c.l.b16 %v1982
        %v2379 = vunpack.c.l.b16 %v1983
        %v2380 = vunpack.c.l.b16 %v1984
        %v2381 = vunpack.c.l.b16 %v1985
        %v2382 = vunpack.c.l.b16 %v1986
        %v2383 = vunpack.c.l.b16 %v1987
        %v2384 = vunpack.c.l.b16 %v1988
        %v2385 = vunpack.c.l.b16 %v1989
        %v2386 = vunpack.c.l.b16 %v1990
        %v2387 = vunpack.c.l.b16 %v1991
        %v2388 = vunpack.c.l.b16 %v1992
        %v2389 = vunpack.c.l.b16 %v1993
        %v2390 = vunpack.c.l.b16 %v1994
        %v2391 = vunpack.c.l.b16 %v1995
        %v2392 = vunpack.c.l.b16 %v1996
        %v2393 = vunpack.c.l.b16 %v1997
        %v2394 = vunpack.c.l.b16 %v1998
        %v2395 = vunpack.c.l.b16 %v1999
        %v2396 = vunpack.c.l.b16 %v2000
        %v2397 = vunpack.c.l.b16 %v2001
        %v2398 = vunpack.c.l.b16 %v2002
        %v2399 = vunpack.c.l.b16 %v2003
        %v2400 = vunpack.c.l.b16 %v2004
        %v2401 = vunpack.c.l.b16 %v2005
        %v2402 = vunpack.c.l.b16 %v2006
        %v2403 = vunpack.c.l.b16 %v2007
        %v2404 = vunpack.c.l.b16 %v2008
        %v2405 = vunpack.c.l.b16 %v2009
        %v2406 = vunpack.c.l.b16 %v2010
        %v2407 = vunpack.c.l.b16 %v2011
        %v2408 = vunpack.c.l.b16 %v2012
        %v2409 = vunpack.c.l.b16 %v2013
        %v2410 = vunpack.c.l.b16 %v2014
        %v2411 = vunpack.c.l.b16 %v2015
        %v2412 = vunpack.c.l.b16 %v2016
        %v2413 = vunpack.c.l.b16 %v2017
        %v2414 = vunpack.c.l.b16 %v2018
        %v2415 = vunpack.c.l.b16 %v2019
        %v2416 = vunpack.c.l.b16 %v2020
        %v2417 = vunpack.c.l.b16 %v2021
        %v2418 = vunpack.c.l.b16 %v2022
        %v2419 = vunpack.c.l.b16 %v2023
        %v2420 = vunpack.c.l.b16 %v2024
        %v2421 = vunpack.c.l.b16 %v2025
        %v2422 = vunpack.c.l.b16 %v2026
        %v2423 = vunpack.c.l.b16 %v2027
        %v2424 = vunpack.c.l.b16 %v2028
        %v2425 = vunpack.c.l.b16 %v2029
        %v2426 = vunpack.c.l.b16 %v2030
        %v2427 = vunpack.c.l.b16 %v2031
        %v2428 = vunpack.c.l.b16 %v2032
        %v2429 = vunpack.c.l.b16 %v2033
        %v2430 = vunpack.c.l.b16 %v2034
        %v2431 = vunpack.c.l.b16 %v2035
        %v2432 = vunpack.c.l.b16 %v2036
        %v2433 = vunpack.c.l.b16 %v2037
        %v2434 = vunpack.c.l.b16 %v2038
        %v2435 = vunpack.c.l.b16 %v2039
        %v2436 = vunpack.c.l.b16 %v2040
        %v2437 = vunpack.c.l.b16 %v2041
        %v2438 = vunpack.c.l.b16 %v2042
        %v2439 = vunpack.c.l.b16 %v2043
        %v2440 = vunpack.c.l.b16 %v2044
        %v2441 = vunpack.c.l.b16 %v2045
        %v2442 = vunpack.c.l.b16 %v2046
        %v2443 = vunpack.c.l.b16 %v2047
        %v2444 = vunpack.c.l.b16 %v2048
        %v2445 = vunpack.c.l.b16 %v2049
        %v2446 = vunpack.c.l.b16 %v2050
        %v2447 = vunpack.c.l.b16 %v2051
        %v2448 = vunpack.c.l.b16 %v2052
        %v2449 = vunpack.c.l.b16 %v2053
        %v2450 = vunpack.c.l.b16 %v2054
        %v2451 = vunpack.c.l.b16 %v2055
        %v2452 = vunpack.c.l.b16 %v2056
        %v2453 = vunpack.c.l.b16 %v2057
        %v2454 = vunpack.c.l.b16 %v2058
        %v2455 = vunpack.c.l.b16 %v2059
        %v2456 = vunpack.c.l.b16 %v2060
        %v2457 = vunpack.c.l.b16 %v2061
        %v2458 = vunpack.c.l.b16 %v2062
        %v2459 = vunpack.c.l.b16 %v2063
        %v2460 = vunpack.c.l.b16 %v2064
        %v2461 = vunpack.c.l.b16 %v2065
        %v2462 = vunpack.c.l.b16 %v2066
        %v2463 = vunpack.c.l.b16 %v2067
        %v2464 = vunpack.c.l.b16 %v2068
        %v2465 = vunpack.c.l.b16 %v2069
        %v2466 = vunpack.c.l.b16 %v2070
        %v2467 = vunpack.c.l.b16 %v2071
        %v2468 = vunpack.c.l.b16 %v2072
        %v2469 = vunpack.c.l.b16 %v2073
        %v2470 = vunpack.c.l.b16 %v2074
        %v2471 = vunpack.c.l.b16 %v2075
        %v2472 = vunpack.c.l.b16 %v2076
        %v2473 = vunpack.c.l.b16 %v2077
        %v2474 = vunpack.c.l.b16 %v2078
        %v2475 = vunpack.c.l.b16 %v2079
        %v2476 = vunpack.c.l.b16 %v2080
        %v2477 = vunpack.c.l.b16 %v2081
        %v2478 = vunpack.c.l.b16 %v2082
        %v2479 = vunpack.c.l.b16 %v2083
        %v2480 = vunpack.c.l.b16 %v2084
        %v2481 = vunpack.c.l.b16 %v2085
        %v2482 = vunpack.c.l.b16 %v2086
        %v2483 = vunpack.c.l.b16 %v2087
        %v2484 = vunpack.c.l.b16 %v2088
        %v2485 = vunpack.c.l.b16 %v2089
        %v2486 = vunpack.c.l.b16 %v2090
        %v2487 = vunpack.c.l.b16 %v2091
        %v2488 = vunpack.c.l.b16 %v2092
        %v2489 = vunpack.c.l.b16 %v2093
        %v2490 = vunpack.c.l.b16 %v2094
        %v2491 = vunpack.c.l.b16 %v2095
        %v2492 = vunpack.c.l.b16 %v2096
        %v2493 = vunpack.c.l.b16 %v2097
        %v2494 = vunpack.c.l.b16 %v2098
        %v2495 = vunpack.c.l.b16 %v2099
        %v2496 = vunpack.c.l.b16 %v2100
        %v2497 = vunpack.c.l.b16 %v2101
        %v2498 = vunpack.c.l.b16 %v2102
        %v2499 = vunpack.c.l.b16 %v2103
        %v2500 = vunpack.c.l.b16 %v2104
        %v2501 = vunpack.c.l.b16 %v2105
        %v2502 = vunpack.c.l.b16 %v2106
        %v2503 = vunpack.c.l.b16 %v2107
        %v2504 = vunpack.c.l.b16 %v2108
        %v2505 = vunpack.c.l.b16 %v2109
        %v2506 = vunpack.c.l.b16 %v2110
        %v2507 = vunpack.c.l.b16 %v2111
        %v2508 = vunpack.c.l.b16 %v2112
        %v2509 = vunpack.c.l.b16 %v2113
        %v2510 = vunpack.c.l.b16 %v2114
        %v2511 = vunpack.c.l.b16 %v2115
        %v2512 = vunpack.c.l.b16 %v2116
        %v2513 = vunpack.c.l.b16 %v2117
        %v2514 = vunpack.c.l.b16 %v2118
        %v2515 = vunpack.c.l.b16 %v2119
        %v2516 = vunpack.c.l.b16 %v2120
        %v2517 = vunpack.c.l.b16 %v2121
        %v2518 = vunpack.c.l.b16 %v2122
        %v2519 = vunpack.c.l.b16 %v2123
        %v2520 = vunpack.c.l.b16 %v2124
        %v2521 = vunpack.c.l.b16 %v2125
        %v2522 = vunpack.c.l.b16 %v2126
        %v2523 = vunpack.c.l.b16 %v2127
        %v2524 = vunpack.c.l.b16 %v2128
        %v2525 = vunpack.c.l.b16 %v2129
        %v2526 = vunpack.c.l.b16 %v2130
        %v2527 = vunpack.c.l.b16 %v2131
        %v2528 = vunpack.c.l.b16 %v2132
        %v2529 = vunpack.c.l.b16 %v2133
        %v2530 = vunpack.c.l.b16 %v2134
        %v2531 = vunpack.c.l.b16 %v2135
        %v2532 = vunpack.c.l.b16 %v2136
        %v2533 = vunpack.c.l.b16 %v2137
        %v2534 = vunpack.c.l.b16 %v2138
        %v2535 = vunpack.c.l.b16 %v2139
        %v2536 = vunpack.c.l.b16 %v2140
        %v2537 = vunpack.c.l.b16 %v2141
        %v2538 = vunpack.c.l.b16 %v2142
        %v2539 = vunpack.c.l.b16 %v2143
        %v2540 = vunpack.c.l.b16 %v2144
        %v2541 = vunpack.c.l.b16 %v2145
        %v2542 = vunpack.c.l.b16 %v2146
        %v2543 = vunpack.c.l.b16 %v2147
        %v2544 = vunpack.c.l.b16 %v2148
        %v2545 = vunpack.c.l.b16 %v2149
        %v2546 = vunpack.c.l.b16 %v2150
        %v2547 = vunpack.c.l.b16 %v2151
        %v2548 = vunpack.c.l.b16 %v2152
        %v2549 = vunpack.c.l.b16 %v2153
        %v2550 = vunpack.c.l.b16 %v2154
        %v2551 = vunpack.c.l.b16 %v2155
        %v2552 = vunpack.c.l.b16 %v2156
        %v2553 = vunpack.c.l.b16 %v2157
        %v2554 = vunpack.c.l.b16 %v2158
        %v2555 = vunpack.c.l.b16 %v2159
        %v2556 = vunpack.c.l.b16 %v2160
        %v2557 = vpack.c.b16 %v2366, %v2365
        %v2558 = vpack.c.b16 %v2368, %v2367
        %v2559 = vpack.c.b16 %v2370, %v2369
        %v2560 = vpack.c.b16 %v2372, %v2371
        %v2561 = vpack.c.b16 %v2374, %v2373
        %v2562 = vpack.c.b16 %v2376, %v2375
        %v2563 = vpack.c.b16 %v2378, %v2377
        %v2564 = vpack.c.b16 %v2380, %v2379
        %v2565 = vpack.c.b16 %v2382, %v2381
        %v2566 = vpack.c.b16 %v2384, %v2383
        %v2567 = vpack.c.b16 %v2386, %v2385
        %v2568 = vpack.c.b16 %v2388, %v2387
        %v2569 = vpack.c.b16 %v2390, %v2389
        %v2570 = vpack.c.b16 %v2392, %v2391
        %v2571 = vpack.c.b16 %v2394, %v2393
        %v2572 = vpack.c.b16 %v2396, %v2395
        %v2573 = vpack.c.b16 %v2398, %v2397
        %v2574 = vpack.c.b16 %v2400, %v2399
        %v2575 = vpack.c.b16 %v2402, %v2401
        %v2576 = vpack.c.b16 %v2404, %v2403
        %v2577 = vpack.c.b16 %v2406, %v2405
        %v2578 = vpack.c.b16 %v2408, %v2407
        %v2579 = vpack.c.b16 %v2410, %v2409
        %v2580 = vpack.c.b16 %v2412, %v2411
        %v2581 = vpack.c.b16 %v2414, %v2413
        %v2582 = vpack.c.b16 %v2416, %v2415
        %v2583 = vpack.c.b16 %v2418, %v2417
        %v2584 = vpack.c.b16 %v2420, %v2419
        %v2585 = vpack.c.b16 %v2422, %v2421
        %v2586 = vpack.c.b16 %v2424, %v2423
        %v2587 = vpack.c.b16 %v2426, %v2425
        %v2588 = vpack.c.b16 %v2428, %v2427
        %v2589 = vpack.c.b16 %v2430, %v2429
        %v2590 = vpack.c.b16 %v2432, %v2431
        %v2591 = vpack.c.b16 %v2434, %v2433
        %v2592 = vpack.c.b16 %v2436, %v2435
        %v2593 = vpack.c.b16 %v2438, %v2437
        %v2594 = vpack.c.b16 %v2440, %v2439
        %v2595 = vpack.c.b16 %v2442, %v2441
        %v2596 = vpack.c.b16 %v2444, %v2443
        %v2597 = vpack.c.b16 %v2446, %v2445
        %v2598 = vpack.c.b16 %v2448, %v2447
        %v2599 = vpack.c.b16 %v2450, %v2449
        %v2600 = vpack.c.b16 %v2452, %v2451
        %v2601 = vpack.c.b16 %v2454, %v2453
        %v2602 = vpack.c.b16 %v2456, %v2455
        %v2603 = vpack.c.b16 %v2458, %v2457
        %v2604 = vpack.c.b16 %v2460, %v2459
        %v2605 = vpack.c.b16 %v2462, %v2461
        %v2606 = vpack.c.b16 %v2464, %v2463
        %v2607 = vpack.c.b16 %v2466, %v2465
        %v2608 = vpack.c.b16 %v2468, %v2467
        %v2609 = vpack.c.b16 %v2470, %v2469
        %v2610 = vpack.c.b16 %v2472, %v2471
        %v2611 = vpack.c.b16 %v2474, %v2473
        %v2612 = vpack.c.b16 %v2476, %v2475
        %v2613 = vpack.c.b16 %v2478, %v2477
        %v2614 = vpack.c.b16 %v2480, %v2479
        %v2615 = vpack.c.b16 %v2482, %v2481
        %v2616 = vpack.c.b16 %v2484, %v2483
        %v2617 = vpack.c.b16 %v2486, %v2485
        %v2618 = vpack.c.b16 %v2488, %v2487
        %v2619 = vpack.c.b16 %v2490, %v2489
        %v2620 = vpack.c.b16 %v2492, %v2491
        %v2621 = vpack.c.b16 %v2494, %v2493
        %v2622 = vpack.c.b16 %v2496, %v2495
        %v2623 = vpack.c.b16 %v2498, %v2497
        %v2624 = vpack.c.b16 %v2500, %v2499
        %v2625 = vpack.c.b16 %v2502, %v2501
        %v2626 = vpack.c.b16 %v2504, %v2503
        %v2627 = vpack.c.b16 %v2506, %v2505
        %v2628 = vpack.c.b16 %v2508, %v2507
        %v2629 = vpack.c.b16 %v2510, %v2509
        %v2630 = vpack.c.b16 %v2512, %v2511
        %v2631 = vpack.c.b16 %v2514, %v2513
        %v2632 = vpack.c.b16 %v2516, %v2515
        %v2633 = vpack.c.b16 %v2518, %v2517
        %v2634 = vpack.c.b16 %v2520, %v2519
        %v2635 = vpack.c.b16 %v2522, %v2521
        %v2636 = vpack.c.b16 %v2524, %v2523
        %v2637 = vpack.c.b16 %v2526, %v2525
        %v2638 = vpack.c.b16 %v2528, %v2527
        %v2639 = vpack.c.b16 %v2530, %v2529
        %v2640 = vpack.c.b16 %v2532, %v2531
        %v2641 = vpack.c.b16 %v2534, %v2533
        %v2642 = vpack.c.b16 %v2536, %v2535
        %v2643 = vpack.c.b16 %v2538, %v2537
        %v2644 = vpack.c.b16 %v2540, %v2539
        %v2645 = vpack.c.b16 %v2542, %v2541
        %v2646 = vpack.c.b16 %v2544, %v2543
        %v2647 = vpack.c.b16 %v2546, %v2545
        %v2648 = vpack.c.b16 %v2548, %v2547
        %v2649 = vpack.c.b16 %v2550, %v2549
        %v2650 = vpack.c.b16 %v2552, %v2551
        %v2651 = vpack.c.b16 %v2554, %v2553
        %v2652 = vpack.c.b16 %v2556, %v2555
        %v2658 = vunpack.c.l.b16 %v2161
        %v2659 = vunpack.c.l.b16 %v2162
        %v2660 = vunpack.c.l.b16 %v2163
        %v2661 = vunpack.c.l.b16 %v2164
        %v2662 = vunpack.c.l.b16 %v2165
        %v2663 = vpack.c.b16 %v2659, %v2658
        %v2664 = vpack.c.b16 %v2661, %v2660
        %v2665 = vpack.c.b16 %v2662, %v2662
        %vm2668 = vcmask 293888
        %v2670 = vsel %vm2668, %v2557, 0
        %v2673 = vsel %vm2668, %v2558, 0
        %v2676 = vsel %vm2668, %v2559, 0
        %v2679 = vsel %vm2668, %v2560, 0
        %v2682 = vsel %vm2668, %v2561, 0
        %v2685 = vsel %vm2668, %v2562, 0
        %v2688 = vsel %vm2668, %v2563, 0
        %v2691 = vsel %vm2668, %v2564, 0
        %v2694 = vsel %vm2668, %v2565, 0
        %v2697 = vsel %vm2668, %v2566, 0
        %v2700 = vsel %vm2668, %v2567, 0
        %v2703 = vsel %vm2668, %v2568, 0
        %v2706 = vsel %vm2668, %v2569, 0
        %v2709 = vsel %vm2668, %v2570, 0
        %v2712 = vsel %vm2668, %v2571, 0
        %v2715 = vsel %vm2668, %v2572, 0
        %v2718 = vsel %vm2668, %v2573, 0
        %v2721 = vsel %vm2668, %v2574, 0
        %v2724 = vsel %vm2668, %v2575, 0
        %v2727 = vsel %vm2668, %v2576, 0
        %v2730 = vsel %vm2668, %v2577, 0
        %v2733 = vsel %vm2668, %v2578, 0
        %v2736 = vsel %vm2668, %v2579, 0
        %v2739 = vsel %vm2668, %v2580, 0
        %v2742 = vsel %vm2668, %v2581, 0
        %v2745 = vsel %vm2668, %v2582, 0
        %v2748 = vsel %vm2668, %v2583, 0
        %v2751 = vsel %vm2668, %v2584, 0
        %v2754 = vsel %vm2668, %v2585, 0
        %v2757 = vsel %vm2668, %v2586, 0
        %v2760 = vsel %vm2668, %v2587, 0
        %v2763 = vsel %vm2668, %v2588, 0
        %v2766 = vsel %vm2668, %v2589, 0
        %v2769 = vsel %vm2668, %v2590, 0
        %v2772 = vsel %vm2668, %v2591, 0
        %v2775 = vsel %vm2668, %v2592, 0
        %v2778 = vsel %vm2668, %v2593, 0
        %v2781 = vsel %vm2668, %v2594, 0
        %v2784 = vsel %vm2668, %v2595, 0
        %v2787 = vsel %vm2668, %v2596, 0
        %v2790 = vsel %vm2668, %v2597, 0
        %v2793 = vsel %vm2668, %v2598, 0
        %v2796 = vsel %vm2668, %v2599, 0
        %v2799 = vsel %vm2668, %v2600, 0
        %v2802 = vsel %vm2668, %v2601, 0
        %v2805 = vsel %vm2668, %v2602, 0
        %v2808 = vsel %vm2668, %v2603, 0
        %v2811 = vsel %vm2668, %v2604, 0
        %v2814 = vsel %vm2668, %v2605, 0
        %v2817 = vsel %vm2668, %v2606, 0
        %v2820 = vsel %vm2668, %v2607, 0
        %v2823 = vsel %vm2668, %v2608, 0
        %v2826 = vsel %vm2668, %v2609, 0
        %v2829 = vsel %vm2668, %v2610, 0
        %v2832 = vsel %vm2668, %v2611, 0
        %v2835 = vsel %vm2668, %v2612, 0
        %v2838 = vsel %vm2668, %v2613, 0
        %v2841 = vsel %vm2668, %v2614, 0
        %v2844 = vsel %vm2668, %v2615, 0
        %v2847 = vsel %vm2668, %v2616, 0
        %v2850 = vsel %vm2668, %v2617, 0
        %v2853 = vsel %vm2668, %v2618, 0
        %v2856 = vsel %vm2668, %v2619, 0
        %v2859 = vsel %vm2668, %v2620, 0
        %v2862 = vsel %vm2668, %v2621, 0
        %v2865 = vsel %vm2668, %v2622, 0
        %v2868 = vsel %vm2668, %v2623, 0
        %v2871 = vsel %vm2668, %v2624, 0
        %v2874 = vsel %vm2668, %v2625, 0
        %v2877 = vsel %vm2668, %v2626, 0
        %v2880 = vsel %vm2668, %v2627, 0
        %v2883 = vsel %vm2668, %v2628, 0
        %v2886 = vsel %vm2668, %v2629, 0
        %v2889 = vsel %vm2668, %v2630, 0
        %v2892 = vsel %vm2668, %v2631, 0
        %v2895 = vsel %vm2668, %v2632, 0
        %v2898 = vsel %vm2668, %v2633, 0
        %v2901 = vsel %vm2668, %v2634, 0
        %v2904 = vsel %vm2668, %v2635, 0
        %v2907 = vsel %vm2668, %v2636, 0
        %v2910 = vsel %vm2668, %v2637, 0
        %v2913 = vsel %vm2668, %v2638, 0
        %v2916 = vsel %vm2668, %v2639, 0
        %v2919 = vsel %vm2668, %v2640, 0
        %v2922 = vsel %vm2668, %v2641, 0
        %v2925 = vsel %vm2668, %v2642, 0
        %v2928 = vsel %vm2668, %v2643, 0
        %v2931 = vsel %vm2668, %v2644, 0
        %v2934 = vsel %vm2668, %v2645, 0
        %v2937 = vsel %vm2668, %v2646, 0
        %v2940 = vsel %vm2668, %v2647, 0
        %v2943 = vsel %vm2668, %v2648, 0
        %v2946 = vsel %vm2668, %v2649, 0
        %v2949 = vsel %vm2668, %v2650, 0
        %v2952 = vsel %vm2668, %v2651, 0
        %v2955 = vsel %vm2668, %v2652, 0
        %vm2957 = vcmask 1041408
        %v2959 = vsel %vm2957, %v2665, 0
        %2961 = vmatprep.subr.bf16.mxu0 0
        %2962 = vmatpush1.bf16.msra.mxu0 %v2663
        %2963 = vmatprep.subr.bf16.mxu0 0
        %2964 = vmatpush1.bf16.msra.mxu0 %v2664
        %2965 = vmatprep.subr.bf16.mxu0 0
        %2966 = vmatpush1.bf16.msra.mxu0 %v2959
        %2967 = vmatprep.subr.bf16.mxu0 0
        %2968 = vmatpush1.bf16.msra.mxu0 0
        %2969 = vmatprep.subr.bf16.mxu0 0
        %2970 = vmatpush1.bf16.msra.mxu0 0
        %2971 = vmatprep.subr.bf16.mxu0 0
        %2972 = vmatpush1.bf16.msra.mxu0 0
        %2973 = vmatprep.subr.bf16.mxu0 0
        %2974 = vmatpush1.bf16.msra.mxu0 0
        %2975 = vmatprep.subr.bf16.mxu0 0
        %2976 = vmatpush1.bf16.msra.mxu0 0
        %2977 = vmatprep.subr.bf16.mxu0 0
        %2978 = vmatpush1.bf16.msra.mxu0 0
        %2979 = vmatprep.subr.bf16.mxu0 0
        %2980 = vmatpush1.bf16.msra.mxu0 0
        %2981 = vmatprep.subr.bf16.mxu0 0
        %2982 = vmatpush1.bf16.msra.mxu0 0
        %2983 = vmatprep.subr.bf16.mxu0 0
        %2984 = vmatpush1.bf16.msra.mxu0 0
        %2985 = vmatprep.subr.bf16.mxu0 0
        %2986 = vmatpush1.bf16.msra.mxu0 0
        %2987 = vmatprep.subr.bf16.mxu0 0
        %2988 = vmatpush1.bf16.msra.mxu0 0
        %2989 = vmatprep.subr.bf16.mxu0 0
        %2990 = vmatpush1.bf16.msra.mxu0 0
        %2991 = vmatprep.subr.bf16.mxu0 0
        %2992 = vmatpush1.bf16.msra.mxu0 0
        %2993 = vmatprep.mubr.bf16.mxu0 0
        %2994 = vmatmul.mubr.bf16.gmra.mrb[0].mxu0 %v2670
        %v2995 = vpop.f32.mrb[0].mxu0
        %v2996 = vadd.f32 %v2171, %v2995
        %v2997 = vpop.f32.mrb[0].mxu0
        %v2998 = vpop.f32.mrb[0].mxu0
        %v2999 = vadd.f32 %v2171, %v2998
        %v3000 = vpop.f32.mrb[0].mxu0
        %3001 = vmatprep.mubr.bf16.mxu0 0
        %3002 = vmatmul.mubr.bf16.gmra.mrb[0].mxu0 %v2673
        %v3003 = vpop.f32.mrb[0].mxu0
        %v3004 = vadd.f32 %v2171, %v3003
        %v3005 = vpop.f32.mrb[0].mxu0
        %v3006 = vpop.f32.mrb[0].mxu0
        %v3007 = vadd.f32 %v2171, %v3006
        %v3008 = vpop.f32.mrb[0].mxu0
        %3009 = vmatprep.mubr.bf16.mxu0 0
        %3010 = vmatmul.mubr.bf16.gmra.mrb[0].mxu0 %v2676
        %v3011 = vpop.f32.mrb[0].mxu0
        %v3012 = vadd.f32 %v2171, %v3011
        %v3013 = vpop.f32.mrb[0].mxu0
        %v3014 = vpop.f32.mrb[0].mxu0
        %v3015 = vadd.f32 %v2171, %v3014
        %v3016 = vpop.f32.mrb[0].mxu0
        %3017 = vmatprep.mubr.bf16.mxu0 0
        %3018 = vmatmul.mubr.bf16.gmra.mrb[0].mxu0 %v2679
        %v3019 = vpop.f32.mrb[0].mxu0
        %v3020 = vadd.f32 %v2171, %v3019
        %v3021 = vpop.f32.mrb[0].mxu0
        %v3022 = vpop.f32.mrb[0].mxu0
        %v3023 = vadd.f32 %v2171, %v3022
        %v3024 = vpop.f32.mrb[0].mxu0
        %3025 = vmatprep.mubr.bf16.mxu0 0
        %3026 = vmatmul.mubr.bf16.gmra.mrb[0].mxu0 %v2682
        %v3027 = vpop.f32.mrb[0].mxu0
        %v3028 = vadd.f32 %v2171, %v3027
        %v3029 = vpop.f32.mrb[0].mxu0
        %v3030 = vpop.f32.mrb[0].mxu0
        %v3031 = vadd.f32 %v2171, %v3030
        %v3032 = vpop.f32.mrb[0].mxu0
        %3033 = vmatprep.mubr.bf16.mxu0 0
        %3034 = vmatmul.mubr.bf16.gmra.mrb[0].mxu0 %v2685
        %v3035 = vpop.f32.mrb[0].mxu0
        %v3036 = vadd.f32 %v2171, %v3035
        %v3037 = vpop.f32.mrb[0].mxu0
        %v3038 = vpop.f32.mrb[0].mxu0
        %v3039 = vadd.f32 %v2171, %v3038
        %v3040 = vpop.f32.mrb[0].mxu0
        %3041 = vmatprep.mubr.bf16.mxu0 0
        %3042 = vmatmul.mubr.bf16.gmra.mrb[0].mxu0 %v2688
        %v3043 = vpop.f32.mrb[0].mxu0
        %v3044 = vadd.f32 %v2171, %v3043
        %v3045 = vpop.f32.mrb[0].mxu0
        %v3046 = vpop.f32.mrb[0].mxu0
        %v3047 = vadd.f32 %v2171, %v3046
        %v3048 = vpop.f32.mrb[0].mxu0
        %3049 = vmatprep.mubr.bf16.mxu0 0
        %3050 = vmatmul.mubr.bf16.gmra.mrb[0].mxu0 %v2691
        %v3051 = vpop.f32.mrb[0].mxu0
        %v3052 = vadd.f32 %v2171, %v3051
        %v3053 = vpop.f32.mrb[0].mxu0
        %v3054 = vpop.f32.mrb[0].mxu0
        %v3055 = vadd.f32 %v2171, %v3054
        %v3056 = vpop.f32.mrb[0].mxu0
        %3057 = vmatprep.mubr.bf16.mxu0 0
        %3058 = vmatmul.mubr.bf16.gmra.mrb[0].mxu0 %v2694
        %v3059 = vpop.f32.mrb[0].mxu0
        %v3060 = vadd.f32 %v2171, %v3059
        %v3061 = vpop.f32.mrb[0].mxu0
        %v3062 = vpop.f32.mrb[0].mxu0
        %v3063 = vadd.f32 %v2171, %v3062
        %v3064 = vpop.f32.mrb[0].mxu0
        %3065 = vmatprep.mubr.bf16.mxu0 0
        %3066 = vmatmul.mubr.bf16.gmra.mrb[0].mxu0 %v2697
        %v3067 = vpop.f32.mrb[0].mxu0
        %v3068 = vadd.f32 %v2171, %v3067
        %v3069 = vpop.f32.mrb[0].mxu0
        %v3070 = vpop.f32.mrb[0].mxu0
        %v3071 = vadd.f32 %v2171, %v3070
        %v3072 = vpop.f32.mrb[0].mxu0
        %3073 = vmatprep.mubr.bf16.mxu0 0
        %3074 = vmatmul.mubr.bf16.gmra.mrb[0].mxu0 %v2700
        %v3075 = vpop.f32.mrb[0].mxu0
        %v3076 = vadd.f32 %v2171, %v3075
        %v3077 = vpop.f32.mrb[0].mxu0
        %v3078 = vpop.f32.mrb[0].mxu0
        %v3079 = vadd.f32 %v2171, %v3078
        %v3080 = vpop.f32.mrb[0].mxu0
        %3081 = vmatprep.mubr.bf16.mxu0 0
        %3082 = vmatmul.mubr.bf16.gmra.mrb[0].mxu0 %v2703
        %v3083 = vpop.f32.mrb[0].mxu0
        %v3084 = vadd.f32 %v2171, %v3083
        %v3085 = vpop.f32.mrb[0].mxu0
        %v3086 = vpop.f32.mrb[0].mxu0
        %v3087 = vadd.f32 %v2171, %v3086
        %v3088 = vpop.f32.mrb[0].mxu0
        %3089 = vmatprep.mubr.bf16.mxu0 0
        %3090 = vmatmul.mubr.bf16.gmra.mrb[0].mxu0 %v2706
        %v3091 = vpop.f32.mrb[0].mxu0
        %v3092 = vadd.f32 %v2171, %v3091
        %v3093 = vpop.f32.mrb[0].mxu0
        %v3094 = vpop.f32.mrb[0].mxu0
        %v3095 = vadd.f32 %v2171, %v3094
        %v3096 = vpop.f32.mrb[0].mxu0
        %3097 = vmatprep.mubr.bf16.mxu0 0
        %3098 = vmatmul.mubr.bf16.gmra.mrb[0].mxu0 %v2709
        %v3099 = vpop.f32.mrb[0].mxu0
        %v3100 = vadd.f32 %v2171, %v3099
        %v3101 = vpop.f32.mrb[0].mxu0
        %v3102 = vpop.f32.mrb[0].mxu0
        %v3103 = vadd.f32 %v2171, %v3102
        %v3104 = vpop.f32.mrb[0].mxu0
        %3105 = vmatprep.mubr.bf16.mxu0 0
        %3106 = vmatmul.mubr.bf16.gmra.mrb[0].mxu0 %v2712
        %v3107 = vpop.f32.mrb[0].mxu0
        %v3108 = vadd.f32 %v2171, %v3107
        %v3109 = vpop.f32.mrb[0].mxu0
        %v3110 = vpop.f32.mrb[0].mxu0
        %v3111 = vadd.f32 %v2171, %v3110
        %v3112 = vpop.f32.mrb[0].mxu0
        %3113 = vmatprep.mubr.bf16.mxu0 0
        %3114 = vmatmul.mubr.bf16.gmra.mrb[0].mxu0 %v2715
        %v3115 = vpop.f32.mrb[0].mxu0
        %v3116 = vadd.f32 %v2171, %v3115
        %v3117 = vpop.f32.mrb[0].mxu0
        %v3118 = vpop.f32.mrb[0].mxu0
        %v3119 = vadd.f32 %v2171, %v3118
        %v3120 = vpop.f32.mrb[0].mxu0
        %3121 = vmatprep.mubr.bf16.mxu0 0
        %3122 = vmatmul.mubr.bf16.gmra.mrb[0].mxu0 %v2718
        %v3123 = vpop.f32.mrb[0].mxu0
        %v3124 = vadd.f32 %v2171, %v3123
        %v3125 = vpop.f32.mrb[0].mxu0
        %v3126 = vpop.f32.mrb[0].mxu0
        %v3127 = vadd.f32 %v2171, %v3126
        %v3128 = vpop.f32.mrb[0].mxu0
        %3129 = vmatprep.mubr.bf16.mxu0 0
        %3130 = vmatmul.mubr.bf16.gmra.mrb[0].mxu0 %v2721
        %v3131 = vpop.f32.mrb[0].mxu0
        %v3132 = vadd.f32 %v2171, %v3131
        %v3133 = vpop.f32.mrb[0].mxu0
        %v3134 = vpop.f32.mrb[0].mxu0
        %v3135 = vadd.f32 %v2171, %v3134
        %v3136 = vpop.f32.mrb[0].mxu0
        %3137 = vmatprep.mubr.bf16.mxu0 0
        %3138 = vmatmul.mubr.bf16.gmra.mrb[0].mxu0 %v2724
        %v3139 = vpop.f32.mrb[0].mxu0
        %v3140 = vadd.f32 %v2171, %v3139
        %v3141 = vpop.f32.mrb[0].mxu0
        %v3142 = vpop.f32.mrb[0].mxu0
        %v3143 = vadd.f32 %v2171, %v3142
        %v3144 = vpop.f32.mrb[0].mxu0
        %3145 = vmatprep.mubr.bf16.mxu0 0
        %3146 = vmatmul.mubr.bf16.gmra.mrb[0].mxu0 %v2727
        %v3147 = vpop.f32.mrb[0].mxu0
        %v3148 = vadd.f32 %v2171, %v3147
        %v3149 = vpop.f32.mrb[0].mxu0
        %v3150 = vpop.f32.mrb[0].mxu0
        %v3151 = vadd.f32 %v2171, %v3150
        %v3152 = vpop.f32.mrb[0].mxu0
        %3153 = vmatprep.mubr.bf16.mxu0 0
        %3154 = vmatmul.mubr.bf16.gmra.mrb[0].mxu0 %v2730
        %v3155 = vpop.f32.mrb[0].mxu0
        %v3156 = vadd.f32 %v2171, %v3155
        %v3157 = vpop.f32.mrb[0].mxu0
        %v3158 = vpop.f32.mrb[0].mxu0
        %v3159 = vadd.f32 %v2171, %v3158
        %v3160 = vpop.f32.mrb[0].mxu0
        %3161 = vmatprep.mubr.bf16.mxu0 0
        %3162 = vmatmul.mubr.bf16.gmra.mrb[0].mxu0 %v2733
        %v3163 = vpop.f32.mrb[0].mxu0
        %v3164 = vadd.f32 %v2171, %v3163
        %v3165 = vpop.f32.mrb[0].mxu0
        %v3166 = vpop.f32.mrb[0].mxu0
        %v3167 = vadd.f32 %v2171, %v3166
        %v3168 = vpop.f32.mrb[0].mxu0
        %3169 = vmatprep.mubr.bf16.mxu0 0
        %3170 = vmatmul.mubr.bf16.gmra.mrb[0].mxu0 %v2736
        %v3171 = vpop.f32.mrb[0].mxu0
        %v3172 = vadd.f32 %v2171, %v3171
        %v3173 = vpop.f32.mrb[0].mxu0
        %v3174 = vpop.f32.mrb[0].mxu0
        %v3175 = vadd.f32 %v2171, %v3174
        %v3176 = vpop.f32.mrb[0].mxu0
        %3177 = vmatprep.mubr.bf16.mxu0 0
        %3178 = vmatmul.mubr.bf16.gmra.mrb[0].mxu0 %v2739
        %v3179 = vpop.f32.mrb[0].mxu0
        %v3180 = vadd.f32 %v2171, %v3179
        %v3181 = vpop.f32.mrb[0].mxu0
        %v3182 = vpop.f32.mrb[0].mxu0
        %v3183 = vadd.f32 %v2171, %v3182
        %v3184 = vpop.f32.mrb[0].mxu0
        %3185 = vmatprep.mubr.bf16.mxu0 0
        %3186 = vmatmul.mubr.bf16.gmra.mrb[0].mxu0 %v2742
        %v3187 = vpop.f32.mrb[0].mxu0
        %v3188 = vadd.f32 %v2171, %v3187
        %v3189 = vpop.f32.mrb[0].mxu0
        %v3190 = vpop.f32.mrb[0].mxu0
        %v3191 = vadd.f32 %v2171, %v3190
        %v3192 = vpop.f32.mrb[0].mxu0
        %3193 = vmatprep.mubr.bf16.mxu0 0
        %3194 = vmatmul.mubr.bf16.gmra.mrb[0].mxu0 %v2745
        %v3195 = vpop.f32.mrb[0].mxu0
        %v3196 = vadd.f32 %v2171, %v3195
        %v3197 = vpop.f32.mrb[0].mxu0
        %v3198 = vpop.f32.mrb[0].mxu0
        %v3199 = vadd.f32 %v2171, %v3198
        %v3200 = vpop.f32.mrb[0].mxu0
        %3201 = vmatprep.mubr.bf16.mxu0 0
        %3202 = vmatmul.mubr.bf16.gmra.mrb[0].mxu0 %v2748
        %v3203 = vpop.f32.mrb[0].mxu0
        %v3204 = vadd.f32 %v2171, %v3203
        %v3205 = vpop.f32.mrb[0].mxu0
        %v3206 = vpop.f32.mrb[0].mxu0
        %v3207 = vadd.f32 %v2171, %v3206
        %v3208 = vpop.f32.mrb[0].mxu0
        %3209 = vmatprep.mubr.bf16.mxu0 0
        %3210 = vmatmul.mubr.bf16.gmra.mrb[0].mxu0 %v2751
        %v3211 = vpop.f32.mrb[0].mxu0
        %v3212 = vadd.f32 %v2171, %v3211
        %v3213 = vpop.f32.mrb[0].mxu0
        %v3214 = vpop.f32.mrb[0].mxu0
        %v3215 = vadd.f32 %v2171, %v3214
        %v3216 = vpop.f32.mrb[0].mxu0
        %3217 = vmatprep.mubr.bf16.mxu0 0
        %3218 = vmatmul.mubr.bf16.gmra.mrb[0].mxu0 %v2754
        %v3219 = vpop.f32.mrb[0].mxu0
        %v3220 = vadd.f32 %v2171, %v3219
        %v3221 = vpop.f32.mrb[0].mxu0
        %v3222 = vpop.f32.mrb[0].mxu0
        %v3223 = vadd.f32 %v2171, %v3222
        %v3224 = vpop.f32.mrb[0].mxu0
        %3225 = vmatprep.mubr.bf16.mxu0 0
        %3226 = vmatmul.mubr.bf16.gmra.mrb[0].mxu0 %v2757
        %v3227 = vpop.f32.mrb[0].mxu0
        %v3228 = vadd.f32 %v2171, %v3227
        %v3229 = vpop.f32.mrb[0].mxu0
        %v3230 = vpop.f32.mrb[0].mxu0
        %v3231 = vadd.f32 %v2171, %v3230
        %v3232 = vpop.f32.mrb[0].mxu0
        %3233 = vmatprep.mubr.bf16.mxu0 0
        %3234 = vmatmul.mubr.bf16.gmra.mrb[0].mxu0 %v2760
        %v3235 = vpop.f32.mrb[0].mxu0
        %v3236 = vadd.f32 %v2171, %v3235
        %v3237 = vpop.f32.mrb[0].mxu0
        %v3238 = vpop.f32.mrb[0].mxu0
        %v3239 = vadd.f32 %v2171, %v3238
        %v3240 = vpop.f32.mrb[0].mxu0
        %3241 = vmatprep.mubr.bf16.mxu0 0
        %3242 = vmatmul.mubr.bf16.gmra.mrb[0].mxu0 %v2763
        %v3243 = vpop.f32.mrb[0].mxu0
        %v3244 = vadd.f32 %v2171, %v3243
        %v3245 = vpop.f32.mrb[0].mxu0
        %v3246 = vpop.f32.mrb[0].mxu0
        %v3247 = vadd.f32 %v2171, %v3246
        %v3248 = vpop.f32.mrb[0].mxu0
        %3249 = vmatprep.mubr.bf16.mxu0 0
        %3250 = vmatmul.mubr.bf16.gmra.mrb[0].mxu0 %v2766
        %v3251 = vpop.f32.mrb[0].mxu0
        %v3252 = vadd.f32 %v2171, %v3251
        %v3253 = vpop.f32.mrb[0].mxu0
        %v3254 = vpop.f32.mrb[0].mxu0
        %v3255 = vadd.f32 %v2171, %v3254
        %v3256 = vpop.f32.mrb[0].mxu0
        %3257 = vmatprep.mubr.bf16.mxu0 0
        %3258 = vmatmul.mubr.bf16.gmra.mrb[0].mxu0 %v2769
        %v3259 = vpop.f32.mrb[0].mxu0
        %v3260 = vadd.f32 %v2171, %v3259
        %v3261 = vpop.f32.mrb[0].mxu0
        %v3262 = vpop.f32.mrb[0].mxu0
        %v3263 = vadd.f32 %v2171, %v3262
        %v3264 = vpop.f32.mrb[0].mxu0
        %3265 = vmatprep.mubr.bf16.mxu0 0
        %3266 = vmatmul.mubr.bf16.gmra.mrb[0].mxu0 %v2772
        %v3267 = vpop.f32.mrb[0].mxu0
        %v3268 = vadd.f32 %v2171, %v3267
        %v3269 = vpop.f32.mrb[0].mxu0
        %v3270 = vpop.f32.mrb[0].mxu0
        %v3271 = vadd.f32 %v2171, %v3270
        %v3272 = vpop.f32.mrb[0].mxu0
        %3273 = vmatprep.mubr.bf16.mxu0 0
        %3274 = vmatmul.mubr.bf16.gmra.mrb[0].mxu0 %v2775
        %v3275 = vpop.f32.mrb[0].mxu0
        %v3276 = vadd.f32 %v2171, %v3275
        %v3277 = vpop.f32.mrb[0].mxu0
        %v3278 = vpop.f32.mrb[0].mxu0
        %v3279 = vadd.f32 %v2171, %v3278
        %v3280 = vpop.f32.mrb[0].mxu0
        %3281 = vmatprep.mubr.bf16.mxu0 0
        %3282 = vmatmul.mubr.bf16.gmra.mrb[0].mxu0 %v2778
        %v3283 = vpop.f32.mrb[0].mxu0
        %v3284 = vadd.f32 %v2171, %v3283
        %v3285 = vpop.f32.mrb[0].mxu0
        %v3286 = vpop.f32.mrb[0].mxu0
        %v3287 = vadd.f32 %v2171, %v3286
        %v3288 = vpop.f32.mrb[0].mxu0
        %3289 = vmatprep.mubr.bf16.mxu0 0
        %3290 = vmatmul.mubr.bf16.gmra.mrb[0].mxu0 %v2781
        %v3291 = vpop.f32.mrb[0].mxu0
        %v3292 = vadd.f32 %v2171, %v3291
        %v3293 = vpop.f32.mrb[0].mxu0
        %v3294 = vpop.f32.mrb[0].mxu0
        %v3295 = vadd.f32 %v2171, %v3294
        %v3296 = vpop.f32.mrb[0].mxu0
        %3297 = vmatprep.mubr.bf16.mxu0 0
        %3298 = vmatmul.mubr.bf16.gmra.mrb[0].mxu0 %v2784
        %v3299 = vpop.f32.mrb[0].mxu0
        %v3300 = vadd.f32 %v2171, %v3299
        %v3301 = vpop.f32.mrb[0].mxu0
        %v3302 = vpop.f32.mrb[0].mxu0
        %v3303 = vadd.f32 %v2171, %v3302
        %v3304 = vpop.f32.mrb[0].mxu0
        %3305 = vmatprep.mubr.bf16.mxu0 0
        %3306 = vmatmul.mubr.bf16.gmra.mrb[0].mxu0 %v2787
        %v3307 = vpop.f32.mrb[0].mxu0
        %v3308 = vadd.f32 %v2171, %v3307
        %v3309 = vpop.f32.mrb[0].mxu0
        %v3310 = vpop.f32.mrb[0].mxu0
        %v3311 = vadd.f32 %v2171, %v3310
        %v3312 = vpop.f32.mrb[0].mxu0
        %3313 = vmatprep.mubr.bf16.mxu0 0
        %3314 = vmatmul.mubr.bf16.gmra.mrb[0].mxu0 %v2790
        %v3315 = vpop.f32.mrb[0].mxu0
        %v3316 = vadd.f32 %v2171, %v3315
        %v3317 = vpop.f32.mrb[0].mxu0
        %v3318 = vpop.f32.mrb[0].mxu0
        %v3319 = vadd.f32 %v2171, %v3318
        %v3320 = vpop.f32.mrb[0].mxu0
        %3321 = vmatprep.mubr.bf16.mxu0 0
        %3322 = vmatmul.mubr.bf16.gmra.mrb[0].mxu0 %v2793
        %v3323 = vpop.f32.mrb[0].mxu0
        %v3324 = vadd.f32 %v2171, %v3323
        %v3325 = vpop.f32.mrb[0].mxu0
        %v3326 = vpop.f32.mrb[0].mxu0
        %v3327 = vadd.f32 %v2171, %v3326
        %v3328 = vpop.f32.mrb[0].mxu0
        %3329 = vmatprep.mubr.bf16.mxu0 0
        %3330 = vmatmul.mubr.bf16.gmra.mrb[0].mxu0 %v2796
        %v3331 = vpop.f32.mrb[0].mxu0
        %v3332 = vadd.f32 %v2171, %v3331
        %v3333 = vpop.f32.mrb[0].mxu0
        %v3334 = vpop.f32.mrb[0].mxu0
        %v3335 = vadd.f32 %v2171, %v3334
        %v3336 = vpop.f32.mrb[0].mxu0
        %3337 = vmatprep.mubr.bf16.mxu0 0
        %3338 = vmatmul.mubr.bf16.gmra.mrb[0].mxu0 %v2799
        %v3339 = vpop.f32.mrb[0].mxu0
        %v3340 = vadd.f32 %v2171, %v3339
        %v3341 = vpop.f32.mrb[0].mxu0
        %v3342 = vpop.f32.mrb[0].mxu0
        %v3343 = vadd.f32 %v2171, %v3342
        %v3344 = vpop.f32.mrb[0].mxu0
        %3345 = vmatprep.mubr.bf16.mxu0 0
        %3346 = vmatmul.mubr.bf16.gmra.mrb[0].mxu0 %v2802
        %v3347 = vpop.f32.mrb[0].mxu0
        %v3348 = vadd.f32 %v2171, %v3347
        %v3349 = vpop.f32.mrb[0].mxu0
        %v3350 = vpop.f32.mrb[0].mxu0
        %v3351 = vadd.f32 %v2171, %v3350
        %v3352 = vpop.f32.mrb[0].mxu0
        %3353 = vmatprep.mubr.bf16.mxu0 0
        %3354 = vmatmul.mubr.bf16.gmra.mrb[0].mxu0 %v2805
        %v3355 = vpop.f32.mrb[0].mxu0
        %v3356 = vadd.f32 %v2171, %v3355
        %v3357 = vpop.f32.mrb[0].mxu0
        %v3358 = vpop.f32.mrb[0].mxu0
        %v3359 = vadd.f32 %v2171, %v3358
        %v3360 = vpop.f32.mrb[0].mxu0
        %3361 = vmatprep.mubr.bf16.mxu0 0
        %3362 = vmatmul.mubr.bf16.gmra.mrb[0].mxu0 %v2808
        %v3363 = vpop.f32.mrb[0].mxu0
        %v3364 = vadd.f32 %v2171, %v3363
        %v3365 = vpop.f32.mrb[0].mxu0
        %v3366 = vpop.f32.mrb[0].mxu0
        %v3367 = vadd.f32 %v2171, %v3366
        %v3368 = vpop.f32.mrb[0].mxu0
        %3369 = vmatprep.mubr.bf16.mxu0 0
        %3370 = vmatmul.mubr.bf16.gmra.mrb[0].mxu0 %v2811
        %v3371 = vpop.f32.mrb[0].mxu0
        %v3372 = vadd.f32 %v2171, %v3371
        %v3373 = vpop.f32.mrb[0].mxu0
        %v3374 = vpop.f32.mrb[0].mxu0
        %v3375 = vadd.f32 %v2171, %v3374
        %v3376 = vpop.f32.mrb[0].mxu0
        %3377 = vmatprep.mubr.bf16.mxu0 0
        %3378 = vmatmul.mubr.bf16.gmra.mrb[0].mxu0 %v2814
        %v3379 = vpop.f32.mrb[0].mxu0
        %v3380 = vadd.f32 %v2171, %v3379
        %v3381 = vpop.f32.mrb[0].mxu0
        %v3382 = vpop.f32.mrb[0].mxu0
        %v3383 = vadd.f32 %v2171, %v3382
        %v3384 = vpop.f32.mrb[0].mxu0
        %3385 = vmatprep.mubr.bf16.mxu0 0
        %3386 = vmatmul.mubr.bf16.gmra.mrb[0].mxu0 %v2817
        %v3387 = vpop.f32.mrb[0].mxu0
        %v3388 = vadd.f32 %v2171, %v3387
        %v3389 = vpop.f32.mrb[0].mxu0
        %v3390 = vpop.f32.mrb[0].mxu0
        %v3391 = vadd.f32 %v2171, %v3390
        %v3392 = vpop.f32.mrb[0].mxu0
        %3393 = vmatprep.mubr.bf16.mxu0 0
        %3394 = vmatmul.mubr.bf16.gmra.mrb[0].mxu0 %v2820
        %v3395 = vpop.f32.mrb[0].mxu0
        %v3396 = vadd.f32 %v2171, %v3395
        %v3397 = vpop.f32.mrb[0].mxu0
        %v3398 = vpop.f32.mrb[0].mxu0
        %v3399 = vadd.f32 %v2171, %v3398
        %v3400 = vpop.f32.mrb[0].mxu0
        %3401 = vmatprep.mubr.bf16.mxu0 0
        %3402 = vmatmul.mubr.bf16.gmra.mrb[0].mxu0 %v2823
        %v3403 = vpop.f32.mrb[0].mxu0
        %v3404 = vadd.f32 %v2171, %v3403
        %v3405 = vpop.f32.mrb[0].mxu0
        %v3406 = vpop.f32.mrb[0].mxu0
        %v3407 = vadd.f32 %v2171, %v3406
        %v3408 = vpop.f32.mrb[0].mxu0
        %3409 = vmatprep.mubr.bf16.mxu0 0
        %3410 = vmatmul.mubr.bf16.gmra.mrb[0].mxu0 %v2826
        %v3411 = vpop.f32.mrb[0].mxu0
        %v3412 = vadd.f32 %v2171, %v3411
        %v3413 = vpop.f32.mrb[0].mxu0
        %v3414 = vpop.f32.mrb[0].mxu0
        %v3415 = vadd.f32 %v2171, %v3414
        %v3416 = vpop.f32.mrb[0].mxu0
        %3417 = vmatprep.mubr.bf16.mxu0 0
        %3418 = vmatmul.mubr.bf16.gmra.mrb[0].mxu0 %v2829
        %v3419 = vpop.f32.mrb[0].mxu0
        %v3420 = vadd.f32 %v2171, %v3419
        %v3421 = vpop.f32.mrb[0].mxu0
        %v3422 = vpop.f32.mrb[0].mxu0
        %v3423 = vadd.f32 %v2171, %v3422
        %v3424 = vpop.f32.mrb[0].mxu0
        %3425 = vmatprep.mubr.bf16.mxu0 0
        %3426 = vmatmul.mubr.bf16.gmra.mrb[0].mxu0 %v2832
        %v3427 = vpop.f32.mrb[0].mxu0
        %v3428 = vadd.f32 %v2171, %v3427
        %v3429 = vpop.f32.mrb[0].mxu0
        %v3430 = vpop.f32.mrb[0].mxu0
        %v3431 = vadd.f32 %v2171, %v3430
        %v3432 = vpop.f32.mrb[0].mxu0
        %3433 = vmatprep.mubr.bf16.mxu0 0
        %3434 = vmatmul.mubr.bf16.gmra.mrb[0].mxu0 %v2835
        %v3435 = vpop.f32.mrb[0].mxu0
        %v3436 = vadd.f32 %v2171, %v3435
        %v3437 = vpop.f32.mrb[0].mxu0
        %v3438 = vpop.f32.mrb[0].mxu0
        %v3439 = vadd.f32 %v2171, %v3438
        %v3440 = vpop.f32.mrb[0].mxu0
        %3441 = vmatprep.mubr.bf16.mxu0 0
        %3442 = vmatmul.mubr.bf16.gmra.mrb[0].mxu0 %v2838
        %v3443 = vpop.f32.mrb[0].mxu0
        %v3444 = vadd.f32 %v2171, %v3443
        %v3445 = vpop.f32.mrb[0].mxu0
        %v3446 = vpop.f32.mrb[0].mxu0
        %v3447 = vadd.f32 %v2171, %v3446
        %v3448 = vpop.f32.mrb[0].mxu0
        %3449 = vmatprep.mubr.bf16.mxu0 0
        %3450 = vmatmul.mubr.bf16.gmra.mrb[0].mxu0 %v2841
        %v3451 = vpop.f32.mrb[0].mxu0
        %v3452 = vadd.f32 %v2171, %v3451
        %v3453 = vpop.f32.mrb[0].mxu0
        %v3454 = vpop.f32.mrb[0].mxu0
        %v3455 = vadd.f32 %v2171, %v3454
        %v3456 = vpop.f32.mrb[0].mxu0
        %3457 = vmatprep.mubr.bf16.mxu0 0
        %3458 = vmatmul.mubr.bf16.gmra.mrb[0].mxu0 %v2844
        %v3459 = vpop.f32.mrb[0].mxu0
        %v3460 = vadd.f32 %v2171, %v3459
        %v3461 = vpop.f32.mrb[0].mxu0
        %v3462 = vpop.f32.mrb[0].mxu0
        %v3463 = vadd.f32 %v2171, %v3462
        %v3464 = vpop.f32.mrb[0].mxu0
        %3465 = vmatprep.mubr.bf16.mxu0 0
        %3466 = vmatmul.mubr.bf16.gmra.mrb[0].mxu0 %v2847
        %v3467 = vpop.f32.mrb[0].mxu0
        %v3468 = vadd.f32 %v2171, %v3467
        %v3469 = vpop.f32.mrb[0].mxu0
        %v3470 = vpop.f32.mrb[0].mxu0
        %v3471 = vadd.f32 %v2171, %v3470
        %v3472 = vpop.f32.mrb[0].mxu0
        %3473 = vmatprep.mubr.bf16.mxu0 0
        %3474 = vmatmul.mubr.bf16.gmra.mrb[0].mxu0 %v2850
        %v3475 = vpop.f32.mrb[0].mxu0
        %v3476 = vadd.f32 %v2171, %v3475
        %v3477 = vpop.f32.mrb[0].mxu0
        %v3478 = vpop.f32.mrb[0].mxu0
        %v3479 = vadd.f32 %v2171, %v3478
        %v3480 = vpop.f32.mrb[0].mxu0
        %3481 = vmatprep.mubr.bf16.mxu0 0
        %3482 = vmatmul.mubr.bf16.gmra.mrb[0].mxu0 %v2853
        %v3483 = vpop.f32.mrb[0].mxu0
        %v3484 = vadd.f32 %v2171, %v3483
        %v3485 = vpop.f32.mrb[0].mxu0
        %v3486 = vpop.f32.mrb[0].mxu0
        %v3487 = vadd.f32 %v2171, %v3486
        %v3488 = vpop.f32.mrb[0].mxu0
        %3489 = vmatprep.mubr.bf16.mxu0 0
        %3490 = vmatmul.mubr.bf16.gmra.mrb[0].mxu0 %v2856
        %v3491 = vpop.f32.mrb[0].mxu0
        %v3492 = vadd.f32 %v2171, %v3491
        %v3493 = vpop.f32.mrb[0].mxu0
        %v3494 = vpop.f32.mrb[0].mxu0
        %v3495 = vadd.f32 %v2171, %v3494
        %v3496 = vpop.f32.mrb[0].mxu0
        %3497 = vmatprep.mubr.bf16.mxu0 0
        %3498 = vmatmul.mubr.bf16.gmra.mrb[0].mxu0 %v2859
        %v3499 = vpop.f32.mrb[0].mxu0
        %v3500 = vadd.f32 %v2171, %v3499
        %v3501 = vpop.f32.mrb[0].mxu0
        %v3502 = vpop.f32.mrb[0].mxu0
        %v3503 = vadd.f32 %v2171, %v3502
        %v3504 = vpop.f32.mrb[0].mxu0
        %3505 = vmatprep.mubr.bf16.mxu0 0
        %3506 = vmatmul.mubr.bf16.gmra.mrb[0].mxu0 %v2862
        %v3507 = vpop.f32.mrb[0].mxu0
        %v3508 = vadd.f32 %v2171, %v3507
        %v3509 = vpop.f32.mrb[0].mxu0
        %v3510 = vpop.f32.mrb[0].mxu0
        %v3511 = vadd.f32 %v2171, %v3510
        %v3512 = vpop.f32.mrb[0].mxu0
        %3513 = vmatprep.mubr.bf16.mxu0 0
        %3514 = vmatmul.mubr.bf16.gmra.mrb[0].mxu0 %v2865
        %v3515 = vpop.f32.mrb[0].mxu0
        %v3516 = vadd.f32 %v2171, %v3515
        %v3517 = vpop.f32.mrb[0].mxu0
        %v3518 = vpop.f32.mrb[0].mxu0
        %v3519 = vadd.f32 %v2171, %v3518
        %v3520 = vpop.f32.mrb[0].mxu0
        %3521 = vmatprep.mubr.bf16.mxu0 0
        %3522 = vmatmul.mubr.bf16.gmra.mrb[0].mxu0 %v2868
        %v3523 = vpop.f32.mrb[0].mxu0
        %v3524 = vadd.f32 %v2171, %v3523
        %v3525 = vpop.f32.mrb[0].mxu0
        %v3526 = vpop.f32.mrb[0].mxu0
        %v3527 = vadd.f32 %v2171, %v3526
        %v3528 = vpop.f32.mrb[0].mxu0
        %3529 = vmatprep.mubr.bf16.mxu0 0
        %3530 = vmatmul.mubr.bf16.gmra.mrb[0].mxu0 %v2871
        %v3531 = vpop.f32.mrb[0].mxu0
        %v3532 = vadd.f32 %v2171, %v3531
        %v3533 = vpop.f32.mrb[0].mxu0
        %v3534 = vpop.f32.mrb[0].mxu0
        %v3535 = vadd.f32 %v2171, %v3534
        %v3536 = vpop.f32.mrb[0].mxu0
        %3537 = vmatprep.mubr.bf16.mxu0 0
        %3538 = vmatmul.mubr.bf16.gmra.mrb[0].mxu0 %v2874
        %v3539 = vpop.f32.mrb[0].mxu0
        %v3540 = vadd.f32 %v2171, %v3539
        %v3541 = vpop.f32.mrb[0].mxu0
        %v3542 = vpop.f32.mrb[0].mxu0
        %v3543 = vadd.f32 %v2171, %v3542
        %v3544 = vpop.f32.mrb[0].mxu0
        %3545 = vmatprep.mubr.bf16.mxu0 0
        %3546 = vmatmul.mubr.bf16.gmra.mrb[0].mxu0 %v2877
        %v3547 = vpop.f32.mrb[0].mxu0
        %v3548 = vadd.f32 %v2171, %v3547
        %v3549 = vpop.f32.mrb[0].mxu0
        %v3550 = vpop.f32.mrb[0].mxu0
        %v3551 = vadd.f32 %v2171, %v3550
        %v3552 = vpop.f32.mrb[0].mxu0
        %3553 = vmatprep.mubr.bf16.mxu0 0
        %3554 = vmatmul.mubr.bf16.gmra.mrb[0].mxu0 %v2880
        %v3555 = vpop.f32.mrb[0].mxu0
        %v3556 = vadd.f32 %v2171, %v3555
        %v3557 = vpop.f32.mrb[0].mxu0
        %v3558 = vpop.f32.mrb[0].mxu0
        %v3559 = vadd.f32 %v2171, %v3558
        %v3560 = vpop.f32.mrb[0].mxu0
        %3561 = vmatprep.mubr.bf16.mxu0 0
        %3562 = vmatmul.mubr.bf16.gmra.mrb[0].mxu0 %v2883
        %v3563 = vpop.f32.mrb[0].mxu0
        %v3564 = vadd.f32 %v2171, %v3563
        %v3565 = vpop.f32.mrb[0].mxu0
        %v3566 = vpop.f32.mrb[0].mxu0
        %v3567 = vadd.f32 %v2171, %v3566
        %v3568 = vpop.f32.mrb[0].mxu0
        %3569 = vmatprep.mubr.bf16.mxu0 0
        %3570 = vmatmul.mubr.bf16.gmra.mrb[0].mxu0 %v2886
        %v3571 = vpop.f32.mrb[0].mxu0
        %v3572 = vadd.f32 %v2171, %v3571
        %v3573 = vpop.f32.mrb[0].mxu0
        %v3574 = vpop.f32.mrb[0].mxu0
        %v3575 = vadd.f32 %v2171, %v3574
        %v3576 = vpop.f32.mrb[0].mxu0
        %3577 = vmatprep.mubr.bf16.mxu0 0
        %3578 = vmatmul.mubr.bf16.gmra.mrb[0].mxu0 %v2889
        %v3579 = vpop.f32.mrb[0].mxu0
        %v3580 = vadd.f32 %v2171, %v3579
        %v3581 = vpop.f32.mrb[0].mxu0
        %v3582 = vpop.f32.mrb[0].mxu0
        %v3583 = vadd.f32 %v2171, %v3582
        %v3584 = vpop.f32.mrb[0].mxu0
        %3585 = vmatprep.mubr.bf16.mxu0 0
        %3586 = vmatmul.mubr.bf16.gmra.mrb[0].mxu0 %v2892
        %v3587 = vpop.f32.mrb[0].mxu0
        %v3588 = vadd.f32 %v2171, %v3587
        %v3589 = vpop.f32.mrb[0].mxu0
        %v3590 = vpop.f32.mrb[0].mxu0
        %v3591 = vadd.f32 %v2171, %v3590
        %v3592 = vpop.f32.mrb[0].mxu0
        %3593 = vmatprep.mubr.bf16.mxu0 0
        %3594 = vmatmul.mubr.bf16.gmra.mrb[0].mxu0 %v2895
        %v3595 = vpop.f32.mrb[0].mxu0
        %v3596 = vadd.f32 %v2171, %v3595
        %v3597 = vpop.f32.mrb[0].mxu0
        %v3598 = vpop.f32.mrb[0].mxu0
        %v3599 = vadd.f32 %v2171, %v3598
        %v3600 = vpop.f32.mrb[0].mxu0
        %3601 = vmatprep.mubr.bf16.mxu0 0
        %3602 = vmatmul.mubr.bf16.gmra.mrb[0].mxu0 %v2898
        %v3603 = vpop.f32.mrb[0].mxu0
        %v3604 = vadd.f32 %v2171, %v3603
        %v3605 = vpop.f32.mrb[0].mxu0
        %v3606 = vpop.f32.mrb[0].mxu0
        %v3607 = vadd.f32 %v2171, %v3606
        %v3608 = vpop.f32.mrb[0].mxu0
        %3609 = vmatprep.mubr.bf16.mxu0 0
        %3610 = vmatmul.mubr.bf16.gmra.mrb[0].mxu0 %v2901
        %v3611 = vpop.f32.mrb[0].mxu0
        %v3612 = vadd.f32 %v2171, %v3611
        %v3613 = vpop.f32.mrb[0].mxu0
        %v3614 = vpop.f32.mrb[0].mxu0
        %v3615 = vadd.f32 %v2171, %v3614
        %v3616 = vpop.f32.mrb[0].mxu0
        %3617 = vmatprep.mubr.bf16.mxu0 0
        %3618 = vmatmul.mubr.bf16.gmra.mrb[0].mxu0 %v2904
        %v3619 = vpop.f32.mrb[0].mxu0
        %v3620 = vadd.f32 %v2171, %v3619
        %v3621 = vpop.f32.mrb[0].mxu0
        %v3622 = vpop.f32.mrb[0].mxu0
        %v3623 = vadd.f32 %v2171, %v3622
        %v3624 = vpop.f32.mrb[0].mxu0
        %3625 = vmatprep.mubr.bf16.mxu0 0
        %3626 = vmatmul.mubr.bf16.gmra.mrb[0].mxu0 %v2907
        %v3627 = vpop.f32.mrb[0].mxu0
        %v3628 = vadd.f32 %v2171, %v3627
        %v3629 = vpop.f32.mrb[0].mxu0
        %v3630 = vpop.f32.mrb[0].mxu0
        %v3631 = vadd.f32 %v2171, %v3630
        %v3632 = vpop.f32.mrb[0].mxu0
        %3633 = vmatprep.mubr.bf16.mxu0 0
        %3634 = vmatmul.mubr.bf16.gmra.mrb[0].mxu0 %v2910
        %v3635 = vpop.f32.mrb[0].mxu0
        %v3636 = vadd.f32 %v2171, %v3635
        %v3637 = vpop.f32.mrb[0].mxu0
        %v3638 = vpop.f32.mrb[0].mxu0
        %v3639 = vadd.f32 %v2171, %v3638
        %v3640 = vpop.f32.mrb[0].mxu0
        %3641 = vmatprep.mubr.bf16.mxu0 0
        %3642 = vmatmul.mubr.bf16.gmra.mrb[0].mxu0 %v2913
        %v3643 = vpop.f32.mrb[0].mxu0
        %v3644 = vadd.f32 %v2171, %v3643
        %v3645 = vpop.f32.mrb[0].mxu0
        %v3646 = vpop.f32.mrb[0].mxu0
        %v3647 = vadd.f32 %v2171, %v3646
        %v3648 = vpop.f32.mrb[0].mxu0
        %3649 = vmatprep.mubr.bf16.mxu0 0
        %3650 = vmatmul.mubr.bf16.gmra.mrb[0].mxu0 %v2916
        %v3651 = vpop.f32.mrb[0].mxu0
        %v3652 = vadd.f32 %v2171, %v3651
        %v3653 = vpop.f32.mrb[0].mxu0
        %v3654 = vpop.f32.mrb[0].mxu0
        %v3655 = vadd.f32 %v2171, %v3654
        %v3656 = vpop.f32.mrb[0].mxu0
        %3657 = vmatprep.mubr.bf16.mxu0 0
        %3658 = vmatmul.mubr.bf16.gmra.mrb[0].mxu0 %v2919
        %v3659 = vpop.f32.mrb[0].mxu0
        %v3660 = vadd.f32 %v2171, %v3659
        %v3661 = vpop.f32.mrb[0].mxu0
        %v3662 = vpop.f32.mrb[0].mxu0
        %v3663 = vadd.f32 %v2171, %v3662
        %v3664 = vpop.f32.mrb[0].mxu0
        %3665 = vmatprep.mubr.bf16.mxu0 0
        %3666 = vmatmul.mubr.bf16.gmra.mrb[0].mxu0 %v2922
        %v3667 = vpop.f32.mrb[0].mxu0
        %v3668 = vadd.f32 %v2171, %v3667
        %v3669 = vpop.f32.mrb[0].mxu0
        %v3670 = vpop.f32.mrb[0].mxu0
        %v3671 = vadd.f32 %v2171, %v3670
        %v3672 = vpop.f32.mrb[0].mxu0
        %3673 = vmatprep.mubr.bf16.mxu0 0
        %3674 = vmatmul.mubr.bf16.gmra.mrb[0].mxu0 %v2925
        %v3675 = vpop.f32.mrb[0].mxu0
        %v3676 = vadd.f32 %v2171, %v3675
        %v3677 = vpop.f32.mrb[0].mxu0
        %v3678 = vpop.f32.mrb[0].mxu0
        %v3679 = vadd.f32 %v2171, %v3678
        %v3680 = vpop.f32.mrb[0].mxu0
        %3681 = vmatprep.mubr.bf16.mxu0 0
        %3682 = vmatmul.mubr.bf16.gmra.mrb[0].mxu0 %v2928
        %v3683 = vpop.f32.mrb[0].mxu0
        %v3684 = vadd.f32 %v2171, %v3683
        %v3685 = vpop.f32.mrb[0].mxu0
        %v3686 = vpop.f32.mrb[0].mxu0
        %v3687 = vadd.f32 %v2171, %v3686
        %v3688 = vpop.f32.mrb[0].mxu0
        %3689 = vmatprep.mubr.bf16.mxu0 0
        %3690 = vmatmul.mubr.bf16.gmra.mrb[0].mxu0 %v2931
        %v3691 = vpop.f32.mrb[0].mxu0
        %v3692 = vadd.f32 %v2171, %v3691
        %v3693 = vpop.f32.mrb[0].mxu0
        %v3694 = vpop.f32.mrb[0].mxu0
        %v3695 = vadd.f32 %v2171, %v3694
        %v3696 = vpop.f32.mrb[0].mxu0
        %3697 = vmatprep.mubr.bf16.mxu0 0
        %3698 = vmatmul.mubr.bf16.gmra.mrb[0].mxu0 %v2934
        %v3699 = vpop.f32.mrb[0].mxu0
        %v3700 = vadd.f32 %v2171, %v3699
        %v3701 = vpop.f32.mrb[0].mxu0
        %v3702 = vpop.f32.mrb[0].mxu0
        %v3703 = vadd.f32 %v2171, %v3702
        %v3704 = vpop.f32.mrb[0].mxu0
        %3705 = vmatprep.mubr.bf16.mxu0 0
        %3706 = vmatmul.mubr.bf16.gmra.mrb[0].mxu0 %v2937
        %v3707 = vpop.f32.mrb[0].mxu0
        %v3708 = vadd.f32 %v2171, %v3707
        %v3709 = vpop.f32.mrb[0].mxu0
        %v3710 = vpop.f32.mrb[0].mxu0
        %v3711 = vadd.f32 %v2171, %v3710
        %v3712 = vpop.f32.mrb[0].mxu0
        %3713 = vmatprep.mubr.bf16.mxu0 0
        %3714 = vmatmul.mubr.bf16.gmra.mrb[0].mxu0 %v2940
        %v3715 = vpop.f32.mrb[0].mxu0
        %v3716 = vadd.f32 %v2171, %v3715
        %v3717 = vpop.f32.mrb[0].mxu0
        %v3718 = vpop.f32.mrb[0].mxu0
        %v3719 = vadd.f32 %v2171, %v3718
        %v3720 = vpop.f32.mrb[0].mxu0
        %3721 = vmatprep.mubr.bf16.mxu0 0
        %3722 = vmatmul.mubr.bf16.gmra.mrb[0].mxu0 %v2943
        %v3723 = vpop.f32.mrb[0].mxu0
        %v3724 = vadd.f32 %v2171, %v3723
        %v3725 = vpop.f32.mrb[0].mxu0
        %v3726 = vpop.f32.mrb[0].mxu0
        %v3727 = vadd.f32 %v2171, %v3726
        %v3728 = vpop.f32.mrb[0].mxu0
        %3729 = vmatprep.mubr.bf16.mxu0 0
        %3730 = vmatmul.mubr.bf16.gmra.mrb[0].mxu0 %v2946
        %v3731 = vpop.f32.mrb[0].mxu0
        %v3732 = vadd.f32 %v2171, %v3731
        %v3733 = vpop.f32.mrb[0].mxu0
        %v3734 = vpop.f32.mrb[0].mxu0
        %v3735 = vadd.f32 %v2171, %v3734
        %v3736 = vpop.f32.mrb[0].mxu0
        %3737 = vmatprep.mubr.bf16.mxu0 0
        %3738 = vmatmul.mubr.bf16.gmra.mrb[0].mxu0 %v2949
        %v3739 = vpop.f32.mrb[0].mxu0
        %v3740 = vadd.f32 %v2171, %v3739
        %v3741 = vpop.f32.mrb[0].mxu0
        %v3742 = vpop.f32.mrb[0].mxu0
        %v3743 = vadd.f32 %v2171, %v3742
        %v3744 = vpop.f32.mrb[0].mxu0
        %3745 = vmatprep.mubr.bf16.mxu0 0
        %3746 = vmatmul.mubr.bf16.gmra.mrb[0].mxu0 %v2952
        %v3747 = vpop.f32.mrb[0].mxu0
        %v3748 = vadd.f32 %v2171, %v3747
        %v3749 = vpop.f32.mrb[0].mxu0
        %v3750 = vpop.f32.mrb[0].mxu0
        %v3751 = vadd.f32 %v2171, %v3750
        %v3752 = vpop.f32.mrb[0].mxu0
        %3753 = vmatprep.mubr.bf16.mxu0 0
        %3754 = vmatmul.mubr.bf16.gmra.mrb[0].mxu0 %v2955
        %v3755 = vpop.f32.mrb[0].mxu0
        %v3756 = vadd.f32 %v2171, %v3755
        %v3757 = vpop.f32.mrb[0].mxu0
        %v3758 = vpop.f32.mrb[0].mxu0
        %v3759 = vadd.f32 %v2171, %v3758
        %v3760 = vpop.f32.mrb[0].mxu0
        %3761 = vdwg.mxu0
        %v3762 = vmax.f32 %v2996, 0.0
        %v3763 = vmax.f32 %v2999, 0.0
        %v3764 = vmax.f32 %v3004, 0.0
        %v3765 = vmax.f32 %v3007, 0.0
        %v3766 = vmax.f32 %v3012, 0.0
        %v3767 = vmax.f32 %v3015, 0.0
        %v3768 = vmax.f32 %v3020, 0.0
        %v3769 = vmax.f32 %v3023, 0.0
        %v3770 = vmax.f32 %v3028, 0.0
        %v3771 = vmax.f32 %v3031, 0.0
        %v3772 = vmax.f32 %v3036, 0.0
        %v3773 = vmax.f32 %v3039, 0.0
        %v3774 = vmax.f32 %v3044, 0.0
        %v3775 = vmax.f32 %v3047, 0.0
        %v3776 = vmax.f32 %v3052, 0.0
        %v3777 = vmax.f32 %v3055, 0.0
        %v3778 = vmax.f32 %v3060, 0.0
        %v3779 = vmax.f32 %v3063, 0.0
        %v3780 = vmax.f32 %v3068, 0.0
        %v3781 = vmax.f32 %v3071, 0.0
        %v3782 = vmax.f32 %v3076, 0.0
        %v3783 = vmax.f32 %v3079, 0.0
        %v3784 = vmax.f32 %v3084, 0.0
        %v3785 = vmax.f32 %v3087, 0.0
        %v3786 = vmax.f32 %v3092, 0.0
        %v3787 = vmax.f32 %v3095, 0.0
        %v3788 = vmax.f32 %v3100, 0.0
        %v3789 = vmax.f32 %v3103, 0.0
        %v3790 = vmax.f32 %v3108, 0.0
        %v3791 = vmax.f32 %v3111, 0.0
        %v3792 = vmax.f32 %v3116, 0.0
        %v3793 = vmax.f32 %v3119, 0.0
        %v3794 = vmax.f32 %v3124, 0.0
        %v3795 = vmax.f32 %v3127, 0.0
        %v3796 = vmax.f32 %v3132, 0.0
        %v3797 = vmax.f32 %v3135, 0.0
        %v3798 = vmax.f32 %v3140, 0.0
        %v3799 = vmax.f32 %v3143, 0.0
        %v3800 = vmax.f32 %v3148, 0.0
        %v3801 = vmax.f32 %v3151, 0.0
        %v3802 = vmax.f32 %v3156, 0.0
        %v3803 = vmax.f32 %v3159, 0.0
        %v3804 = vmax.f32 %v3164, 0.0
        %v3805 = vmax.f32 %v3167, 0.0
        %v3806 = vmax.f32 %v3172, 0.0
        %v3807 = vmax.f32 %v3175, 0.0
        %v3808 = vmax.f32 %v3180, 0.0
        %v3809 = vmax.f32 %v3183, 0.0
        %v3810 = vmax.f32 %v3188, 0.0
        %v3811 = vmax.f32 %v3191, 0.0
        %v3812 = vmax.f32 %v3196, 0.0
        %v3813 = vmax.f32 %v3199, 0.0
        %v3814 = vmax.f32 %v3204, 0.0
        %v3815 = vmax.f32 %v3207, 0.0
        %v3816 = vmax.f32 %v3212, 0.0
        %v3817 = vmax.f32 %v3215, 0.0
        %v3818 = vmax.f32 %v3220, 0.0
        %v3819 = vmax.f32 %v3223, 0.0
        %v3820 = vmax.f32 %v3228, 0.0
        %v3821 = vmax.f32 %v3231, 0.0
        %v3822 = vmax.f32 %v3236, 0.0
        %v3823 = vmax.f32 %v3239, 0.0
        %v3824 = vmax.f32 %v3244, 0.0
        %v3825 = vmax.f32 %v3247, 0.0
        %v3826 = vmax.f32 %v3252, 0.0
        %v3827 = vmax.f32 %v3255, 0.0
        %v3828 = vmax.f32 %v3260, 0.0
        %v3829 = vmax.f32 %v3263, 0.0
        %v3830 = vmax.f32 %v3268, 0.0
        %v3831 = vmax.f32 %v3271, 0.0
        %v3832 = vmax.f32 %v3276, 0.0
        %v3833 = vmax.f32 %v3279, 0.0
        %v3834 = vmax.f32 %v3284, 0.0
        %v3835 = vmax.f32 %v3287, 0.0
        %v3836 = vmax.f32 %v3292, 0.0
        %v3837 = vmax.f32 %v3295, 0.0
        %v3838 = vmax.f32 %v3300, 0.0
        %v3839 = vmax.f32 %v3303, 0.0
        %v3840 = vmax.f32 %v3308, 0.0
        %v3841 = vmax.f32 %v3311, 0.0
        %v3842 = vmax.f32 %v3316, 0.0
        %v3843 = vmax.f32 %v3319, 0.0
        %v3844 = vmax.f32 %v3324, 0.0
        %v3845 = vmax.f32 %v3327, 0.0
        %v3846 = vmax.f32 %v3332, 0.0
        %v3847 = vmax.f32 %v3335, 0.0
        %v3848 = vmax.f32 %v3340, 0.0
        %v3849 = vmax.f32 %v3343, 0.0
        %v3850 = vmax.f32 %v3348, 0.0
        %v3851 = vmax.f32 %v3351, 0.0
        %v3852 = vmax.f32 %v3356, 0.0
        %v3853 = vmax.f32 %v3359, 0.0
        %v3854 = vmax.f32 %v3364, 0.0
        %v3855 = vmax.f32 %v3367, 0.0
        %v3856 = vmax.f32 %v3372, 0.0
        %v3857 = vmax.f32 %v3375, 0.0
        %v3858 = vmax.f32 %v3380, 0.0
        %v3859 = vmax.f32 %v3383, 0.0
        %v3860 = vmax.f32 %v3388, 0.0
        %v3861 = vmax.f32 %v3391, 0.0
        %v3862 = vmax.f32 %v3396, 0.0
        %v3863 = vmax.f32 %v3399, 0.0
        %v3864 = vmax.f32 %v3404, 0.0
        %v3865 = vmax.f32 %v3407, 0.0
        %v3866 = vmax.f32 %v3412, 0.0
        %v3867 = vmax.f32 %v3415, 0.0
        %v3868 = vmax.f32 %v3420, 0.0
        %v3869 = vmax.f32 %v3423, 0.0
        %v3870 = vmax.f32 %v3428, 0.0
        %v3871 = vmax.f32 %v3431, 0.0
        %v3872 = vmax.f32 %v3436, 0.0
        %v3873 = vmax.f32 %v3439, 0.0
        %v3874 = vmax.f32 %v3444, 0.0
        %v3875 = vmax.f32 %v3447, 0.0
        %v3876 = vmax.f32 %v3452, 0.0
        %v3877 = vmax.f32 %v3455, 0.0
        %v3878 = vmax.f32 %v3460, 0.0
        %v3879 = vmax.f32 %v3463, 0.0
        %v3880 = vmax.f32 %v3468, 0.0
        %v3881 = vmax.f32 %v3471, 0.0
        %v3882 = vmax.f32 %v3476, 0.0
        %v3883 = vmax.f32 %v3479, 0.0
        %v3884 = vmax.f32 %v3484, 0.0
        %v3885 = vmax.f32 %v3487, 0.0
        %v3886 = vmax.f32 %v3492, 0.0
        %v3887 = vmax.f32 %v3495, 0.0
        %v3888 = vmax.f32 %v3500, 0.0
        %v3889 = vmax.f32 %v3503, 0.0
        %v3890 = vmax.f32 %v3508, 0.0
        %v3891 = vmax.f32 %v3511, 0.0
        %v3892 = vmax.f32 %v3516, 0.0
        %v3893 = vmax.f32 %v3519, 0.0
        %v3894 = vmax.f32 %v3524, 0.0
        %v3895 = vmax.f32 %v3527, 0.0
        %v3896 = vmax.f32 %v3532, 0.0
        %v3897 = vmax.f32 %v3535, 0.0
        %v3898 = vmax.f32 %v3540, 0.0
        %v3899 = vmax.f32 %v3543, 0.0
        %v3900 = vmax.f32 %v3548, 0.0
        %v3901 = vmax.f32 %v3551, 0.0
        %v3902 = vmax.f32 %v3556, 0.0
        %v3903 = vmax.f32 %v3559, 0.0
        %v3904 = vmax.f32 %v3564, 0.0
        %v3905 = vmax.f32 %v3567, 0.0
        %v3906 = vmax.f32 %v3572, 0.0
        %v3907 = vmax.f32 %v3575, 0.0
        %v3908 = vmax.f32 %v3580, 0.0
        %v3909 = vmax.f32 %v3583, 0.0
        %v3910 = vmax.f32 %v3588, 0.0
        %v3911 = vmax.f32 %v3591, 0.0
        %v3912 = vmax.f32 %v3596, 0.0
        %v3913 = vmax.f32 %v3599, 0.0
        %v3914 = vmax.f32 %v3604, 0.0
        %v3915 = vmax.f32 %v3607, 0.0
        %v3916 = vmax.f32 %v3612, 0.0
        %v3917 = vmax.f32 %v3615, 0.0
        %v3918 = vmax.f32 %v3620, 0.0
        %v3919 = vmax.f32 %v3623, 0.0
        %v3920 = vmax.f32 %v3628, 0.0
        %v3921 = vmax.f32 %v3631, 0.0
        %v3922 = vmax.f32 %v3636, 0.0
        %v3923 = vmax.f32 %v3639, 0.0
        %v3924 = vmax.f32 %v3644, 0.0
        %v3925 = vmax.f32 %v3647, 0.0
        %v3926 = vmax.f32 %v3652, 0.0
        %v3927 = vmax.f32 %v3655, 0.0
        %v3928 = vmax.f32 %v3660, 0.0
        %v3929 = vmax.f32 %v3663, 0.0
        %v3930 = vmax.f32 %v3668, 0.0
        %v3931 = vmax.f32 %v3671, 0.0
        %v3932 = vmax.f32 %v3676, 0.0
        %v3933 = vmax.f32 %v3679, 0.0
        %v3934 = vmax.f32 %v3684, 0.0
        %v3935 = vmax.f32 %v3687, 0.0
        %v3936 = vmax.f32 %v3692, 0.0
        %v3937 = vmax.f32 %v3695, 0.0
        %v3938 = vmax.f32 %v3700, 0.0
        %v3939 = vmax.f32 %v3703, 0.0
        %v3940 = vmax.f32 %v3708, 0.0
        %v3941 = vmax.f32 %v3711, 0.0
        %v3942 = vmax.f32 %v3716, 0.0
        %v3943 = vmax.f32 %v3719, 0.0
        %v3944 = vmax.f32 %v3724, 0.0
        %v3945 = vmax.f32 %v3727, 0.0
        %v3946 = vmax.f32 %v3732, 0.0
        %v3947 = vmax.f32 %v3735, 0.0
        %v3948 = vmax.f32 %v3740, 0.0
        %v3949 = vmax.f32 %v3743, 0.0
        %v3950 = vmax.f32 %v3748, 0.0
        %v3951 = vmax.f32 %v3751, 0.0
        %v3952 = vmax.f32 %v3756, 0.0
        %v3953 = vmax.f32 %v3759, 0.0
        %v3954 = vadd.f32 %v3762, %v3763
        %v3955 = vadd.f32 %v3954, %v3764
        %v3956 = vadd.f32 %v3955, %v3765
        %v3957 = vadd.f32 %v3956, %v3766
        %v3958 = vadd.f32 %v3957, %v3767
        %v3959 = vadd.f32 %v3958, %v3768
        %v3960 = vadd.f32 %v3959, %v3769
        %v3961 = vrot.slane %v3960, 4
        %v3962 = vadd.f32 %v3960, %v3961
        %v3963 = vrot.slane %v3962, 2
        %v3964 = vadd.f32 %v3962, %v3963
        %v3965 = vrot.slane %v3964, 1
        %v3966 = vadd.f32 %v3964, %v3965
        %v3967 = vadd.f32 %v3770, %v3771
        %v3968 = vadd.f32 %v3967, %v3772
        %v3969 = vadd.f32 %v3968, %v3773
        %v3970 = vadd.f32 %v3969, %v3774
        %v3971 = vadd.f32 %v3970, %v3775
        %v3972 = vadd.f32 %v3971, %v3776
        %v3973 = vadd.f32 %v3972, %v3777
        %v3974 = vrot.slane %v3973, 4
        %v3975 = vadd.f32 %v3973, %v3974
        %v3976 = vrot.slane %v3975, 2
        %v3977 = vadd.f32 %v3975, %v3976
        %v3978 = vrot.slane %v3977, 1
        %v3979 = vadd.f32 %v3977, %v3978
        %v3980 = vadd.f32 %v3778, %v3779
        %v3981 = vadd.f32 %v3980, %v3780
        %v3982 = vadd.f32 %v3981, %v3781
        %v3983 = vadd.f32 %v3982, %v3782
        %v3984 = vadd.f32 %v3983, %v3783
        %v3985 = vadd.f32 %v3984, %v3784
        %v3986 = vadd.f32 %v3985, %v3785
        %v3987 = vrot.slane %v3986, 4
        %v3988 = vadd.f32 %v3986, %v3987
        %v3989 = vrot.slane %v3988, 2
        %v3990 = vadd.f32 %v3988, %v3989
        %v3991 = vrot.slane %v3990, 1
        %v3992 = vadd.f32 %v3990, %v3991
        %v3993 = vadd.f32 %v3786, %v3787
        %v3994 = vadd.f32 %v3993, %v3788
        %v3995 = vadd.f32 %v3994, %v3789
        %v3996 = vadd.f32 %v3995, %v3790
        %v3997 = vadd.f32 %v3996, %v3791
        %v3998 = vadd.f32 %v3997, %v3792
        %v3999 = vadd.f32 %v3998, %v3793
        %v4000 = vrot.slane %v3999, 4
        %v4001 = vadd.f32 %v3999, %v4000
        %v4002 = vrot.slane %v4001, 2
        %v4003 = vadd.f32 %v4001, %v4002
        %v4004 = vrot.slane %v4003, 1
        %v4005 = vadd.f32 %v4003, %v4004
        %v4006 = vadd.f32 %v3794, %v3795
        %v4007 = vadd.f32 %v4006, %v3796
        %v4008 = vadd.f32 %v4007, %v3797
        %v4009 = vadd.f32 %v4008, %v3798
        %v4010 = vadd.f32 %v4009, %v3799
        %v4011 = vadd.f32 %v4010, %v3800
        %v4012 = vadd.f32 %v4011, %v3801
        %v4013 = vrot.slane %v4012, 4
        %v4014 = vadd.f32 %v4012, %v4013
        %v4015 = vrot.slane %v4014, 2
        %v4016 = vadd.f32 %v4014, %v4015
        %v4017 = vrot.slane %v4016, 1
        %v4018 = vadd.f32 %v4016, %v4017
        %v4019 = vadd.f32 %v3802, %v3803
        %v4020 = vadd.f32 %v4019, %v3804
        %v4021 = vadd.f32 %v4020, %v3805
        %v4022 = vadd.f32 %v4021, %v3806
        %v4023 = vadd.f32 %v4022, %v3807
        %v4024 = vadd.f32 %v4023, %v3808
        %v4025 = vadd.f32 %v4024, %v3809
        %v4026 = vrot.slane %v4025, 4
        %v4027 = vadd.f32 %v4025, %v4026
        %v4028 = vrot.slane %v4027, 2
        %v4029 = vadd.f32 %v4027, %v4028
        %v4030 = vrot.slane %v4029, 1
        %v4031 = vadd.f32 %v4029, %v4030
        %v4032 = vadd.f32 %v3810, %v3811
        %v4033 = vadd.f32 %v4032, %v3812
        %v4034 = vadd.f32 %v4033, %v3813
        %v4035 = vadd.f32 %v4034, %v3814
        %v4036 = vadd.f32 %v4035, %v3815
        %v4037 = vadd.f32 %v4036, %v3816
        %v4038 = vadd.f32 %v4037, %v3817
        %v4039 = vrot.slane %v4038, 4
        %v4040 = vadd.f32 %v4038, %v4039
        %v4041 = vrot.slane %v4040, 2
        %v4042 = vadd.f32 %v4040, %v4041
        %v4043 = vrot.slane %v4042, 1
        %v4044 = vadd.f32 %v4042, %v4043
        %v4045 = vadd.f32 %v3818, %v3819
        %v4046 = vadd.f32 %v4045, %v3820
        %v4047 = vadd.f32 %v4046, %v3821
        %v4048 = vadd.f32 %v4047, %v3822
        %v4049 = vadd.f32 %v4048, %v3823
        %v4050 = vadd.f32 %v4049, %v3824
        %v4051 = vadd.f32 %v4050, %v3825
        %v4052 = vrot.slane %v4051, 4
        %v4053 = vadd.f32 %v4051, %v4052
        %v4054 = vrot.slane %v4053, 2
        %v4055 = vadd.f32 %v4053, %v4054
        %v4056 = vrot.slane %v4055, 1
        %v4057 = vadd.f32 %v4055, %v4056
        %v4058 = vadd.f32 %v3826, %v3827
        %v4059 = vadd.f32 %v4058, %v3828
        %v4060 = vadd.f32 %v4059, %v3829
        %v4061 = vadd.f32 %v4060, %v3830
        %v4062 = vadd.f32 %v4061, %v3831
        %v4063 = vadd.f32 %v4062, %v3832
        %v4064 = vadd.f32 %v4063, %v3833
        %v4065 = vrot.slane %v4064, 4
        %v4066 = vadd.f32 %v4064, %v4065
        %v4067 = vrot.slane %v4066, 2
        %v4068 = vadd.f32 %v4066, %v4067
        %v4069 = vrot.slane %v4068, 1
        %v4070 = vadd.f32 %v4068, %v4069
        %v4071 = vadd.f32 %v3834, %v3835
        %v4072 = vadd.f32 %v4071, %v3836
        %v4073 = vadd.f32 %v4072, %v3837
        %v4074 = vadd.f32 %v4073, %v3838
        %v4075 = vadd.f32 %v4074, %v3839
        %v4076 = vadd.f32 %v4075, %v3840
        %v4077 = vadd.f32 %v4076, %v3841
        %v4078 = vrot.slane %v4077, 4
        %v4079 = vadd.f32 %v4077, %v4078
        %v4080 = vrot.slane %v4079, 2
        %v4081 = vadd.f32 %v4079, %v4080
        %v4082 = vrot.slane %v4081, 1
        %v4083 = vadd.f32 %v4081, %v4082
        %v4084 = vadd.f32 %v3842, %v3843
        %v4085 = vadd.f32 %v4084, %v3844
        %v4086 = vadd.f32 %v4085, %v3845
        %v4087 = vadd.f32 %v4086, %v3846
        %v4088 = vadd.f32 %v4087, %v3847
        %v4089 = vadd.f32 %v4088, %v3848
        %v4090 = vadd.f32 %v4089, %v3849
        %v4091 = vrot.slane %v4090, 4
        %v4092 = vadd.f32 %v4090, %v4091
        %v4093 = vrot.slane %v4092, 2
        %v4094 = vadd.f32 %v4092, %v4093
        %v4095 = vrot.slane %v4094, 1
        %v4096 = vadd.f32 %v4094, %v4095
        %v4097 = vadd.f32 %v3850, %v3851
        %v4098 = vadd.f32 %v4097, %v3852
        %v4099 = vadd.f32 %v4098, %v3853
        %v4100 = vadd.f32 %v4099, %v3854
        %v4101 = vadd.f32 %v4100, %v3855
        %v4102 = vadd.f32 %v4101, %v3856
        %v4103 = vadd.f32 %v4102, %v3857
        %v4104 = vrot.slane %v4103, 4
        %v4105 = vadd.f32 %v4103, %v4104
        %v4106 = vrot.slane %v4105, 2
        %v4107 = vadd.f32 %v4105, %v4106
        %v4108 = vrot.slane %v4107, 1
        %v4109 = vadd.f32 %v4107, %v4108
        %v4110 = vadd.f32 %v3858, %v3859
        %v4111 = vadd.f32 %v4110, %v3860
        %v4112 = vadd.f32 %v4111, %v3861
        %v4113 = vadd.f32 %v4112, %v3862
        %v4114 = vadd.f32 %v4113, %v3863
        %v4115 = vadd.f32 %v4114, %v3864
        %v4116 = vadd.f32 %v4115, %v3865
        %v4117 = vrot.slane %v4116, 4
        %v4118 = vadd.f32 %v4116, %v4117
        %v4119 = vrot.slane %v4118, 2
        %v4120 = vadd.f32 %v4118, %v4119
        %v4121 = vrot.slane %v4120, 1
        %v4122 = vadd.f32 %v4120, %v4121
        %v4123 = vadd.f32 %v3866, %v3867
        %v4124 = vadd.f32 %v4123, %v3868
        %v4125 = vadd.f32 %v4124, %v3869
        %v4126 = vadd.f32 %v4125, %v3870
        %v4127 = vadd.f32 %v4126, %v3871
        %v4128 = vadd.f32 %v4127, %v3872
        %v4129 = vadd.f32 %v4128, %v3873
        %v4130 = vrot.slane %v4129, 4
        %v4131 = vadd.f32 %v4129, %v4130
        %v4132 = vrot.slane %v4131, 2
        %v4133 = vadd.f32 %v4131, %v4132
        %v4134 = vrot.slane %v4133, 1
        %v4135 = vadd.f32 %v4133, %v4134
        %v4136 = vadd.f32 %v3874, %v3875
        %v4137 = vadd.f32 %v4136, %v3876
        %v4138 = vadd.f32 %v4137, %v3877
        %v4139 = vadd.f32 %v4138, %v3878
        %v4140 = vadd.f32 %v4139, %v3879
        %v4141 = vadd.f32 %v4140, %v3880
        %v4142 = vadd.f32 %v4141, %v3881
        %v4143 = vrot.slane %v4142, 4
        %v4144 = vadd.f32 %v4142, %v4143
        %v4145 = vrot.slane %v4144, 2
        %v4146 = vadd.f32 %v4144, %v4145
        %v4147 = vrot.slane %v4146, 1
        %v4148 = vadd.f32 %v4146, %v4147
        %v4149 = vadd.f32 %v3882, %v3883
        %v4150 = vadd.f32 %v4149, %v3884
        %v4151 = vadd.f32 %v4150, %v3885
        %v4152 = vadd.f32 %v4151, %v3886
        %v4153 = vadd.f32 %v4152, %v3887
        %v4154 = vadd.f32 %v4153, %v3888
        %v4155 = vadd.f32 %v4154, %v3889
        %v4156 = vrot.slane %v4155, 4
        %v4157 = vadd.f32 %v4155, %v4156
        %v4158 = vrot.slane %v4157, 2
        %v4159 = vadd.f32 %v4157, %v4158
        %v4160 = vrot.slane %v4159, 1
        %v4161 = vadd.f32 %v4159, %v4160
        %v4162 = vadd.f32 %v3890, %v3891
        %v4163 = vadd.f32 %v4162, %v3892
        %v4164 = vadd.f32 %v4163, %v3893
        %v4165 = vadd.f32 %v4164, %v3894
        %v4166 = vadd.f32 %v4165, %v3895
        %v4167 = vadd.f32 %v4166, %v3896
        %v4168 = vadd.f32 %v4167, %v3897
        %v4169 = vrot.slane %v4168, 4
        %v4170 = vadd.f32 %v4168, %v4169
        %v4171 = vrot.slane %v4170, 2
        %v4172 = vadd.f32 %v4170, %v4171
        %v4173 = vrot.slane %v4172, 1
        %v4174 = vadd.f32 %v4172, %v4173
        %v4175 = vadd.f32 %v3898, %v3899
        %v4176 = vadd.f32 %v4175, %v3900
        %v4177 = vadd.f32 %v4176, %v3901
        %v4178 = vadd.f32 %v4177, %v3902
        %v4179 = vadd.f32 %v4178, %v3903
        %v4180 = vadd.f32 %v4179, %v3904
        %v4181 = vadd.f32 %v4180, %v3905
        %v4182 = vrot.slane %v4181, 4
        %v4183 = vadd.f32 %v4181, %v4182
        %v4184 = vrot.slane %v4183, 2
        %v4185 = vadd.f32 %v4183, %v4184
        %v4186 = vrot.slane %v4185, 1
        %v4187 = vadd.f32 %v4185, %v4186
        %v4188 = vadd.f32 %v3906, %v3907
        %v4189 = vadd.f32 %v4188, %v3908
        %v4190 = vadd.f32 %v4189, %v3909
        %v4191 = vadd.f32 %v4190, %v3910
        %v4192 = vadd.f32 %v4191, %v3911
        %v4193 = vadd.f32 %v4192, %v3912
        %v4194 = vadd.f32 %v4193, %v3913
        %v4195 = vrot.slane %v4194, 4
        %v4196 = vadd.f32 %v4194, %v4195
        %v4197 = vrot.slane %v4196, 2
        %v4198 = vadd.f32 %v4196, %v4197
        %v4199 = vrot.slane %v4198, 1
        %v4200 = vadd.f32 %v4198, %v4199
        %v4201 = vadd.f32 %v3914, %v3915
        %v4202 = vadd.f32 %v4201, %v3916
        %v4203 = vadd.f32 %v4202, %v3917
        %v4204 = vadd.f32 %v4203, %v3918
        %v4205 = vadd.f32 %v4204, %v3919
        %v4206 = vadd.f32 %v4205, %v3920
        %v4207 = vadd.f32 %v4206, %v3921
        %v4208 = vrot.slane %v4207, 4
        %v4209 = vadd.f32 %v4207, %v4208
        %v4210 = vrot.slane %v4209, 2
        %v4211 = vadd.f32 %v4209, %v4210
        %v4212 = vrot.slane %v4211, 1
        %v4213 = vadd.f32 %v4211, %v4212
        %v4214 = vadd.f32 %v3922, %v3923
        %v4215 = vadd.f32 %v4214, %v3924
        %v4216 = vadd.f32 %v4215, %v3925
        %v4217 = vadd.f32 %v4216, %v3926
        %v4218 = vadd.f32 %v4217, %v3927
        %v4219 = vadd.f32 %v4218, %v3928
        %v4220 = vadd.f32 %v4219, %v3929
        %v4221 = vrot.slane %v4220, 4
        %v4222 = vadd.f32 %v4220, %v4221
        %v4223 = vrot.slane %v4222, 2
        %v4224 = vadd.f32 %v4222, %v4223
        %v4225 = vrot.slane %v4224, 1
        %v4226 = vadd.f32 %v4224, %v4225
        %v4227 = vadd.f32 %v3930, %v3931
        %v4228 = vadd.f32 %v4227, %v3932
        %v4229 = vadd.f32 %v4228, %v3933
        %v4230 = vadd.f32 %v4229, %v3934
        %v4231 = vadd.f32 %v4230, %v3935
        %v4232 = vadd.f32 %v4231, %v3936
        %v4233 = vadd.f32 %v4232, %v3937
        %v4234 = vrot.slane %v4233, 4
        %v4235 = vadd.f32 %v4233, %v4234
        %v4236 = vrot.slane %v4235, 2
        %v4237 = vadd.f32 %v4235, %v4236
        %v4238 = vrot.slane %v4237, 1
        %v4239 = vadd.f32 %v4237, %v4238
        %v4240 = vadd.f32 %v3938, %v3939
        %v4241 = vadd.f32 %v4240, %v3940
        %v4242 = vadd.f32 %v4241, %v3941
        %v4243 = vadd.f32 %v4242, %v3942
        %v4244 = vadd.f32 %v4243, %v3943
        %v4245 = vadd.f32 %v4244, %v3944
        %v4246 = vadd.f32 %v4245, %v3945
        %v4247 = vrot.slane %v4246, 4
        %v4248 = vadd.f32 %v4246, %v4247
        %v4249 = vrot.slane %v4248, 2
        %v4250 = vadd.f32 %v4248, %v4249
        %v4251 = vrot.slane %v4250, 1
        %v4252 = vadd.f32 %v4250, %v4251
        %v4253 = vadd.f32 %v3946, %v3947
        %v4254 = vadd.f32 %v4253, %v3948
        %v4255 = vadd.f32 %v4254, %v3949
        %v4256 = vadd.f32 %v4255, %v3950
        %v4257 = vadd.f32 %v4256, %v3951
        %v4258 = vadd.f32 %v4257, %v3952
        %v4259 = vadd.f32 %v4258, %v3953
        %v4260 = vrot.slane %v4259, 4
        %v4261 = vadd.f32 %v4259, %v4260
        %v4262 = vrot.slane %v4261, 2
        %v4263 = vadd.f32 %v4261, %v4262
        %v4264 = vrot.slane %v4263, 1
        %v4265 = vadd.f32 %v4263, %v4264
        %v4266 = vpack.c.bf16 %v3966, %v3966
        %v4267 = vpack.c.bf16 %v3979, %v3979
        %v4268 = vpack.c.bf16 %v3992, %v3992
        %v4269 = vpack.c.bf16 %v4005, %v4005
        %v4270 = vpack.c.bf16 %v4018, %v4018
        %v4271 = vpack.c.bf16 %v4031, %v4031
        %v4272 = vpack.c.bf16 %v4044, %v4044
        %v4273 = vpack.c.bf16 %v4057, %v4057
        %v4274 = vpack.c.bf16 %v4070, %v4070
        %v4275 = vpack.c.bf16 %v4083, %v4083
        %v4276 = vpack.c.bf16 %v4096, %v4096
        %v4277 = vpack.c.bf16 %v4109, %v4109
        %v4278 = vpack.c.bf16 %v4122, %v4122
        %v4279 = vpack.c.bf16 %v4135, %v4135
        %v4280 = vpack.c.bf16 %v4148, %v4148
        %v4281 = vpack.c.bf16 %v4161, %v4161
        %v4282 = vpack.c.bf16 %v4174, %v4174
        %v4283 = vpack.c.bf16 %v4187, %v4187
        %v4284 = vpack.c.bf16 %v4200, %v4200
        %v4285 = vpack.c.bf16 %v4213, %v4213
        %v4286 = vpack.c.bf16 %v4226, %v4226
        %v4287 = vpack.c.bf16 %v4239, %v4239
        %v4288 = vpack.c.bf16 %v4252, %v4252
        %v4289 = vpack.c.bf16 %v4265, %v4265
        %v4290 = vld [vmem:[%s9] sm:$0xf]
        %v4291 = vld [vmem:[%s9 + $0x4] sm:$0xf]
        %v4292 = vld [vmem:[%s9 + $0x8] sm:$0xf]
        %v4293 = vld [vmem:[%s9 + $0xc] sm:$0xf]
        %v4294 = vld [vmem:[%s9 + $0x10] sm:$0xf]
        %v4295 = vld [vmem:[%s9 + $0x14] sm:$0xf]
        %v4296 = vld [vmem:[%s9 + $0x18] sm:$0xf]
        %v4297 = vld [vmem:[%s9 + $0x1c] sm:$0xf]
        %v4298 = vld [vmem:[%s9 + $0x20] sm:$0xf]
        %v4299 = vld [vmem:[%s9 + $0x24] sm:$0xf]
        %v4300 = vld [vmem:[%s9 + $0x28] sm:$0xf]
        %v4301 = vld [vmem:[%s9 + $0x2c] sm:$0xf]
        %v4302 = vld [vmem:[%s9 + $0x30] sm:$0xf]
        %v4303 = vld [vmem:[%s9 + $0x34] sm:$0xf]
        %v4304 = vld [vmem:[%s9 + $0x38] sm:$0xf]
        %v4305 = vld [vmem:[%s9 + $0x3c] sm:$0xf]
        %v4306 = vld [vmem:[%s10] sm:$0x1]
        %v4308 = vlaneseq
        %v4309 = vshrl.u32 %v4308, 7
        %v4310 = vsub.s32 0, %v4309
        %v4311 = vrot.slane %v4306, %v4310
        %v4337 = vunpack.c.l.b16 %v4266
        %v4338 = vunpack.c.l.b16 %v4267
        %v4339 = vunpack.c.l.b16 %v4268
        %v4340 = vunpack.c.l.b16 %v4269
        %v4341 = vunpack.c.l.b16 %v4270
        %v4342 = vunpack.c.l.b16 %v4271
        %v4343 = vunpack.c.l.b16 %v4272
        %v4344 = vunpack.c.l.b16 %v4273
        %v4345 = vunpack.c.l.b16 %v4274
        %v4346 = vunpack.c.l.b16 %v4275
        %v4347 = vunpack.c.l.b16 %v4276
        %v4348 = vunpack.c.l.b16 %v4277
        %v4349 = vunpack.c.l.b16 %v4278
        %v4350 = vunpack.c.l.b16 %v4279
        %v4351 = vunpack.c.l.b16 %v4280
        %v4352 = vunpack.c.l.b16 %v4281
        %v4353 = vunpack.c.l.b16 %v4282
        %v4354 = vunpack.c.l.b16 %v4283
        %v4355 = vunpack.c.l.b16 %v4284
        %v4356 = vunpack.c.l.b16 %v4285
        %v4357 = vunpack.c.l.b16 %v4286
        %v4358 = vunpack.c.l.b16 %v4287
        %v4359 = vunpack.c.l.b16 %v4288
        %v4360 = vunpack.c.l.b16 %v4289
        %vm4361 = vcmask 1041409
        %v4362 = vsel %vm4361, %v4338, %v4337
        %vm4363 = vcmask 1042434
        %v4364 = vsel %vm4363, %v4339, %v4362
        %vm4365 = vcmask 1043459
        %v4366 = vsel %vm4365, %v4340, %v4364
        %vm4367 = vcmask 1044484
        %v4368 = vsel %vm4367, %v4341, %v4366
        %vm4369 = vcmask 1045509
        %v4370 = vsel %vm4369, %v4342, %v4368
        %vm4371 = vcmask 1046534
        %v4372 = vsel %vm4371, %v4343, %v4370
        %vm4373 = vcmask 1047559
        %v4374 = vsel %vm4373, %v4344, %v4372
        %v4375 = vsel %vm4361, %v4346, %v4345
        %v4376 = vsel %vm4363, %v4347, %v4375
        %v4377 = vsel %vm4365, %v4348, %v4376
        %v4378 = vsel %vm4367, %v4349, %v4377
        %v4379 = vsel %vm4369, %v4350, %v4378
        %v4380 = vsel %vm4371, %v4351, %v4379
        %v4381 = vsel %vm4373, %v4352, %v4380
        %v4382 = vsel %vm4361, %v4354, %v4353
        %v4383 = vsel %vm4363, %v4355, %v4382
        %v4384 = vsel %vm4365, %v4356, %v4383
        %v4385 = vsel %vm4367, %v4357, %v4384
        %v4386 = vsel %vm4369, %v4358, %v4385
        %v4387 = vsel %vm4371, %v4359, %v4386
        %v4388 = vsel %vm4373, %v4360, %v4387
        %v4389 = vpack.c.b16 %v4381, %v4374
        %v4390 = vpack.c.b16 %v4388, %v4388
        %v4409 = vunpack.c.l.b16 %v4290
        %v4410 = vunpack.c.l.b16 %v4291
        %v4411 = vunpack.c.l.b16 %v4292
        %v4412 = vunpack.c.l.b16 %v4293
        %v4413 = vunpack.c.l.b16 %v4294
        %v4414 = vunpack.c.l.b16 %v4295
        %v4415 = vunpack.c.l.b16 %v4296
        %v4416 = vunpack.c.l.b16 %v4297
        %v4417 = vunpack.c.l.b16 %v4298
        %v4418 = vunpack.c.l.b16 %v4299
        %v4419 = vunpack.c.l.b16 %v4300
        %v4420 = vunpack.c.l.b16 %v4301
        %v4421 = vunpack.c.l.b16 %v4302
        %v4422 = vunpack.c.l.b16 %v4303
        %v4423 = vunpack.c.l.b16 %v4304
        %v4424 = vunpack.c.l.b16 %v4305
        %v4425 = vpack.c.b16 %v4410, %v4409
        %v4426 = vpack.c.b16 %v4412, %v4411
        %v4427 = vpack.c.b16 %v4414, %v4413
        %v4428 = vpack.c.b16 %v4416, %v4415
        %v4429 = vpack.c.b16 %v4418, %v4417
        %v4430 = vpack.c.b16 %v4420, %v4419
        %v4431 = vpack.c.b16 %v4422, %v4421
        %v4432 = vpack.c.b16 %v4424, %v4423
        %4441 = vmatprep.subr.bf16.mxu0 0
        %4442 = vmatpush1.bf16.msra.mxu0 %v4425
        %4443 = vmatprep.subr.bf16.mxu0 0
        %4444 = vmatpush1.bf16.msra.mxu0 %v4426
        %4445 = vmatprep.subr.bf16.mxu0 0
        %4446 = vmatpush1.bf16.msra.mxu0 %v4427
        %4447 = vmatprep.subr.bf16.mxu0 0
        %4448 = vmatpush1.bf16.msra.mxu0 %v4428
        %4449 = vmatprep.subr.bf16.mxu0 0
        %4450 = vmatpush1.bf16.msra.mxu0 %v4429
        %4451 = vmatprep.subr.bf16.mxu0 0
        %4452 = vmatpush1.bf16.msra.mxu0 %v4430
        %4453 = vmatprep.subr.bf16.mxu0 0
        %4454 = vmatpush1.bf16.msra.mxu0 %v4431
        %4455 = vmatprep.subr.bf16.mxu0 0
        %4456 = vmatpush1.bf16.msra.mxu0 %v4432
        %4457 = vmatprep.subr.bf16.mxu0 0
        %4458 = vmatpush1.bf16.msra.mxu0 0
        %4459 = vmatprep.subr.bf16.mxu0 0
        %4460 = vmatpush1.bf16.msra.mxu0 0
        %4461 = vmatprep.subr.bf16.mxu0 0
        %4462 = vmatpush1.bf16.msra.mxu0 0
        %4463 = vmatprep.subr.bf16.mxu0 0
        %4464 = vmatpush1.bf16.msra.mxu0 0
        %4465 = vmatprep.subr.bf16.mxu0 0
        %4466 = vmatpush1.bf16.msra.mxu0 0
        %4467 = vmatprep.subr.bf16.mxu0 0
        %4468 = vmatpush1.bf16.msra.mxu0 0
        %4469 = vmatprep.subr.bf16.mxu0 0
        %4470 = vmatpush1.bf16.msra.mxu0 0
        %4471 = vmatprep.subr.bf16.mxu0 0
        %4472 = vmatpush1.bf16.msra.mxu0 0
        %4473 = vmatprep.mubr.bf16.mxu0 0
        %4474 = vmatmul.mubr.bf16.gmra.mrb[0].mxu0 %v4389
        %v4475 = vpop.f32.mrb[0].mxu0
        %v4476 = vadd.f32 %v4311, %v4475
        %v4477 = vpop.f32.mrb[0].mxu0
        %v4478 = vpop.f32.mrb[0].mxu0
        %v4479 = vadd.f32 %v4311, %v4478
        %v4480 = vpop.f32.mrb[0].mxu0
        %4481 = vmatprep.mubr.bf16.mxu0 0
        %4482 = vmatmul.mubr.bf16.gmra.mrb[0].mxu0 %v4390
        %v4483 = vpop.f32.mrb[0].mxu0
        %v4484 = vadd.f32 %v4311, %v4483
        %v4485 = vpop.f32.mrb[0].mxu0
        %v4486 = vpop.f32.mrb[0].mxu0
        %v4487 = vpop.f32.mrb[0].mxu0
        %4488 = vdwg.mxu0
        %v4489 = vmul.f32 %v1964, %v4476
        %4490 = vadd.xlane.f32.xlu0 %v4489
        %v4491 = vpop.xlane.xlu0 %4490
        %v4492 = vmul.f32 %v1964, %v4479
        %4493 = vadd.xlane.f32.xlu0 %v4492
        %v4494 = vpop.xlane.xlu0 %4493
        %v4495 = vmul.f32 %v1964, %v4484
        %4496 = vadd.xlane.f32.xlu0 %v4495
        %v4497 = vpop.xlane.xlu0 %4496
        %vm4498 = vcmask 7168
        %v4499 = vsel %vm4498, %v4491, %v4494
        %vm4500 = vcmask 15360
        %v4501 = vsel %vm4500, %v4499, %v4497
        %vm4502 = vcmask 23552
        %4503 = vst.msk [vmem:[%s1280] sm:$0xff] %vm4502, %v4501
        %p4504 = scmp.lt.s32.totalorder %s22, 1
        %s4505 = scalar_select %p4504, %s22, 1
        %s4506 = smul.addr %s4505, 8
        %s4507 = scalar_lea.vmem %s11, %s4506
        // Predicated region
        $region147: #{tpu_custom_call.1} parent=137 // pred_check
          %p4508 = pneg %p281
        $region148: #{tpu_custom_call.1} parent=137 // pred_check_branch
          %4510 = sbr.rel (%p4508) target = $region150
        $region149: #{tpu_custom_call.1} parent=137 // pred_region
          _
        $region150: #{tpu_custom_call.1} parent=137 // pred_fallthru
          _
      $region138: #{tpu_custom_call.1} parent=5 // pred_fallthru
        _
      %p4511 = scmp.le.s32.totalorder 2, %s17
      // Predicated region
      $region151: #{tpu_custom_call.1} parent=5 // pred_check
        %p4512 = pneg %p4511
      $region152: #{tpu_custom_call.1} parent=5 // pred_check_branch
        %4514 = sbr.rel (%p4512) target = $region154
      $region153: #{tpu_custom_call.1} parent=5 // pred_region
        %s4515 = ssub.s32 %s17, 2
        // Predicated region
        $region155: #{tpu_custom_call.1} parent=153 // pred_check
          %p4516 = pneg %p287
        $region156: #{tpu_custom_call.1} parent=153 // pred_check_branch
          %4518 = sbr.rel (%p4516) target = $region158
        $region157: #{tpu_custom_call.1} parent=153 // pred_region
          %p4519 = scmp.lt.s32.totalorder %s23, 1
          %s4520 = scalar_select %p4519, %s23, 1
          %s4521 = smul.addr %s4520, 8
          %s4522 = scalar_lea.vmem %s11, %s4521
        $region158: #{tpu_custom_call.1} parent=153 // pred_fallthru
          _
      $region154: #{tpu_custom_call.1} parent=5 // pred_fallthru
        _
    $region6: #{tpu_custom_call.1} parent=1 // loop_footer
      %s21 = sadd.s32 1, %s17
    $region7: #{tpu_custom_call.1} parent=1 // loop_footer_branch
      %16 = sbr.rel target = $region3
    $region8: #{tpu_custom_call.1} parent=1 // loop_exit
      _

// kernel: tpu_custom_call.1
$region0: #{tpu_custom_call.1}
  #allocation0 [shape = 'u32[]', space=smem, size = 0x4, offset = 0x4, fixed_abs, tag = 'smem constant byte address 0x4 - core index']
  #allocation1 [shape = 'u32[144,128]{1,0:T(1,128)}', space=vmem, size = 0x12000, scoped, tag = 'internal scratch']
  %s0 = inlined_call_operand.vmem [shape: bf16[8,16,128], index: 0, kind: input, shape index: {}]
  %s1 = inlined_call_operand.vmem [shape: bf16[128,128], index: 1, kind: input, shape index: {}]
  %s2 = inlined_call_operand.vmem [shape: bf16[128,128], index: 2, kind: input, shape index: {}]
  %s3 = inlined_call_operand.vmem [shape: f32[1,128], index: 3, kind: input, shape index: {}]
  %s4 = inlined_call_operand.vmem [shape: bf16[128,128], index: 4, kind: input, shape index: {}]
  %s5 = inlined_call_operand.vmem [shape: f32[1,128], index: 5, kind: input, shape index: {}]
  %s6 = inlined_call_operand.vmem [shape: bf16[3,1024,36], index: 6, kind: input, shape index: {}]
  %s7 = inlined_call_operand.vmem [shape: bf16[36,128], index: 7, kind: input, shape index: {}]
  %s8 = inlined_call_operand.vmem [shape: f32[1,128], index: 8, kind: input, shape index: {}]
  %s9 = inlined_call_operand.vmem [shape: bf16[128,128], index: 9, kind: input, shape index: {}]
  %s10 = inlined_call_operand.vmem [shape: f32[1,128], index: 10, kind: input, shape index: {}]
  %s11 = inlined_call_operand.vmem [shape: f32[16,3], index: 11, kind: output, shape index: {}]
  %s12 = sld [smem:[#allocation0]]
  $region159: #{tpu_custom_call.1} parent=0
    _
  %s14 = ssub.s32 1, %s12
  %s15 = scalar_select 0, %s14, %s12
  $region1: #{tpu_custom_call.1} parent=0
    #allocation2 [shape = 'u8[32768]{0}', space=vmem, size = 0x8000, scoped, tag = 'input window, operand 0']
    #allocation3 [shape = 'u8[786432]{0}', space=vmem, size = 0xc0000, scoped, tag = 'input window, operand 6']
    loop: start=0, step=1, limit=4
    $region2: #{tpu_custom_call.1} parent=1 // loop_pre_header
      _
    $region3: #{tpu_custom_call.1} parent=1 // loop_header
      %s17 = sphi 0, %s21
      %p18 = scmp.ge.s32.totalorder %s17, 4
      %s27 = sphi 0, %s29
      %s30 = sphi 0, %s27
      %s31 = sphi 0, %s30
      %s47 = sphi 0, %s31
      %s51 = sphi 0, %s51
      %s53 = sphi 0, %s51
      %s54 = sphi 0, %s53
      %s68 = sphi 0, %s54
      %s72 = sphi 0, %s72
      %s74 = sphi 0, %s72
      %s75 = sphi 0, %s74
      %s89 = sphi 0, %s75
      %s93 = sphi 0, %s93
      %s95 = sphi 0, %s93
      %s96 = sphi 0, %s95
      %s110 = sphi 0, %s96
      %s114 = sphi 0, %s114
      %s116 = sphi 0, %s114
      %s117 = sphi 0, %s116
      %s131 = sphi 0, %s117
      %s135 = sphi 0, %s135
      %s137 = sphi 0, %s135
      %s138 = sphi 0, %s137
      %s152 = sphi 0, %s138
      %s158 = sphi 0, %s160
      %s161 = sphi 0, %s158
      %s162 = sphi 0, %s161
      %s178 = sphi 0, %s162
      %s182 = sphi 0, %s182
      %s184 = sphi 0, %s182
      %s185 = sphi 0, %s184
      %s199 = sphi 0, %s185
      %s203 = sphi 0, %s203
      %s205 = sphi 0, %s203
      %s206 = sphi 0, %s205
      %s220 = sphi 0, %s206
      %s224 = sphi 0, %s224
      %s226 = sphi 0, %s224
      %s227 = sphi 0, %s226
      %s241 = sphi 0, %s227
      %s245 = sphi 0, %s245
      %s247 = sphi 0, %s245
      %s248 = sphi 0, %s247
      %s262 = sphi 0, %s248
      %s268 = sphi 0, %s270
      %s271 = sphi 0, %s268
      %s272 = sphi 0, %s271
      %s288 = sphi 0, %s272
    $region4: #{tpu_custom_call.1} parent=1 // loop_header_branch
      %20 = sbr.rel (%p18) target = $region8
    $region5: #{tpu_custom_call.1} parent=1 // loop_body
      %s22 = ssub.s32 %s17, 1
      %s23 = ssub.s32 %s17, 2
      %s24 = sadd.s32 %s17, 1
      %s25 = ssub.s32 %s17, %s24
      %p26 = scmp.eq.s32.totalorder %s25, 0
      %s28 = sadd.s32 %s27, 1
      %s29 = scalar_select %p26, %s27, %s28
      %p32 = pneg %p26
      %p33 = scmp.eq.s32.totalorder %s17, 1
      %p34 = por %p32, %p33
      %p35 = scmp.ne.s32.totalorder %s27, %s30
      %p36 = scmp.eq.s32.totalorder %s17, 0
      %p37 = por %p35, %p36
      %p38 = scmp.ne.s32.totalorder %s27, %s30
      %p39 = scmp.eq.s32.totalorder %s22, 1
      %p40 = por %p38, %p39
      %p41 = scmp.ne.s32.totalorder %s30, %s31
      %p42 = scmp.eq.s32.totalorder %s22, 0
      %p43 = por %p41, %p42
      %p44 = scmp.ne.s32.totalorder %s30, %s31
      %p45 = scmp.eq.s32.totalorder %s23, 1
      %p46 = por %p44, %p45
      %p48 = scmp.ne.s32.totalorder %s31, %s47
      %p49 = scmp.eq.s32.totalorder %s23, 0
      %p50 = por %p48, %p49
      %s52 = sadd.s32 %s51, 1
      %p55 = scmp.eq.s32.totalorder %s17, 1
      %p56 = scmp.ne.s32.totalorder %s51, %s53
      %p57 = scmp.eq.s32.totalorder %s17, 0
      %p58 = por %p56, %p57
      %p59 = scmp.ne.s32.totalorder %s51, %s53
      %p60 = scmp.eq.s32.totalorder %s22, 1
      %p61 = por %p59, %p60
      %p62 = scmp.ne.s32.totalorder %s53, %s54
      %p63 = scmp.eq.s32.totalorder %s22, 0
      %p64 = por %p62, %p63
      %p65 = scmp.ne.s32.totalorder %s53, %s54
      %p66 = scmp.eq.s32.totalorder %s23, 1
      %p67 = por %p65, %p66
      %p69 = scmp.ne.s32.totalorder %s54, %s68
      %p70 = scmp.eq.s32.totalorder %s23, 0
      %p71 = por %p69, %p70
      %s73 = sadd.s32 %s72, 1
      %p76 = scmp.eq.s32.totalorder %s17, 1
      %p77 = scmp.ne.s32.totalorder %s72, %s74
      %p78 = scmp.eq.s32.totalorder %s17, 0
      %p79 = por %p77, %p78
      %p80 = scmp.ne.s32.totalorder %s72, %s74
      %p81 = scmp.eq.s32.totalorder %s22, 1
      %p82 = por %p80, %p81
      %p83 = scmp.ne.s32.totalorder %s74, %s75
      %p84 = scmp.eq.s32.totalorder %s22, 0
      %p85 = por %p83, %p84
      %p86 = scmp.ne.s32.totalorder %s74, %s75
      %p87 = scmp.eq.s32.totalorder %s23, 1
      %p88 = por %p86, %p87
      %p90 = scmp.ne.s32.totalorder %s75, %s89
      %p91 = scmp.eq.s32.totalorder %s23, 0
      %p92 = por %p90, %p91
      %s94 = sadd.s32 %s93, 1
      %p97 = scmp.eq.s32.totalorder %s17, 1
      %p98 = scmp.ne.s32.totalorder %s93, %s95
      %p99 = scmp.eq.s32.totalorder %s17, 0
      %p100 = por %p98, %p99
      %p101 = scmp.ne.s32.totalorder %s93, %s95
      %p102 = scmp.eq.s32.totalorder %s22, 1
      %p103 = por %p101, %p102
      %p104 = scmp.ne.s32.totalorder %s95, %s96
      %p105 = scmp.eq.s32.totalorder %s22, 0
      %p106 = por %p104, %p105
      %p107 = scmp.ne.s32.totalorder %s95, %s96
      %p108 = scmp.eq.s32.totalorder %s23, 1
      %p109 = por %p107, %p108
      %p111 = scmp.ne.s32.totalorder %s96, %s110
      %p112 = scmp.eq.s32.totalorder %s23, 0
      %p113 = por %p111, %p112
      %s115 = sadd.s32 %s114, 1
      %p118 = scmp.eq.s32.totalorder %s17, 1
      %p119 = scmp.ne.s32.totalorder %s114, %s116
      %p120 = scmp.eq.s32.totalorder %s17, 0
      %p121 = por %p119, %p120
      %p122 = scmp.ne.s32.totalorder %s114, %s116
      %p123 = scmp.eq.s32.totalorder %s22, 1
      %p124 = por %p122, %p123
      %p125 = scmp.ne.s32.totalorder %s116, %s117
      %p126 = scmp.eq.s32.totalorder %s22, 0
      %p127 = por %p125, %p126
      %p128 = scmp.ne.s32.totalorder %s116, %s117
      %p129 = scmp.eq.s32.totalorder %s23, 1
      %p130 = por %p128, %p129
      %p132 = scmp.ne.s32.totalorder %s117, %s131
      %p133 = scmp.eq.s32.totalorder %s23, 0
      %p134 = por %p132, %p133
      %s136 = sadd.s32 %s135, 1
      %p139 = scmp.eq.s32.totalorder %s17, 1
      %p140 = scmp.ne.s32.totalorder %s135, %s137
      %p141 = scmp.eq.s32.totalorder %s17, 0
      %p142 = por %p140, %p141
      %p143 = scmp.ne.s32.totalorder %s135, %s137
      %p144 = scmp.eq.s32.totalorder %s22, 1
      %p145 = por %p143, %p144
      %p146 = scmp.ne.s32.totalorder %s137, %s138
      %p147 = scmp.eq.s32.totalorder %s22, 0
      %p148 = por %p146, %p147
      %p149 = scmp.ne.s32.totalorder %s137, %s138
      %p150 = scmp.eq.s32.totalorder %s23, 1
      %p151 = por %p149, %p150
      %p153 = scmp.ne.s32.totalorder %s138, %s152
      %p154 = scmp.eq.s32.totalorder %s23, 0
      %p155 = por %p153, %p154
      %s156 = ssub.s32 %s17, %s24
      %p157 = scmp.eq.s32.totalorder %s156, 0
      %s159 = sadd.s32 %s158, 1
      %s160 = scalar_select %p157, %s158, %s159
      %p163 = pneg %p157
      %p164 = scmp.eq.s32.totalorder %s17, 1
      %p165 = por %p163, %p164
      %p166 = scmp.ne.s32.totalorder %s158, %s161
      %p167 = scmp.eq.s32.totalorder %s17, 0
      %p168 = por %p166, %p167
      %p169 = scmp.ne.s32.totalorder %s158, %s161
      %p170 = scmp.eq.s32.totalorder %s22, 1
      %p171 = por %p169, %p170
      %p172 = scmp.ne.s32.totalorder %s161, %s162
      %p173 = scmp.eq.s32.totalorder %s22, 0
      %p174 = por %p172, %p173
      %p175 = scmp.ne.s32.totalorder %s161, %s162
      %p176 = scmp.eq.s32.totalorder %s23, 1
      %p177 = por %p175, %p176
      %p179 = scmp.ne.s32.totalorder %s162, %s178
      %p180 = scmp.eq.s32.totalorder %s23, 0
      %p181 = por %p179, %p180
      %s183 = sadd.s32 %s182, 1
      %p186 = scmp.eq.s32.totalorder %s17, 1
      %p187 = scmp.ne.s32.totalorder %s182, %s184
      %p188 = scmp.eq.s32.totalorder %s17, 0
      %p189 = por %p187, %p188
      %p190 = scmp.ne.s32.totalorder %s182, %s184
      %p191 = scmp.eq.s32.totalorder %s22, 1
      %p192 = por %p190, %p191
      %p193 = scmp.ne.s32.totalorder %s184, %s185
      %p194 = scmp.eq.s32.totalorder %s22, 0
      %p195 = por %p193, %p194
      %p196 = scmp.ne.s32.totalorder %s184, %s185
      %p197 = scmp.eq.s32.totalorder %s23, 1
      %p198 = por %p196, %p197
      %p200 = scmp.ne.s32.totalorder %s185, %s199
      %p201 = scmp.eq.s32.totalorder %s23, 0
      %p202 = por %p200, %p201
      %s204 = sadd.s32 %s203, 1
      %p207 = scmp.eq.s32.totalorder %s17, 1
      %p208 = scmp.ne.s32.totalorder %s203, %s205
      %p209 = scmp.eq.s32.totalorder %s17, 0
      %p210 = por %p208, %p209
      %p211 = scmp.ne.s32.totalorder %s203, %s205
      %p212 = scmp.eq.s32.totalorder %s22, 1
      %p213 = por %p211, %p212
      %p214 = scmp.ne.s32.totalorder %s205, %s206
      %p215 = scmp.eq.s32.totalorder %s22, 0
      %p216 = por %p214, %p215
      %p217 = scmp.ne.s32.totalorder %s205, %s206
      %p218 = scmp.eq.s32.totalorder %s23, 1
      %p219 = por %p217, %p218
      %p221 = scmp.ne.s32.totalorder %s206, %s220
      %p222 = scmp.eq.s32.totalorder %s23, 0
      %p223 = por %p221, %p222
      %s225 = sadd.s32 %s224, 1
      %p228 = scmp.eq.s32.totalorder %s17, 1
      %p229 = scmp.ne.s32.totalorder %s224, %s226
      %p230 = scmp.eq.s32.totalorder %s17, 0
      %p231 = por %p229, %p230
      %p232 = scmp.ne.s32.totalorder %s224, %s226
      %p233 = scmp.eq.s32.totalorder %s22, 1
      %p234 = por %p232, %p233
      %p235 = scmp.ne.s32.totalorder %s226, %s227
      %p236 = scmp.eq.s32.totalorder %s22, 0
      %p237 = por %p235, %p236
      %p238 = scmp.ne.s32.totalorder %s226, %s227
      %p239 = scmp.eq.s32.totalorder %s23, 1
      %p240 = por %p238, %p239
      %p242 = scmp.ne.s32.totalorder %s227, %s241
      %p243 = scmp.eq.s32.totalorder %s23, 0
      %p244 = por %p242, %p243
      %s246 = sadd.s32 %s245, 1
      %p249 = scmp.eq.s32.totalorder %s17, 1
      %p250 = scmp.ne.s32.totalorder %s245, %s247
      %p251 = scmp.eq.s32.totalorder %s17, 0
      %p252 = por %p250, %p251
      %p253 = scmp.ne.s32.totalorder %s245, %s247
      %p254 = scmp.eq.s32.totalorder %s22, 1
      %p255 = por %p253, %p254
      %p256 = scmp.ne.s32.totalorder %s247, %s248
      %p257 = scmp.eq.s32.totalorder %s22, 0
      %p258 = por %p256, %p257
      %p259 = scmp.ne.s32.totalorder %s247, %s248
      %p260 = scmp.eq.s32.totalorder %s23, 1
      %p261 = por %p259, %p260
      %p263 = scmp.ne.s32.totalorder %s248, %s262
      %p264 = scmp.eq.s32.totalorder %s23, 0
      %p265 = por %p263, %p264
      %s266 = ssub.s32 %s17, %s24
      %p267 = scmp.eq.s32.totalorder %s266, 0
      %s269 = sadd.s32 %s268, 1
      %s270 = scalar_select %p267, %s268, %s269
      %p273 = pneg %p267
      %p274 = scmp.eq.s32.totalorder %s17, 1
      %p275 = por %p273, %p274
      %p276 = scmp.ne.s32.totalorder %s268, %s271
      %p277 = scmp.eq.s32.totalorder %s17, 0
      %p278 = por %p276, %p277
      %p279 = scmp.ne.s32.totalorder %s268, %s271
      %p280 = scmp.eq.s32.totalorder %s22, 1
      %p281 = por %p279, %p280
      %p282 = scmp.ne.s32.totalorder %s271, %s272
      %p283 = scmp.eq.s32.totalorder %s22, 0
      %p284 = por %p282, %p283
      %p285 = scmp.ne.s32.totalorder %s271, %s272
      %p286 = scmp.eq.s32.totalorder %s23, 1
      %p287 = por %p285, %p286
      %p289 = scmp.ne.s32.totalorder %s272, %s288
      %p290 = scmp.eq.s32.totalorder %s23, 0
      %p291 = por %p289, %p290
      %p292 = scmp.le.s32.totalorder 1, %s17
      %p293 = scmp.lt.s32.totalorder %s17, 3
      %p294 = pnand %p292, %p293
      %p295 = pneg %p294
      // Predicated region
      $region9: #{tpu_custom_call.1} parent=5 // pred_check
        _
      $region10: #{tpu_custom_call.1} parent=5 // pred_check_branch
        %297 = sbr.rel (%p294) target = $region12
      $region11: #{tpu_custom_call.1} parent=5 // pred_region
        %s298 = ssub.s32 %s17, 1
        // Predicated region
        $region13: #{tpu_custom_call.1} parent=11 // pred_check
          %p299 = pneg %p64
        $region14: #{tpu_custom_call.1} parent=11 // pred_check_branch
          %301 = sbr.rel (%p299) target = $region16
        $region15: #{tpu_custom_call.1} parent=11 // pred_region
          _
        $region16: #{tpu_custom_call.1} parent=11 // pred_fallthru
          _
        // Predicated region
        $region17: #{tpu_custom_call.1} parent=11 // pred_check
          %p302 = pneg %p85
        $region18: #{tpu_custom_call.1} parent=11 // pred_check_branch
          %304 = sbr.rel (%p302) target = $region20
        $region19: #{tpu_custom_call.1} parent=11 // pred_region
          _
        $region20: #{tpu_custom_call.1} parent=11 // pred_fallthru
          _
        // Predicated region
        $region21: #{tpu_custom_call.1} parent=11 // pred_check
          %p305 = pneg %p106
        $region22: #{tpu_custom_call.1} parent=11 // pred_check_branch
          %307 = sbr.rel (%p305) target = $region24
        $region23: #{tpu_custom_call.1} parent=11 // pred_region
          _
        $region24: #{tpu_custom_call.1} parent=11 // pred_fallthru
          _
        // Predicated region
        $region25: #{tpu_custom_call.1} parent=11 // pred_check
          %p308 = pneg %p127
        $region26: #{tpu_custom_call.1} parent=11 // pred_check_branch
          %310 = sbr.rel (%p308) target = $region28
        $region27: #{tpu_custom_call.1} parent=11 // pred_region
          _
        $region28: #{tpu_custom_call.1} parent=11 // pred_fallthru
          _
        // Predicated region
        $region29: #{tpu_custom_call.1} parent=11 // pred_check
          %p311 = pneg %p148
        $region30: #{tpu_custom_call.1} parent=11 // pred_check_branch
          %313 = sbr.rel (%p311) target = $region32
        $region31: #{tpu_custom_call.1} parent=11 // pred_region
          _
        $region32: #{tpu_custom_call.1} parent=11 // pred_fallthru
          _
        // Predicated region
        $region33: #{tpu_custom_call.1} parent=11 // pred_check
          %p314 = pneg %p195
        $region34: #{tpu_custom_call.1} parent=11 // pred_check_branch
          %316 = sbr.rel (%p314) target = $region36
        $region35: #{tpu_custom_call.1} parent=11 // pred_region
          _
        $region36: #{tpu_custom_call.1} parent=11 // pred_fallthru
          _
        // Predicated region
        $region37: #{tpu_custom_call.1} parent=11 // pred_check
          %p317 = pneg %p216
        $region38: #{tpu_custom_call.1} parent=11 // pred_check_branch
          %319 = sbr.rel (%p317) target = $region40
        $region39: #{tpu_custom_call.1} parent=11 // pred_region
          _
        $region40: #{tpu_custom_call.1} parent=11 // pred_fallthru
          _
        // Predicated region
        $region41: #{tpu_custom_call.1} parent=11 // pred_check
          %p320 = pneg %p237
        $region42: #{tpu_custom_call.1} parent=11 // pred_check_branch
          %322 = sbr.rel (%p320) target = $region44
        $region43: #{tpu_custom_call.1} parent=11 // pred_region
          _
        $region44: #{tpu_custom_call.1} parent=11 // pred_fallthru
          _
        // Predicated region
        $region45: #{tpu_custom_call.1} parent=11 // pred_check
          %p323 = pneg %p258
        $region46: #{tpu_custom_call.1} parent=11 // pred_check_branch
          %325 = sbr.rel (%p323) target = $region48
        $region47: #{tpu_custom_call.1} parent=11 // pred_region
          _
        $region48: #{tpu_custom_call.1} parent=11 // pred_fallthru
          _
      $region12: #{tpu_custom_call.1} parent=5 // pred_fallthru
        _
      %p326 = scmp.lt.s32.totalorder %s17, 2
      // Predicated region
      $region49: #{tpu_custom_call.1} parent=5 // pred_check
        %p327 = pneg %p326
      $region50: #{tpu_custom_call.1} parent=5 // pred_check_branch
        %329 = sbr.rel (%p327) target = $region52
      $region51: #{tpu_custom_call.1} parent=5 // pred_region
        // Predicated region
        $region53: #{tpu_custom_call.1} parent=51 // pred_check
          %p330 = pneg %p37
        $region54: #{tpu_custom_call.1} parent=51 // pred_check_branch
          %332 = sbr.rel (%p330) target = $region56
        $region55: #{tpu_custom_call.1} parent=51 // pred_region
          %s333 = sand.u32 %s27, 1
          %s334 = sand.u32 %s27, 1
          %s335 = smul.addr %s334, 32
          %s336 = scalar_lea.vmem [#allocation2], %s335
          %s337 = smul.addr %s17, 4
          %s338 = scalar_lea.vmem %s0, %s337
          // Predicated region
          $region57: #{tpu_custom_call.1} parent=55 // pred_check
            _
          $region58: #{tpu_custom_call.1} parent=55 // pred_check_branch
            %340 = sbr.rel (0) target = $region60
          $region59: #{tpu_custom_call.1} parent=55 // pred_region
            // Predicated region
            $region61: #{tpu_custom_call.1} parent=59 // pred_check
              _
            $region62: #{tpu_custom_call.1} parent=59 // pred_check_branch
              %342 = sbr.rel target = $region64
            $region63: #{tpu_custom_call.1} parent=59 // pred_region
              // Predicated region
              $region76: #{tpu_custom_call.1} parent=63 // pred_check
                _
              $region77: #{tpu_custom_call.1} parent=63 // pred_check_branch
                %371 = sbr.rel (0) target = $region79
              $region78: #{tpu_custom_call.1} parent=63 // pred_region
                loop: start=0, step=1, limit=1
                $region80: #{tpu_custom_call.1} parent=78 // loop_pre_header
                  _
                $region81: #{tpu_custom_call.1} parent=78 // loop_header
                  %s373 = sphi 0, %s377
                  %p374 = scmp.ge.s32.totalorder %s373, 1
                  %s378 = sphi %s338, %s338
                  %s379 = sphi %s336, %s336
                $region82: #{tpu_custom_call.1} parent=78 // loop_header_branch
                  %376 = sbr.rel (%p374) target = $region86
                $region83: #{tpu_custom_call.1} parent=78 // loop_body
                  _
                $region84: #{tpu_custom_call.1} parent=78 // loop_footer
                  %s377 = sadd.s32 1, %s373
                $region85: #{tpu_custom_call.1} parent=78 // loop_footer_branch
                  %372 = sbr.rel target = $region81
                $region86: #{tpu_custom_call.1} parent=78 // loop_exit
                  _
                loop: start=0, step=1, limit=1
                $region87: #{tpu_custom_call.1} parent=78 // loop_pre_header
                  _
                $region88: #{tpu_custom_call.1} parent=78 // loop_header
                  %s382 = sphi 0, %s386
                  %p383 = scmp.ge.s32.totalorder %s382, 1
                  %s387 = sphi %s338, %s338
                  %s388 = sphi %s336, %s336
                $region89: #{tpu_custom_call.1} parent=78 // loop_header_branch
                  %385 = sbr.rel (%p383) target = $region93
                $region90: #{tpu_custom_call.1} parent=78 // loop_body
                  %v389 = vld [vmem:[%s387] sm:$0xf]
                  %390 = vst [vmem:[%s388] sm:$0xf] %v389
                  %v391 = vld [vmem:[%s387 + $0x8] sm:$0xf]
                  %392 = vst [vmem:[%s388 + $0x4] sm:$0xf] %v391
                  %v393 = vld [vmem:[%s387 + $0x10] sm:$0xf]
                  %394 = vst [vmem:[%s388 + $0x8] sm:$0xf] %v393
                  %v395 = vld [vmem:[%s387 + $0x18] sm:$0xf]
                  %396 = vst [vmem:[%s388 + $0xc] sm:$0xf] %v395
                  %v397 = vld [vmem:[%s387 + $0x20] sm:$0xf]
                  %398 = vst [vmem:[%s388 + $0x10] sm:$0xf] %v397
                  %v399 = vld [vmem:[%s387 + $0x28] sm:$0xf]
                  %400 = vst [vmem:[%s388 + $0x14] sm:$0xf] %v399
                  %v401 = vld [vmem:[%s387 + $0x30] sm:$0xf]
                  %402 = vst [vmem:[%s388 + $0x18] sm:$0xf] %v401
                  %v403 = vld [vmem:[%s387 + $0x38] sm:$0xf]
                  %404 = vst [vmem:[%s388 + $0x1c] sm:$0xf] %v403
                $region91: #{tpu_custom_call.1} parent=78 // loop_footer
                  %s386 = sadd.s32 1, %s382
                $region92: #{tpu_custom_call.1} parent=78 // loop_footer_branch
                  %381 = sbr.rel target = $region88
                $region93: #{tpu_custom_call.1} parent=78 // loop_exit
                  _
              $region79: #{tpu_custom_call.1} parent=63 // pred_fallthru
                _
            $region64: #{tpu_custom_call.1} parent=59 // pred_fallthru
              _
            // Predicated region
            $region65: #{tpu_custom_call.1} parent=59 // pred_check
              _
            $region66: #{tpu_custom_call.1} parent=59 // pred_check_branch
              %344 = sbr.rel (0) target = $region68
            $region67: #{tpu_custom_call.1} parent=59 // pred_region
              loop: start=0, step=1, limit=1
              $region69: #{tpu_custom_call.1} parent=67 // loop_pre_header
                _
              $region70: #{tpu_custom_call.1} parent=67 // loop_header
                %s347 = sphi 0, %s351
                %p348 = scmp.ge.s32.totalorder %s347, 1
                %s352 = sphi %s338, %s338
                %s353 = sphi %s336, %s336
              $region71: #{tpu_custom_call.1} parent=67 // loop_header_branch
                %350 = sbr.rel (%p348) target = $region75
              $region72: #{tpu_custom_call.1} parent=67 // loop_body
                %v354 = vld [vmem:[%s352] sm:$0xf]
                %355 = vst [vmem:[%s353] sm:$0xf] %v354
                %v356 = vld [vmem:[%s352 + $0x8] sm:$0xf]
                %357 = vst [vmem:[%s353 + $0x4] sm:$0xf] %v356
                %v358 = vld [vmem:[%s352 + $0x10] sm:$0xf]
                %359 = vst [vmem:[%s353 + $0x8] sm:$0xf] %v358
                %v360 = vld [vmem:[%s352 + $0x18] sm:$0xf]
                %361 = vst [vmem:[%s353 + $0xc] sm:$0xf] %v360
                %v362 = vld [vmem:[%s352 + $0x20] sm:$0xf]
                %363 = vst [vmem:[%s353 + $0x10] sm:$0xf] %v362
                %v364 = vld [vmem:[%s352 + $0x28] sm:$0xf]
                %365 = vst [vmem:[%s353 + $0x14] sm:$0xf] %v364
                %v366 = vld [vmem:[%s352 + $0x30] sm:$0xf]
                %367 = vst [vmem:[%s353 + $0x18] sm:$0xf] %v366
                %v368 = vld [vmem:[%s352 + $0x38] sm:$0xf]
                %369 = vst [vmem:[%s353 + $0x1c] sm:$0xf] %v368
              $region73: #{tpu_custom_call.1} parent=67 // loop_footer
                %s351 = sadd.s32 1, %s347
              $region74: #{tpu_custom_call.1} parent=67 // loop_footer_branch
                %346 = sbr.rel target = $region70
              $region75: #{tpu_custom_call.1} parent=67 // loop_exit
                _
            $region68: #{tpu_custom_call.1} parent=59 // pred_fallthru
              _
          $region60: #{tpu_custom_call.1} parent=55 // pred_fallthru
            _
          %405 = vnop
        $region56: #{tpu_custom_call.1} parent=51 // pred_fallthru
          _
        // Predicated region
        $region94: #{tpu_custom_call.1} parent=51 // pred_check
          %p406 = pneg %p168
        $region95: #{tpu_custom_call.1} parent=51 // pred_check_branch
          %408 = sbr.rel (%p406) target = $region97
        $region96: #{tpu_custom_call.1} parent=51 // pred_region
          %s409 = sand.u32 %s158, 1
          %s410 = sand.u32 %s158, 1
          %s411 = smul.addr %s410, 768
          %s412 = scalar_lea.vmem [#allocation3], %s411
          %s413 = smul.u32 64, %s17
          %s414 = smul.addr %s413, 4
          %s415 = scalar_lea.vmem %s6, %s414
          // Predicated region
          $region98: #{tpu_custom_call.1} parent=96 // pred_check
            _
          $region99: #{tpu_custom_call.1} parent=96 // pred_check_branch
            %417 = sbr.rel (0) target = $region101
          $region100: #{tpu_custom_call.1} parent=96 // pred_region
            // Predicated region
            $region102: #{tpu_custom_call.1} parent=100 // pred_check
              _
            $region103: #{tpu_custom_call.1} parent=100 // pred_check_branch
              %419 = sbr.rel target = $region105
            $region104: #{tpu_custom_call.1} parent=100 // pred_region
              // Predicated region
              $region117: #{tpu_custom_call.1} parent=104 // pred_check
                _
              $region118: #{tpu_custom_call.1} parent=104 // pred_check_branch
                %816 = sbr.rel (0) target = $region120
              $region119: #{tpu_custom_call.1} parent=104 // pred_region
                loop: start=0, step=1, limit=1
                $region121: #{tpu_custom_call.1} parent=119 // loop_pre_header
                  _
                $region122: #{tpu_custom_call.1} parent=119 // loop_header
                  %s818 = sphi 0, %s822
                  %p819 = scmp.ge.s32.totalorder %s818, 1
                  %s823 = sphi %s415, %s415
                  %s824 = sphi %s412, %s412
                $region123: #{tpu_custom_call.1} parent=119 // loop_header_branch
                  %821 = sbr.rel (%p819) target = $region127
                $region124: #{tpu_custom_call.1} parent=119 // loop_body
                  _
                $region125: #{tpu_custom_call.1} parent=119 // loop_footer
                  %s822 = sadd.s32 1, %s818
                $region126: #{tpu_custom_call.1} parent=119 // loop_footer_branch
                  %817 = sbr.rel target = $region122
                $region127: #{tpu_custom_call.1} parent=119 // loop_exit
                  _
                loop: start=0, step=1, limit=1
                $region128: #{tpu_custom_call.1} parent=119 // loop_pre_header
                  _
                $region129: #{tpu_custom_call.1} parent=119 // loop_header
                  %s827 = sphi 0, %s831
                  %p828 = scmp.ge.s32.totalorder %s827, 1
                  %s832 = sphi %s415, %s415
                  %s833 = sphi %s412, %s412
                $region130: #{tpu_custom_call.1} parent=119 // loop_header_branch
                  %830 = sbr.rel (%p828) target = $region134
                $region131: #{tpu_custom_call.1} parent=119 // loop_body
                  %v834 = vld [vmem:[%s832] sm:$0xf]
                  %835 = vst [vmem:[%s833] sm:$0xf] %v834
                  %v836 = vld [vmem:[%s832 + $0x4] sm:$0xf]
                  %837 = vst [vmem:[%s833 + $0x4] sm:$0xf] %v836
                  %v838 = vld [vmem:[%s832 + $0x8] sm:$0xf]
                  %839 = vst [vmem:[%s833 + $0x8] sm:$0xf] %v838
                  %v840 = vld [vmem:[%s832 + $0xc] sm:$0xf]
                  %841 = vst [vmem:[%s833 + $0xc] sm:$0xf] %v840
                  %v842 = vld [vmem:[%s832 + $0x10] sm:$0xf]
                  %843 = vst [vmem:[%s833 + $0x10] sm:$0xf] %v842
                  %v844 = vld [vmem:[%s832 + $0x14] sm:$0xf]
                  %845 = vst [vmem:[%s833 + $0x14] sm:$0xf] %v844
                  %v846 = vld [vmem:[%s832 + $0x18] sm:$0xf]
                  %847 = vst [vmem:[%s833 + $0x18] sm:$0xf] %v846
                  %v848 = vld [vmem:[%s832 + $0x1c] sm:$0xf]
                  %849 = vst [vmem:[%s833 + $0x1c] sm:$0xf] %v848
                  %v850 = vld [vmem:[%s832 + $0x20] sm:$0xf]
                  %851 = vst [vmem:[%s833 + $0x20] sm:$0xf] %v850
                  %v852 = vld [vmem:[%s832 + $0x24] sm:$0xf]
                  %853 = vst [vmem:[%s833 + $0x24] sm:$0xf] %v852
                  %v854 = vld [vmem:[%s832 + $0x28] sm:$0xf]
                  %855 = vst [vmem:[%s833 + $0x28] sm:$0xf] %v854
                  %v856 = vld [vmem:[%s832 + $0x2c] sm:$0xf]
                  %857 = vst [vmem:[%s833 + $0x2c] sm:$0xf] %v856
                  %v858 = vld [vmem:[%s832 + $0x30] sm:$0xf]
                  %859 = vst [vmem:[%s833 + $0x30] sm:$0xf] %v858
                  %v860 = vld [vmem:[%s832 + $0x34] sm:$0xf]
                  %861 = vst [vmem:[%s833 + $0x34] sm:$0xf] %v860
                  %v862 = vld [vmem:[%s832 + $0x38] sm:$0xf]
                  %863 = vst [vmem:[%s833 + $0x38] sm:$0xf] %v862
                  %v864 = vld [vmem:[%s832 + $0x3c] sm:$0xf]
                  %865 = vst [vmem:[%s833 + $0x3c] sm:$0xf] %v864
                  %v866 = vld [vmem:[%s832 + $0x40] sm:$0xf]
                  %867 = vst [vmem:[%s833 + $0x40] sm:$0xf] %v866
                  %v868 = vld [vmem:[%s832 + $0x44] sm:$0xf]
                  %869 = vst [vmem:[%s833 + $0x44] sm:$0xf] %v868
                  %v870 = vld [vmem:[%s832 + $0x48] sm:$0xf]
                  %871 = vst [vmem:[%s833 + $0x48] sm:$0xf] %v870
                  %v872 = vld [vmem:[%s832 + $0x4c] sm:$0xf]
                  %873 = vst [vmem:[%s833 + $0x4c] sm:$0xf] %v872
                  %v874 = vld [vmem:[%s832 + $0x50] sm:$0xf]
                  %875 = vst [vmem:[%s833 + $0x50] sm:$0xf] %v874
                  %v876 = vld [vmem:[%s832 + $0x54] sm:$0xf]
                  %877 = vst [vmem:[%s833 + $0x54] sm:$0xf] %v876
                  %v878 = vld [vmem:[%s832 + $0x58] sm:$0xf]
                  %879 = vst [vmem:[%s833 + $0x58] sm:$0xf] %v878
                  %v880 = vld [vmem:[%s832 + $0x5c] sm:$0xf]
                  %881 = vst [vmem:[%s833 + $0x5c] sm:$0xf] %v880
                  %v882 = vld [vmem:[%s832 + $0x60] sm:$0xf]
                  %883 = vst [vmem:[%s833 + $0x60] sm:$0xf] %v882
                  %v884 = vld [vmem:[%s832 + $0x64] sm:$0xf]
                  %885 = vst [vmem:[%s833 + $0x64] sm:$0xf] %v884
                  %v886 = vld [vmem:[%s832 + $0x68] sm:$0xf]
                  %887 = vst [vmem:[%s833 + $0x68] sm:$0xf] %v886
                  %v888 = vld [vmem:[%s832 + $0x6c] sm:$0xf]
                  %889 = vst [vmem:[%s833 + $0x6c] sm:$0xf] %v888
                  %v890 = vld [vmem:[%s832 + $0x70] sm:$0xf]
                  %891 = vst [vmem:[%s833 + $0x70] sm:$0xf] %v890
                  %v892 = vld [vmem:[%s832 + $0x74] sm:$0xf]
                  %893 = vst [vmem:[%s833 + $0x74] sm:$0xf] %v892
                  %v894 = vld [vmem:[%s832 + $0x78] sm:$0xf]
                  %895 = vst [vmem:[%s833 + $0x78] sm:$0xf] %v894
                  %v896 = vld [vmem:[%s832 + $0x7c] sm:$0xf]
                  %897 = vst [vmem:[%s833 + $0x7c] sm:$0xf] %v896
                  %v898 = vld [vmem:[%s832 + $0x80] sm:$0xf]
                  %899 = vst [vmem:[%s833 + $0x80] sm:$0xf] %v898
                  %v900 = vld [vmem:[%s832 + $0x84] sm:$0xf]
                  %901 = vst [vmem:[%s833 + $0x84] sm:$0xf] %v900
                  %v902 = vld [vmem:[%s832 + $0x88] sm:$0xf]
                  %903 = vst [vmem:[%s833 + $0x88] sm:$0xf] %v902
                  %v904 = vld [vmem:[%s832 + $0x8c] sm:$0xf]
                  %905 = vst [vmem:[%s833 + $0x8c] sm:$0xf] %v904
                  %v906 = vld [vmem:[%s832 + $0x90] sm:$0xf]
                  %907 = vst [vmem:[%s833 + $0x90] sm:$0xf] %v906
                  %v908 = vld [vmem:[%s832 + $0x94] sm:$0xf]
                  %909 = vst [vmem:[%s833 + $0x94] sm:$0xf] %v908
                  %v910 = vld [vmem:[%s832 + $0x98] sm:$0xf]
                  %911 = vst [vmem:[%s833 + $0x98] sm:$0xf] %v910
                  %v912 = vld [vmem:[%s832 + $0x9c] sm:$0xf]
                  %913 = vst [vmem:[%s833 + $0x9c] sm:$0xf] %v912
                  %v914 = vld [vmem:[%s832 + $0xa0] sm:$0xf]
                  %915 = vst [vmem:[%s833 + $0xa0] sm:$0xf] %v914
                  %v916 = vld [vmem:[%s832 + $0xa4] sm:$0xf]
                  %917 = vst [vmem:[%s833 + $0xa4] sm:$0xf] %v916
                  %v918 = vld [vmem:[%s832 + $0xa8] sm:$0xf]
                  %919 = vst [vmem:[%s833 + $0xa8] sm:$0xf] %v918
                  %v920 = vld [vmem:[%s832 + $0xac] sm:$0xf]
                  %921 = vst [vmem:[%s833 + $0xac] sm:$0xf] %v920
                  %v922 = vld [vmem:[%s832 + $0xb0] sm:$0xf]
                  %923 = vst [vmem:[%s833 + $0xb0] sm:$0xf] %v922
                  %v924 = vld [vmem:[%s832 + $0xb4] sm:$0xf]
                  %925 = vst [vmem:[%s833 + $0xb4] sm:$0xf] %v924
                  %v926 = vld [vmem:[%s832 + $0xb8] sm:$0xf]
                  %927 = vst [vmem:[%s833 + $0xb8] sm:$0xf] %v926
                  %v928 = vld [vmem:[%s832 + $0xbc] sm:$0xf]
                  %929 = vst [vmem:[%s833 + $0xbc] sm:$0xf] %v928
                  %v930 = vld [vmem:[%s832 + $0xc0] sm:$0xf]
                  %931 = vst [vmem:[%s833 + $0xc0] sm:$0xf] %v930
                  %v932 = vld [vmem:[%s832 + $0xc4] sm:$0xf]
                  %933 = vst [vmem:[%s833 + $0xc4] sm:$0xf] %v932
                  %v934 = vld [vmem:[%s832 + $0xc8] sm:$0xf]
                  %935 = vst [vmem:[%s833 + $0xc8] sm:$0xf] %v934
                  %v936 = vld [vmem:[%s832 + $0xcc] sm:$0xf]
                  %937 = vst [vmem:[%s833 + $0xcc] sm:$0xf] %v936
                  %v938 = vld [vmem:[%s832 + $0xd0] sm:$0xf]
                  %939 = vst [vmem:[%s833 + $0xd0] sm:$0xf] %v938
                  %v940 = vld [vmem:[%s832 + $0xd4] sm:$0xf]
                  %941 = vst [vmem:[%s833 + $0xd4] sm:$0xf] %v940
                  %v942 = vld [vmem:[%s832 + $0xd8] sm:$0xf]
                  %943 = vst [vmem:[%s833 + $0xd8] sm:$0xf] %v942
                  %v944 = vld [vmem:[%s832 + $0xdc] sm:$0xf]
                  %945 = vst [vmem:[%s833 + $0xdc] sm:$0xf] %v944
                  %v946 = vld [vmem:[%s832 + $0xe0] sm:$0xf]
                  %947 = vst [vmem:[%s833 + $0xe0] sm:$0xf] %v946
                  %v948 = vld [vmem:[%s832 + $0xe4] sm:$0xf]
                  %949 = vst [vmem:[%s833 + $0xe4] sm:$0xf] %v948
                  %v950 = vld [vmem:[%s832 + $0xe8] sm:$0xf]
                  %951 = vst [vmem:[%s833 + $0xe8] sm:$0xf] %v950
                  %v952 = vld [vmem:[%s832 + $0xec] sm:$0xf]
                  %953 = vst [vmem:[%s833 + $0xec] sm:$0xf] %v952
                  %v954 = vld [vmem:[%s832 + $0xf0] sm:$0xf]
                  %955 = vst [vmem:[%s833 + $0xf0] sm:$0xf] %v954
                  %v956 = vld [vmem:[%s832 + $0xf4] sm:$0xf]
                  %957 = vst [vmem:[%s833 + $0xf4] sm:$0xf] %v956
                  %v958 = vld [vmem:[%s832 + $0xf8] sm:$0xf]
                  %959 = vst [vmem:[%s833 + $0xf8] sm:$0xf] %v958
                  %v960 = vld [vmem:[%s832 + $0xfc] sm:$0xf]
                  %961 = vst [vmem:[%s833 + $0xfc] sm:$0xf] %v960
                  %v962 = vld [vmem:[%s832 + $0x200] sm:$0xf]
                  %963 = vst [vmem:[%s833 + $0x100] sm:$0xf] %v962
                  %v964 = vld [vmem:[%s832 + $0x204] sm:$0xf]
                  %965 = vst [vmem:[%s833 + $0x104] sm:$0xf] %v964
                  %v966 = vld [vmem:[%s832 + $0x208] sm:$0xf]
                  %967 = vst [vmem:[%s833 + $0x108] sm:$0xf] %v966
                  %v968 = vld [vmem:[%s832 + $0x20c] sm:$0xf]
                  %969 = vst [vmem:[%s833 + $0x10c] sm:$0xf] %v968
                  %v970 = vld [vmem:[%s832 + $0x210] sm:$0xf]
                  %971 = vst [vmem:[%s833 + $0x110] sm:$0xf] %v970
                  %v972 = vld [vmem:[%s832 + $0x214] sm:$0xf]
                  %973 = vst [vmem:[%s833 + $0x114] sm:$0xf] %v972
                  %v974 = vld [vmem:[%s832 + $0x218] sm:$0xf]
                  %975 = vst [vmem:[%s833 + $0x118] sm:$0xf] %v974
                  %v976 = vld [vmem:[%s832 + $0x21c] sm:$0xf]
                  %977 = vst [vmem:[%s833 + $0x11c] sm:$0xf] %v976
                  %v978 = vld [vmem:[%s832 + $0x220] sm:$0xf]
                  %979 = vst [vmem:[%s833 + $0x120] sm:$0xf] %v978
                  %v980 = vld [vmem:[%s832 + $0x224] sm:$0xf]
                  %981 = vst [vmem:[%s833 + $0x124] sm:$0xf] %v980
                  %v982 = vld [vmem:[%s832 + $0x228] sm:$0xf]
                  %983 = vst [vmem:[%s833 + $0x128] sm:$0xf] %v982
                  %v984 = vld [vmem:[%s832 + $0x22c] sm:$0xf]
                  %985 = vst [vmem:[%s833 + $0x12c] sm:$0xf] %v984
                  %v986 = vld [vmem:[%s832 + $0x230] sm:$0xf]
                  %987 = vst [vmem:[%s833 + $0x130] sm:$0xf] %v986
                  %v988 = vld [vmem:[%s832 + $0x234] sm:$0xf]
                  %989 = vst [vmem:[%s833 + $0x134] sm:$0xf] %v988
                  %v990 = vld [vmem:[%s832 + $0x238] sm:$0xf]
                  %991 = vst [vmem:[%s833 + $0x138] sm:$0xf] %v990
                  %v992 = vld [vmem:[%s832 + $0x23c] sm:$0xf]
                  %993 = vst [vmem:[%s833 + $0x13c] sm:$0xf] %v992
                  %v994 = vld [vmem:[%s832 + $0x240] sm:$0xf]
                  %995 = vst [vmem:[%s833 + $0x140] sm:$0xf] %v994
                  %v996 = vld [vmem:[%s832 + $0x244] sm:$0xf]
                  %997 = vst [vmem:[%s833 + $0x144] sm:$0xf] %v996
                  %v998 = vld [vmem:[%s832 + $0x248] sm:$0xf]
                  %999 = vst [vmem:[%s833 + $0x148] sm:$0xf] %v998
                  %v1000 = vld [vmem:[%s832 + $0x24c] sm:$0xf]
                  %1001 = vst [vmem:[%s833 + $0x14c] sm:$0xf] %v1000
                  %v1002 = vld [vmem:[%s832 + $0x250] sm:$0xf]
                  %1003 = vst [vmem:[%s833 + $0x150] sm:$0xf] %v1002
                  %v1004 = vld [vmem:[%s832 + $0x254] sm:$0xf]
                  %1005 = vst [vmem:[%s833 + $0x154] sm:$0xf] %v1004
                  %v1006 = vld [vmem:[%s832 + $0x258] sm:$0xf]
                  %1007 = vst [vmem:[%s833 + $0x158] sm:$0xf] %v1006
                  %v1008 = vld [vmem:[%s832 + $0x25c] sm:$0xf]
                  %1009 = vst [vmem:[%s833 + $0x15c] sm:$0xf] %v1008
                  %v1010 = vld [vmem:[%s832 + $0x260] sm:$0xf]
                  %1011 = vst [vmem:[%s833 + $0x160] sm:$0xf] %v1010
                  %v1012 = vld [vmem:[%s832 + $0x264] sm:$0xf]
                  %1013 = vst [vmem:[%s833 + $0x164] sm:$0xf] %v1012
                  %v1014 = vld [vmem:[%s832 + $0x268] sm:$0xf]
                  %1015 = vst [vmem:[%s833 + $0x168] sm:$0xf] %v1014
                  %v1016 = vld [vmem:[%s832 + $0x26c] sm:$0xf]
                  %1017 = vst [vmem:[%s833 + $0x16c] sm:$0xf] %v1016
                  %v1018 = vld [vmem:[%s832 + $0x270] sm:$0xf]
                  %1019 = vst [vmem:[%s833 + $0x170] sm:$0xf] %v1018
                  %v1020 = vld [vmem:[%s832 + $0x274] sm:$0xf]
                  %1021 = vst [vmem:[%s833 + $0x174] sm:$0xf] %v1020
                  %v1022 = vld [vmem:[%s832 + $0x278] sm:$0xf]
                  %1023 = vst [vmem:[%s833 + $0x178] sm:$0xf] %v1022
                  %v1024 = vld [vmem:[%s832 + $0x27c] sm:$0xf]
                  %1025 = vst [vmem:[%s833 + $0x17c] sm:$0xf] %v1024
                  %v1026 = vld [vmem:[%s832 + $0x280] sm:$0xf]
                  %1027 = vst [vmem:[%s833 + $0x180] sm:$0xf] %v1026
                  %v1028 = vld [vmem:[%s832 + $0x284] sm:$0xf]
                  %1029 = vst [vmem:[%s833 + $0x184] sm:$0xf] %v1028
                  %v1030 = vld [vmem:[%s832 + $0x288] sm:$0xf]
                  %1031 = vst [vmem:[%s833 + $0x188] sm:$0xf] %v1030
                  %v1032 = vld [vmem:[%s832 + $0x28c] sm:$0xf]
                  %1033 = vst [vmem:[%s833 + $0x18c] sm:$0xf] %v1032
                  %v1034 = vld [vmem:[%s832 + $0x290] sm:$0xf]
                  %1035 = vst [vmem:[%s833 + $0x190] sm:$0xf] %v1034
                  %v1036 = vld [vmem:[%s832 + $0x294] sm:$0xf]
                  %1037 = vst [vmem:[%s833 + $0x194] sm:$0xf] %v1036
                  %v1038 = vld [vmem:[%s832 + $0x298] sm:$0xf]
                  %1039 = vst [vmem:[%s833 + $0x198] sm:$0xf] %v1038
                  %v1040 = vld [vmem:[%s832 + $0x29c] sm:$0xf]
                  %1041 = vst [vmem:[%s833 + $0x19c] sm:$0xf] %v1040
                  %v1042 = vld [vmem:[%s832 + $0x2a0] sm:$0xf]
                  %1043 = vst [vmem:[%s833 + $0x1a0] sm:$0xf] %v1042
                  %v1044 = vld [vmem:[%s832 + $0x2a4] sm:$0xf]
                  %1045 = vst [vmem:[%s833 + $0x1a4] sm:$0xf] %v1044
                  %v1046 = vld [vmem:[%s832 + $0x2a8] sm:$0xf]
                  %1047 = vst [vmem:[%s833 + $0x1a8] sm:$0xf] %v1046
                  %v1048 = vld [vmem:[%s832 + $0x2ac] sm:$0xf]
                  %1049 = vst [vmem:[%s833 + $0x1ac] sm:$0xf] %v1048
                  %v1050 = vld [vmem:[%s832 + $0x2b0] sm:$0xf]
                  %1051 = vst [vmem:[%s833 + $0x1b0] sm:$0xf] %v1050
                  %v1052 = vld [vmem:[%s832 + $0x2b4] sm:$0xf]
                  %1053 = vst [vmem:[%s833 + $0x1b4] sm:$0xf] %v1052
                  %v1054 = vld [vmem:[%s832 + $0x2b8] sm:$0xf]
                  %1055 = vst [vmem:[%s833 + $0x1b8] sm:$0xf] %v1054
                  %v1056 = vld [vmem:[%s832 + $0x2bc] sm:$0xf]
                  %1057 = vst [vmem:[%s833 + $0x1bc] sm:$0xf] %v1056
                  %v1058 = vld [vmem:[%s832 + $0x2c0] sm:$0xf]
                  %1059 = vst [vmem:[%s833 + $0x1c0] sm:$0xf] %v1058
                  %v1060 = vld [vmem:[%s832 + $0x2c4] sm:$0xf]
                  %1061 = vst [vmem:[%s833 + $0x1c4] sm:$0xf] %v1060
                  %v1062 = vld [vmem:[%s832 + $0x2c8] sm:$0xf]
                  %1063 = vst [vmem:[%s833 + $0x1c8] sm:$0xf] %v1062
                  %v1064 = vld [vmem:[%s832 + $0x2cc] sm:$0xf]
                  %1065 = vst [vmem:[%s833 + $0x1cc] sm:$0xf] %v1064
                  %v1066 = vld [vmem:[%s832 + $0x2d0] sm:$0xf]
                  %1067 = vst [vmem:[%s833 + $0x1d0] sm:$0xf] %v1066
                  %v1068 = vld [vmem:[%s832 + $0x2d4] sm:$0xf]
                  %1069 = vst [vmem:[%s833 + $0x1d4] sm:$0xf] %v1068
                  %v1070 = vld [vmem:[%s832 + $0x2d8] sm:$0xf]
                  %1071 = vst [vmem:[%s833 + $0x1d8] sm:$0xf] %v1070
                  %v1072 = vld [vmem:[%s832 + $0x2dc] sm:$0xf]
                  %1073 = vst [vmem:[%s833 + $0x1dc] sm:$0xf] %v1072
                  %v1074 = vld [vmem:[%s832 + $0x2e0] sm:$0xf]
                  %1075 = vst [vmem:[%s833 + $0x1e0] sm:$0xf] %v1074
                  %v1076 = vld [vmem:[%s832 + $0x2e4] sm:$0xf]
                  %1077 = vst [vmem:[%s833 + $0x1e4] sm:$0xf] %v1076
                  %v1078 = vld [vmem:[%s832 + $0x2e8] sm:$0xf]
                  %1079 = vst [vmem:[%s833 + $0x1e8] sm:$0xf] %v1078
                  %v1080 = vld [vmem:[%s832 + $0x2ec] sm:$0xf]
                  %1081 = vst [vmem:[%s833 + $0x1ec] sm:$0xf] %v1080
                  %v1082 = vld [vmem:[%s832 + $0x2f0] sm:$0xf]
                  %1083 = vst [vmem:[%s833 + $0x1f0] sm:$0xf] %v1082
                  %v1084 = vld [vmem:[%s832 + $0x2f4] sm:$0xf]
                  %1085 = vst [vmem:[%s833 + $0x1f4] sm:$0xf] %v1084
                  %v1086 = vld [vmem:[%s832 + $0x2f8] sm:$0xf]
                  %1087 = vst [vmem:[%s833 + $0x1f8] sm:$0xf] %v1086
                  %v1088 = vld [vmem:[%s832 + $0x2fc] sm:$0xf]
                  %1089 = vst [vmem:[%s833 + $0x1fc] sm:$0xf] %v1088
                  %v1090 = vld [vmem:[%s832 + $0x400] sm:$0xf]
                  %1091 = vst [vmem:[%s833 + $0x200] sm:$0xf] %v1090
                  %v1092 = vld [vmem:[%s832 + $0x404] sm:$0xf]
                  %1093 = vst [vmem:[%s833 + $0x204] sm:$0xf] %v1092
                  %v1094 = vld [vmem:[%s832 + $0x408] sm:$0xf]
                  %1095 = vst [vmem:[%s833 + $0x208] sm:$0xf] %v1094
                  %v1096 = vld [vmem:[%s832 + $0x40c] sm:$0xf]
                  %1097 = vst [vmem:[%s833 + $0x20c] sm:$0xf] %v1096
                  %v1098 = vld [vmem:[%s832 + $0x410] sm:$0xf]
                  %1099 = vst [vmem:[%s833 + $0x210] sm:$0xf] %v1098
                  %v1100 = vld [vmem:[%s832 + $0x414] sm:$0xf]
                  %1101 = vst [vmem:[%s833 + $0x214] sm:$0xf] %v1100
                  %v1102 = vld [vmem:[%s832 + $0x418] sm:$0xf]
                  %1103 = vst [vmem:[%s833 + $0x218] sm:$0xf] %v1102
                  %v1104 = vld [vmem:[%s832 + $0x41c] sm:$0xf]
                  %1105 = vst [vmem:[%s833 + $0x21c] sm:$0xf] %v1104
                  %v1106 = vld [vmem:[%s832 + $0x420] sm:$0xf]
                  %1107 = vst [vmem:[%s833 + $0x220] sm:$0xf] %v1106
                  %v1108 = vld [vmem:[%s832 + $0x424] sm:$0xf]
                  %1109 = vst [vmem:[%s833 + $0x224] sm:$0xf] %v1108
                  %v1110 = vld [vmem:[%s832 + $0x428] sm:$0xf]
                  %1111 = vst [vmem:[%s833 + $0x228] sm:$0xf] %v1110
                  %v1112 = vld [vmem:[%s832 + $0x42c] sm:$0xf]
                  %1113 = vst [vmem:[%s833 + $0x22c] sm:$0xf] %v1112
                  %v1114 = vld [vmem:[%s832 + $0x430] sm:$0xf]
                  %1115 = vst [vmem:[%s833 + $0x230] sm:$0xf] %v1114
                  %v1116 = vld [vmem:[%s832 + $0x434] sm:$0xf]
                  %1117 = vst [vmem:[%s833 + $0x234] sm:$0xf] %v1116
                  %v1118 = vld [vmem:[%s832 + $0x438] sm:$0xf]
                  %1119 = vst [vmem:[%s833 + $0x238] sm:$0xf] %v1118
                  %v1120 = vld [vmem:[%s832 + $0x43c] sm:$0xf]
                  %1121 = vst [vmem:[%s833 + $0x23c] sm:$0xf] %v1120
                  %v1122 = vld [vmem:[%s832 + $0x440] sm:$0xf]
                  %1123 = vst [vmem:[%s833 + $0x240] sm:$0xf] %v1122
                  %v1124 = vld [vmem:[%s832 + $0x444] sm:$0xf]
                  %1125 = vst [vmem:[%s833 + $0x244] sm:$0xf] %v1124
                  %v1126 = vld [vmem:[%s832 + $0x448] sm:$0xf]
                  %1127 = vst [vmem:[%s833 + $0x248] sm:$0xf] %v1126
                  %v1128 = vld [vmem:[%s832 + $0x44c] sm:$0xf]
                  %1129 = vst [vmem:[%s833 + $0x24c] sm:$0xf] %v1128
                  %v1130 = vld [vmem:[%s832 + $0x450] sm:$0xf]
                  %1131 = vst [vmem:[%s833 + $0x250] sm:$0xf] %v1130
                  %v1132 = vld [vmem:[%s832 + $0x454] sm:$0xf]
                  %1133 = vst [vmem:[%s833 + $0x254] sm:$0xf] %v1132
                  %v1134 = vld [vmem:[%s832 + $0x458] sm:$0xf]
                  %1135 = vst [vmem:[%s833 + $0x258] sm:$0xf] %v1134
                  %v1136 = vld [vmem:[%s832 + $0x45c] sm:$0xf]
                  %1137 = vst [vmem:[%s833 + $0x25c] sm:$0xf] %v1136
                  %v1138 = vld [vmem:[%s832 + $0x460] sm:$0xf]
                  %1139 = vst [vmem:[%s833 + $0x260] sm:$0xf] %v1138
                  %v1140 = vld [vmem:[%s832 + $0x464] sm:$0xf]
                  %1141 = vst [vmem:[%s833 + $0x264] sm:$0xf] %v1140
                  %v1142 = vld [vmem:[%s832 + $0x468] sm:$0xf]
                  %1143 = vst [vmem:[%s833 + $0x268] sm:$0xf] %v1142
                  %v1144 = vld [vmem:[%s832 + $0x46c] sm:$0xf]
                  %1145 = vst [vmem:[%s833 + $0x26c] sm:$0xf] %v1144
                  %v1146 = vld [vmem:[%s832 + $0x470] sm:$0xf]
                  %1147 = vst [vmem:[%s833 + $0x270] sm:$0xf] %v1146
                  %v1148 = vld [vmem:[%s832 + $0x474] sm:$0xf]
                  %1149 = vst [vmem:[%s833 + $0x274] sm:$0xf] %v1148
                  %v1150 = vld [vmem:[%s832 + $0x478] sm:$0xf]
                  %1151 = vst [vmem:[%s833 + $0x278] sm:$0xf] %v1150
                  %v1152 = vld [vmem:[%s832 + $0x47c] sm:$0xf]
                  %1153 = vst [vmem:[%s833 + $0x27c] sm:$0xf] %v1152
                  %v1154 = vld [vmem:[%s832 + $0x480] sm:$0xf]
                  %1155 = vst [vmem:[%s833 + $0x280] sm:$0xf] %v1154
                  %v1156 = vld [vmem:[%s832 + $0x484] sm:$0xf]
                  %1157 = vst [vmem:[%s833 + $0x284] sm:$0xf] %v1156
                  %v1158 = vld [vmem:[%s832 + $0x488] sm:$0xf]
                  %1159 = vst [vmem:[%s833 + $0x288] sm:$0xf] %v1158
                  %v1160 = vld [vmem:[%s832 + $0x48c] sm:$0xf]
                  %1161 = vst [vmem:[%s833 + $0x28c] sm:$0xf] %v1160
                  %v1162 = vld [vmem:[%s832 + $0x490] sm:$0xf]
                  %1163 = vst [vmem:[%s833 + $0x290] sm:$0xf] %v1162
                  %v1164 = vld [vmem:[%s832 + $0x494] sm:$0xf]
                  %1165 = vst [vmem:[%s833 + $0x294] sm:$0xf] %v1164
                  %v1166 = vld [vmem:[%s832 + $0x498] sm:$0xf]
                  %1167 = vst [vmem:[%s833 + $0x298] sm:$0xf] %v1166
                  %v1168 = vld [vmem:[%s832 + $0x49c] sm:$0xf]
                  %1169 = vst [vmem:[%s833 + $0x29c] sm:$0xf] %v1168
                  %v1170 = vld [vmem:[%s832 + $0x4a0] sm:$0xf]
                  %1171 = vst [vmem:[%s833 + $0x2a0] sm:$0xf] %v1170
                  %v1172 = vld [vmem:[%s832 + $0x4a4] sm:$0xf]
                  %1173 = vst [vmem:[%s833 + $0x2a4] sm:$0xf] %v1172
                  %v1174 = vld [vmem:[%s832 + $0x4a8] sm:$0xf]
                  %1175 = vst [vmem:[%s833 + $0x2a8] sm:$0xf] %v1174
                  %v1176 = vld [vmem:[%s832 + $0x4ac] sm:$0xf]
                  %1177 = vst [vmem:[%s833 + $0x2ac] sm:$0xf] %v1176
                  %v1178 = vld [vmem:[%s832 + $0x4b0] sm:$0xf]
                  %1179 = vst [vmem:[%s833 + $0x2b0] sm:$0xf] %v1178
                  %v1180 = vld [vmem:[%s832 + $0x4b4] sm:$0xf]
                  %1181 = vst [vmem:[%s833 + $0x2b4] sm:$0xf] %v1180
                  %v1182 = vld [vmem:[%s832 + $0x4b8] sm:$0xf]
                  %1183 = vst [vmem:[%s833 + $0x2b8] sm:$0xf] %v1182
                  %v1184 = vld [vmem:[%s832 + $0x4bc] sm:$0xf]
                  %1185 = vst [vmem:[%s833 + $0x2bc] sm:$0xf] %v1184
                  %v1186 = vld [vmem:[%s832 + $0x4c0] sm:$0xf]
                  %1187 = vst [vmem:[%s833 + $0x2c0] sm:$0xf] %v1186
                  %v1188 = vld [vmem:[%s832 + $0x4c4] sm:$0xf]
                  %1189 = vst [vmem:[%s833 + $0x2c4] sm:$0xf] %v1188
                  %v1190 = vld [vmem:[%s832 + $0x4c8] sm:$0xf]
                  %1191 = vst [vmem:[%s833 + $0x2c8] sm:$0xf] %v1190
                  %v1192 = vld [vmem:[%s832 + $0x4cc] sm:$0xf]
                  %1193 = vst [vmem:[%s833 + $0x2cc] sm:$0xf] %v1192
                  %v1194 = vld [vmem:[%s832 + $0x4d0] sm:$0xf]
                  %1195 = vst [vmem:[%s833 + $0x2d0] sm:$0xf] %v1194
                  %v1196 = vld [vmem:[%s832 + $0x4d4] sm:$0xf]
                  %1197 = vst [vmem:[%s833 + $0x2d4] sm:$0xf] %v1196
                  %v1198 = vld [vmem:[%s832 + $0x4d8] sm:$0xf]
                  %1199 = vst [vmem:[%s833 + $0x2d8] sm:$0xf] %v1198
                  %v1200 = vld [vmem:[%s832 + $0x4dc] sm:$0xf]
                  %1201 = vst [vmem:[%s833 + $0x2dc] sm:$0xf] %v1200
                  %v1202 = vld [vmem:[%s832 + $0x4e0] sm:$0xf]
                  %1203 = vst [vmem:[%s833 + $0x2e0] sm:$0xf] %v1202
                  %v1204 = vld [vmem:[%s832 + $0x4e4] sm:$0xf]
                  %1205 = vst [vmem:[%s833 + $0x2e4] sm:$0xf] %v1204
                  %v1206 = vld [vmem:[%s832 + $0x4e8] sm:$0xf]
                  %1207 = vst [vmem:[%s833 + $0x2e8] sm:$0xf] %v1206
                  %v1208 = vld [vmem:[%s832 + $0x4ec] sm:$0xf]
                  %1209 = vst [vmem:[%s833 + $0x2ec] sm:$0xf] %v1208
                  %v1210 = vld [vmem:[%s832 + $0x4f0] sm:$0xf]
                  %1211 = vst [vmem:[%s833 + $0x2f0] sm:$0xf] %v1210
                  %v1212 = vld [vmem:[%s832 + $0x4f4] sm:$0xf]
                  %1213 = vst [vmem:[%s833 + $0x2f4] sm:$0xf] %v1212
                  %v1214 = vld [vmem:[%s832 + $0x4f8] sm:$0xf]
                  %1215 = vst [vmem:[%s833 + $0x2f8] sm:$0xf] %v1214
                  %v1216 = vld [vmem:[%s832 + $0x4fc] sm:$0xf]
                  %1217 = vst [vmem:[%s833 + $0x2fc] sm:$0xf] %v1216
                $region132: #{tpu_custom_call.1} parent=119 // loop_footer
                  %s831 = sadd.s32 1, %s827
                $region133: #{tpu_custom_call.1} parent=119 // loop_footer_branch
                  %826 = sbr.rel target = $region129
                $region134: #{tpu_custom_call.1} parent=119 // loop_exit
                  _
              $region120: #{tpu_custom_call.1} parent=104 // pred_fallthru
                _
            $region105: #{tpu_custom_call.1} parent=100 // pred_fallthru
              _
            // Predicated region
            $region106: #{tpu_custom_call.1} parent=100 // pred_check
              _
            $region107: #{tpu_custom_call.1} parent=100 // pred_check_branch
              %421 = sbr.rel (0) target = $region109
            $region108: #{tpu_custom_call.1} parent=100 // pred_region
              loop: start=0, step=1, limit=1
              $region110: #{tpu_custom_call.1} parent=108 // loop_pre_header
                _
              $region111: #{tpu_custom_call.1} parent=108 // loop_header
                %s424 = sphi 0, %s428
                %p425 = scmp.ge.s32.totalorder %s424, 1
                %s429 = sphi %s415, %s415
                %s430 = sphi %s412, %s412
              $region112: #{tpu_custom_call.1} parent=108 // loop_header_branch
                %427 = sbr.rel (%p425) target = $region116
              $region113: #{tpu_custom_call.1} parent=108 // loop_body
                %v431 = vld [vmem:[%s429] sm:$0xf]
                %432 = vst [vmem:[%s430] sm:$0xf] %v431
                %v433 = vld [vmem:[%s429 + $0x4] sm:$0xf]
                %434 = vst [vmem:[%s430 + $0x4] sm:$0xf] %v433
                %v435 = vld [vmem:[%s429 + $0x8] sm:$0xf]
                %436 = vst [vmem:[%s430 + $0x8] sm:$0xf] %v435
                %v437 = vld [vmem:[%s429 + $0xc] sm:$0xf]
                %438 = vst [vmem:[%s430 + $0xc] sm:$0xf] %v437
                %v439 = vld [vmem:[%s429 + $0x10] sm:$0xf]
                %440 = vst [vmem:[%s430 + $0x10] sm:$0xf] %v439
                %v441 = vld [vmem:[%s429 + $0x14] sm:$0xf]
                %442 = vst [vmem:[%s430 + $0x14] sm:$0xf] %v441
                %v443 = vld [vmem:[%s429 + $0x18] sm:$0xf]
                %444 = vst [vmem:[%s430 + $0x18] sm:$0xf] %v443
                %v445 = vld [vmem:[%s429 + $0x1c] sm:$0xf]
                %446 = vst [vmem:[%s430 + $0x1c] sm:$0xf] %v445
                %v447 = vld [vmem:[%s429 + $0x20] sm:$0xf]
                %448 = vst [vmem:[%s430 + $0x20] sm:$0xf] %v447
                %v449 = vld [vmem:[%s429 + $0x24] sm:$0xf]
                %450 = vst [vmem:[%s430 + $0x24] sm:$0xf] %v449
                %v451 = vld [vmem:[%s429 + $0x28] sm:$0xf]
                %452 = vst [vmem:[%s430 + $0x28] sm:$0xf] %v451
                %v453 = vld [vmem:[%s429 + $0x2c] sm:$0xf]
                %454 = vst [vmem:[%s430 + $0x2c] sm:$0xf] %v453
                %v455 = vld [vmem:[%s429 + $0x30] sm:$0xf]
                %456 = vst [vmem:[%s430 + $0x30] sm:$0xf] %v455
                %v457 = vld [vmem:[%s429 + $0x34] sm:$0xf]
                %458 = vst [vmem:[%s430 + $0x34] sm:$0xf] %v457
                %v459 = vld [vmem:[%s429 + $0x38] sm:$0xf]
                %460 = vst [vmem:[%s430 + $0x38] sm:$0xf] %v459
                %v461 = vld [vmem:[%s429 + $0x3c] sm:$0xf]
                %462 = vst [vmem:[%s430 + $0x3c] sm:$0xf] %v461
                %v463 = vld [vmem:[%s429 + $0x40] sm:$0xf]
                %464 = vst [vmem:[%s430 + $0x40] sm:$0xf] %v463
                %v465 = vld [vmem:[%s429 + $0x44] sm:$0xf]
                %466 = vst [vmem:[%s430 + $0x44] sm:$0xf] %v465
                %v467 = vld [vmem:[%s429 + $0x48] sm:$0xf]
                %468 = vst [vmem:[%s430 + $0x48] sm:$0xf] %v467
                %v469 = vld [vmem:[%s429 + $0x4c] sm:$0xf]
                %470 = vst [vmem:[%s430 + $0x4c] sm:$0xf] %v469
                %v471 = vld [vmem:[%s429 + $0x50] sm:$0xf]
                %472 = vst [vmem:[%s430 + $0x50] sm:$0xf] %v471
                %v473 = vld [vmem:[%s429 + $0x54] sm:$0xf]
                %474 = vst [vmem:[%s430 + $0x54] sm:$0xf] %v473
                %v475 = vld [vmem:[%s429 + $0x58] sm:$0xf]
                %476 = vst [vmem:[%s430 + $0x58] sm:$0xf] %v475
                %v477 = vld [vmem:[%s429 + $0x5c] sm:$0xf]
                %478 = vst [vmem:[%s430 + $0x5c] sm:$0xf] %v477
                %v479 = vld [vmem:[%s429 + $0x60] sm:$0xf]
                %480 = vst [vmem:[%s430 + $0x60] sm:$0xf] %v479
                %v481 = vld [vmem:[%s429 + $0x64] sm:$0xf]
                %482 = vst [vmem:[%s430 + $0x64] sm:$0xf] %v481
                %v483 = vld [vmem:[%s429 + $0x68] sm:$0xf]
                %484 = vst [vmem:[%s430 + $0x68] sm:$0xf] %v483
                %v485 = vld [vmem:[%s429 + $0x6c] sm:$0xf]
                %486 = vst [vmem:[%s430 + $0x6c] sm:$0xf] %v485
                %v487 = vld [vmem:[%s429 + $0x70] sm:$0xf]
                %488 = vst [vmem:[%s430 + $0x70] sm:$0xf] %v487
                %v489 = vld [vmem:[%s429 + $0x74] sm:$0xf]
                %490 = vst [vmem:[%s430 + $0x74] sm:$0xf] %v489
                %v491 = vld [vmem:[%s429 + $0x78] sm:$0xf]
                %492 = vst [vmem:[%s430 + $0x78] sm:$0xf] %v491
                %v493 = vld [vmem:[%s429 + $0x7c] sm:$0xf]
                %494 = vst [vmem:[%s430 + $0x7c] sm:$0xf] %v493
                %v495 = vld [vmem:[%s429 + $0x80] sm:$0xf]
                %496 = vst [vmem:[%s430 + $0x80] sm:$0xf] %v495
                %v497 = vld [vmem:[%s429 + $0x84] sm:$0xf]
                %498 = vst [vmem:[%s430 + $0x84] sm:$0xf] %v497
                %v499 = vld [vmem:[%s429 + $0x88] sm:$0xf]
                %500 = vst [vmem:[%s430 + $0x88] sm:$0xf] %v499
                %v501 = vld [vmem:[%s429 + $0x8c] sm:$0xf]
                %502 = vst [vmem:[%s430 + $0x8c] sm:$0xf] %v501
                %v503 = vld [vmem:[%s429 + $0x90] sm:$0xf]
                %504 = vst [vmem:[%s430 + $0x90] sm:$0xf] %v503
                %v505 = vld [vmem:[%s429 + $0x94] sm:$0xf]
                %506 = vst [vmem:[%s430 + $0x94] sm:$0xf] %v505
                %v507 = vld [vmem:[%s429 + $0x98] sm:$0xf]
                %508 = vst [vmem:[%s430 + $0x98] sm:$0xf] %v507
                %v509 = vld [vmem:[%s429 + $0x9c] sm:$0xf]
                %510 = vst [vmem:[%s430 + $0x9c] sm:$0xf] %v509
                %v511 = vld [vmem:[%s429 + $0xa0] sm:$0xf]
                %512 = vst [vmem:[%s430 + $0xa0] sm:$0xf] %v511
                %v513 = vld [vmem:[%s429 + $0xa4] sm:$0xf]
                %514 = vst [vmem:[%s430 + $0xa4] sm:$0xf] %v513
                %v515 = vld [vmem:[%s429 + $0xa8] sm:$0xf]
                %516 = vst [vmem:[%s430 + $0xa8] sm:$0xf] %v515
                %v517 = vld [vmem:[%s429 + $0xac] sm:$0xf]
                %518 = vst [vmem:[%s430 + $0xac] sm:$0xf] %v517
                %v519 = vld [vmem:[%s429 + $0xb0] sm:$0xf]
                %520 = vst [vmem:[%s430 + $0xb0] sm:$0xf] %v519
                %v521 = vld [vmem:[%s429 + $0xb4] sm:$0xf]
                %522 = vst [vmem:[%s430 + $0xb4] sm:$0xf] %v521
                %v523 = vld [vmem:[%s429 + $0xb8] sm:$0xf]
                %524 = vst [vmem:[%s430 + $0xb8] sm:$0xf] %v523
                %v525 = vld [vmem:[%s429 + $0xbc] sm:$0xf]
                %526 = vst [vmem:[%s430 + $0xbc] sm:$0xf] %v525
                %v527 = vld [vmem:[%s429 + $0xc0] sm:$0xf]
                %528 = vst [vmem:[%s430 + $0xc0] sm:$0xf] %v527
                %v529 = vld [vmem:[%s429 + $0xc4] sm:$0xf]
                %530 = vst [vmem:[%s430 + $0xc4] sm:$0xf] %v529
                %v531 = vld [vmem:[%s429 + $0xc8] sm:$0xf]
                %532 = vst [vmem:[%s430 + $0xc8] sm:$0xf] %v531
                %v533 = vld [vmem:[%s429 + $0xcc] sm:$0xf]
                %534 = vst [vmem:[%s430 + $0xcc] sm:$0xf] %v533
                %v535 = vld [vmem:[%s429 + $0xd0] sm:$0xf]
                %536 = vst [vmem:[%s430 + $0xd0] sm:$0xf] %v535
                %v537 = vld [vmem:[%s429 + $0xd4] sm:$0xf]
                %538 = vst [vmem:[%s430 + $0xd4] sm:$0xf] %v537
                %v539 = vld [vmem:[%s429 + $0xd8] sm:$0xf]
                %540 = vst [vmem:[%s430 + $0xd8] sm:$0xf] %v539
                %v541 = vld [vmem:[%s429 + $0xdc] sm:$0xf]
                %542 = vst [vmem:[%s430 + $0xdc] sm:$0xf] %v541
                %v543 = vld [vmem:[%s429 + $0xe0] sm:$0xf]
                %544 = vst [vmem:[%s430 + $0xe0] sm:$0xf] %v543
                %v545 = vld [vmem:[%s429 + $0xe4] sm:$0xf]
                %546 = vst [vmem:[%s430 + $0xe4] sm:$0xf] %v545
                %v547 = vld [vmem:[%s429 + $0xe8] sm:$0xf]
                %548 = vst [vmem:[%s430 + $0xe8] sm:$0xf] %v547
                %v549 = vld [vmem:[%s429 + $0xec] sm:$0xf]
                %550 = vst [vmem:[%s430 + $0xec] sm:$0xf] %v549
                %v551 = vld [vmem:[%s429 + $0xf0] sm:$0xf]
                %552 = vst [vmem:[%s430 + $0xf0] sm:$0xf] %v551
                %v553 = vld [vmem:[%s429 + $0xf4] sm:$0xf]
                %554 = vst [vmem:[%s430 + $0xf4] sm:$0xf] %v553
                %v555 = vld [vmem:[%s429 + $0xf8] sm:$0xf]
                %556 = vst [vmem:[%s430 + $0xf8] sm:$0xf] %v555
                %v557 = vld [vmem:[%s429 + $0xfc] sm:$0xf]
                %558 = vst [vmem:[%s430 + $0xfc] sm:$0xf] %v557
                %v559 = vld [vmem:[%s429 + $0x200] sm:$0xf]
                %560 = vst [vmem:[%s430 + $0x100] sm:$0xf] %v559
                %v561 = vld [vmem:[%s429 + $0x204] sm:$0xf]
                %562 = vst [vmem:[%s430 + $0x104] sm:$0xf] %v561
                %v563 = vld [vmem:[%s429 + $0x208] sm:$0xf]
                %564 = vst [vmem:[%s430 + $0x108] sm:$0xf] %v563
                %v565 = vld [vmem:[%s429 + $0x20c] sm:$0xf]
                %566 = vst [vmem:[%s430 + $0x10c] sm:$0xf] %v565
                %v567 = vld [vmem:[%s429 + $0x210] sm:$0xf]
                %568 = vst [vmem:[%s430 + $0x110] sm:$0xf] %v567
                %v569 = vld [vmem:[%s429 + $0x214] sm:$0xf]
                %570 = vst [vmem:[%s430 + $0x114] sm:$0xf] %v569
                %v571 = vld [vmem:[%s429 + $0x218] sm:$0xf]
                %572 = vst [vmem:[%s430 + $0x118] sm:$0xf] %v571
                %v573 = vld [vmem:[%s429 + $0x21c] sm:$0xf]
                %574 = vst [vmem:[%s430 + $0x11c] sm:$0xf] %v573
                %v575 = vld [vmem:[%s429 + $0x220] sm:$0xf]
                %576 = vst [vmem:[%s430 + $0x120] sm:$0xf] %v575
                %v577 = vld [vmem:[%s429 + $0x224] sm:$0xf]
                %578 = vst [vmem:[%s430 + $0x124] sm:$0xf] %v577
                %v579 = vld [vmem:[%s429 + $0x228] sm:$0xf]
                %580 = vst [vmem:[%s430 + $0x128] sm:$0xf] %v579
                %v581 = vld [vmem:[%s429 + $0x22c] sm:$0xf]
                %582 = vst [vmem:[%s430 + $0x12c] sm:$0xf] %v581
                %v583 = vld [vmem:[%s429 + $0x230] sm:$0xf]
                %584 = vst [vmem:[%s430 + $0x130] sm:$0xf] %v583
                %v585 = vld [vmem:[%s429 + $0x234] sm:$0xf]
                %586 = vst [vmem:[%s430 + $0x134] sm:$0xf] %v585
                %v587 = vld [vmem:[%s429 + $0x238] sm:$0xf]
                %588 = vst [vmem:[%s430 + $0x138] sm:$0xf] %v587
                %v589 = vld [vmem:[%s429 + $0x23c] sm:$0xf]
                %590 = vst [vmem:[%s430 + $0x13c] sm:$0xf] %v589
                %v591 = vld [vmem:[%s429 + $0x240] sm:$0xf]
                %592 = vst [vmem:[%s430 + $0x140] sm:$0xf] %v591
                %v593 = vld [vmem:[%s429 + $0x244] sm:$0xf]
                %594 = vst [vmem:[%s430 + $0x144] sm:$0xf] %v593
                %v595 = vld [vmem:[%s429 + $0x248] sm:$0xf]
                %596 = vst [vmem:[%s430 + $0x148] sm:$0xf] %v595
                %v597 = vld [vmem:[%s429 + $0x24c] sm:$0xf]
                %598 = vst [vmem:[%s430 + $0x14c] sm:$0xf] %v597
                %v599 = vld [vmem:[%s429 + $0x250] sm:$0xf]
                %600 = vst [vmem:[%s430 + $0x150] sm:$0xf] %v599
                %v601 = vld [vmem:[%s429 + $0x254] sm:$0xf]
                %602 = vst [vmem:[%s430 + $0x154] sm:$0xf] %v601
                %v603 = vld [vmem:[%s429 + $0x258] sm:$0xf]
                %604 = vst [vmem:[%s430 + $0x158] sm:$0xf] %v603
                %v605 = vld [vmem:[%s429 + $0x25c] sm:$0xf]
                %606 = vst [vmem:[%s430 + $0x15c] sm:$0xf] %v605
                %v607 = vld [vmem:[%s429 + $0x260] sm:$0xf]
                %608 = vst [vmem:[%s430 + $0x160] sm:$0xf] %v607
                %v609 = vld [vmem:[%s429 + $0x264] sm:$0xf]
                %610 = vst [vmem:[%s430 + $0x164] sm:$0xf] %v609
                %v611 = vld [vmem:[%s429 + $0x268] sm:$0xf]
                %612 = vst [vmem:[%s430 + $0x168] sm:$0xf] %v611
                %v613 = vld [vmem:[%s429 + $0x26c] sm:$0xf]
                %614 = vst [vmem:[%s430 + $0x16c] sm:$0xf] %v613
                %v615 = vld [vmem:[%s429 + $0x270] sm:$0xf]
                %616 = vst [vmem:[%s430 + $0x170] sm:$0xf] %v615
                %v617 = vld [vmem:[%s429 + $0x274] sm:$0xf]
                %618 = vst [vmem:[%s430 + $0x174] sm:$0xf] %v617
                %v619 = vld [vmem:[%s429 + $0x278] sm:$0xf]
                %620 = vst [vmem:[%s430 + $0x178] sm:$0xf] %v619
                %v621 = vld [vmem:[%s429 + $0x27c] sm:$0xf]
                %622 = vst [vmem:[%s430 + $0x17c] sm:$0xf] %v621
                %v623 = vld [vmem:[%s429 + $0x280] sm:$0xf]
                %624 = vst [vmem:[%s430 + $0x180] sm:$0xf] %v623
                %v625 = vld [vmem:[%s429 + $0x284] sm:$0xf]
                %626 = vst [vmem:[%s430 + $0x184] sm:$0xf] %v625
                %v627 = vld [vmem:[%s429 + $0x288] sm:$0xf]
                %628 = vst [vmem:[%s430 + $0x188] sm:$0xf] %v627
                %v629 = vld [vmem:[%s429 + $0x28c] sm:$0xf]
                %630 = vst [vmem:[%s430 + $0x18c] sm:$0xf] %v629
                %v631 = vld [vmem:[%s429 + $0x290] sm:$0xf]
                %632 = vst [vmem:[%s430 + $0x190] sm:$0xf] %v631
                %v633 = vld [vmem:[%s429 + $0x294] sm:$0xf]
                %634 = vst [vmem:[%s430 + $0x194] sm:$0xf] %v633
                %v635 = vld [vmem:[%s429 + $0x298] sm:$0xf]
                %636 = vst [vmem:[%s430 + $0x198] sm:$0xf] %v635
                %v637 = vld [vmem:[%s429 + $0x29c] sm:$0xf]
                %638 = vst [vmem:[%s430 + $0x19c] sm:$0xf] %v637
                %v639 = vld [vmem:[%s429 + $0x2a0] sm:$0xf]
                %640 = vst [vmem:[%s430 + $0x1a0] sm:$0xf] %v639
                %v641 = vld [vmem:[%s429 + $0x2a4] sm:$0xf]
                %642 = vst [vmem:[%s430 + $0x1a4] sm:$0xf] %v641
                %v643 = vld [vmem:[%s429 + $0x2a8] sm:$0xf]
                %644 = vst [vmem:[%s430 + $0x1a8] sm:$0xf] %v643
                %v645 = vld [vmem:[%s429 + $0x2ac] sm:$0xf]
                %646 = vst [vmem:[%s430 + $0x1ac] sm:$0xf] %v645
                %v647 = vld [vmem:[%s429 + $0x2b0] sm:$0xf]
                %648 = vst [vmem:[%s430 + $0x1b0] sm:$0xf] %v647
                %v649 = vld [vmem:[%s429 + $0x2b4] sm:$0xf]
                %650 = vst [vmem:[%s430 + $0x1b4] sm:$0xf] %v649
                %v651 = vld [vmem:[%s429 + $0x2b8] sm:$0xf]
                %652 = vst [vmem:[%s430 + $0x1b8] sm:$0xf] %v651
                %v653 = vld [vmem:[%s429 + $0x2bc] sm:$0xf]
                %654 = vst [vmem:[%s430 + $0x1bc] sm:$0xf] %v653
                %v655 = vld [vmem:[%s429 + $0x2c0] sm:$0xf]
                %656 = vst [vmem:[%s430 + $0x1c0] sm:$0xf] %v655
                %v657 = vld [vmem:[%s429 + $0x2c4] sm:$0xf]
                %658 = vst [vmem:[%s430 + $0x1c4] sm:$0xf] %v657
                %v659 = vld [vmem:[%s429 + $0x2c8] sm:$0xf]
                %660 = vst [vmem:[%s430 + $0x1c8] sm:$0xf] %v659
                %v661 = vld [vmem:[%s429 + $0x2cc] sm:$0xf]
                %662 = vst [vmem:[%s430 + $0x1cc] sm:$0xf] %v661
                %v663 = vld [vmem:[%s429 + $0x2d0] sm:$0xf]
                %664 = vst [vmem:[%s430 + $0x1d0] sm:$0xf] %v663
                %v665 = vld [vmem:[%s429 + $0x2d4] sm:$0xf]
                %666 = vst [vmem:[%s430 + $0x1d4] sm:$0xf] %v665
                %v667 = vld [vmem:[%s429 + $0x2d8] sm:$0xf]
                %668 = vst [vmem:[%s430 + $0x1d8] sm:$0xf] %v667
                %v669 = vld [vmem:[%s429 + $0x2dc] sm:$0xf]
                %670 = vst [vmem:[%s430 + $0x1dc] sm:$0xf] %v669
                %v671 = vld [vmem:[%s429 + $0x2e0] sm:$0xf]
                %672 = vst [vmem:[%s430 + $0x1e0] sm:$0xf] %v671
                %v673 = vld [vmem:[%s429 + $0x2e4] sm:$0xf]
                %674 = vst [vmem:[%s430 + $0x1e4] sm:$0xf] %v673
                %v675 = vld [vmem:[%s429 + $0x2e8] sm:$0xf]
                %676 = vst [vmem:[%s430 + $0x1e8] sm:$0xf] %v675
                %v677 = vld [vmem:[%s429 + $0x2ec] sm:$0xf]
                %678 = vst [vmem:[%s430 + $0x1ec] sm:$0xf] %v677
                %v679 = vld [vmem:[%s429 + $0x2f0] sm:$0xf]
                %680 = vst [vmem:[%s430 + $0x1f0] sm:$0xf] %v679
                %v681 = vld [vmem:[%s429 + $0x2f4] sm:$0xf]
                %682 = vst [vmem:[%s430 + $0x1f4] sm:$0xf] %v681
                %v683 = vld [vmem:[%s429 + $0x2f8] sm:$0xf]
                %684 = vst [vmem:[%s430 + $0x1f8] sm:$0xf] %v683
                %v685 = vld [vmem:[%s429 + $0x2fc] sm:$0xf]
                %686 = vst [vmem:[%s430 + $0x1fc] sm:$0xf] %v685
                %v687 = vld [vmem:[%s429 + $0x400] sm:$0xf]
                %688 = vst [vmem:[%s430 + $0x200] sm:$0xf] %v687
                %v689 = vld [vmem:[%s429 + $0x404] sm:$0xf]
                %690 = vst [vmem:[%s430 + $0x204] sm:$0xf] %v689
                %v691 = vld [vmem:[%s429 + $0x408] sm:$0xf]
                %692 = vst [vmem:[%s430 + $0x208] sm:$0xf] %v691
                %v693 = vld [vmem:[%s429 + $0x40c] sm:$0xf]
                %694 = vst [vmem:[%s430 + $0x20c] sm:$0xf] %v693
                %v695 = vld [vmem:[%s429 + $0x410] sm:$0xf]
                %696 = vst [vmem:[%s430 + $0x210] sm:$0xf] %v695
                %v697 = vld [vmem:[%s429 + $0x414] sm:$0xf]
                %698 = vst [vmem:[%s430 + $0x214] sm:$0xf] %v697
                %v699 = vld [vmem:[%s429 + $0x418] sm:$0xf]
                %700 = vst [vmem:[%s430 + $0x218] sm:$0xf] %v699
                %v701 = vld [vmem:[%s429 + $0x41c] sm:$0xf]
                %702 = vst [vmem:[%s430 + $0x21c] sm:$0xf] %v701
                %v703 = vld [vmem:[%s429 + $0x420] sm:$0xf]
                %704 = vst [vmem:[%s430 + $0x220] sm:$0xf] %v703
                %v705 = vld [vmem:[%s429 + $0x424] sm:$0xf]
                %706 = vst [vmem:[%s430 + $0x224] sm:$0xf] %v705
                %v707 = vld [vmem:[%s429 + $0x428] sm:$0xf]
                %708 = vst [vmem:[%s430 + $0x228] sm:$0xf] %v707
                %v709 = vld [vmem:[%s429 + $0x42c] sm:$0xf]
                %710 = vst [vmem:[%s430 + $0x22c] sm:$0xf] %v709
                %v711 = vld [vmem:[%s429 + $0x430] sm:$0xf]
                %712 = vst [vmem:[%s430 + $0x230] sm:$0xf] %v711
                %v713 = vld [vmem:[%s429 + $0x434] sm:$0xf]
                %714 = vst [vmem:[%s430 + $0x234] sm:$0xf] %v713
                %v715 = vld [vmem:[%s429 + $0x438] sm:$0xf]
                %716 = vst [vmem:[%s430 + $0x238] sm:$0xf] %v715
                %v717 = vld [vmem:[%s429 + $0x43c] sm:$0xf]
                %718 = vst [vmem:[%s430 + $0x23c] sm:$0xf] %v717
                %v719 = vld [vmem:[%s429 + $0x440] sm:$0xf]
                %720 = vst [vmem:[%s430 + $0x240] sm:$0xf] %v719
                %v721 = vld [vmem:[%s429 + $0x444] sm:$0xf]
                %722 = vst [vmem:[%s430 + $0x244] sm:$0xf] %v721
                %v723 = vld [vmem:[%s429 + $0x448] sm:$0xf]
                %724 = vst [vmem:[%s430 + $0x248] sm:$0xf] %v723
                %v725 = vld [vmem:[%s429 + $0x44c] sm:$0xf]
                %726 = vst [vmem:[%s430 + $0x24c] sm:$0xf] %v725
                %v727 = vld [vmem:[%s429 + $0x450] sm:$0xf]
                %728 = vst [vmem:[%s430 + $0x250] sm:$0xf] %v727
                %v729 = vld [vmem:[%s429 + $0x454] sm:$0xf]
                %730 = vst [vmem:[%s430 + $0x254] sm:$0xf] %v729
                %v731 = vld [vmem:[%s429 + $0x458] sm:$0xf]
                %732 = vst [vmem:[%s430 + $0x258] sm:$0xf] %v731
                %v733 = vld [vmem:[%s429 + $0x45c] sm:$0xf]
                %734 = vst [vmem:[%s430 + $0x25c] sm:$0xf] %v733
                %v735 = vld [vmem:[%s429 + $0x460] sm:$0xf]
                %736 = vst [vmem:[%s430 + $0x260] sm:$0xf] %v735
                %v737 = vld [vmem:[%s429 + $0x464] sm:$0xf]
                %738 = vst [vmem:[%s430 + $0x264] sm:$0xf] %v737
                %v739 = vld [vmem:[%s429 + $0x468] sm:$0xf]
                %740 = vst [vmem:[%s430 + $0x268] sm:$0xf] %v739
                %v741 = vld [vmem:[%s429 + $0x46c] sm:$0xf]
                %742 = vst [vmem:[%s430 + $0x26c] sm:$0xf] %v741
                %v743 = vld [vmem:[%s429 + $0x470] sm:$0xf]
                %744 = vst [vmem:[%s430 + $0x270] sm:$0xf] %v743
                %v745 = vld [vmem:[%s429 + $0x474] sm:$0xf]
                %746 = vst [vmem:[%s430 + $0x274] sm:$0xf] %v745
                %v747 = vld [vmem:[%s429 + $0x478] sm:$0xf]
                %748 = vst [vmem:[%s430 + $0x278] sm:$0xf] %v747
                %v749 = vld [vmem:[%s429 + $0x47c] sm:$0xf]
                %750 = vst [vmem:[%s430 + $0x27c] sm:$0xf] %v749
                %v751 = vld [vmem:[%s429 + $0x480] sm:$0xf]
                %752 = vst [vmem:[%s430 + $0x280] sm:$0xf] %v751
                %v753 = vld [vmem:[%s429 + $0x484] sm:$0xf]
                %754 = vst [vmem:[%s430 + $0x284] sm:$0xf] %v753
                %v755 = vld [vmem:[%s429 + $0x488] sm:$0xf]
                %756 = vst [vmem:[%s430 + $0x288] sm:$0xf] %v755
                %v757 = vld [vmem:[%s429 + $0x48c] sm:$0xf]
                %758 = vst [vmem:[%s430 + $0x28c] sm:$0xf] %v757
                %v759 = vld [vmem:[%s429 + $0x490] sm:$0xf]
                %760 = vst [vmem:[%s430 + $0x290] sm:$0xf] %v759
                %v761 = vld [vmem:[%s429 + $0x494] sm:$0xf]
                %762 = vst [vmem:[%s430 + $0x294] sm:$0xf] %v761
                %v763 = vld [vmem:[%s429 + $0x498] sm:$0xf]
                %764 = vst [vmem:[%s430 + $0x298] sm:$0xf] %v763
                %v765 = vld [vmem:[%s429 + $0x49c] sm:$0xf]
                %766 = vst [vmem:[%s430 + $0x29c] sm:$0xf] %v765
                %v767 = vld [vmem:[%s429 + $0x4a0] sm:$0xf]
                %768 = vst [vmem:[%s430 + $0x2a0] sm:$0xf] %v767
                %v769 = vld [vmem:[%s429 + $0x4a4] sm:$0xf]
                %770 = vst [vmem:[%s430 + $0x2a4] sm:$0xf] %v769
                %v771 = vld [vmem:[%s429 + $0x4a8] sm:$0xf]
                %772 = vst [vmem:[%s430 + $0x2a8] sm:$0xf] %v771
                %v773 = vld [vmem:[%s429 + $0x4ac] sm:$0xf]
                %774 = vst [vmem:[%s430 + $0x2ac] sm:$0xf] %v773
                %v775 = vld [vmem:[%s429 + $0x4b0] sm:$0xf]
                %776 = vst [vmem:[%s430 + $0x2b0] sm:$0xf] %v775
                %v777 = vld [vmem:[%s429 + $0x4b4] sm:$0xf]
                %778 = vst [vmem:[%s430 + $0x2b4] sm:$0xf] %v777
                %v779 = vld [vmem:[%s429 + $0x4b8] sm:$0xf]
                %780 = vst [vmem:[%s430 + $0x2b8] sm:$0xf] %v779
                %v781 = vld [vmem:[%s429 + $0x4bc] sm:$0xf]
                %782 = vst [vmem:[%s430 + $0x2bc] sm:$0xf] %v781
                %v783 = vld [vmem:[%s429 + $0x4c0] sm:$0xf]
                %784 = vst [vmem:[%s430 + $0x2c0] sm:$0xf] %v783
                %v785 = vld [vmem:[%s429 + $0x4c4] sm:$0xf]
                %786 = vst [vmem:[%s430 + $0x2c4] sm:$0xf] %v785
                %v787 = vld [vmem:[%s429 + $0x4c8] sm:$0xf]
                %788 = vst [vmem:[%s430 + $0x2c8] sm:$0xf] %v787
                %v789 = vld [vmem:[%s429 + $0x4cc] sm:$0xf]
                %790 = vst [vmem:[%s430 + $0x2cc] sm:$0xf] %v789
                %v791 = vld [vmem:[%s429 + $0x4d0] sm:$0xf]
                %792 = vst [vmem:[%s430 + $0x2d0] sm:$0xf] %v791
                %v793 = vld [vmem:[%s429 + $0x4d4] sm:$0xf]
                %794 = vst [vmem:[%s430 + $0x2d4] sm:$0xf] %v793
                %v795 = vld [vmem:[%s429 + $0x4d8] sm:$0xf]
                %796 = vst [vmem:[%s430 + $0x2d8] sm:$0xf] %v795
                %v797 = vld [vmem:[%s429 + $0x4dc] sm:$0xf]
                %798 = vst [vmem:[%s430 + $0x2dc] sm:$0xf] %v797
                %v799 = vld [vmem:[%s429 + $0x4e0] sm:$0xf]
                %800 = vst [vmem:[%s430 + $0x2e0] sm:$0xf] %v799
                %v801 = vld [vmem:[%s429 + $0x4e4] sm:$0xf]
                %802 = vst [vmem:[%s430 + $0x2e4] sm:$0xf] %v801
                %v803 = vld [vmem:[%s429 + $0x4e8] sm:$0xf]
                %804 = vst [vmem:[%s430 + $0x2e8] sm:$0xf] %v803
                %v805 = vld [vmem:[%s429 + $0x4ec] sm:$0xf]
                %806 = vst [vmem:[%s430 + $0x2ec] sm:$0xf] %v805
                %v807 = vld [vmem:[%s429 + $0x4f0] sm:$0xf]
                %808 = vst [vmem:[%s430 + $0x2f0] sm:$0xf] %v807
                %v809 = vld [vmem:[%s429 + $0x4f4] sm:$0xf]
                %810 = vst [vmem:[%s430 + $0x2f4] sm:$0xf] %v809
                %v811 = vld [vmem:[%s429 + $0x4f8] sm:$0xf]
                %812 = vst [vmem:[%s430 + $0x2f8] sm:$0xf] %v811
                %v813 = vld [vmem:[%s429 + $0x4fc] sm:$0xf]
                %814 = vst [vmem:[%s430 + $0x2fc] sm:$0xf] %v813
              $region114: #{tpu_custom_call.1} parent=108 // loop_footer
                %s428 = sadd.s32 1, %s424
              $region115: #{tpu_custom_call.1} parent=108 // loop_footer_branch
                %423 = sbr.rel target = $region111
              $region116: #{tpu_custom_call.1} parent=108 // loop_exit
                _
            $region109: #{tpu_custom_call.1} parent=100 // pred_fallthru
              _
          $region101: #{tpu_custom_call.1} parent=96 // pred_fallthru
            _
          %1218 = vnop
        $region97: #{tpu_custom_call.1} parent=51 // pred_fallthru
          _
      $region52: #{tpu_custom_call.1} parent=5 // pred_fallthru
        _
      %p1219 = scmp.le.s32.totalorder 1, %s17
      %p1220 = scmp.lt.s32.totalorder %s17, 3
      %p1221 = pnand %p1219, %p1220
      %p1222 = pneg %p1221
      // Predicated region
      $region135: #{tpu_custom_call.1} parent=5 // pred_check
        _
      $region136: #{tpu_custom_call.1} parent=5 // pred_check_branch
        %1224 = sbr.rel (%p1221) target = $region138
      $region137: #{tpu_custom_call.1} parent=5 // pred_region
        %s1225 = ssub.s32 %s17, 1
        %s1226 = sand.u32 %s30, 1
        %s1227 = sand.u32 %s30, 1
        %s1228 = smul.addr %s1227, 32
        %s1229 = scalar_lea.vmem [#allocation2], %s1228
        // Predicated region
        $region139: #{tpu_custom_call.1} parent=137 // pred_check
          %p1230 = pneg %p43
        $region140: #{tpu_custom_call.1} parent=137 // pred_check_branch
          %1232 = sbr.rel (%p1230) target = $region142
        $region141: #{tpu_custom_call.1} parent=137 // pred_region
          _
        $region142: #{tpu_custom_call.1} parent=137 // pred_fallthru
          _
        %s1233 = sand.u32 %s161, 1
        %s1234 = sand.u32 %s161, 1
        %s1235 = smul.addr %s1234, 768
        %s1236 = scalar_lea.vmem [#allocation3], %s1235
        // Predicated region
        $region143: #{tpu_custom_call.1} parent=137 // pred_check
          %p1237 = pneg %p174
        $region144: #{tpu_custom_call.1} parent=137 // pred_check_branch
          %1239 = sbr.rel (%p1237) target = $region146
        $region145: #{tpu_custom_call.1} parent=137 // pred_region
          _
        $region146: #{tpu_custom_call.1} parent=137 // pred_fallthru
          _
        %s1240 = sand.u32 %s30, 1
        %s1241 = sand.u32 %s30, 1
        %s1242 = smul.addr %s1241, 32
        %s1243 = scalar_lea.vmem [#allocation2], %s1242
        %p1244 = pneg %p43
        %p1245 = pneg %p40
        %p1246 = pneg %p64
        %p1247 = pneg %p61
        %p1248 = pneg %p85
        %p1249 = pneg %p82
        %p1250 = pneg %p106
        %p1251 = pneg %p103
        %p1252 = pneg %p127
        %p1253 = pneg %p124
        %p1254 = pneg %p148
        %p1255 = pneg %p145
        %s1256 = sand.u32 %s161, 1
        %s1257 = sand.u32 %s161, 1
        %s1258 = smul.addr %s1257, 768
        %s1259 = scalar_lea.vmem [#allocation3], %s1258
        %p1260 = pneg %p174
        %p1261 = pneg %p171
        %p1262 = pneg %p195
        %p1263 = pneg %p192
        %p1264 = pneg %p216
        %p1265 = pneg %p213
        %p1266 = pneg %p237
        %p1267 = pneg %p234
        %p1268 = pneg %p258
        %p1269 = pneg %p255
        %p1270 = pneg %p284
        %p1271 = pneg %p281
        %p1272 = scmp.lt.s32.totalorder %s22, 1
        %s1273 = scalar_select %p1272, %s22, 1
        %s1274 = smul.addr %s1273, 8
        %s1275 = scalar_lea.vmem %s11, %s1274
        %s1276 = smul.u32 64, %s22
        %p1277 = scmp.lt.s32.totalorder %s22, 1
        %s1278 = scalar_select %p1277, %s22, 1
        %s1279 = smul.addr %s1278, 8
        %s1280 = scalar_lea.vmem %s11, %s1279
        %v1282 = vld [vmem:[%s1229] sm:$0xf]
        %v1283 = vld [vmem:[%s1229 + $0x4] sm:$0xf]
        %v1284 = vld [vmem:[%s1229 + $0x8] sm:$0xf]
        %v1285 = vld [vmem:[%s1229 + $0xc] sm:$0xf]
        %v1286 = vld [vmem:[%s1229 + $0x10] sm:$0xf]
        %v1287 = vld [vmem:[%s1229 + $0x14] sm:$0xf]
        %v1288 = vld [vmem:[%s1229 + $0x18] sm:$0xf]
        %v1289 = vld [vmem:[%s1229 + $0x1c] sm:$0xf]
        %v1290 = vld [vmem:[%s1] sm:$0xf]
        %v1291 = vld [vmem:[%s1 + $0x4] sm:$0xf]
        %v1292 = vld [vmem:[%s1 + $0x8] sm:$0xf]
        %v1293 = vld [vmem:[%s1 + $0xc] sm:$0xf]
        %v1294 = vld [vmem:[%s1 + $0x10] sm:$0xf]
        %v1295 = vld [vmem:[%s1 + $0x14] sm:$0xf]
        %v1296 = vld [vmem:[%s1 + $0x18] sm:$0xf]
        %v1297 = vld [vmem:[%s1 + $0x1c] sm:$0xf]
        %v1298 = vld [vmem:[%s1 + $0x20] sm:$0xf]
        %v1299 = vld [vmem:[%s1 + $0x24] sm:$0xf]
        %v1300 = vld [vmem:[%s1 + $0x28] sm:$0xf]
        %v1301 = vld [vmem:[%s1 + $0x2c] sm:$0xf]
        %v1302 = vld [vmem:[%s1 + $0x30] sm:$0xf]
        %v1303 = vld [vmem:[%s1 + $0x34] sm:$0xf]
        %v1304 = vld [vmem:[%s1 + $0x38] sm:$0xf]
        %v1305 = vld [vmem:[%s1 + $0x3c] sm:$0xf]
        %v1306 = vld [vmem:[%s3] sm:$0x1]
        %v1308 = vlaneseq
        %v1309 = vshrl.u32 %v1308, 7
        %v1310 = vsub.s32 0, %v1309
        %v1311 = vrot.slane %v1306, %v1310
        %v1321 = vunpack.c.l.b16 %v1282
        %v1322 = vunpack.c.l.b16 %v1283
        %v1323 = vunpack.c.l.b16 %v1284
        %v1324 = vunpack.c.l.b16 %v1285
        %v1325 = vunpack.c.l.b16 %v1286
        %v1326 = vunpack.c.l.b16 %v1287
        %v1327 = vunpack.c.l.b16 %v1288
        %v1328 = vunpack.c.l.b16 %v1289
        %v1329 = vpack.c.b16 %v1322, %v1321
        %v1330 = vpack.c.b16 %v1324, %v1323
        %v1331 = vpack.c.b16 %v1326, %v1325
        %v1332 = vpack.c.b16 %v1328, %v1327
        %v1353 = vunpack.c.l.b16 %v1290
        %v1354 = vunpack.c.l.b16 %v1291
        %v1355 = vunpack.c.l.b16 %v1292
        %v1356 = vunpack.c.l.b16 %v1293
        %v1357 = vunpack.c.l.b16 %v1294
        %v1358 = vunpack.c.l.b16 %v1295
        %v1359 = vunpack.c.l.b16 %v1296
        %v1360 = vunpack.c.l.b16 %v1297
        %v1361 = vunpack.c.l.b16 %v1298
        %v1362 = vunpack.c.l.b16 %v1299
        %v1363 = vunpack.c.l.b16 %v1300
        %v1364 = vunpack.c.l.b16 %v1301
        %v1365 = vunpack.c.l.b16 %v1302
        %v1366 = vunpack.c.l.b16 %v1303
        %v1367 = vunpack.c.l.b16 %v1304
        %v1368 = vunpack.c.l.b16 %v1305
        %v1369 = vpack.c.b16 %v1354, %v1353
        %v1370 = vpack.c.b16 %v1356, %v1355
        %v1371 = vpack.c.b16 %v1358, %v1357
        %v1372 = vpack.c.b16 %v1360, %v1359
        %v1373 = vpack.c.b16 %v1362, %v1361
        %v1374 = vpack.c.b16 %v1364, %v1363
        %v1375 = vpack.c.b16 %v1366, %v1365
        %v1376 = vpack.c.b16 %v1368, %v1367
        %1385 = vmatprep.subr.bf16.mxu0 0
        %1386 = vmatpush1.bf16.msra.mxu0 %v1369
        %1387 = vmatprep.subr.bf16.mxu0 0
        %1388 = vmatpush1.bf16.msra.mxu0 %v1370
        %1389 = vmatprep.subr.bf16.mxu0 0
        %1390 = vmatpush1.bf16.msra.mxu0 %v1371
        %1391 = vmatprep.subr.bf16.mxu0 0
        %1392 = vmatpush1.bf16.msra.mxu0 %v1372
        %1393 = vmatprep.subr.bf16.mxu0 0
        %1394 = vmatpush1.bf16.msra.mxu0 %v1373
        %1395 = vmatprep.subr.bf16.mxu0 0
        %1396 = vmatpush1.bf16.msra.mxu0 %v1374
        %1397 = vmatprep.subr.bf16.mxu0 0
        %1398 = vmatpush1.bf16.msra.mxu0 %v1375
        %1399 = vmatprep.subr.bf16.mxu0 0
        %1400 = vmatpush1.bf16.msra.mxu0 %v1376
        %1401 = vmatprep.subr.bf16.mxu0 0
        %1402 = vmatpush1.bf16.msra.mxu0 0
        %1403 = vmatprep.subr.bf16.mxu0 0
        %1404 = vmatpush1.bf16.msra.mxu0 0
        %1405 = vmatprep.subr.bf16.mxu0 0
        %1406 = vmatpush1.bf16.msra.mxu0 0
        %1407 = vmatprep.subr.bf16.mxu0 0
        %1408 = vmatpush1.bf16.msra.mxu0 0
        %1409 = vmatprep.subr.bf16.mxu0 0
        %1410 = vmatpush1.bf16.msra.mxu0 0
        %1411 = vmatprep.subr.bf16.mxu0 0
        %1412 = vmatpush1.bf16.msra.mxu0 0
        %1413 = vmatprep.subr.bf16.mxu0 0
        %1414 = vmatpush1.bf16.msra.mxu0 0
        %1415 = vmatprep.subr.bf16.mxu0 0
        %1416 = vmatpush1.bf16.msra.mxu0 0
        %1417 = vmatprep.mubr.bf16.mxu0 0
        %1418 = vmatmul.mubr.bf16.gmra.mrb[0].mxu0 %v1329
        %v1419 = vpop.f32.mrb[0].mxu0
        %v1420 = vadd.f32 %v1311, %v1419
        %v1421 = vpop.f32.mrb[0].mxu0
        %v1422 = vpop.f32.mrb[0].mxu0
        %v1423 = vadd.f32 %v1311, %v1422
        %v1424 = vpop.f32.mrb[0].mxu0
        %1425 = vmatprep.mubr.bf16.mxu0 0
        %1426 = vmatmul.mubr.bf16.gmra.mrb[0].mxu0 %v1330
        %v1427 = vpop.f32.mrb[0].mxu0
        %v1428 = vadd.f32 %v1311, %v1427
        %v1429 = vpop.f32.mrb[0].mxu0
        %v1430 = vpop.f32.mrb[0].mxu0
        %v1431 = vadd.f32 %v1311, %v1430
        %v1432 = vpop.f32.mrb[0].mxu0
        %1433 = vmatprep.mubr.bf16.mxu0 0
        %1434 = vmatmul.mubr.bf16.gmra.mrb[0].mxu0 %v1331
        %v1435 = vpop.f32.mrb[0].mxu0
        %v1436 = vadd.f32 %v1311, %v1435
        %v1437 = vpop.f32.mrb[0].mxu0
        %v1438 = vpop.f32.mrb[0].mxu0
        %v1439 = vadd.f32 %v1311, %v1438
        %v1440 = vpop.f32.mrb[0].mxu0
        %1441 = vmatprep.mubr.bf16.mxu0 0
        %1442 = vmatmul.mubr.bf16.gmra.mrb[0].mxu0 %v1332
        %v1443 = vpop.f32.mrb[0].mxu0
        %v1444 = vadd.f32 %v1311, %v1443
        %v1445 = vpop.f32.mrb[0].mxu0
        %v1446 = vpop.f32.mrb[0].mxu0
        %v1447 = vadd.f32 %v1311, %v1446
        %v1448 = vpop.f32.mrb[0].mxu0
        %1449 = vdwg.mxu0
        %v1450 = vld [vmem:[%s2] sm:$0xf]
        %v1451 = vld [vmem:[%s2 + $0x4] sm:$0xf]
        %v1452 = vld [vmem:[%s2 + $0x8] sm:$0xf]
        %v1453 = vld [vmem:[%s2 + $0xc] sm:$0xf]
        %v1454 = vld [vmem:[%s2 + $0x10] sm:$0xf]
        %v1455 = vld [vmem:[%s2 + $0x14] sm:$0xf]
        %v1456 = vld [vmem:[%s2 + $0x18] sm:$0xf]
        %v1457 = vld [vmem:[%s2 + $0x1c] sm:$0xf]
        %v1458 = vld [vmem:[%s2 + $0x20] sm:$0xf]
        %v1459 = vld [vmem:[%s2 + $0x24] sm:$0xf]
        %v1460 = vld [vmem:[%s2 + $0x28] sm:$0xf]
        %v1461 = vld [vmem:[%s2 + $0x2c] sm:$0xf]
        %v1462 = vld [vmem:[%s2 + $0x30] sm:$0xf]
        %v1463 = vld [vmem:[%s2 + $0x34] sm:$0xf]
        %v1464 = vld [vmem:[%s2 + $0x38] sm:$0xf]
        %v1465 = vld [vmem:[%s2 + $0x3c] sm:$0xf]
        %v1482 = vunpack.c.l.b16 %v1450
        %v1483 = vunpack.c.l.b16 %v1451
        %v1484 = vunpack.c.l.b16 %v1452
        %v1485 = vunpack.c.l.b16 %v1453
        %v1486 = vunpack.c.l.b16 %v1454
        %v1487 = vunpack.c.l.b16 %v1455
        %v1488 = vunpack.c.l.b16 %v1456
        %v1489 = vunpack.c.l.b16 %v1457
        %v1490 = vunpack.c.l.b16 %v1458
        %v1491 = vunpack.c.l.b16 %v1459
        %v1492 = vunpack.c.l.b16 %v1460
        %v1493 = vunpack.c.l.b16 %v1461
        %v1494 = vunpack.c.l.b16 %v1462
        %v1495 = vunpack.c.l.b16 %v1463
        %v1496 = vunpack.c.l.b16 %v1464
        %v1497 = vunpack.c.l.b16 %v1465
        %v1498 = vpack.c.b16 %v1483, %v1482
        %v1499 = vpack.c.b16 %v1485, %v1484
        %v1500 = vpack.c.b16 %v1487, %v1486
        %v1501 = vpack.c.b16 %v1489, %v1488
        %v1502 = vpack.c.b16 %v1491, %v1490
        %v1503 = vpack.c.b16 %v1493, %v1492
        %v1504 = vpack.c.b16 %v1495, %v1494
        %v1505 = vpack.c.b16 %v1497, %v1496
        %1514 = vmatprep.subr.bf16.mxu0 0
        %1515 = vmatpush1.bf16.msra.mxu0 %v1498
        %1516 = vmatprep.subr.bf16.mxu0 0
        %1517 = vmatpush1.bf16.msra.mxu0 %v1499
        %1518 = vmatprep.subr.bf16.mxu0 0
        %1519 = vmatpush1.bf16.msra.mxu0 %v1500
        %1520 = vmatprep.subr.bf16.mxu0 0
        %1521 = vmatpush1.bf16.msra.mxu0 %v1501
        %1522 = vmatprep.subr.bf16.mxu0 0
        %1523 = vmatpush1.bf16.msra.mxu0 %v1502
        %1524 = vmatprep.subr.bf16.mxu0 0
        %1525 = vmatpush1.bf16.msra.mxu0 %v1503
        %1526 = vmatprep.subr.bf16.mxu0 0
        %1527 = vmatpush1.bf16.msra.mxu0 %v1504
        %1528 = vmatprep.subr.bf16.mxu0 0
        %1529 = vmatpush1.bf16.msra.mxu0 %v1505
        %1530 = vmatprep.subr.bf16.mxu0 0
        %1531 = vmatpush1.bf16.msra.mxu0 0
        %1532 = vmatprep.subr.bf16.mxu0 0
        %1533 = vmatpush1.bf16.msra.mxu0 0
        %1534 = vmatprep.subr.bf16.mxu0 0
        %1535 = vmatpush1.bf16.msra.mxu0 0
        %1536 = vmatprep.subr.bf16.mxu0 0
        %1537 = vmatpush1.bf16.msra.mxu0 0
        %1538 = vmatprep.subr.bf16.mxu0 0
        %1539 = vmatpush1.bf16.msra.mxu0 0
        %1540 = vmatprep.subr.bf16.mxu0 0
        %1541 = vmatpush1.bf16.msra.mxu0 0
        %1542 = vmatprep.subr.bf16.mxu0 0
        %1543 = vmatpush1.bf16.msra.mxu0 0
        %1544 = vmatprep.subr.bf16.mxu0 0
        %1545 = vmatpush1.bf16.msra.mxu0 0
        %1546 = vmatprep.mubr.bf16.mxu0 0
        %1547 = vmatmul.mubr.bf16.gmra.mrb[0].mxu0 0
        %v1548 = vpop.f32.mrb[0].mxu0
        %v1549 = vadd.f32 0.0, %v1548
        %v1550 = vpop.f32.mrb[0].mxu0
        %v1551 = vpop.f32.mrb[0].mxu0
        %v1552 = vpop.f32.mrb[0].mxu0
        %1553 = vdwg.mxu0
        %v1554 = vadd.f32 %v1420, %v1549
        %v1555 = vtanh.pop %v1554
        %v1556 = vpack.c.bf16 %v1555, %v1555
        %1557 = vmatprep.subr.bf16.mxu0 0
        %1558 = vmatpush1.bf16.msra.mxu0 %v1498
        %1559 = vmatprep.subr.bf16.mxu0 0
        %1560 = vmatpush1.bf16.msra.mxu0 %v1499
        %1561 = vmatprep.subr.bf16.mxu0 0
        %1562 = vmatpush1.bf16.msra.mxu0 %v1500
        %1563 = vmatprep.subr.bf16.mxu0 0
        %1564 = vmatpush1.bf16.msra.mxu0 %v1501
        %1565 = vmatprep.subr.bf16.mxu0 0
        %1566 = vmatpush1.bf16.msra.mxu0 %v1502
        %1567 = vmatprep.subr.bf16.mxu0 0
        %1568 = vmatpush1.bf16.msra.mxu0 %v1503
        %1569 = vmatprep.subr.bf16.mxu0 0
        %1570 = vmatpush1.bf16.msra.mxu0 %v1504
        %1571 = vmatprep.subr.bf16.mxu0 0
        %1572 = vmatpush1.bf16.msra.mxu0 %v1505
        %1573 = vmatprep.subr.bf16.mxu0 0
        %1574 = vmatpush1.bf16.msra.mxu0 0
        %1575 = vmatprep.subr.bf16.mxu0 0
        %1576 = vmatpush1.bf16.msra.mxu0 0
        %1577 = vmatprep.subr.bf16.mxu0 0
        %1578 = vmatpush1.bf16.msra.mxu0 0
        %1579 = vmatprep.subr.bf16.mxu0 0
        %1580 = vmatpush1.bf16.msra.mxu0 0
        %1581 = vmatprep.subr.bf16.mxu0 0
        %1582 = vmatpush1.bf16.msra.mxu0 0
        %1583 = vmatprep.subr.bf16.mxu0 0
        %1584 = vmatpush1.bf16.msra.mxu0 0
        %1585 = vmatprep.subr.bf16.mxu0 0
        %1586 = vmatpush1.bf16.msra.mxu0 0
        %1587 = vmatprep.subr.bf16.mxu0 0
        %1588 = vmatpush1.bf16.msra.mxu0 0
        %1589 = vmatprep.mubr.bf16.mxu0 0
        %1590 = vmatmul.mubr.bf16.gmra.mrb[0].mxu0 %v1556
        %v1591 = vpop.f32.mrb[0].mxu0
        %v1592 = vadd.f32 0.0, %v1591
        %v1593 = vpop.f32.mrb[0].mxu0
        %v1594 = vpop.f32.mrb[0].mxu0
        %v1595 = vpop.f32.mrb[0].mxu0
        %1596 = vdwg.mxu0
        %v1597 = vadd.f32 %v1423, %v1592
        %v1598 = vtanh.pop %v1597
        %v1599 = vpack.c.bf16 %v1598, %v1598
        %1600 = vmatprep.subr.bf16.mxu0 0
        %1601 = vmatpush1.bf16.msra.mxu0 %v1498
        %1602 = vmatprep.subr.bf16.mxu0 0
        %1603 = vmatpush1.bf16.msra.mxu0 %v1499
        %1604 = vmatprep.subr.bf16.mxu0 0
        %1605 = vmatpush1.bf16.msra.mxu0 %v1500
        %1606 = vmatprep.subr.bf16.mxu0 0
        %1607 = vmatpush1.bf16.msra.mxu0 %v1501
        %1608 = vmatprep.subr.bf16.mxu0 0
        %1609 = vmatpush1.bf16.msra.mxu0 %v1502
        %1610 = vmatprep.subr.bf16.mxu0 0
        %1611 = vmatpush1.bf16.msra.mxu0 %v1503
        %1612 = vmatprep.subr.bf16.mxu0 0
        %1613 = vmatpush1.bf16.msra.mxu0 %v1504
        %1614 = vmatprep.subr.bf16.mxu0 0
        %1615 = vmatpush1.bf16.msra.mxu0 %v1505
        %1616 = vmatprep.subr.bf16.mxu0 0
        %1617 = vmatpush1.bf16.msra.mxu0 0
        %1618 = vmatprep.subr.bf16.mxu0 0
        %1619 = vmatpush1.bf16.msra.mxu0 0
        %1620 = vmatprep.subr.bf16.mxu0 0
        %1621 = vmatpush1.bf16.msra.mxu0 0
        %1622 = vmatprep.subr.bf16.mxu0 0
        %1623 = vmatpush1.bf16.msra.mxu0 0
        %1624 = vmatprep.subr.bf16.mxu0 0
        %1625 = vmatpush1.bf16.msra.mxu0 0
        %1626 = vmatprep.subr.bf16.mxu0 0
        %1627 = vmatpush1.bf16.msra.mxu0 0
        %1628 = vmatprep.subr.bf16.mxu0 0
        %1629 = vmatpush1.bf16.msra.mxu0 0
        %1630 = vmatprep.subr.bf16.mxu0 0
        %1631 = vmatpush1.bf16.msra.mxu0 0
        %1632 = vmatprep.mubr.bf16.mxu0 0
        %1633 = vmatmul.mubr.bf16.gmra.mrb[0].mxu0 %v1599
        %v1634 = vpop.f32.mrb[0].mxu0
        %v1635 = vadd.f32 0.0, %v1634
        %v1636 = vpop.f32.mrb[0].mxu0
        %v1637 = vpop.f32.mrb[0].mxu0
        %v1638 = vpop.f32.mrb[0].mxu0
        %1639 = vdwg.mxu0
        %v1640 = vadd.f32 %v1428, %v1635
        %v1641 = vtanh.pop %v1640
        %v1642 = vpack.c.bf16 %v1641, %v1641
        %1643 = vmatprep.subr.bf16.mxu0 0
        %1644 = vmatpush1.bf16.msra.mxu0 %v1498
        %1645 = vmatprep.subr.bf16.mxu0 0
        %1646 = vmatpush1.bf16.msra.mxu0 %v1499
        %1647 = vmatprep.subr.bf16.mxu0 0
        %1648 = vmatpush1.bf16.msra.mxu0 %v1500
        %1649 = vmatprep.subr.bf16.mxu0 0
        %1650 = vmatpush1.bf16.msra.mxu0 %v1501
        %1651 = vmatprep.subr.bf16.mxu0 0
        %1652 = vmatpush1.bf16.msra.mxu0 %v1502
        %1653 = vmatprep.subr.bf16.mxu0 0
        %1654 = vmatpush1.bf16.msra.mxu0 %v1503
        %1655 = vmatprep.subr.bf16.mxu0 0
        %1656 = vmatpush1.bf16.msra.mxu0 %v1504
        %1657 = vmatprep.subr.bf16.mxu0 0
        %1658 = vmatpush1.bf16.msra.mxu0 %v1505
        %1659 = vmatprep.subr.bf16.mxu0 0
        %1660 = vmatpush1.bf16.msra.mxu0 0
        %1661 = vmatprep.subr.bf16.mxu0 0
        %1662 = vmatpush1.bf16.msra.mxu0 0
        %1663 = vmatprep.subr.bf16.mxu0 0
        %1664 = vmatpush1.bf16.msra.mxu0 0
        %1665 = vmatprep.subr.bf16.mxu0 0
        %1666 = vmatpush1.bf16.msra.mxu0 0
        %1667 = vmatprep.subr.bf16.mxu0 0
        %1668 = vmatpush1.bf16.msra.mxu0 0
        %1669 = vmatprep.subr.bf16.mxu0 0
        %1670 = vmatpush1.bf16.msra.mxu0 0
        %1671 = vmatprep.subr.bf16.mxu0 0
        %1672 = vmatpush1.bf16.msra.mxu0 0
        %1673 = vmatprep.subr.bf16.mxu0 0
        %1674 = vmatpush1.bf16.msra.mxu0 0
        %1675 = vmatprep.mubr.bf16.mxu0 0
        %1676 = vmatmul.mubr.bf16.gmra.mrb[0].mxu0 %v1642
        %v1677 = vpop.f32.mrb[0].mxu0
        %v1678 = vadd.f32 0.0, %v1677
        %v1679 = vpop.f32.mrb[0].mxu0
        %v1680 = vpop.f32.mrb[0].mxu0
        %v1681 = vpop.f32.mrb[0].mxu0
        %1682 = vdwg.mxu0
        %v1683 = vadd.f32 %v1431, %v1678
        %v1684 = vtanh.pop %v1683
        %v1685 = vpack.c.bf16 %v1684, %v1684
        %1686 = vmatprep.subr.bf16.mxu0 0
        %1687 = vmatpush1.bf16.msra.mxu0 %v1498
        %1688 = vmatprep.subr.bf16.mxu0 0
        %1689 = vmatpush1.bf16.msra.mxu0 %v1499
        %1690 = vmatprep.subr.bf16.mxu0 0
        %1691 = vmatpush1.bf16.msra.mxu0 %v1500
        %1692 = vmatprep.subr.bf16.mxu0 0
        %1693 = vmatpush1.bf16.msra.mxu0 %v1501
        %1694 = vmatprep.subr.bf16.mxu0 0
        %1695 = vmatpush1.bf16.msra.mxu0 %v1502
        %1696 = vmatprep.subr.bf16.mxu0 0
        %1697 = vmatpush1.bf16.msra.mxu0 %v1503
        %1698 = vmatprep.subr.bf16.mxu0 0
        %1699 = vmatpush1.bf16.msra.mxu0 %v1504
        %1700 = vmatprep.subr.bf16.mxu0 0
        %1701 = vmatpush1.bf16.msra.mxu0 %v1505
        %1702 = vmatprep.subr.bf16.mxu0 0
        %1703 = vmatpush1.bf16.msra.mxu0 0
        %1704 = vmatprep.subr.bf16.mxu0 0
        %1705 = vmatpush1.bf16.msra.mxu0 0
        %1706 = vmatprep.subr.bf16.mxu0 0
        %1707 = vmatpush1.bf16.msra.mxu0 0
        %1708 = vmatprep.subr.bf16.mxu0 0
        %1709 = vmatpush1.bf16.msra.mxu0 0
        %1710 = vmatprep.subr.bf16.mxu0 0
        %1711 = vmatpush1.bf16.msra.mxu0 0
        %1712 = vmatprep.subr.bf16.mxu0 0
        %1713 = vmatpush1.bf16.msra.mxu0 0
        %1714 = vmatprep.subr.bf16.mxu0 0
        %1715 = vmatpush1.bf16.msra.mxu0 0
        %1716 = vmatprep.subr.bf16.mxu0 0
        %1717 = vmatpush1.bf16.msra.mxu0 0
        %1718 = vmatprep.mubr.bf16.mxu0 0
        %1719 = vmatmul.mubr.bf16.gmra.mrb[0].mxu0 %v1685
        %v1720 = vpop.f32.mrb[0].mxu0
        %v1721 = vadd.f32 0.0, %v1720
        %v1722 = vpop.f32.mrb[0].mxu0
        %v1723 = vpop.f32.mrb[0].mxu0
        %v1724 = vpop.f32.mrb[0].mxu0
        %1725 = vdwg.mxu0
        %v1726 = vadd.f32 %v1436, %v1721
        %v1727 = vtanh.pop %v1726
        %v1728 = vpack.c.bf16 %v1727, %v1727
        %1729 = vmatprep.subr.bf16.mxu0 0
        %1730 = vmatpush1.bf16.msra.mxu0 %v1498
        %1731 = vmatprep.subr.bf16.mxu0 0
        %1732 = vmatpush1.bf16.msra.mxu0 %v1499
        %1733 = vmatprep.subr.bf16.mxu0 0
        %1734 = vmatpush1.bf16.msra.mxu0 %v1500
        %1735 = vmatprep.subr.bf16.mxu0 0
        %1736 = vmatpush1.bf16.msra.mxu0 %v1501
        %1737 = vmatprep.subr.bf16.mxu0 0
        %1738 = vmatpush1.bf16.msra.mxu0 %v1502
        %1739 = vmatprep.subr.bf16.mxu0 0
        %1740 = vmatpush1.bf16.msra.mxu0 %v1503
        %1741 = vmatprep.subr.bf16.mxu0 0
        %1742 = vmatpush1.bf16.msra.mxu0 %v1504
        %1743 = vmatprep.subr.bf16.mxu0 0
        %1744 = vmatpush1.bf16.msra.mxu0 %v1505
        %1745 = vmatprep.subr.bf16.mxu0 0
        %1746 = vmatpush1.bf16.msra.mxu0 0
        %1747 = vmatprep.subr.bf16.mxu0 0
        %1748 = vmatpush1.bf16.msra.mxu0 0
        %1749 = vmatprep.subr.bf16.mxu0 0
        %1750 = vmatpush1.bf16.msra.mxu0 0
        %1751 = vmatprep.subr.bf16.mxu0 0
        %1752 = vmatpush1.bf16.msra.mxu0 0
        %1753 = vmatprep.subr.bf16.mxu0 0
        %1754 = vmatpush1.bf16.msra.mxu0 0
        %1755 = vmatprep.subr.bf16.mxu0 0
        %1756 = vmatpush1.bf16.msra.mxu0 0
        %1757 = vmatprep.subr.bf16.mxu0 0
        %1758 = vmatpush1.bf16.msra.mxu0 0
        %1759 = vmatprep.subr.bf16.mxu0 0
        %1760 = vmatpush1.bf16.msra.mxu0 0
        %1761 = vmatprep.mubr.bf16.mxu0 0
        %1762 = vmatmul.mubr.bf16.gmra.mrb[0].mxu0 %v1728
        %v1763 = vpop.f32.mrb[0].mxu0
        %v1764 = vadd.f32 0.0, %v1763
        %v1765 = vpop.f32.mrb[0].mxu0
        %v1766 = vpop.f32.mrb[0].mxu0
        %v1767 = vpop.f32.mrb[0].mxu0
        %1768 = vdwg.mxu0
        %v1769 = vadd.f32 %v1439, %v1764
        %v1770 = vtanh.pop %v1769
        %v1771 = vpack.c.bf16 %v1770, %v1770
        %1772 = vmatprep.subr.bf16.mxu0 0
        %1773 = vmatpush1.bf16.msra.mxu0 %v1498
        %1774 = vmatprep.subr.bf16.mxu0 0
        %1775 = vmatpush1.bf16.msra.mxu0 %v1499
        %1776 = vmatprep.subr.bf16.mxu0 0
        %1777 = vmatpush1.bf16.msra.mxu0 %v1500
        %1778 = vmatprep.subr.bf16.mxu0 0
        %1779 = vmatpush1.bf16.msra.mxu0 %v1501
        %1780 = vmatprep.subr.bf16.mxu0 0
        %1781 = vmatpush1.bf16.msra.mxu0 %v1502
        %1782 = vmatprep.subr.bf16.mxu0 0
        %1783 = vmatpush1.bf16.msra.mxu0 %v1503
        %1784 = vmatprep.subr.bf16.mxu0 0
        %1785 = vmatpush1.bf16.msra.mxu0 %v1504
        %1786 = vmatprep.subr.bf16.mxu0 0
        %1787 = vmatpush1.bf16.msra.mxu0 %v1505
        %1788 = vmatprep.subr.bf16.mxu0 0
        %1789 = vmatpush1.bf16.msra.mxu0 0
        %1790 = vmatprep.subr.bf16.mxu0 0
        %1791 = vmatpush1.bf16.msra.mxu0 0
        %1792 = vmatprep.subr.bf16.mxu0 0
        %1793 = vmatpush1.bf16.msra.mxu0 0
        %1794 = vmatprep.subr.bf16.mxu0 0
        %1795 = vmatpush1.bf16.msra.mxu0 0
        %1796 = vmatprep.subr.bf16.mxu0 0
        %1797 = vmatpush1.bf16.msra.mxu0 0
        %1798 = vmatprep.subr.bf16.mxu0 0
        %1799 = vmatpush1.bf16.msra.mxu0 0
        %1800 = vmatprep.subr.bf16.mxu0 0
        %1801 = vmatpush1.bf16.msra.mxu0 0
        %1802 = vmatprep.subr.bf16.mxu0 0
        %1803 = vmatpush1.bf16.msra.mxu0 0
        %1804 = vmatprep.mubr.bf16.mxu0 0
        %1805 = vmatmul.mubr.bf16.gmra.mrb[0].mxu0 %v1771
        %v1806 = vpop.f32.mrb[0].mxu0
        %v1807 = vadd.f32 0.0, %v1806
        %v1808 = vpop.f32.mrb[0].mxu0
        %v1809 = vpop.f32.mrb[0].mxu0
        %v1810 = vpop.f32.mrb[0].mxu0
        %1811 = vdwg.mxu0
        %v1812 = vadd.f32 %v1444, %v1807
        %v1813 = vtanh.pop %v1812
        %v1814 = vpack.c.bf16 %v1813, %v1813
        %1815 = vmatprep.subr.bf16.mxu0 0
        %1816 = vmatpush1.bf16.msra.mxu0 %v1498
        %1817 = vmatprep.subr.bf16.mxu0 0
        %1818 = vmatpush1.bf16.msra.mxu0 %v1499
        %1819 = vmatprep.subr.bf16.mxu0 0
        %1820 = vmatpush1.bf16.msra.mxu0 %v1500
        %1821 = vmatprep.subr.bf16.mxu0 0
        %1822 = vmatpush1.bf16.msra.mxu0 %v1501
        %1823 = vmatprep.subr.bf16.mxu0 0
        %1824 = vmatpush1.bf16.msra.mxu0 %v1502
        %1825 = vmatprep.subr.bf16.mxu0 0
        %1826 = vmatpush1.bf16.msra.mxu0 %v1503
        %1827 = vmatprep.subr.bf16.mxu0 0
        %1828 = vmatpush1.bf16.msra.mxu0 %v1504
        %1829 = vmatprep.subr.bf16.mxu0 0
        %1830 = vmatpush1.bf16.msra.mxu0 %v1505
        %1831 = vmatprep.subr.bf16.mxu0 0
        %1832 = vmatpush1.bf16.msra.mxu0 0
        %1833 = vmatprep.subr.bf16.mxu0 0
        %1834 = vmatpush1.bf16.msra.mxu0 0
        %1835 = vmatprep.subr.bf16.mxu0 0
        %1836 = vmatpush1.bf16.msra.mxu0 0
        %1837 = vmatprep.subr.bf16.mxu0 0
        %1838 = vmatpush1.bf16.msra.mxu0 0
        %1839 = vmatprep.subr.bf16.mxu0 0
        %1840 = vmatpush1.bf16.msra.mxu0 0
        %1841 = vmatprep.subr.bf16.mxu0 0
        %1842 = vmatpush1.bf16.msra.mxu0 0
        %1843 = vmatprep.subr.bf16.mxu0 0
        %1844 = vmatpush1.bf16.msra.mxu0 0
        %1845 = vmatprep.subr.bf16.mxu0 0
        %1846 = vmatpush1.bf16.msra.mxu0 0
        %1847 = vmatprep.mubr.bf16.mxu0 0
        %1848 = vmatmul.mubr.bf16.gmra.mrb[0].mxu0 %v1814
        %v1849 = vpop.f32.mrb[0].mxu0
        %v1850 = vadd.f32 0.0, %v1849
        %v1851 = vpop.f32.mrb[0].mxu0
        %v1852 = vpop.f32.mrb[0].mxu0
        %v1853 = vpop.f32.mrb[0].mxu0
        %1854 = vdwg.mxu0
        %v1855 = vadd.f32 %v1447, %v1850
        %v1856 = vtanh.pop %v1855
        %v1857 = vpack.c.bf16 %v1856, %v1856
        %v1858 = vld [vmem:[%s4] sm:$0xf]
        %v1859 = vld [vmem:[%s4 + $0x4] sm:$0xf]
        %v1860 = vld [vmem:[%s4 + $0x8] sm:$0xf]
        %v1861 = vld [vmem:[%s4 + $0xc] sm:$0xf]
        %v1862 = vld [vmem:[%s4 + $0x10] sm:$0xf]
        %v1863 = vld [vmem:[%s4 + $0x14] sm:$0xf]
        %v1864 = vld [vmem:[%s4 + $0x18] sm:$0xf]
        %v1865 = vld [vmem:[%s4 + $0x1c] sm:$0xf]
        %v1866 = vld [vmem:[%s4 + $0x20] sm:$0xf]
        %v1867 = vld [vmem:[%s4 + $0x24] sm:$0xf]
        %v1868 = vld [vmem:[%s4 + $0x28] sm:$0xf]
        %v1869 = vld [vmem:[%s4 + $0x2c] sm:$0xf]
        %v1870 = vld [vmem:[%s4 + $0x30] sm:$0xf]
        %v1871 = vld [vmem:[%s4 + $0x34] sm:$0xf]
        %v1872 = vld [vmem:[%s4 + $0x38] sm:$0xf]
        %v1873 = vld [vmem:[%s4 + $0x3c] sm:$0xf]
        %v1874 = vld [vmem:[%s5] sm:$0x1]
        %v1876 = vlaneseq
        %v1877 = vshrl.u32 %v1876, 7
        %v1878 = vsub.s32 0, %v1877
        %v1879 = vrot.slane %v1874, %v1878
        %v1897 = vunpack.c.l.b16 %v1858
        %v1898 = vunpack.c.l.b16 %v1859
        %v1899 = vunpack.c.l.b16 %v1860
        %v1900 = vunpack.c.l.b16 %v1861
        %v1901 = vunpack.c.l.b16 %v1862
        %v1902 = vunpack.c.l.b16 %v1863
        %v1903 = vunpack.c.l.b16 %v1864
        %v1904 = vunpack.c.l.b16 %v1865
        %v1905 = vunpack.c.l.b16 %v1866
        %v1906 = vunpack.c.l.b16 %v1867
        %v1907 = vunpack.c.l.b16 %v1868
        %v1908 = vunpack.c.l.b16 %v1869
        %v1909 = vunpack.c.l.b16 %v1870
        %v1910 = vunpack.c.l.b16 %v1871
        %v1911 = vunpack.c.l.b16 %v1872
        %v1912 = vunpack.c.l.b16 %v1873
        %v1913 = vpack.c.b16 %v1898, %v1897
        %v1914 = vpack.c.b16 %v1900, %v1899
        %v1915 = vpack.c.b16 %v1902, %v1901
        %v1916 = vpack.c.b16 %v1904, %v1903
        %v1917 = vpack.c.b16 %v1906, %v1905
        %v1918 = vpack.c.b16 %v1908, %v1907
        %v1919 = vpack.c.b16 %v1910, %v1909
        %v1920 = vpack.c.b16 %v1912, %v1911
        %1929 = vmatprep.subr.bf16.mxu0 0
        %1930 = vmatpush1.bf16.msra.mxu0 %v1913
        %1931 = vmatprep.subr.bf16.mxu0 0
        %1932 = vmatpush1.bf16.msra.mxu0 %v1914
        %1933 = vmatprep.subr.bf16.mxu0 0
        %1934 = vmatpush1.bf16.msra.mxu0 %v1915
        %1935 = vmatprep.subr.bf16.mxu0 0
        %1936 = vmatpush1.bf16.msra.mxu0 %v1916
        %1937 = vmatprep.subr.bf16.mxu0 0
        %1938 = vmatpush1.bf16.msra.mxu0 %v1917
        %1939 = vmatprep.subr.bf16.mxu0 0
        %1940 = vmatpush1.bf16.msra.mxu0 %v1918
        %1941 = vmatprep.subr.bf16.mxu0 0
        %1942 = vmatpush1.bf16.msra.mxu0 %v1919
        %1943 = vmatprep.subr.bf16.mxu0 0
        %1944 = vmatpush1.bf16.msra.mxu0 %v1920
        %1945 = vmatprep.subr.bf16.mxu0 0
        %1946 = vmatpush1.bf16.msra.mxu0 0
        %1947 = vmatprep.subr.bf16.mxu0 0
        %1948 = vmatpush1.bf16.msra.mxu0 0
        %1949 = vmatprep.subr.bf16.mxu0 0
        %1950 = vmatpush1.bf16.msra.mxu0 0
        %1951 = vmatprep.subr.bf16.mxu0 0
        %1952 = vmatpush1.bf16.msra.mxu0 0
        %1953 = vmatprep.subr.bf16.mxu0 0
        %1954 = vmatpush1.bf16.msra.mxu0 0
        %1955 = vmatprep.subr.bf16.mxu0 0
        %1956 = vmatpush1.bf16.msra.mxu0 0
        %1957 = vmatprep.subr.bf16.mxu0 0
        %1958 = vmatpush1.bf16.msra.mxu0 0
        %1959 = vmatprep.subr.bf16.mxu0 0
        %1960 = vmatpush1.bf16.msra.mxu0 0
        %1961 = vmatprep.mubr.bf16.mxu0 0
        %1962 = vmatmul.mubr.bf16.gmra.mrb[0].mxu0 %v1857
        %v1963 = vpop.f32.mrb[0].mxu0
        %v1964 = vadd.f32 %v1879, %v1963
        %v1965 = vpop.f32.mrb[0].mxu0
        %v1966 = vpop.f32.mrb[0].mxu0
        %v1967 = vpop.f32.mrb[0].mxu0
        %1968 = vdwg.mxu0
        %v1969 = vld [vmem:[%s1236] sm:$0xf]
        %v1970 = vld [vmem:[%s1236 + $0x4] sm:$0xf]
        %v1971 = vld [vmem:[%s1236 + $0x8] sm:$0xf]
        %v1972 = vld [vmem:[%s1236 + $0xc] sm:$0xf]
        %v1973 = vld [vmem:[%s1236 + $0x10] sm:$0xf]
        %v1974 = vld [vmem:[%s1236 + $0x14] sm:$0xf]
        %v1975 = vld [vmem:[%s1236 + $0x18] sm:$0xf]
        %v1976 = vld [vmem:[%s1236 + $0x1c] sm:$0xf]
        %v1977 = vld [vmem:[%s1236 + $0x20] sm:$0xf]
        %v1978 = vld [vmem:[%s1236 + $0x24] sm:$0xf]
        %v1979 = vld [vmem:[%s1236 + $0x28] sm:$0xf]
        %v1980 = vld [vmem:[%s1236 + $0x2c] sm:$0xf]
        %v1981 = vld [vmem:[%s1236 + $0x30] sm:$0xf]
        %v1982 = vld [vmem:[%s1236 + $0x34] sm:$0xf]
        %v1983 = vld [vmem:[%s1236 + $0x38] sm:$0xf]
        %v1984 = vld [vmem:[%s1236 + $0x3c] sm:$0xf]
        %v1985 = vld [vmem:[%s1236 + $0x40] sm:$0xf]
        %v1986 = vld [vmem:[%s1236 + $0x44] sm:$0xf]
        %v1987 = vld [vmem:[%s1236 + $0x48] sm:$0xf]
        %v1988 = vld [vmem:[%s1236 + $0x4c] sm:$0xf]
        %v1989 = vld [vmem:[%s1236 + $0x50] sm:$0xf]
        %v1990 = vld [vmem:[%s1236 + $0x54] sm:$0xf]
        %v1991 = vld [vmem:[%s1236 + $0x58] sm:$0xf]
        %v1992 = vld [vmem:[%s1236 + $0x5c] sm:$0xf]
        %v1993 = vld [vmem:[%s1236 + $0x60] sm:$0xf]
        %v1994 = vld [vmem:[%s1236 + $0x64] sm:$0xf]
        %v1995 = vld [vmem:[%s1236 + $0x68] sm:$0xf]
        %v1996 = vld [vmem:[%s1236 + $0x6c] sm:$0xf]
        %v1997 = vld [vmem:[%s1236 + $0x70] sm:$0xf]
        %v1998 = vld [vmem:[%s1236 + $0x74] sm:$0xf]
        %v1999 = vld [vmem:[%s1236 + $0x78] sm:$0xf]
        %v2000 = vld [vmem:[%s1236 + $0x7c] sm:$0xf]
        %v2001 = vld [vmem:[%s1236 + $0x80] sm:$0xf]
        %v2002 = vld [vmem:[%s1236 + $0x84] sm:$0xf]
        %v2003 = vld [vmem:[%s1236 + $0x88] sm:$0xf]
        %v2004 = vld [vmem:[%s1236 + $0x8c] sm:$0xf]
        %v2005 = vld [vmem:[%s1236 + $0x90] sm:$0xf]
        %v2006 = vld [vmem:[%s1236 + $0x94] sm:$0xf]
        %v2007 = vld [vmem:[%s1236 + $0x98] sm:$0xf]
        %v2008 = vld [vmem:[%s1236 + $0x9c] sm:$0xf]
        %v2009 = vld [vmem:[%s1236 + $0xa0] sm:$0xf]
        %v2010 = vld [vmem:[%s1236 + $0xa4] sm:$0xf]
        %v2011 = vld [vmem:[%s1236 + $0xa8] sm:$0xf]
        %v2012 = vld [vmem:[%s1236 + $0xac] sm:$0xf]
        %v2013 = vld [vmem:[%s1236 + $0xb0] sm:$0xf]
        %v2014 = vld [vmem:[%s1236 + $0xb4] sm:$0xf]
        %v2015 = vld [vmem:[%s1236 + $0xb8] sm:$0xf]
        %v2016 = vld [vmem:[%s1236 + $0xbc] sm:$0xf]
        %v2017 = vld [vmem:[%s1236 + $0xc0] sm:$0xf]
        %v2018 = vld [vmem:[%s1236 + $0xc4] sm:$0xf]
        %v2019 = vld [vmem:[%s1236 + $0xc8] sm:$0xf]
        %v2020 = vld [vmem:[%s1236 + $0xcc] sm:$0xf]
        %v2021 = vld [vmem:[%s1236 + $0xd0] sm:$0xf]
        %v2022 = vld [vmem:[%s1236 + $0xd4] sm:$0xf]
        %v2023 = vld [vmem:[%s1236 + $0xd8] sm:$0xf]
        %v2024 = vld [vmem:[%s1236 + $0xdc] sm:$0xf]
        %v2025 = vld [vmem:[%s1236 + $0xe0] sm:$0xf]
        %v2026 = vld [vmem:[%s1236 + $0xe4] sm:$0xf]
        %v2027 = vld [vmem:[%s1236 + $0xe8] sm:$0xf]
        %v2028 = vld [vmem:[%s1236 + $0xec] sm:$0xf]
        %v2029 = vld [vmem:[%s1236 + $0xf0] sm:$0xf]
        %v2030 = vld [vmem:[%s1236 + $0xf4] sm:$0xf]
        %v2031 = vld [vmem:[%s1236 + $0xf8] sm:$0xf]
        %v2032 = vld [vmem:[%s1236 + $0xfc] sm:$0xf]
        %v2033 = vld [vmem:[%s1236 + $0x100] sm:$0xf]
        %v2034 = vld [vmem:[%s1236 + $0x104] sm:$0xf]
        %v2035 = vld [vmem:[%s1236 + $0x108] sm:$0xf]
        %v2036 = vld [vmem:[%s1236 + $0x10c] sm:$0xf]
        %v2037 = vld [vmem:[%s1236 + $0x110] sm:$0xf]
        %v2038 = vld [vmem:[%s1236 + $0x114] sm:$0xf]
        %v2039 = vld [vmem:[%s1236 + $0x118] sm:$0xf]
        %v2040 = vld [vmem:[%s1236 + $0x11c] sm:$0xf]
        %v2041 = vld [vmem:[%s1236 + $0x120] sm:$0xf]
        %v2042 = vld [vmem:[%s1236 + $0x124] sm:$0xf]
        %v2043 = vld [vmem:[%s1236 + $0x128] sm:$0xf]
        %v2044 = vld [vmem:[%s1236 + $0x12c] sm:$0xf]
        %v2045 = vld [vmem:[%s1236 + $0x130] sm:$0xf]
        %v2046 = vld [vmem:[%s1236 + $0x134] sm:$0xf]
        %v2047 = vld [vmem:[%s1236 + $0x138] sm:$0xf]
        %v2048 = vld [vmem:[%s1236 + $0x13c] sm:$0xf]
        %v2049 = vld [vmem:[%s1236 + $0x140] sm:$0xf]
        %v2050 = vld [vmem:[%s1236 + $0x144] sm:$0xf]
        %v2051 = vld [vmem:[%s1236 + $0x148] sm:$0xf]
        %v2052 = vld [vmem:[%s1236 + $0x14c] sm:$0xf]
        %v2053 = vld [vmem:[%s1236 + $0x150] sm:$0xf]
        %v2054 = vld [vmem:[%s1236 + $0x154] sm:$0xf]
        %v2055 = vld [vmem:[%s1236 + $0x158] sm:$0xf]
        %v2056 = vld [vmem:[%s1236 + $0x15c] sm:$0xf]
        %v2057 = vld [vmem:[%s1236 + $0x160] sm:$0xf]
        %v2058 = vld [vmem:[%s1236 + $0x164] sm:$0xf]
        %v2059 = vld [vmem:[%s1236 + $0x168] sm:$0xf]
        %v2060 = vld [vmem:[%s1236 + $0x16c] sm:$0xf]
        %v2061 = vld [vmem:[%s1236 + $0x170] sm:$0xf]
        %v2062 = vld [vmem:[%s1236 + $0x174] sm:$0xf]
        %v2063 = vld [vmem:[%s1236 + $0x178] sm:$0xf]
        %v2064 = vld [vmem:[%s1236 + $0x17c] sm:$0xf]
        %v2065 = vld [vmem:[%s1236 + $0x180] sm:$0xf]
        %v2066 = vld [vmem:[%s1236 + $0x184] sm:$0xf]
        %v2067 = vld [vmem:[%s1236 + $0x188] sm:$0xf]
        %v2068 = vld [vmem:[%s1236 + $0x18c] sm:$0xf]
        %v2069 = vld [vmem:[%s1236 + $0x190] sm:$0xf]
        %v2070 = vld [vmem:[%s1236 + $0x194] sm:$0xf]
        %v2071 = vld [vmem:[%s1236 + $0x198] sm:$0xf]
        %v2072 = vld [vmem:[%s1236 + $0x19c] sm:$0xf]
        %v2073 = vld [vmem:[%s1236 + $0x1a0] sm:$0xf]
        %v2074 = vld [vmem:[%s1236 + $0x1a4] sm:$0xf]
        %v2075 = vld [vmem:[%s1236 + $0x1a8] sm:$0xf]
        %v2076 = vld [vmem:[%s1236 + $0x1ac] sm:$0xf]
        %v2077 = vld [vmem:[%s1236 + $0x1b0] sm:$0xf]
        %v2078 = vld [vmem:[%s1236 + $0x1b4] sm:$0xf]
        %v2079 = vld [vmem:[%s1236 + $0x1b8] sm:$0xf]
        %v2080 = vld [vmem:[%s1236 + $0x1bc] sm:$0xf]
        %v2081 = vld [vmem:[%s1236 + $0x1c0] sm:$0xf]
        %v2082 = vld [vmem:[%s1236 + $0x1c4] sm:$0xf]
        %v2083 = vld [vmem:[%s1236 + $0x1c8] sm:$0xf]
        %v2084 = vld [vmem:[%s1236 + $0x1cc] sm:$0xf]
        %v2085 = vld [vmem:[%s1236 + $0x1d0] sm:$0xf]
        %v2086 = vld [vmem:[%s1236 + $0x1d4] sm:$0xf]
        %v2087 = vld [vmem:[%s1236 + $0x1d8] sm:$0xf]
        %v2088 = vld [vmem:[%s1236 + $0x1dc] sm:$0xf]
        %v2089 = vld [vmem:[%s1236 + $0x1e0] sm:$0xf]
        %v2090 = vld [vmem:[%s1236 + $0x1e4] sm:$0xf]
        %v2091 = vld [vmem:[%s1236 + $0x1e8] sm:$0xf]
        %v2092 = vld [vmem:[%s1236 + $0x1ec] sm:$0xf]
        %v2093 = vld [vmem:[%s1236 + $0x1f0] sm:$0xf]
        %v2094 = vld [vmem:[%s1236 + $0x1f4] sm:$0xf]
        %v2095 = vld [vmem:[%s1236 + $0x1f8] sm:$0xf]
        %v2096 = vld [vmem:[%s1236 + $0x1fc] sm:$0xf]
        %v2097 = vld [vmem:[%s1236 + $0x200] sm:$0xf]
        %v2098 = vld [vmem:[%s1236 + $0x204] sm:$0xf]
        %v2099 = vld [vmem:[%s1236 + $0x208] sm:$0xf]
        %v2100 = vld [vmem:[%s1236 + $0x20c] sm:$0xf]
        %v2101 = vld [vmem:[%s1236 + $0x210] sm:$0xf]
        %v2102 = vld [vmem:[%s1236 + $0x214] sm:$0xf]
        %v2103 = vld [vmem:[%s1236 + $0x218] sm:$0xf]
        %v2104 = vld [vmem:[%s1236 + $0x21c] sm:$0xf]
        %v2105 = vld [vmem:[%s1236 + $0x220] sm:$0xf]
        %v2106 = vld [vmem:[%s1236 + $0x224] sm:$0xf]
        %v2107 = vld [vmem:[%s1236 + $0x228] sm:$0xf]
        %v2108 = vld [vmem:[%s1236 + $0x22c] sm:$0xf]
        %v2109 = vld [vmem:[%s1236 + $0x230] sm:$0xf]
        %v2110 = vld [vmem:[%s1236 + $0x234] sm:$0xf]
        %v2111 = vld [vmem:[%s1236 + $0x238] sm:$0xf]
        %v2112 = vld [vmem:[%s1236 + $0x23c] sm:$0xf]
        %v2113 = vld [vmem:[%s1236 + $0x240] sm:$0xf]
        %v2114 = vld [vmem:[%s1236 + $0x244] sm:$0xf]
        %v2115 = vld [vmem:[%s1236 + $0x248] sm:$0xf]
        %v2116 = vld [vmem:[%s1236 + $0x24c] sm:$0xf]
        %v2117 = vld [vmem:[%s1236 + $0x250] sm:$0xf]
        %v2118 = vld [vmem:[%s1236 + $0x254] sm:$0xf]
        %v2119 = vld [vmem:[%s1236 + $0x258] sm:$0xf]
        %v2120 = vld [vmem:[%s1236 + $0x25c] sm:$0xf]
        %v2121 = vld [vmem:[%s1236 + $0x260] sm:$0xf]
        %v2122 = vld [vmem:[%s1236 + $0x264] sm:$0xf]
        %v2123 = vld [vmem:[%s1236 + $0x268] sm:$0xf]
        %v2124 = vld [vmem:[%s1236 + $0x26c] sm:$0xf]
        %v2125 = vld [vmem:[%s1236 + $0x270] sm:$0xf]
        %v2126 = vld [vmem:[%s1236 + $0x274] sm:$0xf]
        %v2127 = vld [vmem:[%s1236 + $0x278] sm:$0xf]
        %v2128 = vld [vmem:[%s1236 + $0x27c] sm:$0xf]
        %v2129 = vld [vmem:[%s1236 + $0x280] sm:$0xf]
        %v2130 = vld [vmem:[%s1236 + $0x284] sm:$0xf]
        %v2131 = vld [vmem:[%s1236 + $0x288] sm:$0xf]
        %v2132 = vld [vmem:[%s1236 + $0x28c] sm:$0xf]
        %v2133 = vld [vmem:[%s1236 + $0x290] sm:$0xf]
        %v2134 = vld [vmem:[%s1236 + $0x294] sm:$0xf]
        %v2135 = vld [vmem:[%s1236 + $0x298] sm:$0xf]
        %v2136 = vld [vmem:[%s1236 + $0x29c] sm:$0xf]
        %v2137 = vld [vmem:[%s1236 + $0x2a0] sm:$0xf]
        %v2138 = vld [vmem:[%s1236 + $0x2a4] sm:$0xf]
        %v2139 = vld [vmem:[%s1236 + $0x2a8] sm:$0xf]
        %v2140 = vld [vmem:[%s1236 + $0x2ac] sm:$0xf]
        %v2141 = vld [vmem:[%s1236 + $0x2b0] sm:$0xf]
        %v2142 = vld [vmem:[%s1236 + $0x2b4] sm:$0xf]
        %v2143 = vld [vmem:[%s1236 + $0x2b8] sm:$0xf]
        %v2144 = vld [vmem:[%s1236 + $0x2bc] sm:$0xf]
        %v2145 = vld [vmem:[%s1236 + $0x2c0] sm:$0xf]
        %v2146 = vld [vmem:[%s1236 + $0x2c4] sm:$0xf]
        %v2147 = vld [vmem:[%s1236 + $0x2c8] sm:$0xf]
        %v2148 = vld [vmem:[%s1236 + $0x2cc] sm:$0xf]
        %v2149 = vld [vmem:[%s1236 + $0x2d0] sm:$0xf]
        %v2150 = vld [vmem:[%s1236 + $0x2d4] sm:$0xf]
        %v2151 = vld [vmem:[%s1236 + $0x2d8] sm:$0xf]
        %v2152 = vld [vmem:[%s1236 + $0x2dc] sm:$0xf]
        %v2153 = vld [vmem:[%s1236 + $0x2e0] sm:$0xf]
        %v2154 = vld [vmem:[%s1236 + $0x2e4] sm:$0xf]
        %v2155 = vld [vmem:[%s1236 + $0x2e8] sm:$0xf]
        %v2156 = vld [vmem:[%s1236 + $0x2ec] sm:$0xf]
        %v2157 = vld [vmem:[%s1236 + $0x2f0] sm:$0xf]
        %v2158 = vld [vmem:[%s1236 + $0x2f4] sm:$0xf]
        %v2159 = vld [vmem:[%s1236 + $0x2f8] sm:$0xf]
        %v2160 = vld [vmem:[%s1236 + $0x2fc] sm:$0xf]
        %v2161 = vld [vmem:[%s7] sm:$0xf]
        %v2162 = vld [vmem:[%s7 + $0x4] sm:$0xf]
        %v2163 = vld [vmem:[%s7 + $0x8] sm:$0xf]
        %v2164 = vld [vmem:[%s7 + $0xc] sm:$0xf]
        %v2165 = vld [vmem:[%s7 + $0x10] sm:$0x3]
        %v2166 = vld [vmem:[%s8] sm:$0x1]
        %v2168 = vlaneseq
        %v2169 = vshrl.u32 %v2168, 7
        %v2170 = vsub.s32 0, %v2169
        %v2171 = vrot.slane %v2166, %v2170
        %v2365 = vunpack.c.l.b16 %v1969
        %v2366 = vunpack.c.l.b16 %v1970
        %v2367 = vunpack.c.l.b16 %v1971
        %v2368 = vunpack.c.l.b16 %v1972
        %v2369 = vunpack.c.l.b16 %v1973
        %v2370 = vunpack.c.l.b16 %v1974
        %v2371 = vunpack.c.l.b16 %v1975
        %v2372 = vunpack.c.l.b16 %v1976
        %v2373 = vunpack.c.l.b16 %v1977
        %v2374 = vunpack.c.l.b16 %v1978
        %v2375 = vunpack.c.l.b16 %v1979
        %v2376 = vunpack.c.l.b16 %v1980
        %v2377 = vunpack.c.l.b16 %v1981
        %v2378 = vunpack.c.l.b16 %v1982
        %v2379 = vunpack.c.l.b16 %v1983
        %v2380 = vunpack.c.l.b16 %v1984
        %v2381 = vunpack.c.l.b16 %v1985
        %v2382 = vunpack.c.l.b16 %v1986
        %v2383 = vunpack.c.l.b16 %v1987
        %v2384 = vunpack.c.l.b16 %v1988
        %v2385 = vunpack.c.l.b16 %v1989
        %v2386 = vunpack.c.l.b16 %v1990
        %v2387 = vunpack.c.l.b16 %v1991
        %v2388 = vunpack.c.l.b16 %v1992
        %v2389 = vunpack.c.l.b16 %v1993
        %v2390 = vunpack.c.l.b16 %v1994
        %v2391 = vunpack.c.l.b16 %v1995
        %v2392 = vunpack.c.l.b16 %v1996
        %v2393 = vunpack.c.l.b16 %v1997
        %v2394 = vunpack.c.l.b16 %v1998
        %v2395 = vunpack.c.l.b16 %v1999
        %v2396 = vunpack.c.l.b16 %v2000
        %v2397 = vunpack.c.l.b16 %v2001
        %v2398 = vunpack.c.l.b16 %v2002
        %v2399 = vunpack.c.l.b16 %v2003
        %v2400 = vunpack.c.l.b16 %v2004
        %v2401 = vunpack.c.l.b16 %v2005
        %v2402 = vunpack.c.l.b16 %v2006
        %v2403 = vunpack.c.l.b16 %v2007
        %v2404 = vunpack.c.l.b16 %v2008
        %v2405 = vunpack.c.l.b16 %v2009
        %v2406 = vunpack.c.l.b16 %v2010
        %v2407 = vunpack.c.l.b16 %v2011
        %v2408 = vunpack.c.l.b16 %v2012
        %v2409 = vunpack.c.l.b16 %v2013
        %v2410 = vunpack.c.l.b16 %v2014
        %v2411 = vunpack.c.l.b16 %v2015
        %v2412 = vunpack.c.l.b16 %v2016
        %v2413 = vunpack.c.l.b16 %v2017
        %v2414 = vunpack.c.l.b16 %v2018
        %v2415 = vunpack.c.l.b16 %v2019
        %v2416 = vunpack.c.l.b16 %v2020
        %v2417 = vunpack.c.l.b16 %v2021
        %v2418 = vunpack.c.l.b16 %v2022
        %v2419 = vunpack.c.l.b16 %v2023
        %v2420 = vunpack.c.l.b16 %v2024
        %v2421 = vunpack.c.l.b16 %v2025
        %v2422 = vunpack.c.l.b16 %v2026
        %v2423 = vunpack.c.l.b16 %v2027
        %v2424 = vunpack.c.l.b16 %v2028
        %v2425 = vunpack.c.l.b16 %v2029
        %v2426 = vunpack.c.l.b16 %v2030
        %v2427 = vunpack.c.l.b16 %v2031
        %v2428 = vunpack.c.l.b16 %v2032
        %v2429 = vunpack.c.l.b16 %v2033
        %v2430 = vunpack.c.l.b16 %v2034
        %v2431 = vunpack.c.l.b16 %v2035
        %v2432 = vunpack.c.l.b16 %v2036
        %v2433 = vunpack.c.l.b16 %v2037
        %v2434 = vunpack.c.l.b16 %v2038
        %v2435 = vunpack.c.l.b16 %v2039
        %v2436 = vunpack.c.l.b16 %v2040
        %v2437 = vunpack.c.l.b16 %v2041
        %v2438 = vunpack.c.l.b16 %v2042
        %v2439 = vunpack.c.l.b16 %v2043
        %v2440 = vunpack.c.l.b16 %v2044
        %v2441 = vunpack.c.l.b16 %v2045
        %v2442 = vunpack.c.l.b16 %v2046
        %v2443 = vunpack.c.l.b16 %v2047
        %v2444 = vunpack.c.l.b16 %v2048
        %v2445 = vunpack.c.l.b16 %v2049
        %v2446 = vunpack.c.l.b16 %v2050
        %v2447 = vunpack.c.l.b16 %v2051
        %v2448 = vunpack.c.l.b16 %v2052
        %v2449 = vunpack.c.l.b16 %v2053
        %v2450 = vunpack.c.l.b16 %v2054
        %v2451 = vunpack.c.l.b16 %v2055
        %v2452 = vunpack.c.l.b16 %v2056
        %v2453 = vunpack.c.l.b16 %v2057
        %v2454 = vunpack.c.l.b16 %v2058
        %v2455 = vunpack.c.l.b16 %v2059
        %v2456 = vunpack.c.l.b16 %v2060
        %v2457 = vunpack.c.l.b16 %v2061
        %v2458 = vunpack.c.l.b16 %v2062
        %v2459 = vunpack.c.l.b16 %v2063
        %v2460 = vunpack.c.l.b16 %v2064
        %v2461 = vunpack.c.l.b16 %v2065
        %v2462 = vunpack.c.l.b16 %v2066
        %v2463 = vunpack.c.l.b16 %v2067
        %v2464 = vunpack.c.l.b16 %v2068
        %v2465 = vunpack.c.l.b16 %v2069
        %v2466 = vunpack.c.l.b16 %v2070
        %v2467 = vunpack.c.l.b16 %v2071
        %v2468 = vunpack.c.l.b16 %v2072
        %v2469 = vunpack.c.l.b16 %v2073
        %v2470 = vunpack.c.l.b16 %v2074
        %v2471 = vunpack.c.l.b16 %v2075
        %v2472 = vunpack.c.l.b16 %v2076
        %v2473 = vunpack.c.l.b16 %v2077
        %v2474 = vunpack.c.l.b16 %v2078
        %v2475 = vunpack.c.l.b16 %v2079
        %v2476 = vunpack.c.l.b16 %v2080
        %v2477 = vunpack.c.l.b16 %v2081
        %v2478 = vunpack.c.l.b16 %v2082
        %v2479 = vunpack.c.l.b16 %v2083
        %v2480 = vunpack.c.l.b16 %v2084
        %v2481 = vunpack.c.l.b16 %v2085
        %v2482 = vunpack.c.l.b16 %v2086
        %v2483 = vunpack.c.l.b16 %v2087
        %v2484 = vunpack.c.l.b16 %v2088
        %v2485 = vunpack.c.l.b16 %v2089
        %v2486 = vunpack.c.l.b16 %v2090
        %v2487 = vunpack.c.l.b16 %v2091
        %v2488 = vunpack.c.l.b16 %v2092
        %v2489 = vunpack.c.l.b16 %v2093
        %v2490 = vunpack.c.l.b16 %v2094
        %v2491 = vunpack.c.l.b16 %v2095
        %v2492 = vunpack.c.l.b16 %v2096
        %v2493 = vunpack.c.l.b16 %v2097
        %v2494 = vunpack.c.l.b16 %v2098
        %v2495 = vunpack.c.l.b16 %v2099
        %v2496 = vunpack.c.l.b16 %v2100
        %v2497 = vunpack.c.l.b16 %v2101
        %v2498 = vunpack.c.l.b16 %v2102
        %v2499 = vunpack.c.l.b16 %v2103
        %v2500 = vunpack.c.l.b16 %v2104
        %v2501 = vunpack.c.l.b16 %v2105
        %v2502 = vunpack.c.l.b16 %v2106
        %v2503 = vunpack.c.l.b16 %v2107
        %v2504 = vunpack.c.l.b16 %v2108
        %v2505 = vunpack.c.l.b16 %v2109
        %v2506 = vunpack.c.l.b16 %v2110
        %v2507 = vunpack.c.l.b16 %v2111
        %v2508 = vunpack.c.l.b16 %v2112
        %v2509 = vunpack.c.l.b16 %v2113
        %v2510 = vunpack.c.l.b16 %v2114
        %v2511 = vunpack.c.l.b16 %v2115
        %v2512 = vunpack.c.l.b16 %v2116
        %v2513 = vunpack.c.l.b16 %v2117
        %v2514 = vunpack.c.l.b16 %v2118
        %v2515 = vunpack.c.l.b16 %v2119
        %v2516 = vunpack.c.l.b16 %v2120
        %v2517 = vunpack.c.l.b16 %v2121
        %v2518 = vunpack.c.l.b16 %v2122
        %v2519 = vunpack.c.l.b16 %v2123
        %v2520 = vunpack.c.l.b16 %v2124
        %v2521 = vunpack.c.l.b16 %v2125
        %v2522 = vunpack.c.l.b16 %v2126
        %v2523 = vunpack.c.l.b16 %v2127
        %v2524 = vunpack.c.l.b16 %v2128
        %v2525 = vunpack.c.l.b16 %v2129
        %v2526 = vunpack.c.l.b16 %v2130
        %v2527 = vunpack.c.l.b16 %v2131
        %v2528 = vunpack.c.l.b16 %v2132
        %v2529 = vunpack.c.l.b16 %v2133
        %v2530 = vunpack.c.l.b16 %v2134
        %v2531 = vunpack.c.l.b16 %v2135
        %v2532 = vunpack.c.l.b16 %v2136
        %v2533 = vunpack.c.l.b16 %v2137
        %v2534 = vunpack.c.l.b16 %v2138
        %v2535 = vunpack.c.l.b16 %v2139
        %v2536 = vunpack.c.l.b16 %v2140
        %v2537 = vunpack.c.l.b16 %v2141
        %v2538 = vunpack.c.l.b16 %v2142
        %v2539 = vunpack.c.l.b16 %v2143
        %v2540 = vunpack.c.l.b16 %v2144
        %v2541 = vunpack.c.l.b16 %v2145
        %v2542 = vunpack.c.l.b16 %v2146
        %v2543 = vunpack.c.l.b16 %v2147
        %v2544 = vunpack.c.l.b16 %v2148
        %v2545 = vunpack.c.l.b16 %v2149
        %v2546 = vunpack.c.l.b16 %v2150
        %v2547 = vunpack.c.l.b16 %v2151
        %v2548 = vunpack.c.l.b16 %v2152
        %v2549 = vunpack.c.l.b16 %v2153
        %v2550 = vunpack.c.l.b16 %v2154
        %v2551 = vunpack.c.l.b16 %v2155
        %v2552 = vunpack.c.l.b16 %v2156
        %v2553 = vunpack.c.l.b16 %v2157
        %v2554 = vunpack.c.l.b16 %v2158
        %v2555 = vunpack.c.l.b16 %v2159
        %v2556 = vunpack.c.l.b16 %v2160
        %v2557 = vpack.c.b16 %v2366, %v2365
        %v2558 = vpack.c.b16 %v2368, %v2367
        %v2559 = vpack.c.b16 %v2370, %v2369
        %v2560 = vpack.c.b16 %v2372, %v2371
        %v2561 = vpack.c.b16 %v2374, %v2373
        %v2562 = vpack.c.b16 %v2376, %v2375
        %v2563 = vpack.c.b16 %v2378, %v2377
        %v2564 = vpack.c.b16 %v2380, %v2379
        %v2565 = vpack.c.b16 %v2382, %v2381
        %v2566 = vpack.c.b16 %v2384, %v2383
        %v2567 = vpack.c.b16 %v2386, %v2385
        %v2568 = vpack.c.b16 %v2388, %v2387
        %v2569 = vpack.c.b16 %v2390, %v2389
        %v2570 = vpack.c.b16 %v2392, %v2391
        %v2571 = vpack.c.b16 %v2394, %v2393
        %v2572 = vpack.c.b16 %v2396, %v2395
        %v2573 = vpack.c.b16 %v2398, %v2397
        %v2574 = vpack.c.b16 %v2400, %v2399
        %v2575 = vpack.c.b16 %v2402, %v2401
        %v2576 = vpack.c.b16 %v2404, %v2403
        %v2577 = vpack.c.b16 %v2406, %v2405
        %v2578 = vpack.c.b16 %v2408, %v2407
        %v2579 = vpack.c.b16 %v2410, %v2409
        %v2580 = vpack.c.b16 %v2412, %v2411
        %v2581 = vpack.c.b16 %v2414, %v2413
        %v2582 = vpack.c.b16 %v2416, %v2415
        %v2583 = vpack.c.b16 %v2418, %v2417
        %v2584 = vpack.c.b16 %v2420, %v2419
        %v2585 = vpack.c.b16 %v2422, %v2421
        %v2586 = vpack.c.b16 %v2424, %v2423
        %v2587 = vpack.c.b16 %v2426, %v2425
        %v2588 = vpack.c.b16 %v2428, %v2427
        %v2589 = vpack.c.b16 %v2430, %v2429
        %v2590 = vpack.c.b16 %v2432, %v2431
        %v2591 = vpack.c.b16 %v2434, %v2433
        %v2592 = vpack.c.b16 %v2436, %v2435
        %v2593 = vpack.c.b16 %v2438, %v2437
        %v2594 = vpack.c.b16 %v2440, %v2439
        %v2595 = vpack.c.b16 %v2442, %v2441
        %v2596 = vpack.c.b16 %v2444, %v2443
        %v2597 = vpack.c.b16 %v2446, %v2445
        %v2598 = vpack.c.b16 %v2448, %v2447
        %v2599 = vpack.c.b16 %v2450, %v2449
        %v2600 = vpack.c.b16 %v2452, %v2451
        %v2601 = vpack.c.b16 %v2454, %v2453
        %v2602 = vpack.c.b16 %v2456, %v2455
        %v2603 = vpack.c.b16 %v2458, %v2457
        %v2604 = vpack.c.b16 %v2460, %v2459
        %v2605 = vpack.c.b16 %v2462, %v2461
        %v2606 = vpack.c.b16 %v2464, %v2463
        %v2607 = vpack.c.b16 %v2466, %v2465
        %v2608 = vpack.c.b16 %v2468, %v2467
        %v2609 = vpack.c.b16 %v2470, %v2469
        %v2610 = vpack.c.b16 %v2472, %v2471
        %v2611 = vpack.c.b16 %v2474, %v2473
        %v2612 = vpack.c.b16 %v2476, %v2475
        %v2613 = vpack.c.b16 %v2478, %v2477
        %v2614 = vpack.c.b16 %v2480, %v2479
        %v2615 = vpack.c.b16 %v2482, %v2481
        %v2616 = vpack.c.b16 %v2484, %v2483
        %v2617 = vpack.c.b16 %v2486, %v2485
        %v2618 = vpack.c.b16 %v2488, %v2487
        %v2619 = vpack.c.b16 %v2490, %v2489
        %v2620 = vpack.c.b16 %v2492, %v2491
        %v2621 = vpack.c.b16 %v2494, %v2493
        %v2622 = vpack.c.b16 %v2496, %v2495
        %v2623 = vpack.c.b16 %v2498, %v2497
        %v2624 = vpack.c.b16 %v2500, %v2499
        %v2625 = vpack.c.b16 %v2502, %v2501
        %v2626 = vpack.c.b16 %v2504, %v2503
        %v2627 = vpack.c.b16 %v2506, %v2505
        %v2628 = vpack.c.b16 %v2508, %v2507
        %v2629 = vpack.c.b16 %v2510, %v2509
        %v2630 = vpack.c.b16 %v2512, %v2511
        %v2631 = vpack.c.b16 %v2514, %v2513
        %v2632 = vpack.c.b16 %v2516, %v2515
        %v2633 = vpack.c.b16 %v2518, %v2517
        %v2634 = vpack.c.b16 %v2520, %v2519
        %v2635 = vpack.c.b16 %v2522, %v2521
        %v2636 = vpack.c.b16 %v2524, %v2523
        %v2637 = vpack.c.b16 %v2526, %v2525
        %v2638 = vpack.c.b16 %v2528, %v2527
        %v2639 = vpack.c.b16 %v2530, %v2529
        %v2640 = vpack.c.b16 %v2532, %v2531
        %v2641 = vpack.c.b16 %v2534, %v2533
        %v2642 = vpack.c.b16 %v2536, %v2535
        %v2643 = vpack.c.b16 %v2538, %v2537
        %v2644 = vpack.c.b16 %v2540, %v2539
        %v2645 = vpack.c.b16 %v2542, %v2541
        %v2646 = vpack.c.b16 %v2544, %v2543
        %v2647 = vpack.c.b16 %v2546, %v2545
        %v2648 = vpack.c.b16 %v2548, %v2547
        %v2649 = vpack.c.b16 %v2550, %v2549
        %v2650 = vpack.c.b16 %v2552, %v2551
        %v2651 = vpack.c.b16 %v2554, %v2553
        %v2652 = vpack.c.b16 %v2556, %v2555
        %v2658 = vunpack.c.l.b16 %v2161
        %v2659 = vunpack.c.l.b16 %v2162
        %v2660 = vunpack.c.l.b16 %v2163
        %v2661 = vunpack.c.l.b16 %v2164
        %v2662 = vunpack.c.l.b16 %v2165
        %v2663 = vpack.c.b16 %v2659, %v2658
        %v2664 = vpack.c.b16 %v2661, %v2660
        %v2665 = vpack.c.b16 %v2662, %v2662
        %vm2668 = vcmask 293888
        %v2670 = vsel %vm2668, %v2557, 0
        %v2673 = vsel %vm2668, %v2558, 0
        %v2676 = vsel %vm2668, %v2559, 0
        %v2679 = vsel %vm2668, %v2560, 0
        %v2682 = vsel %vm2668, %v2561, 0
        %v2685 = vsel %vm2668, %v2562, 0
        %v2688 = vsel %vm2668, %v2563, 0
        %v2691 = vsel %vm2668, %v2564, 0
        %v2694 = vsel %vm2668, %v2565, 0
        %v2697 = vsel %vm2668, %v2566, 0
        %v2700 = vsel %vm2668, %v2567, 0
        %v2703 = vsel %vm2668, %v2568, 0
        %v2706 = vsel %vm2668, %v2569, 0
        %v2709 = vsel %vm2668, %v2570, 0
        %v2712 = vsel %vm2668, %v2571, 0
        %v2715 = vsel %vm2668, %v2572, 0
        %v2718 = vsel %vm2668, %v2573, 0
        %v2721 = vsel %vm2668, %v2574, 0
        %v2724 = vsel %vm2668, %v2575, 0
        %v2727 = vsel %vm2668, %v2576, 0
        %v2730 = vsel %vm2668, %v2577, 0
        %v2733 = vsel %vm2668, %v2578, 0
        %v2736 = vsel %vm2668, %v2579, 0
        %v2739 = vsel %vm2668, %v2580, 0
        %v2742 = vsel %vm2668, %v2581, 0
        %v2745 = vsel %vm2668, %v2582, 0
        %v2748 = vsel %vm2668, %v2583, 0
        %v2751 = vsel %vm2668, %v2584, 0
        %v2754 = vsel %vm2668, %v2585, 0
        %v2757 = vsel %vm2668, %v2586, 0
        %v2760 = vsel %vm2668, %v2587, 0
        %v2763 = vsel %vm2668, %v2588, 0
        %v2766 = vsel %vm2668, %v2589, 0
        %v2769 = vsel %vm2668, %v2590, 0
        %v2772 = vsel %vm2668, %v2591, 0
        %v2775 = vsel %vm2668, %v2592, 0
        %v2778 = vsel %vm2668, %v2593, 0
        %v2781 = vsel %vm2668, %v2594, 0
        %v2784 = vsel %vm2668, %v2595, 0
        %v2787 = vsel %vm2668, %v2596, 0
        %v2790 = vsel %vm2668, %v2597, 0
        %v2793 = vsel %vm2668, %v2598, 0
        %v2796 = vsel %vm2668, %v2599, 0
        %v2799 = vsel %vm2668, %v2600, 0
        %v2802 = vsel %vm2668, %v2601, 0
        %v2805 = vsel %vm2668, %v2602, 0
        %v2808 = vsel %vm2668, %v2603, 0
        %v2811 = vsel %vm2668, %v2604, 0
        %v2814 = vsel %vm2668, %v2605, 0
        %v2817 = vsel %vm2668, %v2606, 0
        %v2820 = vsel %vm2668, %v2607, 0
        %v2823 = vsel %vm2668, %v2608, 0
        %v2826 = vsel %vm2668, %v2609, 0
        %v2829 = vsel %vm2668, %v2610, 0
        %v2832 = vsel %vm2668, %v2611, 0
        %v2835 = vsel %vm2668, %v2612, 0
        %v2838 = vsel %vm2668, %v2613, 0
        %v2841 = vsel %vm2668, %v2614, 0
        %v2844 = vsel %vm2668, %v2615, 0
        %v2847 = vsel %vm2668, %v2616, 0
        %v2850 = vsel %vm2668, %v2617, 0
        %v2853 = vsel %vm2668, %v2618, 0
        %v2856 = vsel %vm2668, %v2619, 0
        %v2859 = vsel %vm2668, %v2620, 0
        %v2862 = vsel %vm2668, %v2621, 0
        %v2865 = vsel %vm2668, %v2622, 0
        %v2868 = vsel %vm2668, %v2623, 0
        %v2871 = vsel %vm2668, %v2624, 0
        %v2874 = vsel %vm2668, %v2625, 0
        %v2877 = vsel %vm2668, %v2626, 0
        %v2880 = vsel %vm2668, %v2627, 0
        %v2883 = vsel %vm2668, %v2628, 0
        %v2886 = vsel %vm2668, %v2629, 0
        %v2889 = vsel %vm2668, %v2630, 0
        %v2892 = vsel %vm2668, %v2631, 0
        %v2895 = vsel %vm2668, %v2632, 0
        %v2898 = vsel %vm2668, %v2633, 0
        %v2901 = vsel %vm2668, %v2634, 0
        %v2904 = vsel %vm2668, %v2635, 0
        %v2907 = vsel %vm2668, %v2636, 0
        %v2910 = vsel %vm2668, %v2637, 0
        %v2913 = vsel %vm2668, %v2638, 0
        %v2916 = vsel %vm2668, %v2639, 0
        %v2919 = vsel %vm2668, %v2640, 0
        %v2922 = vsel %vm2668, %v2641, 0
        %v2925 = vsel %vm2668, %v2642, 0
        %v2928 = vsel %vm2668, %v2643, 0
        %v2931 = vsel %vm2668, %v2644, 0
        %v2934 = vsel %vm2668, %v2645, 0
        %v2937 = vsel %vm2668, %v2646, 0
        %v2940 = vsel %vm2668, %v2647, 0
        %v2943 = vsel %vm2668, %v2648, 0
        %v2946 = vsel %vm2668, %v2649, 0
        %v2949 = vsel %vm2668, %v2650, 0
        %v2952 = vsel %vm2668, %v2651, 0
        %v2955 = vsel %vm2668, %v2652, 0
        %vm2957 = vcmask 1041408
        %v2959 = vsel %vm2957, %v2665, 0
        %2961 = vmatprep.subr.bf16.mxu0 0
        %2962 = vmatpush1.bf16.msra.mxu0 %v2663
        %2963 = vmatprep.subr.bf16.mxu0 0
        %2964 = vmatpush1.bf16.msra.mxu0 %v2664
        %2965 = vmatprep.subr.bf16.mxu0 0
        %2966 = vmatpush1.bf16.msra.mxu0 %v2959
        %2967 = vmatprep.subr.bf16.mxu0 0
        %2968 = vmatpush1.bf16.msra.mxu0 0
        %2969 = vmatprep.subr.bf16.mxu0 0
        %2970 = vmatpush1.bf16.msra.mxu0 0
        %2971 = vmatprep.subr.bf16.mxu0 0
        %2972 = vmatpush1.bf16.msra.mxu0 0
        %2973 = vmatprep.subr.bf16.mxu0 0
        %2974 = vmatpush1.bf16.msra.mxu0 0
        %2975 = vmatprep.subr.bf16.mxu0 0
        %2976 = vmatpush1.bf16.msra.mxu0 0
        %2977 = vmatprep.subr.bf16.mxu0 0
        %2978 = vmatpush1.bf16.msra.mxu0 0
        %2979 = vmatprep.subr.bf16.mxu0 0
        %2980 = vmatpush1.bf16.msra.mxu0 0
        %2981 = vmatprep.subr.bf16.mxu0 0
        %2982 = vmatpush1.bf16.msra.mxu0 0
        %2983 = vmatprep.subr.bf16.mxu0 0
        %2984 = vmatpush1.bf16.msra.mxu0 0
        %2985 = vmatprep.subr.bf16.mxu0 0
        %2986 = vmatpush1.bf16.msra.mxu0 0
        %2987 = vmatprep.subr.bf16.mxu0 0
        %2988 = vmatpush1.bf16.msra.mxu0 0
        %2989 = vmatprep.subr.bf16.mxu0 0
        %2990 = vmatpush1.bf16.msra.mxu0 0
        %2991 = vmatprep.subr.bf16.mxu0 0
        %2992 = vmatpush1.bf16.msra.mxu0 0
        %2993 = vmatprep.mubr.bf16.mxu0 0
        %2994 = vmatmul.mubr.bf16.gmra.mrb[0].mxu0 %v2670
        %v2995 = vpop.f32.mrb[0].mxu0
        %v2996 = vadd.f32 %v2171, %v2995
        %v2997 = vpop.f32.mrb[0].mxu0
        %v2998 = vpop.f32.mrb[0].mxu0
        %v2999 = vadd.f32 %v2171, %v2998
        %v3000 = vpop.f32.mrb[0].mxu0
        %3001 = vmatprep.mubr.bf16.mxu0 0
        %3002 = vmatmul.mubr.bf16.gmra.mrb[0].mxu0 %v2673
        %v3003 = vpop.f32.mrb[0].mxu0
        %v3004 = vadd.f32 %v2171, %v3003
        %v3005 = vpop.f32.mrb[0].mxu0
        %v3006 = vpop.f32.mrb[0].mxu0
        %v3007 = vadd.f32 %v2171, %v3006
        %v3008 = vpop.f32.mrb[0].mxu0
        %3009 = vmatprep.mubr.bf16.mxu0 0
        %3010 = vmatmul.mubr.bf16.gmra.mrb[0].mxu0 %v2676
        %v3011 = vpop.f32.mrb[0].mxu0
        %v3012 = vadd.f32 %v2171, %v3011
        %v3013 = vpop.f32.mrb[0].mxu0
        %v3014 = vpop.f32.mrb[0].mxu0
        %v3015 = vadd.f32 %v2171, %v3014
        %v3016 = vpop.f32.mrb[0].mxu0
        %3017 = vmatprep.mubr.bf16.mxu0 0
        %3018 = vmatmul.mubr.bf16.gmra.mrb[0].mxu0 %v2679
        %v3019 = vpop.f32.mrb[0].mxu0
        %v3020 = vadd.f32 %v2171, %v3019
        %v3021 = vpop.f32.mrb[0].mxu0
        %v3022 = vpop.f32.mrb[0].mxu0
        %v3023 = vadd.f32 %v2171, %v3022
        %v3024 = vpop.f32.mrb[0].mxu0
        %3025 = vmatprep.mubr.bf16.mxu0 0
        %3026 = vmatmul.mubr.bf16.gmra.mrb[0].mxu0 %v2682
        %v3027 = vpop.f32.mrb[0].mxu0
        %v3028 = vadd.f32 %v2171, %v3027
        %v3029 = vpop.f32.mrb[0].mxu0
        %v3030 = vpop.f32.mrb[0].mxu0
        %v3031 = vadd.f32 %v2171, %v3030
        %v3032 = vpop.f32.mrb[0].mxu0
        %3033 = vmatprep.mubr.bf16.mxu0 0
        %3034 = vmatmul.mubr.bf16.gmra.mrb[0].mxu0 %v2685
        %v3035 = vpop.f32.mrb[0].mxu0
        %v3036 = vadd.f32 %v2171, %v3035
        %v3037 = vpop.f32.mrb[0].mxu0
        %v3038 = vpop.f32.mrb[0].mxu0
        %v3039 = vadd.f32 %v2171, %v3038
        %v3040 = vpop.f32.mrb[0].mxu0
        %3041 = vmatprep.mubr.bf16.mxu0 0
        %3042 = vmatmul.mubr.bf16.gmra.mrb[0].mxu0 %v2688
        %v3043 = vpop.f32.mrb[0].mxu0
        %v3044 = vadd.f32 %v2171, %v3043
        %v3045 = vpop.f32.mrb[0].mxu0
        %v3046 = vpop.f32.mrb[0].mxu0
        %v3047 = vadd.f32 %v2171, %v3046
        %v3048 = vpop.f32.mrb[0].mxu0
        %3049 = vmatprep.mubr.bf16.mxu0 0
        %3050 = vmatmul.mubr.bf16.gmra.mrb[0].mxu0 %v2691
        %v3051 = vpop.f32.mrb[0].mxu0
        %v3052 = vadd.f32 %v2171, %v3051
        %v3053 = vpop.f32.mrb[0].mxu0
        %v3054 = vpop.f32.mrb[0].mxu0
        %v3055 = vadd.f32 %v2171, %v3054
        %v3056 = vpop.f32.mrb[0].mxu0
        %3057 = vmatprep.mubr.bf16.mxu0 0
        %3058 = vmatmul.mubr.bf16.gmra.mrb[0].mxu0 %v2694
        %v3059 = vpop.f32.mrb[0].mxu0
        %v3060 = vadd.f32 %v2171, %v3059
        %v3061 = vpop.f32.mrb[0].mxu0
        %v3062 = vpop.f32.mrb[0].mxu0
        %v3063 = vadd.f32 %v2171, %v3062
        %v3064 = vpop.f32.mrb[0].mxu0
        %3065 = vmatprep.mubr.bf16.mxu0 0
        %3066 = vmatmul.mubr.bf16.gmra.mrb[0].mxu0 %v2697
        %v3067 = vpop.f32.mrb[0].mxu0
        %v3068 = vadd.f32 %v2171, %v3067
        %v3069 = vpop.f32.mrb[0].mxu0
        %v3070 = vpop.f32.mrb[0].mxu0
        %v3071 = vadd.f32 %v2171, %v3070
        %v3072 = vpop.f32.mrb[0].mxu0
        %3073 = vmatprep.mubr.bf16.mxu0 0
        %3074 = vmatmul.mubr.bf16.gmra.mrb[0].mxu0 %v2700
        %v3075 = vpop.f32.mrb[0].mxu0
        %v3076 = vadd.f32 %v2171, %v3075
        %v3077 = vpop.f32.mrb[0].mxu0
        %v3078 = vpop.f32.mrb[0].mxu0
        %v3079 = vadd.f32 %v2171, %v3078
        %v3080 = vpop.f32.mrb[0].mxu0
        %3081 = vmatprep.mubr.bf16.mxu0 0
        %3082 = vmatmul.mubr.bf16.gmra.mrb[0].mxu0 %v2703
        %v3083 = vpop.f32.mrb[0].mxu0
        %v3084 = vadd.f32 %v2171, %v3083
        %v3085 = vpop.f32.mrb[0].mxu0
        %v3086 = vpop.f32.mrb[0].mxu0
        %v3087 = vadd.f32 %v2171, %v3086
        %v3088 = vpop.f32.mrb[0].mxu0
        %3089 = vmatprep.mubr.bf16.mxu0 0
        %3090 = vmatmul.mubr.bf16.gmra.mrb[0].mxu0 %v2706
        %v3091 = vpop.f32.mrb[0].mxu0
        %v3092 = vadd.f32 %v2171, %v3091
        %v3093 = vpop.f32.mrb[0].mxu0
        %v3094 = vpop.f32.mrb[0].mxu0
        %v3095 = vadd.f32 %v2171, %v3094
        %v3096 = vpop.f32.mrb[0].mxu0
        %3097 = vmatprep.mubr.bf16.mxu0 0
        %3098 = vmatmul.mubr.bf16.gmra.mrb[0].mxu0 %v2709
        %v3099 = vpop.f32.mrb[0].mxu0
        %v3100 = vadd.f32 %v2171, %v3099
        %v3101 = vpop.f32.mrb[0].mxu0
        %v3102 = vpop.f32.mrb[0].mxu0
        %v3103 = vadd.f32 %v2171, %v3102
        %v3104 = vpop.f32.mrb[0].mxu0
        %3105 = vmatprep.mubr.bf16.mxu0 0
        %3106 = vmatmul.mubr.bf16.gmra.mrb[0].mxu0 %v2712
        %v3107 = vpop.f32.mrb[0].mxu0
        %v3108 = vadd.f32 %v2171, %v3107
        %v3109 = vpop.f32.mrb[0].mxu0
        %v3110 = vpop.f32.mrb[0].mxu0
        %v3111 = vadd.f32 %v2171, %v3110
        %v3112 = vpop.f32.mrb[0].mxu0
        %3113 = vmatprep.mubr.bf16.mxu0 0
        %3114 = vmatmul.mubr.bf16.gmra.mrb[0].mxu0 %v2715
        %v3115 = vpop.f32.mrb[0].mxu0
        %v3116 = vadd.f32 %v2171, %v3115
        %v3117 = vpop.f32.mrb[0].mxu0
        %v3118 = vpop.f32.mrb[0].mxu0
        %v3119 = vadd.f32 %v2171, %v3118
        %v3120 = vpop.f32.mrb[0].mxu0
        %3121 = vmatprep.mubr.bf16.mxu0 0
        %3122 = vmatmul.mubr.bf16.gmra.mrb[0].mxu0 %v2718
        %v3123 = vpop.f32.mrb[0].mxu0
        %v3124 = vadd.f32 %v2171, %v3123
        %v3125 = vpop.f32.mrb[0].mxu0
        %v3126 = vpop.f32.mrb[0].mxu0
        %v3127 = vadd.f32 %v2171, %v3126
        %v3128 = vpop.f32.mrb[0].mxu0
        %3129 = vmatprep.mubr.bf16.mxu0 0
        %3130 = vmatmul.mubr.bf16.gmra.mrb[0].mxu0 %v2721
        %v3131 = vpop.f32.mrb[0].mxu0
        %v3132 = vadd.f32 %v2171, %v3131
        %v3133 = vpop.f32.mrb[0].mxu0
        %v3134 = vpop.f32.mrb[0].mxu0
        %v3135 = vadd.f32 %v2171, %v3134
        %v3136 = vpop.f32.mrb[0].mxu0
        %3137 = vmatprep.mubr.bf16.mxu0 0
        %3138 = vmatmul.mubr.bf16.gmra.mrb[0].mxu0 %v2724
        %v3139 = vpop.f32.mrb[0].mxu0
        %v3140 = vadd.f32 %v2171, %v3139
        %v3141 = vpop.f32.mrb[0].mxu0
        %v3142 = vpop.f32.mrb[0].mxu0
        %v3143 = vadd.f32 %v2171, %v3142
        %v3144 = vpop.f32.mrb[0].mxu0
        %3145 = vmatprep.mubr.bf16.mxu0 0
        %3146 = vmatmul.mubr.bf16.gmra.mrb[0].mxu0 %v2727
        %v3147 = vpop.f32.mrb[0].mxu0
        %v3148 = vadd.f32 %v2171, %v3147
        %v3149 = vpop.f32.mrb[0].mxu0
        %v3150 = vpop.f32.mrb[0].mxu0
        %v3151 = vadd.f32 %v2171, %v3150
        %v3152 = vpop.f32.mrb[0].mxu0
        %3153 = vmatprep.mubr.bf16.mxu0 0
        %3154 = vmatmul.mubr.bf16.gmra.mrb[0].mxu0 %v2730
        %v3155 = vpop.f32.mrb[0].mxu0
        %v3156 = vadd.f32 %v2171, %v3155
        %v3157 = vpop.f32.mrb[0].mxu0
        %v3158 = vpop.f32.mrb[0].mxu0
        %v3159 = vadd.f32 %v2171, %v3158
        %v3160 = vpop.f32.mrb[0].mxu0
        %3161 = vmatprep.mubr.bf16.mxu0 0
        %3162 = vmatmul.mubr.bf16.gmra.mrb[0].mxu0 %v2733
        %v3163 = vpop.f32.mrb[0].mxu0
        %v3164 = vadd.f32 %v2171, %v3163
        %v3165 = vpop.f32.mrb[0].mxu0
        %v3166 = vpop.f32.mrb[0].mxu0
        %v3167 = vadd.f32 %v2171, %v3166
        %v3168 = vpop.f32.mrb[0].mxu0
        %3169 = vmatprep.mubr.bf16.mxu0 0
        %3170 = vmatmul.mubr.bf16.gmra.mrb[0].mxu0 %v2736
        %v3171 = vpop.f32.mrb[0].mxu0
        %v3172 = vadd.f32 %v2171, %v3171
        %v3173 = vpop.f32.mrb[0].mxu0
        %v3174 = vpop.f32.mrb[0].mxu0
        %v3175 = vadd.f32 %v2171, %v3174
        %v3176 = vpop.f32.mrb[0].mxu0
        %3177 = vmatprep.mubr.bf16.mxu0 0
        %3178 = vmatmul.mubr.bf16.gmra.mrb[0].mxu0 %v2739
        %v3179 = vpop.f32.mrb[0].mxu0
        %v3180 = vadd.f32 %v2171, %v3179
        %v3181 = vpop.f32.mrb[0].mxu0
        %v3182 = vpop.f32.mrb[0].mxu0
        %v3183 = vadd.f32 %v2171, %v3182
        %v3184 = vpop.f32.mrb[0].mxu0
        %3185 = vmatprep.mubr.bf16.mxu0 0
        %3186 = vmatmul.mubr.bf16.gmra.mrb[0].mxu0 %v2742
        %v3187 = vpop.f32.mrb[0].mxu0
        %v3188 = vadd.f32 %v2171, %v3187
        %v3189 = vpop.f32.mrb[0].mxu0
        %v3190 = vpop.f32.mrb[0].mxu0
        %v3191 = vadd.f32 %v2171, %v3190
        %v3192 = vpop.f32.mrb[0].mxu0
        %3193 = vmatprep.mubr.bf16.mxu0 0
        %3194 = vmatmul.mubr.bf16.gmra.mrb[0].mxu0 %v2745
        %v3195 = vpop.f32.mrb[0].mxu0
        %v3196 = vadd.f32 %v2171, %v3195
        %v3197 = vpop.f32.mrb[0].mxu0
        %v3198 = vpop.f32.mrb[0].mxu0
        %v3199 = vadd.f32 %v2171, %v3198
        %v3200 = vpop.f32.mrb[0].mxu0
        %3201 = vmatprep.mubr.bf16.mxu0 0
        %3202 = vmatmul.mubr.bf16.gmra.mrb[0].mxu0 %v2748
        %v3203 = vpop.f32.mrb[0].mxu0
        %v3204 = vadd.f32 %v2171, %v3203
        %v3205 = vpop.f32.mrb[0].mxu0
        %v3206 = vpop.f32.mrb[0].mxu0
        %v3207 = vadd.f32 %v2171, %v3206
        %v3208 = vpop.f32.mrb[0].mxu0
        %3209 = vmatprep.mubr.bf16.mxu0 0
        %3210 = vmatmul.mubr.bf16.gmra.mrb[0].mxu0 %v2751
        %v3211 = vpop.f32.mrb[0].mxu0
        %v3212 = vadd.f32 %v2171, %v3211
        %v3213 = vpop.f32.mrb[0].mxu0
        %v3214 = vpop.f32.mrb[0].mxu0
        %v3215 = vadd.f32 %v2171, %v3214
        %v3216 = vpop.f32.mrb[0].mxu0
        %3217 = vmatprep.mubr.bf16.mxu0 0
        %3218 = vmatmul.mubr.bf16.gmra.mrb[0].mxu0 %v2754
        %v3219 = vpop.f32.mrb[0].mxu0
        %v3220 = vadd.f32 %v2171, %v3219
        %v3221 = vpop.f32.mrb[0].mxu0
        %v3222 = vpop.f32.mrb[0].mxu0
        %v3223 = vadd.f32 %v2171, %v3222
        %v3224 = vpop.f32.mrb[0].mxu0
        %3225 = vmatprep.mubr.bf16.mxu0 0
        %3226 = vmatmul.mubr.bf16.gmra.mrb[0].mxu0 %v2757
        %v3227 = vpop.f32.mrb[0].mxu0
        %v3228 = vadd.f32 %v2171, %v3227
        %v3229 = vpop.f32.mrb[0].mxu0
        %v3230 = vpop.f32.mrb[0].mxu0
        %v3231 = vadd.f32 %v2171, %v3230
        %v3232 = vpop.f32.mrb[0].mxu0
        %3233 = vmatprep.mubr.bf16.mxu0 0
        %3234 = vmatmul.mubr.bf16.gmra.mrb[0].mxu0 %v2760
        %v3235 = vpop.f32.mrb[0].mxu0
        %v3236 = vadd.f32 %v2171, %v3235
        %v3237 = vpop.f32.mrb[0].mxu0
        %v3238 = vpop.f32.mrb[0].mxu0
        %v3239 = vadd.f32 %v2171, %v3238
        %v3240 = vpop.f32.mrb[0].mxu0
        %3241 = vmatprep.mubr.bf16.mxu0 0
        %3242 = vmatmul.mubr.bf16.gmra.mrb[0].mxu0 %v2763
        %v3243 = vpop.f32.mrb[0].mxu0
        %v3244 = vadd.f32 %v2171, %v3243
        %v3245 = vpop.f32.mrb[0].mxu0
        %v3246 = vpop.f32.mrb[0].mxu0
        %v3247 = vadd.f32 %v2171, %v3246
        %v3248 = vpop.f32.mrb[0].mxu0
        %3249 = vmatprep.mubr.bf16.mxu0 0
        %3250 = vmatmul.mubr.bf16.gmra.mrb[0].mxu0 %v2766
        %v3251 = vpop.f32.mrb[0].mxu0
        %v3252 = vadd.f32 %v2171, %v3251
        %v3253 = vpop.f32.mrb[0].mxu0
        %v3254 = vpop.f32.mrb[0].mxu0
        %v3255 = vadd.f32 %v2171, %v3254
        %v3256 = vpop.f32.mrb[0].mxu0
        %3257 = vmatprep.mubr.bf16.mxu0 0
        %3258 = vmatmul.mubr.bf16.gmra.mrb[0].mxu0 %v2769
        %v3259 = vpop.f32.mrb[0].mxu0
        %v3260 = vadd.f32 %v2171, %v3259
        %v3261 = vpop.f32.mrb[0].mxu0
        %v3262 = vpop.f32.mrb[0].mxu0
        %v3263 = vadd.f32 %v2171, %v3262
        %v3264 = vpop.f32.mrb[0].mxu0
        %3265 = vmatprep.mubr.bf16.mxu0 0
        %3266 = vmatmul.mubr.bf16.gmra.mrb[0].mxu0 %v2772
        %v3267 = vpop.f32.mrb[0].mxu0
        %v3268 = vadd.f32 %v2171, %v3267
        %v3269 = vpop.f32.mrb[0].mxu0
        %v3270 = vpop.f32.mrb[0].mxu0
        %v3271 = vadd.f32 %v2171, %v3270
        %v3272 = vpop.f32.mrb[0].mxu0
        %3273 = vmatprep.mubr.bf16.mxu0 0
        %3274 = vmatmul.mubr.bf16.gmra.mrb[0].mxu0 %v2775
        %v3275 = vpop.f32.mrb[0].mxu0
        %v3276 = vadd.f32 %v2171, %v3275
        %v3277 = vpop.f32.mrb[0].mxu0
        %v3278 = vpop.f32.mrb[0].mxu0
        %v3279 = vadd.f32 %v2171, %v3278
        %v3280 = vpop.f32.mrb[0].mxu0
        %3281 = vmatprep.mubr.bf16.mxu0 0
        %3282 = vmatmul.mubr.bf16.gmra.mrb[0].mxu0 %v2778
        %v3283 = vpop.f32.mrb[0].mxu0
        %v3284 = vadd.f32 %v2171, %v3283
        %v3285 = vpop.f32.mrb[0].mxu0
        %v3286 = vpop.f32.mrb[0].mxu0
        %v3287 = vadd.f32 %v2171, %v3286
        %v3288 = vpop.f32.mrb[0].mxu0
        %3289 = vmatprep.mubr.bf16.mxu0 0
        %3290 = vmatmul.mubr.bf16.gmra.mrb[0].mxu0 %v2781
        %v3291 = vpop.f32.mrb[0].mxu0
        %v3292 = vadd.f32 %v2171, %v3291
        %v3293 = vpop.f32.mrb[0].mxu0
        %v3294 = vpop.f32.mrb[0].mxu0
        %v3295 = vadd.f32 %v2171, %v3294
        %v3296 = vpop.f32.mrb[0].mxu0
        %3297 = vmatprep.mubr.bf16.mxu0 0
        %3298 = vmatmul.mubr.bf16.gmra.mrb[0].mxu0 %v2784
        %v3299 = vpop.f32.mrb[0].mxu0
        %v3300 = vadd.f32 %v2171, %v3299
        %v3301 = vpop.f32.mrb[0].mxu0
        %v3302 = vpop.f32.mrb[0].mxu0
        %v3303 = vadd.f32 %v2171, %v3302
        %v3304 = vpop.f32.mrb[0].mxu0
        %3305 = vmatprep.mubr.bf16.mxu0 0
        %3306 = vmatmul.mubr.bf16.gmra.mrb[0].mxu0 %v2787
        %v3307 = vpop.f32.mrb[0].mxu0
        %v3308 = vadd.f32 %v2171, %v3307
        %v3309 = vpop.f32.mrb[0].mxu0
        %v3310 = vpop.f32.mrb[0].mxu0
        %v3311 = vadd.f32 %v2171, %v3310
        %v3312 = vpop.f32.mrb[0].mxu0
        %3313 = vmatprep.mubr.bf16.mxu0 0
        %3314 = vmatmul.mubr.bf16.gmra.mrb[0].mxu0 %v2790
        %v3315 = vpop.f32.mrb[0].mxu0
        %v3316 = vadd.f32 %v2171, %v3315
        %v3317 = vpop.f32.mrb[0].mxu0
        %v3318 = vpop.f32.mrb[0].mxu0
        %v3319 = vadd.f32 %v2171, %v3318
        %v3320 = vpop.f32.mrb[0].mxu0
        %3321 = vmatprep.mubr.bf16.mxu0 0
        %3322 = vmatmul.mubr.bf16.gmra.mrb[0].mxu0 %v2793
        %v3323 = vpop.f32.mrb[0].mxu0
        %v3324 = vadd.f32 %v2171, %v3323
        %v3325 = vpop.f32.mrb[0].mxu0
        %v3326 = vpop.f32.mrb[0].mxu0
        %v3327 = vadd.f32 %v2171, %v3326
        %v3328 = vpop.f32.mrb[0].mxu0
        %3329 = vmatprep.mubr.bf16.mxu0 0
        %3330 = vmatmul.mubr.bf16.gmra.mrb[0].mxu0 %v2796
        %v3331 = vpop.f32.mrb[0].mxu0
        %v3332 = vadd.f32 %v2171, %v3331
        %v3333 = vpop.f32.mrb[0].mxu0
        %v3334 = vpop.f32.mrb[0].mxu0
        %v3335 = vadd.f32 %v2171, %v3334
        %v3336 = vpop.f32.mrb[0].mxu0
        %3337 = vmatprep.mubr.bf16.mxu0 0
        %3338 = vmatmul.mubr.bf16.gmra.mrb[0].mxu0 %v2799
        %v3339 = vpop.f32.mrb[0].mxu0
        %v3340 = vadd.f32 %v2171, %v3339
        %v3341 = vpop.f32.mrb[0].mxu0
        %v3342 = vpop.f32.mrb[0].mxu0
        %v3343 = vadd.f32 %v2171, %v3342
        %v3344 = vpop.f32.mrb[0].mxu0
        %3345 = vmatprep.mubr.bf16.mxu0 0
        %3346 = vmatmul.mubr.bf16.gmra.mrb[0].mxu0 %v2802
        %v3347 = vpop.f32.mrb[0].mxu0
        %v3348 = vadd.f32 %v2171, %v3347
        %v3349 = vpop.f32.mrb[0].mxu0
        %v3350 = vpop.f32.mrb[0].mxu0
        %v3351 = vadd.f32 %v2171, %v3350
        %v3352 = vpop.f32.mrb[0].mxu0
        %3353 = vmatprep.mubr.bf16.mxu0 0
        %3354 = vmatmul.mubr.bf16.gmra.mrb[0].mxu0 %v2805
        %v3355 = vpop.f32.mrb[0].mxu0
        %v3356 = vadd.f32 %v2171, %v3355
        %v3357 = vpop.f32.mrb[0].mxu0
        %v3358 = vpop.f32.mrb[0].mxu0
        %v3359 = vadd.f32 %v2171, %v3358
        %v3360 = vpop.f32.mrb[0].mxu0
        %3361 = vmatprep.mubr.bf16.mxu0 0
        %3362 = vmatmul.mubr.bf16.gmra.mrb[0].mxu0 %v2808
        %v3363 = vpop.f32.mrb[0].mxu0
        %v3364 = vadd.f32 %v2171, %v3363
        %v3365 = vpop.f32.mrb[0].mxu0
        %v3366 = vpop.f32.mrb[0].mxu0
        %v3367 = vadd.f32 %v2171, %v3366
        %v3368 = vpop.f32.mrb[0].mxu0
        %3369 = vmatprep.mubr.bf16.mxu0 0
        %3370 = vmatmul.mubr.bf16.gmra.mrb[0].mxu0 %v2811
        %v3371 = vpop.f32.mrb[0].mxu0
        %v3372 = vadd.f32 %v2171, %v3371
        %v3373 = vpop.f32.mrb[0].mxu0
        %v3374 = vpop.f32.mrb[0].mxu0
        %v3375 = vadd.f32 %v2171, %v3374
        %v3376 = vpop.f32.mrb[0].mxu0
        %3377 = vmatprep.mubr.bf16.mxu0 0
        %3378 = vmatmul.mubr.bf16.gmra.mrb[0].mxu0 %v2814
        %v3379 = vpop.f32.mrb[0].mxu0
        %v3380 = vadd.f32 %v2171, %v3379
        %v3381 = vpop.f32.mrb[0].mxu0
        %v3382 = vpop.f32.mrb[0].mxu0
        %v3383 = vadd.f32 %v2171, %v3382
        %v3384 = vpop.f32.mrb[0].mxu0
        %3385 = vmatprep.mubr.bf16.mxu0 0
        %3386 = vmatmul.mubr.bf16.gmra.mrb[0].mxu0 %v2817
        %v3387 = vpop.f32.mrb[0].mxu0
        %v3388 = vadd.f32 %v2171, %v3387
        %v3389 = vpop.f32.mrb[0].mxu0
        %v3390 = vpop.f32.mrb[0].mxu0
        %v3391 = vadd.f32 %v2171, %v3390
        %v3392 = vpop.f32.mrb[0].mxu0
        %3393 = vmatprep.mubr.bf16.mxu0 0
        %3394 = vmatmul.mubr.bf16.gmra.mrb[0].mxu0 %v2820
        %v3395 = vpop.f32.mrb[0].mxu0
        %v3396 = vadd.f32 %v2171, %v3395
        %v3397 = vpop.f32.mrb[0].mxu0
        %v3398 = vpop.f32.mrb[0].mxu0
        %v3399 = vadd.f32 %v2171, %v3398
        %v3400 = vpop.f32.mrb[0].mxu0
        %3401 = vmatprep.mubr.bf16.mxu0 0
        %3402 = vmatmul.mubr.bf16.gmra.mrb[0].mxu0 %v2823
        %v3403 = vpop.f32.mrb[0].mxu0
        %v3404 = vadd.f32 %v2171, %v3403
        %v3405 = vpop.f32.mrb[0].mxu0
        %v3406 = vpop.f32.mrb[0].mxu0
        %v3407 = vadd.f32 %v2171, %v3406
        %v3408 = vpop.f32.mrb[0].mxu0
        %3409 = vmatprep.mubr.bf16.mxu0 0
        %3410 = vmatmul.mubr.bf16.gmra.mrb[0].mxu0 %v2826
        %v3411 = vpop.f32.mrb[0].mxu0
        %v3412 = vadd.f32 %v2171, %v3411
        %v3413 = vpop.f32.mrb[0].mxu0
        %v3414 = vpop.f32.mrb[0].mxu0
        %v3415 = vadd.f32 %v2171, %v3414
        %v3416 = vpop.f32.mrb[0].mxu0
        %3417 = vmatprep.mubr.bf16.mxu0 0
        %3418 = vmatmul.mubr.bf16.gmra.mrb[0].mxu0 %v2829
        %v3419 = vpop.f32.mrb[0].mxu0
        %v3420 = vadd.f32 %v2171, %v3419
        %v3421 = vpop.f32.mrb[0].mxu0
        %v3422 = vpop.f32.mrb[0].mxu0
        %v3423 = vadd.f32 %v2171, %v3422
        %v3424 = vpop.f32.mrb[0].mxu0
        %3425 = vmatprep.mubr.bf16.mxu0 0
        %3426 = vmatmul.mubr.bf16.gmra.mrb[0].mxu0 %v2832
        %v3427 = vpop.f32.mrb[0].mxu0
        %v3428 = vadd.f32 %v2171, %v3427
        %v3429 = vpop.f32.mrb[0].mxu0
        %v3430 = vpop.f32.mrb[0].mxu0
        %v3431 = vadd.f32 %v2171, %v3430
        %v3432 = vpop.f32.mrb[0].mxu0
        %3433 = vmatprep.mubr.bf16.mxu0 0
        %3434 = vmatmul.mubr.bf16.gmra.mrb[0].mxu0 %v2835
        %v3435 = vpop.f32.mrb[0].mxu0
        %v3436 = vadd.f32 %v2171, %v3435
        %v3437 = vpop.f32.mrb[0].mxu0
        %v3438 = vpop.f32.mrb[0].mxu0
        %v3439 = vadd.f32 %v2171, %v3438
        %v3440 = vpop.f32.mrb[0].mxu0
        %3441 = vmatprep.mubr.bf16.mxu0 0
        %3442 = vmatmul.mubr.bf16.gmra.mrb[0].mxu0 %v2838
        %v3443 = vpop.f32.mrb[0].mxu0
        %v3444 = vadd.f32 %v2171, %v3443
        %v3445 = vpop.f32.mrb[0].mxu0
        %v3446 = vpop.f32.mrb[0].mxu0
        %v3447 = vadd.f32 %v2171, %v3446
        %v3448 = vpop.f32.mrb[0].mxu0
        %3449 = vmatprep.mubr.bf16.mxu0 0
        %3450 = vmatmul.mubr.bf16.gmra.mrb[0].mxu0 %v2841
        %v3451 = vpop.f32.mrb[0].mxu0
        %v3452 = vadd.f32 %v2171, %v3451
        %v3453 = vpop.f32.mrb[0].mxu0
        %v3454 = vpop.f32.mrb[0].mxu0
        %v3455 = vadd.f32 %v2171, %v3454
        %v3456 = vpop.f32.mrb[0].mxu0
        %3457 = vmatprep.mubr.bf16.mxu0 0
        %3458 = vmatmul.mubr.bf16.gmra.mrb[0].mxu0 %v2844
        %v3459 = vpop.f32.mrb[0].mxu0
        %v3460 = vadd.f32 %v2171, %v3459
        %v3461 = vpop.f32.mrb[0].mxu0
        %v3462 = vpop.f32.mrb[0].mxu0
        %v3463 = vadd.f32 %v2171, %v3462
        %v3464 = vpop.f32.mrb[0].mxu0
        %3465 = vmatprep.mubr.bf16.mxu0 0
        %3466 = vmatmul.mubr.bf16.gmra.mrb[0].mxu0 %v2847
        %v3467 = vpop.f32.mrb[0].mxu0
        %v3468 = vadd.f32 %v2171, %v3467
        %v3469 = vpop.f32.mrb[0].mxu0
        %v3470 = vpop.f32.mrb[0].mxu0
        %v3471 = vadd.f32 %v2171, %v3470
        %v3472 = vpop.f32.mrb[0].mxu0
        %3473 = vmatprep.mubr.bf16.mxu0 0
        %3474 = vmatmul.mubr.bf16.gmra.mrb[0].mxu0 %v2850
        %v3475 = vpop.f32.mrb[0].mxu0
        %v3476 = vadd.f32 %v2171, %v3475
        %v3477 = vpop.f32.mrb[0].mxu0
        %v3478 = vpop.f32.mrb[0].mxu0
        %v3479 = vadd.f32 %v2171, %v3478
        %v3480 = vpop.f32.mrb[0].mxu0
        %3481 = vmatprep.mubr.bf16.mxu0 0
        %3482 = vmatmul.mubr.bf16.gmra.mrb[0].mxu0 %v2853
        %v3483 = vpop.f32.mrb[0].mxu0
        %v3484 = vadd.f32 %v2171, %v3483
        %v3485 = vpop.f32.mrb[0].mxu0
        %v3486 = vpop.f32.mrb[0].mxu0
        %v3487 = vadd.f32 %v2171, %v3486
        %v3488 = vpop.f32.mrb[0].mxu0
        %3489 = vmatprep.mubr.bf16.mxu0 0
        %3490 = vmatmul.mubr.bf16.gmra.mrb[0].mxu0 %v2856
        %v3491 = vpop.f32.mrb[0].mxu0
        %v3492 = vadd.f32 %v2171, %v3491
        %v3493 = vpop.f32.mrb[0].mxu0
        %v3494 = vpop.f32.mrb[0].mxu0
        %v3495 = vadd.f32 %v2171, %v3494
        %v3496 = vpop.f32.mrb[0].mxu0
        %3497 = vmatprep.mubr.bf16.mxu0 0
        %3498 = vmatmul.mubr.bf16.gmra.mrb[0].mxu0 %v2859
        %v3499 = vpop.f32.mrb[0].mxu0
        %v3500 = vadd.f32 %v2171, %v3499
        %v3501 = vpop.f32.mrb[0].mxu0
        %v3502 = vpop.f32.mrb[0].mxu0
        %v3503 = vadd.f32 %v2171, %v3502
        %v3504 = vpop.f32.mrb[0].mxu0
        %3505 = vmatprep.mubr.bf16.mxu0 0
        %3506 = vmatmul.mubr.bf16.gmra.mrb[0].mxu0 %v2862
        %v3507 = vpop.f32.mrb[0].mxu0
        %v3508 = vadd.f32 %v2171, %v3507
        %v3509 = vpop.f32.mrb[0].mxu0
        %v3510 = vpop.f32.mrb[0].mxu0
        %v3511 = vadd.f32 %v2171, %v3510
        %v3512 = vpop.f32.mrb[0].mxu0
        %3513 = vmatprep.mubr.bf16.mxu0 0
        %3514 = vmatmul.mubr.bf16.gmra.mrb[0].mxu0 %v2865
        %v3515 = vpop.f32.mrb[0].mxu0
        %v3516 = vadd.f32 %v2171, %v3515
        %v3517 = vpop.f32.mrb[0].mxu0
        %v3518 = vpop.f32.mrb[0].mxu0
        %v3519 = vadd.f32 %v2171, %v3518
        %v3520 = vpop.f32.mrb[0].mxu0
        %3521 = vmatprep.mubr.bf16.mxu0 0
        %3522 = vmatmul.mubr.bf16.gmra.mrb[0].mxu0 %v2868
        %v3523 = vpop.f32.mrb[0].mxu0
        %v3524 = vadd.f32 %v2171, %v3523
        %v3525 = vpop.f32.mrb[0].mxu0
        %v3526 = vpop.f32.mrb[0].mxu0
        %v3527 = vadd.f32 %v2171, %v3526
        %v3528 = vpop.f32.mrb[0].mxu0
        %3529 = vmatprep.mubr.bf16.mxu0 0
        %3530 = vmatmul.mubr.bf16.gmra.mrb[0].mxu0 %v2871
        %v3531 = vpop.f32.mrb[0].mxu0
        %v3532 = vadd.f32 %v2171, %v3531
        %v3533 = vpop.f32.mrb[0].mxu0
        %v3534 = vpop.f32.mrb[0].mxu0
        %v3535 = vadd.f32 %v2171, %v3534
        %v3536 = vpop.f32.mrb[0].mxu0
        %3537 = vmatprep.mubr.bf16.mxu0 0
        %3538 = vmatmul.mubr.bf16.gmra.mrb[0].mxu0 %v2874
        %v3539 = vpop.f32.mrb[0].mxu0
        %v3540 = vadd.f32 %v2171, %v3539
        %v3541 = vpop.f32.mrb[0].mxu0
        %v3542 = vpop.f32.mrb[0].mxu0
        %v3543 = vadd.f32 %v2171, %v3542
        %v3544 = vpop.f32.mrb[0].mxu0
        %3545 = vmatprep.mubr.bf16.mxu0 0
        %3546 = vmatmul.mubr.bf16.gmra.mrb[0].mxu0 %v2877
        %v3547 = vpop.f32.mrb[0].mxu0
        %v3548 = vadd.f32 %v2171, %v3547
        %v3549 = vpop.f32.mrb[0].mxu0
        %v3550 = vpop.f32.mrb[0].mxu0
        %v3551 = vadd.f32 %v2171, %v3550
        %v3552 = vpop.f32.mrb[0].mxu0
        %3553 = vmatprep.mubr.bf16.mxu0 0
        %3554 = vmatmul.mubr.bf16.gmra.mrb[0].mxu0 %v2880
        %v3555 = vpop.f32.mrb[0].mxu0
        %v3556 = vadd.f32 %v2171, %v3555
        %v3557 = vpop.f32.mrb[0].mxu0
        %v3558 = vpop.f32.mrb[0].mxu0
        %v3559 = vadd.f32 %v2171, %v3558
        %v3560 = vpop.f32.mrb[0].mxu0
        %3561 = vmatprep.mubr.bf16.mxu0 0
        %3562 = vmatmul.mubr.bf16.gmra.mrb[0].mxu0 %v2883
        %v3563 = vpop.f32.mrb[0].mxu0
        %v3564 = vadd.f32 %v2171, %v3563
        %v3565 = vpop.f32.mrb[0].mxu0
        %v3566 = vpop.f32.mrb[0].mxu0
        %v3567 = vadd.f32 %v2171, %v3566
        %v3568 = vpop.f32.mrb[0].mxu0
        %3569 = vmatprep.mubr.bf16.mxu0 0
        %3570 = vmatmul.mubr.bf16.gmra.mrb[0].mxu0 %v2886
        %v3571 = vpop.f32.mrb[0].mxu0
        %v3572 = vadd.f32 %v2171, %v3571
        %v3573 = vpop.f32.mrb[0].mxu0
        %v3574 = vpop.f32.mrb[0].mxu0
        %v3575 = vadd.f32 %v2171, %v3574
        %v3576 = vpop.f32.mrb[0].mxu0
        %3577 = vmatprep.mubr.bf16.mxu0 0
        %3578 = vmatmul.mubr.bf16.gmra.mrb[0].mxu0 %v2889
        %v3579 = vpop.f32.mrb[0].mxu0
        %v3580 = vadd.f32 %v2171, %v3579
        %v3581 = vpop.f32.mrb[0].mxu0
        %v3582 = vpop.f32.mrb[0].mxu0
        %v3583 = vadd.f32 %v2171, %v3582
        %v3584 = vpop.f32.mrb[0].mxu0
        %3585 = vmatprep.mubr.bf16.mxu0 0
        %3586 = vmatmul.mubr.bf16.gmra.mrb[0].mxu0 %v2892
        %v3587 = vpop.f32.mrb[0].mxu0
        %v3588 = vadd.f32 %v2171, %v3587
        %v3589 = vpop.f32.mrb[0].mxu0
        %v3590 = vpop.f32.mrb[0].mxu0
        %v3591 = vadd.f32 %v2171, %v3590
        %v3592 = vpop.f32.mrb[0].mxu0
        %3593 = vmatprep.mubr.bf16.mxu0 0
        %3594 = vmatmul.mubr.bf16.gmra.mrb[0].mxu0 %v2895
        %v3595 = vpop.f32.mrb[0].mxu0
        %v3596 = vadd.f32 %v2171, %v3595
        %v3597 = vpop.f32.mrb[0].mxu0
        %v3598 = vpop.f32.mrb[0].mxu0
        %v3599 = vadd.f32 %v2171, %v3598
        %v3600 = vpop.f32.mrb[0].mxu0
        %3601 = vmatprep.mubr.bf16.mxu0 0
        %3602 = vmatmul.mubr.bf16.gmra.mrb[0].mxu0 %v2898
        %v3603 = vpop.f32.mrb[0].mxu0
        %v3604 = vadd.f32 %v2171, %v3603
        %v3605 = vpop.f32.mrb[0].mxu0
        %v3606 = vpop.f32.mrb[0].mxu0
        %v3607 = vadd.f32 %v2171, %v3606
        %v3608 = vpop.f32.mrb[0].mxu0
        %3609 = vmatprep.mubr.bf16.mxu0 0
        %3610 = vmatmul.mubr.bf16.gmra.mrb[0].mxu0 %v2901
        %v3611 = vpop.f32.mrb[0].mxu0
        %v3612 = vadd.f32 %v2171, %v3611
        %v3613 = vpop.f32.mrb[0].mxu0
        %v3614 = vpop.f32.mrb[0].mxu0
        %v3615 = vadd.f32 %v2171, %v3614
        %v3616 = vpop.f32.mrb[0].mxu0
        %3617 = vmatprep.mubr.bf16.mxu0 0
        %3618 = vmatmul.mubr.bf16.gmra.mrb[0].mxu0 %v2904
        %v3619 = vpop.f32.mrb[0].mxu0
        %v3620 = vadd.f32 %v2171, %v3619
        %v3621 = vpop.f32.mrb[0].mxu0
        %v3622 = vpop.f32.mrb[0].mxu0
        %v3623 = vadd.f32 %v2171, %v3622
        %v3624 = vpop.f32.mrb[0].mxu0
        %3625 = vmatprep.mubr.bf16.mxu0 0
        %3626 = vmatmul.mubr.bf16.gmra.mrb[0].mxu0 %v2907
        %v3627 = vpop.f32.mrb[0].mxu0
        %v3628 = vadd.f32 %v2171, %v3627
        %v3629 = vpop.f32.mrb[0].mxu0
        %v3630 = vpop.f32.mrb[0].mxu0
        %v3631 = vadd.f32 %v2171, %v3630
        %v3632 = vpop.f32.mrb[0].mxu0
        %3633 = vmatprep.mubr.bf16.mxu0 0
        %3634 = vmatmul.mubr.bf16.gmra.mrb[0].mxu0 %v2910
        %v3635 = vpop.f32.mrb[0].mxu0
        %v3636 = vadd.f32 %v2171, %v3635
        %v3637 = vpop.f32.mrb[0].mxu0
        %v3638 = vpop.f32.mrb[0].mxu0
        %v3639 = vadd.f32 %v2171, %v3638
        %v3640 = vpop.f32.mrb[0].mxu0
        %3641 = vmatprep.mubr.bf16.mxu0 0
        %3642 = vmatmul.mubr.bf16.gmra.mrb[0].mxu0 %v2913
        %v3643 = vpop.f32.mrb[0].mxu0
        %v3644 = vadd.f32 %v2171, %v3643
        %v3645 = vpop.f32.mrb[0].mxu0
        %v3646 = vpop.f32.mrb[0].mxu0
        %v3647 = vadd.f32 %v2171, %v3646
        %v3648 = vpop.f32.mrb[0].mxu0
        %3649 = vmatprep.mubr.bf16.mxu0 0
        %3650 = vmatmul.mubr.bf16.gmra.mrb[0].mxu0 %v2916
        %v3651 = vpop.f32.mrb[0].mxu0
        %v3652 = vadd.f32 %v2171, %v3651
        %v3653 = vpop.f32.mrb[0].mxu0
        %v3654 = vpop.f32.mrb[0].mxu0
        %v3655 = vadd.f32 %v2171, %v3654
        %v3656 = vpop.f32.mrb[0].mxu0
        %3657 = vmatprep.mubr.bf16.mxu0 0
        %3658 = vmatmul.mubr.bf16.gmra.mrb[0].mxu0 %v2919
        %v3659 = vpop.f32.mrb[0].mxu0
        %v3660 = vadd.f32 %v2171, %v3659
        %v3661 = vpop.f32.mrb[0].mxu0
        %v3662 = vpop.f32.mrb[0].mxu0
        %v3663 = vadd.f32 %v2171, %v3662
        %v3664 = vpop.f32.mrb[0].mxu0
        %3665 = vmatprep.mubr.bf16.mxu0 0
        %3666 = vmatmul.mubr.bf16.gmra.mrb[0].mxu0 %v2922
        %v3667 = vpop.f32.mrb[0].mxu0
        %v3668 = vadd.f32 %v2171, %v3667
        %v3669 = vpop.f32.mrb[0].mxu0
        %v3670 = vpop.f32.mrb[0].mxu0
        %v3671 = vadd.f32 %v2171, %v3670
        %v3672 = vpop.f32.mrb[0].mxu0
        %3673 = vmatprep.mubr.bf16.mxu0 0
        %3674 = vmatmul.mubr.bf16.gmra.mrb[0].mxu0 %v2925
        %v3675 = vpop.f32.mrb[0].mxu0
        %v3676 = vadd.f32 %v2171, %v3675
        %v3677 = vpop.f32.mrb[0].mxu0
        %v3678 = vpop.f32.mrb[0].mxu0
        %v3679 = vadd.f32 %v2171, %v3678
        %v3680 = vpop.f32.mrb[0].mxu0
        %3681 = vmatprep.mubr.bf16.mxu0 0
        %3682 = vmatmul.mubr.bf16.gmra.mrb[0].mxu0 %v2928
        %v3683 = vpop.f32.mrb[0].mxu0
        %v3684 = vadd.f32 %v2171, %v3683
        %v3685 = vpop.f32.mrb[0].mxu0
        %v3686 = vpop.f32.mrb[0].mxu0
        %v3687 = vadd.f32 %v2171, %v3686
        %v3688 = vpop.f32.mrb[0].mxu0
        %3689 = vmatprep.mubr.bf16.mxu0 0
        %3690 = vmatmul.mubr.bf16.gmra.mrb[0].mxu0 %v2931
        %v3691 = vpop.f32.mrb[0].mxu0
        %v3692 = vadd.f32 %v2171, %v3691
        %v3693 = vpop.f32.mrb[0].mxu0
        %v3694 = vpop.f32.mrb[0].mxu0
        %v3695 = vadd.f32 %v2171, %v3694
        %v3696 = vpop.f32.mrb[0].mxu0
        %3697 = vmatprep.mubr.bf16.mxu0 0
        %3698 = vmatmul.mubr.bf16.gmra.mrb[0].mxu0 %v2934
        %v3699 = vpop.f32.mrb[0].mxu0
        %v3700 = vadd.f32 %v2171, %v3699
        %v3701 = vpop.f32.mrb[0].mxu0
        %v3702 = vpop.f32.mrb[0].mxu0
        %v3703 = vadd.f32 %v2171, %v3702
        %v3704 = vpop.f32.mrb[0].mxu0
        %3705 = vmatprep.mubr.bf16.mxu0 0
        %3706 = vmatmul.mubr.bf16.gmra.mrb[0].mxu0 %v2937
        %v3707 = vpop.f32.mrb[0].mxu0
        %v3708 = vadd.f32 %v2171, %v3707
        %v3709 = vpop.f32.mrb[0].mxu0
        %v3710 = vpop.f32.mrb[0].mxu0
        %v3711 = vadd.f32 %v2171, %v3710
        %v3712 = vpop.f32.mrb[0].mxu0
        %3713 = vmatprep.mubr.bf16.mxu0 0
        %3714 = vmatmul.mubr.bf16.gmra.mrb[0].mxu0 %v2940
        %v3715 = vpop.f32.mrb[0].mxu0
        %v3716 = vadd.f32 %v2171, %v3715
        %v3717 = vpop.f32.mrb[0].mxu0
        %v3718 = vpop.f32.mrb[0].mxu0
        %v3719 = vadd.f32 %v2171, %v3718
        %v3720 = vpop.f32.mrb[0].mxu0
        %3721 = vmatprep.mubr.bf16.mxu0 0
        %3722 = vmatmul.mubr.bf16.gmra.mrb[0].mxu0 %v2943
        %v3723 = vpop.f32.mrb[0].mxu0
        %v3724 = vadd.f32 %v2171, %v3723
        %v3725 = vpop.f32.mrb[0].mxu0
        %v3726 = vpop.f32.mrb[0].mxu0
        %v3727 = vadd.f32 %v2171, %v3726
        %v3728 = vpop.f32.mrb[0].mxu0
        %3729 = vmatprep.mubr.bf16.mxu0 0
        %3730 = vmatmul.mubr.bf16.gmra.mrb[0].mxu0 %v2946
        %v3731 = vpop.f32.mrb[0].mxu0
        %v3732 = vadd.f32 %v2171, %v3731
        %v3733 = vpop.f32.mrb[0].mxu0
        %v3734 = vpop.f32.mrb[0].mxu0
        %v3735 = vadd.f32 %v2171, %v3734
        %v3736 = vpop.f32.mrb[0].mxu0
        %3737 = vmatprep.mubr.bf16.mxu0 0
        %3738 = vmatmul.mubr.bf16.gmra.mrb[0].mxu0 %v2949
        %v3739 = vpop.f32.mrb[0].mxu0
        %v3740 = vadd.f32 %v2171, %v3739
        %v3741 = vpop.f32.mrb[0].mxu0
        %v3742 = vpop.f32.mrb[0].mxu0
        %v3743 = vadd.f32 %v2171, %v3742
        %v3744 = vpop.f32.mrb[0].mxu0
        %3745 = vmatprep.mubr.bf16.mxu0 0
        %3746 = vmatmul.mubr.bf16.gmra.mrb[0].mxu0 %v2952
        %v3747 = vpop.f32.mrb[0].mxu0
        %v3748 = vadd.f32 %v2171, %v3747
        %v3749 = vpop.f32.mrb[0].mxu0
        %v3750 = vpop.f32.mrb[0].mxu0
        %v3751 = vadd.f32 %v2171, %v3750
        %v3752 = vpop.f32.mrb[0].mxu0
        %3753 = vmatprep.mubr.bf16.mxu0 0
        %3754 = vmatmul.mubr.bf16.gmra.mrb[0].mxu0 %v2955
        %v3755 = vpop.f32.mrb[0].mxu0
        %v3756 = vadd.f32 %v2171, %v3755
        %v3757 = vpop.f32.mrb[0].mxu0
        %v3758 = vpop.f32.mrb[0].mxu0
        %v3759 = vadd.f32 %v2171, %v3758
        %v3760 = vpop.f32.mrb[0].mxu0
        %3761 = vdwg.mxu0
        %v3762 = vmax.f32 %v2996, 0.0
        %v3763 = vmax.f32 %v2999, 0.0
        %v3764 = vmax.f32 %v3004, 0.0
        %v3765 = vmax.f32 %v3007, 0.0
        %v3766 = vmax.f32 %v3012, 0.0
        %v3767 = vmax.f32 %v3015, 0.0
        %v3768 = vmax.f32 %v3020, 0.0
        %v3769 = vmax.f32 %v3023, 0.0
        %v3770 = vmax.f32 %v3028, 0.0
        %v3771 = vmax.f32 %v3031, 0.0
        %v3772 = vmax.f32 %v3036, 0.0
        %v3773 = vmax.f32 %v3039, 0.0
        %v3774 = vmax.f32 %v3044, 0.0
        %v3775 = vmax.f32 %v3047, 0.0
        %v3776 = vmax.f32 %v3052, 0.0
        %v3777 = vmax.f32 %v3055, 0.0
        %v3778 = vmax.f32 %v3060, 0.0
        %v3779 = vmax.f32 %v3063, 0.0
        %v3780 = vmax.f32 %v3068, 0.0
        %v3781 = vmax.f32 %v3071, 0.0
        %v3782 = vmax.f32 %v3076, 0.0
        %v3783 = vmax.f32 %v3079, 0.0
        %v3784 = vmax.f32 %v3084, 0.0
        %v3785 = vmax.f32 %v3087, 0.0
        %v3786 = vmax.f32 %v3092, 0.0
        %v3787 = vmax.f32 %v3095, 0.0
        %v3788 = vmax.f32 %v3100, 0.0
        %v3789 = vmax.f32 %v3103, 0.0
        %v3790 = vmax.f32 %v3108, 0.0
        %v3791 = vmax.f32 %v3111, 0.0
        %v3792 = vmax.f32 %v3116, 0.0
        %v3793 = vmax.f32 %v3119, 0.0
        %v3794 = vmax.f32 %v3124, 0.0
        %v3795 = vmax.f32 %v3127, 0.0
        %v3796 = vmax.f32 %v3132, 0.0
        %v3797 = vmax.f32 %v3135, 0.0
        %v3798 = vmax.f32 %v3140, 0.0
        %v3799 = vmax.f32 %v3143, 0.0
        %v3800 = vmax.f32 %v3148, 0.0
        %v3801 = vmax.f32 %v3151, 0.0
        %v3802 = vmax.f32 %v3156, 0.0
        %v3803 = vmax.f32 %v3159, 0.0
        %v3804 = vmax.f32 %v3164, 0.0
        %v3805 = vmax.f32 %v3167, 0.0
        %v3806 = vmax.f32 %v3172, 0.0
        %v3807 = vmax.f32 %v3175, 0.0
        %v3808 = vmax.f32 %v3180, 0.0
        %v3809 = vmax.f32 %v3183, 0.0
        %v3810 = vmax.f32 %v3188, 0.0
        %v3811 = vmax.f32 %v3191, 0.0
        %v3812 = vmax.f32 %v3196, 0.0
        %v3813 = vmax.f32 %v3199, 0.0
        %v3814 = vmax.f32 %v3204, 0.0
        %v3815 = vmax.f32 %v3207, 0.0
        %v3816 = vmax.f32 %v3212, 0.0
        %v3817 = vmax.f32 %v3215, 0.0
        %v3818 = vmax.f32 %v3220, 0.0
        %v3819 = vmax.f32 %v3223, 0.0
        %v3820 = vmax.f32 %v3228, 0.0
        %v3821 = vmax.f32 %v3231, 0.0
        %v3822 = vmax.f32 %v3236, 0.0
        %v3823 = vmax.f32 %v3239, 0.0
        %v3824 = vmax.f32 %v3244, 0.0
        %v3825 = vmax.f32 %v3247, 0.0
        %v3826 = vmax.f32 %v3252, 0.0
        %v3827 = vmax.f32 %v3255, 0.0
        %v3828 = vmax.f32 %v3260, 0.0
        %v3829 = vmax.f32 %v3263, 0.0
        %v3830 = vmax.f32 %v3268, 0.0
        %v3831 = vmax.f32 %v3271, 0.0
        %v3832 = vmax.f32 %v3276, 0.0
        %v3833 = vmax.f32 %v3279, 0.0
        %v3834 = vmax.f32 %v3284, 0.0
        %v3835 = vmax.f32 %v3287, 0.0
        %v3836 = vmax.f32 %v3292, 0.0
        %v3837 = vmax.f32 %v3295, 0.0
        %v3838 = vmax.f32 %v3300, 0.0
        %v3839 = vmax.f32 %v3303, 0.0
        %v3840 = vmax.f32 %v3308, 0.0
        %v3841 = vmax.f32 %v3311, 0.0
        %v3842 = vmax.f32 %v3316, 0.0
        %v3843 = vmax.f32 %v3319, 0.0
        %v3844 = vmax.f32 %v3324, 0.0
        %v3845 = vmax.f32 %v3327, 0.0
        %v3846 = vmax.f32 %v3332, 0.0
        %v3847 = vmax.f32 %v3335, 0.0
        %v3848 = vmax.f32 %v3340, 0.0
        %v3849 = vmax.f32 %v3343, 0.0
        %v3850 = vmax.f32 %v3348, 0.0
        %v3851 = vmax.f32 %v3351, 0.0
        %v3852 = vmax.f32 %v3356, 0.0
        %v3853 = vmax.f32 %v3359, 0.0
        %v3854 = vmax.f32 %v3364, 0.0
        %v3855 = vmax.f32 %v3367, 0.0
        %v3856 = vmax.f32 %v3372, 0.0
        %v3857 = vmax.f32 %v3375, 0.0
        %v3858 = vmax.f32 %v3380, 0.0
        %v3859 = vmax.f32 %v3383, 0.0
        %v3860 = vmax.f32 %v3388, 0.0
        %v3861 = vmax.f32 %v3391, 0.0
        %v3862 = vmax.f32 %v3396, 0.0
        %v3863 = vmax.f32 %v3399, 0.0
        %v3864 = vmax.f32 %v3404, 0.0
        %v3865 = vmax.f32 %v3407, 0.0
        %v3866 = vmax.f32 %v3412, 0.0
        %v3867 = vmax.f32 %v3415, 0.0
        %v3868 = vmax.f32 %v3420, 0.0
        %v3869 = vmax.f32 %v3423, 0.0
        %v3870 = vmax.f32 %v3428, 0.0
        %v3871 = vmax.f32 %v3431, 0.0
        %v3872 = vmax.f32 %v3436, 0.0
        %v3873 = vmax.f32 %v3439, 0.0
        %v3874 = vmax.f32 %v3444, 0.0
        %v3875 = vmax.f32 %v3447, 0.0
        %v3876 = vmax.f32 %v3452, 0.0
        %v3877 = vmax.f32 %v3455, 0.0
        %v3878 = vmax.f32 %v3460, 0.0
        %v3879 = vmax.f32 %v3463, 0.0
        %v3880 = vmax.f32 %v3468, 0.0
        %v3881 = vmax.f32 %v3471, 0.0
        %v3882 = vmax.f32 %v3476, 0.0
        %v3883 = vmax.f32 %v3479, 0.0
        %v3884 = vmax.f32 %v3484, 0.0
        %v3885 = vmax.f32 %v3487, 0.0
        %v3886 = vmax.f32 %v3492, 0.0
        %v3887 = vmax.f32 %v3495, 0.0
        %v3888 = vmax.f32 %v3500, 0.0
        %v3889 = vmax.f32 %v3503, 0.0
        %v3890 = vmax.f32 %v3508, 0.0
        %v3891 = vmax.f32 %v3511, 0.0
        %v3892 = vmax.f32 %v3516, 0.0
        %v3893 = vmax.f32 %v3519, 0.0
        %v3894 = vmax.f32 %v3524, 0.0
        %v3895 = vmax.f32 %v3527, 0.0
        %v3896 = vmax.f32 %v3532, 0.0
        %v3897 = vmax.f32 %v3535, 0.0
        %v3898 = vmax.f32 %v3540, 0.0
        %v3899 = vmax.f32 %v3543, 0.0
        %v3900 = vmax.f32 %v3548, 0.0
        %v3901 = vmax.f32 %v3551, 0.0
        %v3902 = vmax.f32 %v3556, 0.0
        %v3903 = vmax.f32 %v3559, 0.0
        %v3904 = vmax.f32 %v3564, 0.0
        %v3905 = vmax.f32 %v3567, 0.0
        %v3906 = vmax.f32 %v3572, 0.0
        %v3907 = vmax.f32 %v3575, 0.0
        %v3908 = vmax.f32 %v3580, 0.0
        %v3909 = vmax.f32 %v3583, 0.0
        %v3910 = vmax.f32 %v3588, 0.0
        %v3911 = vmax.f32 %v3591, 0.0
        %v3912 = vmax.f32 %v3596, 0.0
        %v3913 = vmax.f32 %v3599, 0.0
        %v3914 = vmax.f32 %v3604, 0.0
        %v3915 = vmax.f32 %v3607, 0.0
        %v3916 = vmax.f32 %v3612, 0.0
        %v3917 = vmax.f32 %v3615, 0.0
        %v3918 = vmax.f32 %v3620, 0.0
        %v3919 = vmax.f32 %v3623, 0.0
        %v3920 = vmax.f32 %v3628, 0.0
        %v3921 = vmax.f32 %v3631, 0.0
        %v3922 = vmax.f32 %v3636, 0.0
        %v3923 = vmax.f32 %v3639, 0.0
        %v3924 = vmax.f32 %v3644, 0.0
        %v3925 = vmax.f32 %v3647, 0.0
        %v3926 = vmax.f32 %v3652, 0.0
        %v3927 = vmax.f32 %v3655, 0.0
        %v3928 = vmax.f32 %v3660, 0.0
        %v3929 = vmax.f32 %v3663, 0.0
        %v3930 = vmax.f32 %v3668, 0.0
        %v3931 = vmax.f32 %v3671, 0.0
        %v3932 = vmax.f32 %v3676, 0.0
        %v3933 = vmax.f32 %v3679, 0.0
        %v3934 = vmax.f32 %v3684, 0.0
        %v3935 = vmax.f32 %v3687, 0.0
        %v3936 = vmax.f32 %v3692, 0.0
        %v3937 = vmax.f32 %v3695, 0.0
        %v3938 = vmax.f32 %v3700, 0.0
        %v3939 = vmax.f32 %v3703, 0.0
        %v3940 = vmax.f32 %v3708, 0.0
        %v3941 = vmax.f32 %v3711, 0.0
        %v3942 = vmax.f32 %v3716, 0.0
        %v3943 = vmax.f32 %v3719, 0.0
        %v3944 = vmax.f32 %v3724, 0.0
        %v3945 = vmax.f32 %v3727, 0.0
        %v3946 = vmax.f32 %v3732, 0.0
        %v3947 = vmax.f32 %v3735, 0.0
        %v3948 = vmax.f32 %v3740, 0.0
        %v3949 = vmax.f32 %v3743, 0.0
        %v3950 = vmax.f32 %v3748, 0.0
        %v3951 = vmax.f32 %v3751, 0.0
        %v3952 = vmax.f32 %v3756, 0.0
        %v3953 = vmax.f32 %v3759, 0.0
        %v3954 = vadd.f32 %v3762, %v3763
        %v3955 = vadd.f32 %v3954, %v3764
        %v3956 = vadd.f32 %v3955, %v3765
        %v3957 = vadd.f32 %v3956, %v3766
        %v3958 = vadd.f32 %v3957, %v3767
        %v3959 = vadd.f32 %v3958, %v3768
        %v3960 = vadd.f32 %v3959, %v3769
        %v3961 = vrot.slane %v3960, 4
        %v3962 = vadd.f32 %v3960, %v3961
        %v3963 = vrot.slane %v3962, 2
        %v3964 = vadd.f32 %v3962, %v3963
        %v3965 = vrot.slane %v3964, 1
        %v3966 = vadd.f32 %v3964, %v3965
        %v3967 = vadd.f32 %v3770, %v3771
        %v3968 = vadd.f32 %v3967, %v3772
        %v3969 = vadd.f32 %v3968, %v3773
        %v3970 = vadd.f32 %v3969, %v3774
        %v3971 = vadd.f32 %v3970, %v3775
        %v3972 = vadd.f32 %v3971, %v3776
        %v3973 = vadd.f32 %v3972, %v3777
        %v3974 = vrot.slane %v3973, 4
        %v3975 = vadd.f32 %v3973, %v3974
        %v3976 = vrot.slane %v3975, 2
        %v3977 = vadd.f32 %v3975, %v3976
        %v3978 = vrot.slane %v3977, 1
        %v3979 = vadd.f32 %v3977, %v3978
        %v3980 = vadd.f32 %v3778, %v3779
        %v3981 = vadd.f32 %v3980, %v3780
        %v3982 = vadd.f32 %v3981, %v3781
        %v3983 = vadd.f32 %v3982, %v3782
        %v3984 = vadd.f32 %v3983, %v3783
        %v3985 = vadd.f32 %v3984, %v3784
        %v3986 = vadd.f32 %v3985, %v3785
        %v3987 = vrot.slane %v3986, 4
        %v3988 = vadd.f32 %v3986, %v3987
        %v3989 = vrot.slane %v3988, 2
        %v3990 = vadd.f32 %v3988, %v3989
        %v3991 = vrot.slane %v3990, 1
        %v3992 = vadd.f32 %v3990, %v3991
        %v3993 = vadd.f32 %v3786, %v3787
        %v3994 = vadd.f32 %v3993, %v3788
        %v3995 = vadd.f32 %v3994, %v3789
        %v3996 = vadd.f32 %v3995, %v3790
        %v3997 = vadd.f32 %v3996, %v3791
        %v3998 = vadd.f32 %v3997, %v3792
        %v3999 = vadd.f32 %v3998, %v3793
        %v4000 = vrot.slane %v3999, 4
        %v4001 = vadd.f32 %v3999, %v4000
        %v4002 = vrot.slane %v4001, 2
        %v4003 = vadd.f32 %v4001, %v4002
        %v4004 = vrot.slane %v4003, 1
        %v4005 = vadd.f32 %v4003, %v4004
        %v4006 = vadd.f32 %v3794, %v3795
        %v4007 = vadd.f32 %v4006, %v3796
        %v4008 = vadd.f32 %v4007, %v3797
        %v4009 = vadd.f32 %v4008, %v3798
        %v4010 = vadd.f32 %v4009, %v3799
        %v4011 = vadd.f32 %v4010, %v3800
        %v4012 = vadd.f32 %v4011, %v3801
        %v4013 = vrot.slane %v4012, 4
        %v4014 = vadd.f32 %v4012, %v4013
        %v4015 = vrot.slane %v4014, 2
        %v4016 = vadd.f32 %v4014, %v4015
        %v4017 = vrot.slane %v4016, 1
        %v4018 = vadd.f32 %v4016, %v4017
        %v4019 = vadd.f32 %v3802, %v3803
        %v4020 = vadd.f32 %v4019, %v3804
        %v4021 = vadd.f32 %v4020, %v3805
        %v4022 = vadd.f32 %v4021, %v3806
        %v4023 = vadd.f32 %v4022, %v3807
        %v4024 = vadd.f32 %v4023, %v3808
        %v4025 = vadd.f32 %v4024, %v3809
        %v4026 = vrot.slane %v4025, 4
        %v4027 = vadd.f32 %v4025, %v4026
        %v4028 = vrot.slane %v4027, 2
        %v4029 = vadd.f32 %v4027, %v4028
        %v4030 = vrot.slane %v4029, 1
        %v4031 = vadd.f32 %v4029, %v4030
        %v4032 = vadd.f32 %v3810, %v3811
        %v4033 = vadd.f32 %v4032, %v3812
        %v4034 = vadd.f32 %v4033, %v3813
        %v4035 = vadd.f32 %v4034, %v3814
        %v4036 = vadd.f32 %v4035, %v3815
        %v4037 = vadd.f32 %v4036, %v3816
        %v4038 = vadd.f32 %v4037, %v3817
        %v4039 = vrot.slane %v4038, 4
        %v4040 = vadd.f32 %v4038, %v4039
        %v4041 = vrot.slane %v4040, 2
        %v4042 = vadd.f32 %v4040, %v4041
        %v4043 = vrot.slane %v4042, 1
        %v4044 = vadd.f32 %v4042, %v4043
        %v4045 = vadd.f32 %v3818, %v3819
        %v4046 = vadd.f32 %v4045, %v3820
        %v4047 = vadd.f32 %v4046, %v3821
        %v4048 = vadd.f32 %v4047, %v3822
        %v4049 = vadd.f32 %v4048, %v3823
        %v4050 = vadd.f32 %v4049, %v3824
        %v4051 = vadd.f32 %v4050, %v3825
        %v4052 = vrot.slane %v4051, 4
        %v4053 = vadd.f32 %v4051, %v4052
        %v4054 = vrot.slane %v4053, 2
        %v4055 = vadd.f32 %v4053, %v4054
        %v4056 = vrot.slane %v4055, 1
        %v4057 = vadd.f32 %v4055, %v4056
        %v4058 = vadd.f32 %v3826, %v3827
        %v4059 = vadd.f32 %v4058, %v3828
        %v4060 = vadd.f32 %v4059, %v3829
        %v4061 = vadd.f32 %v4060, %v3830
        %v4062 = vadd.f32 %v4061, %v3831
        %v4063 = vadd.f32 %v4062, %v3832
        %v4064 = vadd.f32 %v4063, %v3833
        %v4065 = vrot.slane %v4064, 4
        %v4066 = vadd.f32 %v4064, %v4065
        %v4067 = vrot.slane %v4066, 2
        %v4068 = vadd.f32 %v4066, %v4067
        %v4069 = vrot.slane %v4068, 1
        %v4070 = vadd.f32 %v4068, %v4069
        %v4071 = vadd.f32 %v3834, %v3835
        %v4072 = vadd.f32 %v4071, %v3836
        %v4073 = vadd.f32 %v4072, %v3837
        %v4074 = vadd.f32 %v4073, %v3838
        %v4075 = vadd.f32 %v4074, %v3839
        %v4076 = vadd.f32 %v4075, %v3840
        %v4077 = vadd.f32 %v4076, %v3841
        %v4078 = vrot.slane %v4077, 4
        %v4079 = vadd.f32 %v4077, %v4078
        %v4080 = vrot.slane %v4079, 2
        %v4081 = vadd.f32 %v4079, %v4080
        %v4082 = vrot.slane %v4081, 1
        %v4083 = vadd.f32 %v4081, %v4082
        %v4084 = vadd.f32 %v3842, %v3843
        %v4085 = vadd.f32 %v4084, %v3844
        %v4086 = vadd.f32 %v4085, %v3845
        %v4087 = vadd.f32 %v4086, %v3846
        %v4088 = vadd.f32 %v4087, %v3847
        %v4089 = vadd.f32 %v4088, %v3848
        %v4090 = vadd.f32 %v4089, %v3849
        %v4091 = vrot.slane %v4090, 4
        %v4092 = vadd.f32 %v4090, %v4091
        %v4093 = vrot.slane %v4092, 2
        %v4094 = vadd.f32 %v4092, %v4093
        %v4095 = vrot.slane %v4094, 1
        %v4096 = vadd.f32 %v4094, %v4095
        %v4097 = vadd.f32 %v3850, %v3851
        %v4098 = vadd.f32 %v4097, %v3852
        %v4099 = vadd.f32 %v4098, %v3853
        %v4100 = vadd.f32 %v4099, %v3854
        %v4101 = vadd.f32 %v4100, %v3855
        %v4102 = vadd.f32 %v4101, %v3856
        %v4103 = vadd.f32 %v4102, %v3857
        %v4104 = vrot.slane %v4103, 4
        %v4105 = vadd.f32 %v4103, %v4104
        %v4106 = vrot.slane %v4105, 2
        %v4107 = vadd.f32 %v4105, %v4106
        %v4108 = vrot.slane %v4107, 1
        %v4109 = vadd.f32 %v4107, %v4108
        %v4110 = vadd.f32 %v3858, %v3859
        %v4111 = vadd.f32 %v4110, %v3860
        %v4112 = vadd.f32 %v4111, %v3861
        %v4113 = vadd.f32 %v4112, %v3862
        %v4114 = vadd.f32 %v4113, %v3863
        %v4115 = vadd.f32 %v4114, %v3864
        %v4116 = vadd.f32 %v4115, %v3865
        %v4117 = vrot.slane %v4116, 4
        %v4118 = vadd.f32 %v4116, %v4117
        %v4119 = vrot.slane %v4118, 2
        %v4120 = vadd.f32 %v4118, %v4119
        %v4121 = vrot.slane %v4120, 1
        %v4122 = vadd.f32 %v4120, %v4121
        %v4123 = vadd.f32 %v3866, %v3867
        %v4124 = vadd.f32 %v4123, %v3868
        %v4125 = vadd.f32 %v4124, %v3869
        %v4126 = vadd.f32 %v4125, %v3870
        %v4127 = vadd.f32 %v4126, %v3871
        %v4128 = vadd.f32 %v4127, %v3872
        %v4129 = vadd.f32 %v4128, %v3873
        %v4130 = vrot.slane %v4129, 4
        %v4131 = vadd.f32 %v4129, %v4130
        %v4132 = vrot.slane %v4131, 2
        %v4133 = vadd.f32 %v4131, %v4132
        %v4134 = vrot.slane %v4133, 1
        %v4135 = vadd.f32 %v4133, %v4134
        %v4136 = vadd.f32 %v3874, %v3875
        %v4137 = vadd.f32 %v4136, %v3876
        %v4138 = vadd.f32 %v4137, %v3877
        %v4139 = vadd.f32 %v4138, %v3878
        %v4140 = vadd.f32 %v4139, %v3879
        %v4141 = vadd.f32 %v4140, %v3880
        %v4142 = vadd.f32 %v4141, %v3881
        %v4143 = vrot.slane %v4142, 4
        %v4144 = vadd.f32 %v4142, %v4143
        %v4145 = vrot.slane %v4144, 2
        %v4146 = vadd.f32 %v4144, %v4145
        %v4147 = vrot.slane %v4146, 1
        %v4148 = vadd.f32 %v4146, %v4147
        %v4149 = vadd.f32 %v3882, %v3883
        %v4150 = vadd.f32 %v4149, %v3884
        %v4151 = vadd.f32 %v4150, %v3885
        %v4152 = vadd.f32 %v4151, %v3886
        %v4153 = vadd.f32 %v4152, %v3887
        %v4154 = vadd.f32 %v4153, %v3888
        %v4155 = vadd.f32 %v4154, %v3889
        %v4156 = vrot.slane %v4155, 4
        %v4157 = vadd.f32 %v4155, %v4156
        %v4158 = vrot.slane %v4157, 2
        %v4159 = vadd.f32 %v4157, %v4158
        %v4160 = vrot.slane %v4159, 1
        %v4161 = vadd.f32 %v4159, %v4160
        %v4162 = vadd.f32 %v3890, %v3891
        %v4163 = vadd.f32 %v4162, %v3892
        %v4164 = vadd.f32 %v4163, %v3893
        %v4165 = vadd.f32 %v4164, %v3894
        %v4166 = vadd.f32 %v4165, %v3895
        %v4167 = vadd.f32 %v4166, %v3896
        %v4168 = vadd.f32 %v4167, %v3897
        %v4169 = vrot.slane %v4168, 4
        %v4170 = vadd.f32 %v4168, %v4169
        %v4171 = vrot.slane %v4170, 2
        %v4172 = vadd.f32 %v4170, %v4171
        %v4173 = vrot.slane %v4172, 1
        %v4174 = vadd.f32 %v4172, %v4173
        %v4175 = vadd.f32 %v3898, %v3899
        %v4176 = vadd.f32 %v4175, %v3900
        %v4177 = vadd.f32 %v4176, %v3901
        %v4178 = vadd.f32 %v4177, %v3902
        %v4179 = vadd.f32 %v4178, %v3903
        %v4180 = vadd.f32 %v4179, %v3904
        %v4181 = vadd.f32 %v4180, %v3905
        %v4182 = vrot.slane %v4181, 4
        %v4183 = vadd.f32 %v4181, %v4182
        %v4184 = vrot.slane %v4183, 2
        %v4185 = vadd.f32 %v4183, %v4184
        %v4186 = vrot.slane %v4185, 1
        %v4187 = vadd.f32 %v4185, %v4186
        %v4188 = vadd.f32 %v3906, %v3907
        %v4189 = vadd.f32 %v4188, %v3908
        %v4190 = vadd.f32 %v4189, %v3909
        %v4191 = vadd.f32 %v4190, %v3910
        %v4192 = vadd.f32 %v4191, %v3911
        %v4193 = vadd.f32 %v4192, %v3912
        %v4194 = vadd.f32 %v4193, %v3913
        %v4195 = vrot.slane %v4194, 4
        %v4196 = vadd.f32 %v4194, %v4195
        %v4197 = vrot.slane %v4196, 2
        %v4198 = vadd.f32 %v4196, %v4197
        %v4199 = vrot.slane %v4198, 1
        %v4200 = vadd.f32 %v4198, %v4199
        %v4201 = vadd.f32 %v3914, %v3915
        %v4202 = vadd.f32 %v4201, %v3916
        %v4203 = vadd.f32 %v4202, %v3917
        %v4204 = vadd.f32 %v4203, %v3918
        %v4205 = vadd.f32 %v4204, %v3919
        %v4206 = vadd.f32 %v4205, %v3920
        %v4207 = vadd.f32 %v4206, %v3921
        %v4208 = vrot.slane %v4207, 4
        %v4209 = vadd.f32 %v4207, %v4208
        %v4210 = vrot.slane %v4209, 2
        %v4211 = vadd.f32 %v4209, %v4210
        %v4212 = vrot.slane %v4211, 1
        %v4213 = vadd.f32 %v4211, %v4212
        %v4214 = vadd.f32 %v3922, %v3923
        %v4215 = vadd.f32 %v4214, %v3924
        %v4216 = vadd.f32 %v4215, %v3925
        %v4217 = vadd.f32 %v4216, %v3926
        %v4218 = vadd.f32 %v4217, %v3927
        %v4219 = vadd.f32 %v4218, %v3928
        %v4220 = vadd.f32 %v4219, %v3929
        %v4221 = vrot.slane %v4220, 4
        %v4222 = vadd.f32 %v4220, %v4221
        %v4223 = vrot.slane %v4222, 2
        %v4224 = vadd.f32 %v4222, %v4223
        %v4225 = vrot.slane %v4224, 1
        %v4226 = vadd.f32 %v4224, %v4225
        %v4227 = vadd.f32 %v3930, %v3931
        %v4228 = vadd.f32 %v4227, %v3932
        %v4229 = vadd.f32 %v4228, %v3933
        %v4230 = vadd.f32 %v4229, %v3934
        %v4231 = vadd.f32 %v4230, %v3935
        %v4232 = vadd.f32 %v4231, %v3936
        %v4233 = vadd.f32 %v4232, %v3937
        %v4234 = vrot.slane %v4233, 4
        %v4235 = vadd.f32 %v4233, %v4234
        %v4236 = vrot.slane %v4235, 2
        %v4237 = vadd.f32 %v4235, %v4236
        %v4238 = vrot.slane %v4237, 1
        %v4239 = vadd.f32 %v4237, %v4238
        %v4240 = vadd.f32 %v3938, %v3939
        %v4241 = vadd.f32 %v4240, %v3940
        %v4242 = vadd.f32 %v4241, %v3941
        %v4243 = vadd.f32 %v4242, %v3942
        %v4244 = vadd.f32 %v4243, %v3943
        %v4245 = vadd.f32 %v4244, %v3944
        %v4246 = vadd.f32 %v4245, %v3945
        %v4247 = vrot.slane %v4246, 4
        %v4248 = vadd.f32 %v4246, %v4247
        %v4249 = vrot.slane %v4248, 2
        %v4250 = vadd.f32 %v4248, %v4249
        %v4251 = vrot.slane %v4250, 1
        %v4252 = vadd.f32 %v4250, %v4251
        %v4253 = vadd.f32 %v3946, %v3947
        %v4254 = vadd.f32 %v4253, %v3948
        %v4255 = vadd.f32 %v4254, %v3949
        %v4256 = vadd.f32 %v4255, %v3950
        %v4257 = vadd.f32 %v4256, %v3951
        %v4258 = vadd.f32 %v4257, %v3952
        %v4259 = vadd.f32 %v4258, %v3953
        %v4260 = vrot.slane %v4259, 4
        %v4261 = vadd.f32 %v4259, %v4260
        %v4262 = vrot.slane %v4261, 2
        %v4263 = vadd.f32 %v4261, %v4262
        %v4264 = vrot.slane %v4263, 1
        %v4265 = vadd.f32 %v4263, %v4264
        %v4266 = vpack.c.bf16 %v3966, %v3966
        %v4267 = vpack.c.bf16 %v3979, %v3979
        %v4268 = vpack.c.bf16 %v3992, %v3992
        %v4269 = vpack.c.bf16 %v4005, %v4005
        %v4270 = vpack.c.bf16 %v4018, %v4018
        %v4271 = vpack.c.bf16 %v4031, %v4031
        %v4272 = vpack.c.bf16 %v4044, %v4044
        %v4273 = vpack.c.bf16 %v4057, %v4057
        %v4274 = vpack.c.bf16 %v4070, %v4070
        %v4275 = vpack.c.bf16 %v4083, %v4083
        %v4276 = vpack.c.bf16 %v4096, %v4096
        %v4277 = vpack.c.bf16 %v4109, %v4109
        %v4278 = vpack.c.bf16 %v4122, %v4122
        %v4279 = vpack.c.bf16 %v4135, %v4135
        %v4280 = vpack.c.bf16 %v4148, %v4148
        %v4281 = vpack.c.bf16 %v4161, %v4161
        %v4282 = vpack.c.bf16 %v4174, %v4174
        %v4283 = vpack.c.bf16 %v4187, %v4187
        %v4284 = vpack.c.bf16 %v4200, %v4200
        %v4285 = vpack.c.bf16 %v4213, %v4213
        %v4286 = vpack.c.bf16 %v4226, %v4226
        %v4287 = vpack.c.bf16 %v4239, %v4239
        %v4288 = vpack.c.bf16 %v4252, %v4252
        %v4289 = vpack.c.bf16 %v4265, %v4265
        %v4290 = vld [vmem:[%s9] sm:$0xf]
        %v4291 = vld [vmem:[%s9 + $0x4] sm:$0xf]
        %v4292 = vld [vmem:[%s9 + $0x8] sm:$0xf]
        %v4293 = vld [vmem:[%s9 + $0xc] sm:$0xf]
        %v4294 = vld [vmem:[%s9 + $0x10] sm:$0xf]
        %v4295 = vld [vmem:[%s9 + $0x14] sm:$0xf]
        %v4296 = vld [vmem:[%s9 + $0x18] sm:$0xf]
        %v4297 = vld [vmem:[%s9 + $0x1c] sm:$0xf]
        %v4298 = vld [vmem:[%s9 + $0x20] sm:$0xf]
        %v4299 = vld [vmem:[%s9 + $0x24] sm:$0xf]
        %v4300 = vld [vmem:[%s9 + $0x28] sm:$0xf]
        %v4301 = vld [vmem:[%s9 + $0x2c] sm:$0xf]
        %v4302 = vld [vmem:[%s9 + $0x30] sm:$0xf]
        %v4303 = vld [vmem:[%s9 + $0x34] sm:$0xf]
        %v4304 = vld [vmem:[%s9 + $0x38] sm:$0xf]
        %v4305 = vld [vmem:[%s9 + $0x3c] sm:$0xf]
        %v4306 = vld [vmem:[%s10] sm:$0x1]
        %v4308 = vlaneseq
        %v4309 = vshrl.u32 %v4308, 7
        %v4310 = vsub.s32 0, %v4309
        %v4311 = vrot.slane %v4306, %v4310
        %v4337 = vunpack.c.l.b16 %v4266
        %v4338 = vunpack.c.l.b16 %v4267
        %v4339 = vunpack.c.l.b16 %v4268
        %v4340 = vunpack.c.l.b16 %v4269
        %v4341 = vunpack.c.l.b16 %v4270
        %v4342 = vunpack.c.l.b16 %v4271
        %v4343 = vunpack.c.l.b16 %v4272
        %v4344 = vunpack.c.l.b16 %v4273
        %v4345 = vunpack.c.l.b16 %v4274
        %v4346 = vunpack.c.l.b16 %v4275
        %v4347 = vunpack.c.l.b16 %v4276
        %v4348 = vunpack.c.l.b16 %v4277
        %v4349 = vunpack.c.l.b16 %v4278
        %v4350 = vunpack.c.l.b16 %v4279
        %v4351 = vunpack.c.l.b16 %v4280
        %v4352 = vunpack.c.l.b16 %v4281
        %v4353 = vunpack.c.l.b16 %v4282
        %v4354 = vunpack.c.l.b16 %v4283
        %v4355 = vunpack.c.l.b16 %v4284
        %v4356 = vunpack.c.l.b16 %v4285
        %v4357 = vunpack.c.l.b16 %v4286
        %v4358 = vunpack.c.l.b16 %v4287
        %v4359 = vunpack.c.l.b16 %v4288
        %v4360 = vunpack.c.l.b16 %v4289
        %vm4361 = vcmask 1041409
        %v4362 = vsel %vm4361, %v4338, %v4337
        %vm4363 = vcmask 1042434
        %v4364 = vsel %vm4363, %v4339, %v4362
        %vm4365 = vcmask 1043459
        %v4366 = vsel %vm4365, %v4340, %v4364
        %vm4367 = vcmask 1044484
        %v4368 = vsel %vm4367, %v4341, %v4366
        %vm4369 = vcmask 1045509
        %v4370 = vsel %vm4369, %v4342, %v4368
        %vm4371 = vcmask 1046534
        %v4372 = vsel %vm4371, %v4343, %v4370
        %vm4373 = vcmask 1047559
        %v4374 = vsel %vm4373, %v4344, %v4372
        %v4375 = vsel %vm4361, %v4346, %v4345
        %v4376 = vsel %vm4363, %v4347, %v4375
        %v4377 = vsel %vm4365, %v4348, %v4376
        %v4378 = vsel %vm4367, %v4349, %v4377
        %v4379 = vsel %vm4369, %v4350, %v4378
        %v4380 = vsel %vm4371, %v4351, %v4379
        %v4381 = vsel %vm4373, %v4352, %v4380
        %v4382 = vsel %vm4361, %v4354, %v4353
        %v4383 = vsel %vm4363, %v4355, %v4382
        %v4384 = vsel %vm4365, %v4356, %v4383
        %v4385 = vsel %vm4367, %v4357, %v4384
        %v4386 = vsel %vm4369, %v4358, %v4385
        %v4387 = vsel %vm4371, %v4359, %v4386
        %v4388 = vsel %vm4373, %v4360, %v4387
        %v4389 = vpack.c.b16 %v4381, %v4374
        %v4390 = vpack.c.b16 %v4388, %v4388
        %v4409 = vunpack.c.l.b16 %v4290
        %v4410 = vunpack.c.l.b16 %v4291
        %v4411 = vunpack.c.l.b16 %v4292
        %v4412 = vunpack.c.l.b16 %v4293
        %v4413 = vunpack.c.l.b16 %v4294
        %v4414 = vunpack.c.l.b16 %v4295
        %v4415 = vunpack.c.l.b16 %v4296
        %v4416 = vunpack.c.l.b16 %v4297
        %v4417 = vunpack.c.l.b16 %v4298
        %v4418 = vunpack.c.l.b16 %v4299
        %v4419 = vunpack.c.l.b16 %v4300
        %v4420 = vunpack.c.l.b16 %v4301
        %v4421 = vunpack.c.l.b16 %v4302
        %v4422 = vunpack.c.l.b16 %v4303
        %v4423 = vunpack.c.l.b16 %v4304
        %v4424 = vunpack.c.l.b16 %v4305
        %v4425 = vpack.c.b16 %v4410, %v4409
        %v4426 = vpack.c.b16 %v4412, %v4411
        %v4427 = vpack.c.b16 %v4414, %v4413
        %v4428 = vpack.c.b16 %v4416, %v4415
        %v4429 = vpack.c.b16 %v4418, %v4417
        %v4430 = vpack.c.b16 %v4420, %v4419
        %v4431 = vpack.c.b16 %v4422, %v4421
        %v4432 = vpack.c.b16 %v4424, %v4423
        %4441 = vmatprep.subr.bf16.mxu0 0
        %4442 = vmatpush1.bf16.msra.mxu0 %v4425
        %4443 = vmatprep.subr.bf16.mxu0 0
        %4444 = vmatpush1.bf16.msra.mxu0 %v4426
        %4445 = vmatprep.subr.bf16.mxu0 0
        %4446 = vmatpush1.bf16.msra.mxu0 %v4427
        %4447 = vmatprep.subr.bf16.mxu0 0
        %4448 = vmatpush1.bf16.msra.mxu0 %v4428
        %4449 = vmatprep.subr.bf16.mxu0 0
        %4450 = vmatpush1.bf16.msra.mxu0 %v4429
        %4451 = vmatprep.subr.bf16.mxu0 0
        %4452 = vmatpush1.bf16.msra.mxu0 %v4430
        %4453 = vmatprep.subr.bf16.mxu0 0
        %4454 = vmatpush1.bf16.msra.mxu0 %v4431
        %4455 = vmatprep.subr.bf16.mxu0 0
        %4456 = vmatpush1.bf16.msra.mxu0 %v4432
        %4457 = vmatprep.subr.bf16.mxu0 0
        %4458 = vmatpush1.bf16.msra.mxu0 0
        %4459 = vmatprep.subr.bf16.mxu0 0
        %4460 = vmatpush1.bf16.msra.mxu0 0
        %4461 = vmatprep.subr.bf16.mxu0 0
        %4462 = vmatpush1.bf16.msra.mxu0 0
        %4463 = vmatprep.subr.bf16.mxu0 0
        %4464 = vmatpush1.bf16.msra.mxu0 0
        %4465 = vmatprep.subr.bf16.mxu0 0
        %4466 = vmatpush1.bf16.msra.mxu0 0
        %4467 = vmatprep.subr.bf16.mxu0 0
        %4468 = vmatpush1.bf16.msra.mxu0 0
        %4469 = vmatprep.subr.bf16.mxu0 0
        %4470 = vmatpush1.bf16.msra.mxu0 0
        %4471 = vmatprep.subr.bf16.mxu0 0
        %4472 = vmatpush1.bf16.msra.mxu0 0
        %4473 = vmatprep.mubr.bf16.mxu0 0
        %4474 = vmatmul.mubr.bf16.gmra.mrb[0].mxu0 %v4389
        %v4475 = vpop.f32.mrb[0].mxu0
        %v4476 = vadd.f32 %v4311, %v4475
        %v4477 = vpop.f32.mrb[0].mxu0
        %v4478 = vpop.f32.mrb[0].mxu0
        %v4479 = vadd.f32 %v4311, %v4478
        %v4480 = vpop.f32.mrb[0].mxu0
        %4481 = vmatprep.mubr.bf16.mxu0 0
        %4482 = vmatmul.mubr.bf16.gmra.mrb[0].mxu0 %v4390
        %v4483 = vpop.f32.mrb[0].mxu0
        %v4484 = vadd.f32 %v4311, %v4483
        %v4485 = vpop.f32.mrb[0].mxu0
        %v4486 = vpop.f32.mrb[0].mxu0
        %v4487 = vpop.f32.mrb[0].mxu0
        %4488 = vdwg.mxu0
        %v4489 = vmul.f32 %v1964, %v4476
        %4490 = vadd.xlane.f32.xlu0 %v4489
        %v4491 = vpop.xlane.xlu0 %4490
        %v4492 = vmul.f32 %v1964, %v4479
        %4493 = vadd.xlane.f32.xlu0 %v4492
        %v4494 = vpop.xlane.xlu0 %4493
        %v4495 = vmul.f32 %v1964, %v4484
        %4496 = vadd.xlane.f32.xlu0 %v4495
        %v4497 = vpop.xlane.xlu0 %4496
        %vm4498 = vcmask 7168
        %v4499 = vsel %vm4498, %v4491, %v4494
        %vm4500 = vcmask 15360
        %v4501 = vsel %vm4500, %v4499, %v4497
        %vm4502 = vcmask 23552
        %4503 = vst.msk [vmem:[%s1280] sm:$0xff] %vm4502, %v4501
        %p4504 = scmp.lt.s32.totalorder %s22, 1
        %s4505 = scalar_select %p4504, %s22, 1
        %s4506 = smul.addr %s4505, 8
        %s4507 = scalar_lea.vmem %s11, %s4506
        // Predicated region
        $region147: #{tpu_custom_call.1} parent=137 // pred_check
          %p4508 = pneg %p281
        $region148: #{tpu_custom_call.1} parent=137 // pred_check_branch
          %4510 = sbr.rel (%p4508) target = $region150
        $region149: #{tpu_custom_call.1} parent=137 // pred_region
          _
        $region150: #{tpu_custom_call.1} parent=137 // pred_fallthru
          _
      $region138: #{tpu_custom_call.1} parent=5 // pred_fallthru
        _
      %p4511 = scmp.le.s32.totalorder 2, %s17
      // Predicated region
      $region151: #{tpu_custom_call.1} parent=5 // pred_check
        %p4512 = pneg %p4511
      $region152: #{tpu_custom_call.1} parent=5 // pred_check_branch
        %4514 = sbr.rel (%p4512) target = $region154
      $region153: #{tpu_custom_call.1} parent=5 // pred_region
        %s4515 = ssub.s32 %s17, 2
        // Predicated region
        $region155: #{tpu_custom_call.1} parent=153 // pred_check
          %p4516 = pneg %p287
        $region156: #{tpu_custom_call.1} parent=153 // pred_check_branch
          %4518 = sbr.rel (%p4516) target = $region158
        $region157: #{tpu_custom_call.1} parent=153 // pred_region
          %p4519 = scmp.lt.s32.totalorder %s23, 1
          %s4520 = scalar_select %p4519, %s23, 1
          %s4521 = smul.addr %s4520, 8
          %s4522 = scalar_lea.vmem %s11, %s4521
        $region158: #{tpu_custom_call.1} parent=153 // pred_fallthru
          _
      $region154: #{tpu_custom_call.1} parent=5 // pred_fallthru
        _
    $region6: #{tpu_custom_call.1} parent=1 // loop_footer
      %s21 = sadd.s32 1, %s17
    $region7: #{tpu_custom_call.1} parent=1 // loop_footer_branch
      %16 = sbr.rel target = $region3
    $region8: #{tpu_custom_call.1} parent=1 // loop_exit
      _

</llo_original>
